<compile_context>
chip_gen: v6e
topology: v6e:2x2x1
jax: 0.10.0
libtpu: 0.0.40
codegen_flags: <defaults>
</compile_context>

<pallas_src>
import jax
import jax.numpy as jnp
from jax import lax
from jax.experimental import pallas as pl
from jax.experimental.pallas import tpu as pltpu


def _pooling_kernel(ids_ref, emb_ref, w_ref, b_ref, o_ref):
    """Fused one-hot embedding gather + running max over seq + linear.

    ids_ref : (S, block_b, 1) int32    -- token ids for this batch tile (seq-major)
    emb_ref : (V, E)  table dtype      -- embedding table, VMEM resident, Buffered(1)
    w_ref   : (E, Op) float32          -- linear weight (transposed, lane-padded)
    b_ref   : (1, Op) float32          -- linear bias (lane-padded)
    o_ref   : (block_b, Op) float32    -- output tile
    """
    seq_len, block_b, _ = ids_ref.shape
    vocab, emb_dim = emb_ref.shape
    gather_dtype = emb_ref.dtype

    # Loop-invariant vocab iota along lanes (broadcasts are not CSE'd -> hoist).
    vocab_iota = lax.broadcasted_iota(jnp.int32, (block_b, vocab), 1)

    def seq_body(s, acc):
        ids_s = ids_ref[s]                                   # (block_b, 1) int32
        onehot = (ids_s == vocab_iota).astype(gather_dtype)  # (block_b, V), dense
        # MXU gather: exactly one 1.0 per row -> rows[b, :] == emb[ids[b, s], :].
        # HIGHEST keeps the row-select exact w.r.t. the f32 table regardless of the
        # default matmul precision; with a bf16 table it is a plain bf16 matmul.
        rows = jnp.dot(onehot, emb_ref[...],
                       preferred_element_type=jnp.float32,
                       precision=lax.Precision.HIGHEST)      # (block_b, E) f32
        return jnp.maximum(acc, rows)                        # VPU, full vregs

    acc0 = jnp.full((block_b, emb_dim), -jnp.inf, jnp.float32)
    pooled = lax.fori_loop(0, seq_len, seq_body, acc0, unroll=min(8, seq_len))

    # Finalize once per batch tile: MXU matmul + bias, lane-dense store.
    out = jnp.dot(pooled, w_ref[...], preferred_element_type=jnp.float32)
    o_ref[...] = (out + b_ref[...]).astype(o_ref.dtype)


def pooling_layer_forward(x_ids, emb_table, lin_w, lin_b, *,
                          block_b=None, table_dtype=None):
    """Equivalent of PoolingLayer.forward.

    x_ids:     (B, S) int32 token ids
    emb_table: (V, E) float32 embedding weights
    lin_w:     (O, E) float32 linear weight (PyTorch convention)
    lin_b:     (O,)   float32 linear bias
    returns:   (B, O) float32
    """
    B, S = x_ids.shape
    V, E = emb_table.shape
    O, E2 = lin_w.shape
    assert E2 == E

    # f32 table keeps exact module semantics; jnp.bfloat16 halves the resident
    # footprint / gather bandwidth (recommended for large vocabs on v6e/v7x).
    if table_dtype is None:
        table_dtype = emb_table.dtype

    # Lane-dense output: pad the linear output dim up to a multiple of 128.
    Op = max(128, ((O + 127) // 128) * 128)
    w_t = jnp.zeros((E, Op), jnp.float32).at[:, :O].set(lin_w.T.astype(jnp.float32))
    b2 = jnp.zeros((1, Op), jnp.float32).at[:, :O].set(
        lin_b.astype(jnp.float32)[None, :])

    # Batch tiling only (the seq loop lives inside the kernel).  128 rows feed the
    # MXU nicely; on v7x prefer B // block_b even so both TensorCores get tiles.
    if block_b is None:
        block_b = 128 if B % 128 == 0 else B
    assert B % block_b == 0 and (block_b == B or block_b % 8 == 0), \
        "block_b must divide B and be == B or a multiple of 8"
    grid = (B // block_b,)

    # ids laid out (S, B, 1): one dynamic leading-axis index per seq step in-kernel.
    ids3 = x_ids.astype(jnp.int32).T[:, :, None]
    emb = emb_table.astype(table_dtype)

    # --- VMEM accounting (single-buffered residents + double-buffered ids/output
    #     blocks + in-kernel working values), budget from the real chip capacity. ---
    tbl_item = jnp.dtype(table_dtype).itemsize
    resident = V * E * tbl_item + (E * Op + Op) * 4           # Buffered(1) operands
    pipelined = 2 * S * block_b * 4 + 2 * block_b * Op * 4    # ids + out, 2 buffers each
    working = block_b * (V * tbl_item + 3 * E * 4 + Op * 4)   # onehot + rows/acc + out
    est = resident + pipelined + working
    try:
        vmem_cap = int(pltpu.get_tpu_info().vmem_capacity_bytes)
    except Exception:  # pragma: no cover -- conservative fallback, fits every gen
        vmem_cap = 32 * 1024 * 1024
    assert est <= int(0.8 * vmem_cap), (
        f"estimated VMEM use {est} B exceeds budget (cap {vmem_cap} B); "
        "use table_dtype=bfloat16 or a vocab-chunked / manual-DMA gather")
    vmem_limit = int(min(vmem_cap, max(8 * 1024 * 1024, int(1.25 * est))))

    def _call(single_buffer_resident):
        resident_mode = pl.Buffered(1) if single_buffer_resident else None
        in_specs = [
            pl.BlockSpec((S, block_b, 1), lambda bi: (0, bi, 0)),   # ids (per tile)
            pl.BlockSpec((V, E), lambda bi: (0, 0), pipeline_mode=resident_mode),
            pl.BlockSpec((E, Op), lambda bi: (0, 0), pipeline_mode=resident_mode),
            pl.BlockSpec((1, Op), lambda bi: (0, 0), pipeline_mode=resident_mode),
        ]
        return pl.pallas_call(
            _pooling_kernel,
            out_shape=jax.ShapeDtypeStruct((B, Op), jnp.float32),
            grid=grid,
            in_specs=in_specs,
            out_specs=pl.BlockSpec((block_b, Op), lambda bi: (bi, 0)),
            compiler_params=pltpu.CompilerParams(
                dimension_semantics=("parallel",),
                vmem_limit_bytes=vmem_limit,
            ),
        )(ids3, emb, w_t, b2)

    try:
        out_padded = _call(True)       # single-buffer the constant-index residents
    except Exception:                  # pragma: no cover -- jax without Buffered(1)
        out_padded = _call(False)

    return out_padded[:, :O]


if __name__ == "__main__":
    # Small, deterministic config consistent with the module's __init__.
    vocab_size = 32
    embedding_size = 32
    output_size = 16
    batch = 16
    seq = 8

    key = jax.random.PRNGKey(0)
    k_emb, k_w, k_b, k_x = jax.random.split(key, 4)

    emb_table = jax.random.normal(k_emb, (vocab_size, embedding_size), dtype=jnp.float32)
    bound = 1.0 / (embedding_size ** 0.5)
    lin_w = jax.random.uniform(k_w, (output_size, embedding_size),
                               minval=-bound, maxval=bound, dtype=jnp.float32)
    lin_b = jax.random.uniform(k_b, (output_size,),
                               minval=-bound, maxval=bound, dtype=jnp.float32)

    x_ids = jax.random.randint(k_x, (batch, seq), 0, vocab_size, dtype=jnp.int32)

    # block_b=8 -> grid (2,): exercises the batch-parallel axis with multiple tiles.
    out = pooling_layer_forward(x_ids, emb_table, lin_w, lin_b, block_b=8)
    out = jax.block_until_ready(out)

    # Pure-JAX reference of the same semantics.
    ref = jnp.max(jnp.take(emb_table, x_ids, axis=0), axis=1) @ lin_w.T + lin_b
    assert out.shape == (batch, output_size)
    assert jnp.allclose(out, ref, atol=1e-5, rtol=1e-5), \
        float(jnp.max(jnp.abs(out - ref)))

    print("KERNEL_OK")
</pallas_src>

<mosaic_0001>
module attributes {stable_mosaic.version = 11 : i64} {
  func.func @_pooling_kernel(%arg0: i32, %arg1: memref<8x8x1xi32, #tpu.memory_space<vmem>>, %arg2: memref<32x32xf32, #tpu.memory_space<vmem>>, %arg3: memref<32x128xf32, #tpu.memory_space<vmem>>, %arg4: memref<1x128xf32, #tpu.memory_space<vmem>>, %arg5: memref<8x128xf32, #tpu.memory_space<vmem>>) attributes {dimension_semantics = [#tpu.dimension_semantics<parallel>], iteration_bounds = array<i64: 2>, scalar_prefetch = 0 : i64, scratch_operands = 0 : i64, tpu.core_type = #tpu.core_type<tc>, window_params = [{transform_indices = @transform_0, window_bounds = array<i64: 8, 8, 1>}, {pipeline_mode = #tpu.pipeline_mode<synchronous>, transform_indices = @transform_1, window_bounds = array<i64: 32, 32>}, {pipeline_mode = #tpu.pipeline_mode<synchronous>, transform_indices = @transform_2, window_bounds = array<i64: 32, 128>}, {pipeline_mode = #tpu.pipeline_mode<synchronous>, transform_indices = @transform_3, window_bounds = array<i64: 1, 128>}, {transform_indices = @transform_4, window_bounds = array<i64: 8, 128>}]} {
    %0 = tpu.iota {dimensions = array<i32: 1>} : vector<8x32xi32>
    %cst = arith.constant 0xFF800000 : f32
    %1 = vector.broadcast %cst : f32 to vector<8x32xf32>
    %c0_i32 = arith.constant 0 : i32
    %2 = arith.index_cast %c0_i32 : i32 to index
    %c0 = arith.constant 0 : index
    %c0_0 = arith.constant 0 : index
    %3 = vector.load %arg1[%2, %c0, %c0_0] : memref<8x8x1xi32, #tpu.memory_space<vmem>>, vector<1x8x1xi32>
    %4 = vector.shape_cast %3 : vector<1x8x1xi32> to vector<8x1xi32>
    %5 = vector.broadcast %4 : vector<8x1xi32> to vector<8x32xi32>
    %6 = arith.cmpi eq, %5, %0 : vector<8x32xi32>
    %7 = arith.extui %6 : vector<8x32xi1> to vector<8x32xi32>
    %8 = arith.sitofp %7 : vector<8x32xi32> to vector<8x32xf32>
    %c0_1 = arith.constant 0 : index
    %c0_2 = arith.constant 0 : index
    %9 = vector.load %arg2[%c0_1, %c0_2] : memref<32x32xf32, #tpu.memory_space<vmem>>, vector<32x32xf32>
    %cst_3 = arith.constant dense<0.000000e+00> : vector<8x32xf32>
    %10 = tpu.matmul %8, %9, %cst_3 {dimension_numbers = #tpu.dot_dimension_numbers<[1], [0], [0], [1], [0, 0, 1, 1], [], []>, precision = #tpu.contract_precision<fp32>} : vector<8x32xf32>, vector<32x32xf32>, vector<8x32xf32> -> vector<8x32xf32>
    %11 = arith.maximumf %1, %10 : vector<8x32xf32>
    %c1_i32 = arith.constant 1 : i32
    %12 = arith.index_cast %c1_i32 : i32 to index
    %c0_4 = arith.constant 0 : index
    %c0_5 = arith.constant 0 : index
    %13 = vector.load %arg1[%12, %c0_4, %c0_5] : memref<8x8x1xi32, #tpu.memory_space<vmem>>, vector<1x8x1xi32>
    %14 = vector.shape_cast %13 : vector<1x8x1xi32> to vector<8x1xi32>
    %15 = vector.broadcast %14 : vector<8x1xi32> to vector<8x32xi32>
    %16 = arith.cmpi eq, %15, %0 : vector<8x32xi32>
    %17 = arith.extui %16 : vector<8x32xi1> to vector<8x32xi32>
    %18 = arith.sitofp %17 : vector<8x32xi32> to vector<8x32xf32>
    %c0_6 = arith.constant 0 : index
    %c0_7 = arith.constant 0 : index
    %19 = vector.load %arg2[%c0_6, %c0_7] : memref<32x32xf32, #tpu.memory_space<vmem>>, vector<32x32xf32>
    %cst_8 = arith.constant dense<0.000000e+00> : vector<8x32xf32>
    %20 = tpu.matmul %18, %19, %cst_8 {dimension_numbers = #tpu.dot_dimension_numbers<[1], [0], [0], [1], [0, 0, 1, 1], [], []>, precision = #tpu.contract_precision<fp32>} : vector<8x32xf32>, vector<32x32xf32>, vector<8x32xf32> -> vector<8x32xf32>
    %21 = arith.maximumf %11, %20 : vector<8x32xf32>
    %c2_i32 = arith.constant 2 : i32
    %22 = arith.index_cast %c2_i32 : i32 to index
    %c0_9 = arith.constant 0 : index
    %c0_10 = arith.constant 0 : index
    %23 = vector.load %arg1[%22, %c0_9, %c0_10] : memref<8x8x1xi32, #tpu.memory_space<vmem>>, vector<1x8x1xi32>
    %24 = vector.shape_cast %23 : vector<1x8x1xi32> to vector<8x1xi32>
    %25 = vector.broadcast %24 : vector<8x1xi32> to vector<8x32xi32>
    %26 = arith.cmpi eq, %25, %0 : vector<8x32xi32>
    %27 = arith.extui %26 : vector<8x32xi1> to vector<8x32xi32>
    %28 = arith.sitofp %27 : vector<8x32xi32> to vector<8x32xf32>
    %c0_11 = arith.constant 0 : index
    %c0_12 = arith.constant 0 : index
    %29 = vector.load %arg2[%c0_11, %c0_12] : memref<32x32xf32, #tpu.memory_space<vmem>>, vector<32x32xf32>
    %cst_13 = arith.constant dense<0.000000e+00> : vector<8x32xf32>
    %30 = tpu.matmul %28, %29, %cst_13 {dimension_numbers = #tpu.dot_dimension_numbers<[1], [0], [0], [1], [0, 0, 1, 1], [], []>, precision = #tpu.contract_precision<fp32>} : vector<8x32xf32>, vector<32x32xf32>, vector<8x32xf32> -> vector<8x32xf32>
    %31 = arith.maximumf %21, %30 : vector<8x32xf32>
    %c3_i32 = arith.constant 3 : i32
    %32 = arith.index_cast %c3_i32 : i32 to index
    %c0_14 = arith.constant 0 : index
    %c0_15 = arith.constant 0 : index
    %33 = vector.load %arg1[%32, %c0_14, %c0_15] : memref<8x8x1xi32, #tpu.memory_space<vmem>>, vector<1x8x1xi32>
    %34 = vector.shape_cast %33 : vector<1x8x1xi32> to vector<8x1xi32>
    %35 = vector.broadcast %34 : vector<8x1xi32> to vector<8x32xi32>
    %36 = arith.cmpi eq, %35, %0 : vector<8x32xi32>
    %37 = arith.extui %36 : vector<8x32xi1> to vector<8x32xi32>
    %38 = arith.sitofp %37 : vector<8x32xi32> to vector<8x32xf32>
    %c0_16 = arith.constant 0 : index
    %c0_17 = arith.constant 0 : index
    %39 = vector.load %arg2[%c0_16, %c0_17] : memref<32x32xf32, #tpu.memory_space<vmem>>, vector<32x32xf32>
    %cst_18 = arith.constant dense<0.000000e+00> : vector<8x32xf32>
    %40 = tpu.matmul %38, %39, %cst_18 {dimension_numbers = #tpu.dot_dimension_numbers<[1], [0], [0], [1], [0, 0, 1, 1], [], []>, precision = #tpu.contract_precision<fp32>} : vector<8x32xf32>, vector<32x32xf32>, vector<8x32xf32> -> vector<8x32xf32>
    %41 = arith.maximumf %31, %40 : vector<8x32xf32>
    %c4_i32 = arith.constant 4 : i32
    %42 = arith.index_cast %c4_i32 : i32 to index
    %c0_19 = arith.constant 0 : index
    %c0_20 = arith.constant 0 : index
    %43 = vector.load %arg1[%42, %c0_19, %c0_20] : memref<8x8x1xi32, #tpu.memory_space<vmem>>, vector<1x8x1xi32>
    %44 = vector.shape_cast %43 : vector<1x8x1xi32> to vector<8x1xi32>
    %45 = vector.broadcast %44 : vector<8x1xi32> to vector<8x32xi32>
    %46 = arith.cmpi eq, %45, %0 : vector<8x32xi32>
    %47 = arith.extui %46 : vector<8x32xi1> to vector<8x32xi32>
    %48 = arith.sitofp %47 : vector<8x32xi32> to vector<8x32xf32>
    %c0_21 = arith.constant 0 : index
    %c0_22 = arith.constant 0 : index
    %49 = vector.load %arg2[%c0_21, %c0_22] : memref<32x32xf32, #tpu.memory_space<vmem>>, vector<32x32xf32>
    %cst_23 = arith.constant dense<0.000000e+00> : vector<8x32xf32>
    %50 = tpu.matmul %48, %49, %cst_23 {dimension_numbers = #tpu.dot_dimension_numbers<[1], [0], [0], [1], [0, 0, 1, 1], [], []>, precision = #tpu.contract_precision<fp32>} : vector<8x32xf32>, vector<32x32xf32>, vector<8x32xf32> -> vector<8x32xf32>
    %51 = arith.maximumf %41, %50 : vector<8x32xf32>
    %c5_i32 = arith.constant 5 : i32
    %52 = arith.index_cast %c5_i32 : i32 to index
    %c0_24 = arith.constant 0 : index
    %c0_25 = arith.constant 0 : index
    %53 = vector.load %arg1[%52, %c0_24, %c0_25] : memref<8x8x1xi32, #tpu.memory_space<vmem>>, vector<1x8x1xi32>
    %54 = vector.shape_cast %53 : vector<1x8x1xi32> to vector<8x1xi32>
    %55 = vector.broadcast %54 : vector<8x1xi32> to vector<8x32xi32>
    %56 = arith.cmpi eq, %55, %0 : vector<8x32xi32>
    %57 = arith.extui %56 : vector<8x32xi1> to vector<8x32xi32>
    %58 = arith.sitofp %57 : vector<8x32xi32> to vector<8x32xf32>
    %c0_26 = arith.constant 0 : index
    %c0_27 = arith.constant 0 : index
    %59 = vector.load %arg2[%c0_26, %c0_27] : memref<32x32xf32, #tpu.memory_space<vmem>>, vector<32x32xf32>
    %cst_28 = arith.constant dense<0.000000e+00> : vector<8x32xf32>
    %60 = tpu.matmul %58, %59, %cst_28 {dimension_numbers = #tpu.dot_dimension_numbers<[1], [0], [0], [1], [0, 0, 1, 1], [], []>, precision = #tpu.contract_precision<fp32>} : vector<8x32xf32>, vector<32x32xf32>, vector<8x32xf32> -> vector<8x32xf32>
    %61 = arith.maximumf %51, %60 : vector<8x32xf32>
    %c6_i32 = arith.constant 6 : i32
    %62 = arith.index_cast %c6_i32 : i32 to index
    %c0_29 = arith.constant 0 : index
    %c0_30 = arith.constant 0 : index
    %63 = vector.load %arg1[%62, %c0_29, %c0_30] : memref<8x8x1xi32, #tpu.memory_space<vmem>>, vector<1x8x1xi32>
    %64 = vector.shape_cast %63 : vector<1x8x1xi32> to vector<8x1xi32>
    %65 = vector.broadcast %64 : vector<8x1xi32> to vector<8x32xi32>
    %66 = arith.cmpi eq, %65, %0 : vector<8x32xi32>
    %67 = arith.extui %66 : vector<8x32xi1> to vector<8x32xi32>
    %68 = arith.sitofp %67 : vector<8x32xi32> to vector<8x32xf32>
    %c0_31 = arith.constant 0 : index
    %c0_32 = arith.constant 0 : index
    %69 = vector.load %arg2[%c0_31, %c0_32] : memref<32x32xf32, #tpu.memory_space<vmem>>, vector<32x32xf32>
    %cst_33 = arith.constant dense<0.000000e+00> : vector<8x32xf32>
    %70 = tpu.matmul %68, %69, %cst_33 {dimension_numbers = #tpu.dot_dimension_numbers<[1], [0], [0], [1], [0, 0, 1, 1], [], []>, precision = #tpu.contract_precision<fp32>} : vector<8x32xf32>, vector<32x32xf32>, vector<8x32xf32> -> vector<8x32xf32>
    %71 = arith.maximumf %61, %70 : vector<8x32xf32>
    %c7_i32 = arith.constant 7 : i32
    %72 = arith.index_cast %c7_i32 : i32 to index
    %c0_34 = arith.constant 0 : index
    %c0_35 = arith.constant 0 : index
    %73 = vector.load %arg1[%72, %c0_34, %c0_35] : memref<8x8x1xi32, #tpu.memory_space<vmem>>, vector<1x8x1xi32>
    %74 = vector.shape_cast %73 : vector<1x8x1xi32> to vector<8x1xi32>
    %75 = vector.broadcast %74 : vector<8x1xi32> to vector<8x32xi32>
    %76 = arith.cmpi eq, %75, %0 : vector<8x32xi32>
    %77 = arith.extui %76 : vector<8x32xi1> to vector<8x32xi32>
    %78 = arith.sitofp %77 : vector<8x32xi32> to vector<8x32xf32>
    %c0_36 = arith.constant 0 : index
    %c0_37 = arith.constant 0 : index
    %79 = vector.load %arg2[%c0_36, %c0_37] : memref<32x32xf32, #tpu.memory_space<vmem>>, vector<32x32xf32>
    %cst_38 = arith.constant dense<0.000000e+00> : vector<8x32xf32>
    %80 = tpu.matmul %78, %79, %cst_38 {dimension_numbers = #tpu.dot_dimension_numbers<[1], [0], [0], [1], [0, 0, 1, 1], [], []>, precision = #tpu.contract_precision<fp32>} : vector<8x32xf32>, vector<32x32xf32>, vector<8x32xf32> -> vector<8x32xf32>
    %81 = arith.maximumf %71, %80 : vector<8x32xf32>
    %c8_i32 = arith.constant 8 : i32
    %c0_39 = arith.constant 0 : index
    %c0_40 = arith.constant 0 : index
    %82 = vector.load %arg3[%c0_39, %c0_40] : memref<32x128xf32, #tpu.memory_space<vmem>>, vector<32x128xf32>
    %cst_41 = arith.constant dense<0.000000e+00> : vector<8x128xf32>
    %83 = tpu.matmul %81, %82, %cst_41 {dimension_numbers = #tpu.dot_dimension_numbers<[1], [0], [0], [1], [0, 0, 1, 1], [], []>} : vector<8x32xf32>, vector<32x128xf32>, vector<8x128xf32> -> vector<8x128xf32>
    %c0_42 = arith.constant 0 : index
    %c0_43 = arith.constant 0 : index
    %84 = vector.load %arg4[%c0_42, %c0_43] : memref<1x128xf32, #tpu.memory_space<vmem>>, vector<1x128xf32>
    %85 = vector.broadcast %84 : vector<1x128xf32> to vector<8x128xf32>
    %86 = arith.addf %83, %85 : vector<8x128xf32>
    %c0_44 = arith.constant 0 : index
    %c0_45 = arith.constant 0 : index
    %87 = vector.load %arg5[%c0_44, %c0_45] : memref<8x128xf32, #tpu.memory_space<vmem>>, vector<8x128xf32>
    tpu.vector_store %arg5[%c0_44, %c0_45], %86 {strides = array<i32>} : memref<8x128xf32, #tpu.memory_space<vmem>>, vector<8x128xf32>,
    return
  }
  func.func @transform_0(%arg0: i32) -> (i32, i32, i32) {
    %c0_i32 = arith.constant 0 : i32
    %c0_i32_0 = arith.constant 0 : i32
    %c0_i32_1 = arith.constant 0 : i32
    return %c0_i32, %arg0, %c0_i32_0 : i32, i32, i32
  }
  func.func @transform_1(%arg0: i32) -> (i32, i32) {
    %c0_i32 = arith.constant 0 : i32
    %c0_i32_0 = arith.constant 0 : i32
    %c0_i32_1 = arith.constant 0 : i32
    return %c0_i32, %c0_i32_0 : i32, i32
  }
  func.func @transform_2(%arg0: i32) -> (i32, i32) {
    %c0_i32 = arith.constant 0 : i32
    %c0_i32_0 = arith.constant 0 : i32
    %c0_i32_1 = arith.constant 0 : i32
    return %c0_i32, %c0_i32_0 : i32, i32
  }
  func.func @transform_3(%arg0: i32) -> (i32, i32) {
    %c0_i32 = arith.constant 0 : i32
    %c0_i32_0 = arith.constant 0 : i32
    %c0_i32_1 = arith.constant 0 : i32
    return %c0_i32, %c0_i32_0 : i32, i32
  }
  func.func @transform_4(%arg0: i32) -> (i32, i32) {
    %c0_i32 = arith.constant 0 : i32
    %c0_i32_0 = arith.constant 0 : i32
    return %arg0, %c0_i32 : i32, i32
  }
}

module attributes {stable_mosaic.version = 11 : i64} {
  func.func @_pooling_kernel(%arg0: i32, %arg1: memref<8x8x1xi32, #tpu.memory_space<vmem>>, %arg2: memref<32x32xf32, #tpu.memory_space<vmem>>, %arg3: memref<32x128xf32, #tpu.memory_space<vmem>>, %arg4: memref<1x128xf32, #tpu.memory_space<vmem>>, %arg5: memref<8x128xf32, #tpu.memory_space<vmem>>) attributes {dimension_semantics = [#tpu.dimension_semantics<parallel>], iteration_bounds = array<i64: 2>, scalar_prefetch = 0 : i64, scratch_operands = 0 : i64, tpu.core_type = #tpu.core_type<tc>, window_params = [{transform_indices = @transform_0, window_bounds = array<i64: 8, 8, 1>}, {pipeline_mode = #tpu.pipeline_mode<synchronous>, transform_indices = @transform_1, window_bounds = array<i64: 32, 32>}, {pipeline_mode = #tpu.pipeline_mode<synchronous>, transform_indices = @transform_2, window_bounds = array<i64: 32, 128>}, {pipeline_mode = #tpu.pipeline_mode<synchronous>, transform_indices = @transform_3, window_bounds = array<i64: 1, 128>}, {transform_indices = @transform_4, window_bounds = array<i64: 8, 128>}]} {
    %0 = tpu.iota {dimensions = array<i32: 1>} : vector<8x32xi32>
    %cst = arith.constant 0xFF800000 : f32
    %1 = vector.broadcast %cst : f32 to vector<8x32xf32>
    %c0_i32 = arith.constant 0 : i32
    %2 = arith.index_cast %c0_i32 : i32 to index
    %c0 = arith.constant 0 : index
    %c0_0 = arith.constant 0 : index
    %3 = vector.load %arg1[%2, %c0, %c0_0] : memref<8x8x1xi32, #tpu.memory_space<vmem>>, vector<1x8x1xi32>
    %4 = vector.shape_cast %3 : vector<1x8x1xi32> to vector<8x1xi32>
    %5 = vector.broadcast %4 : vector<8x1xi32> to vector<8x32xi32>
    %6 = arith.cmpi eq, %5, %0 : vector<8x32xi32>
    %7 = arith.extui %6 : vector<8x32xi1> to vector<8x32xi32>
    %8 = arith.sitofp %7 : vector<8x32xi32> to vector<8x32xf32>
    %c0_1 = arith.constant 0 : index
    %c0_2 = arith.constant 0 : index
    %9 = vector.load %arg2[%c0_1, %c0_2] : memref<32x32xf32, #tpu.memory_space<vmem>>, vector<32x32xf32>
    %cst_3 = arith.constant dense<0.000000e+00> : vector<8x32xf32>
    %10 = tpu.matmul %8, %9, %cst_3 {dimension_numbers = #tpu.dot_dimension_numbers<[1], [0], [0], [1], [0, 0, 1, 1], [], []>, precision = #tpu.contract_precision<fp32>} : vector<8x32xf32>, vector<32x32xf32>, vector<8x32xf32> -> vector<8x32xf32>
    %11 = arith.maximumf %1, %10 : vector<8x32xf32>
    %c1_i32 = arith.constant 1 : i32
    %12 = arith.index_cast %c1_i32 : i32 to index
    %c0_4 = arith.constant 0 : index
    %c0_5 = arith.constant 0 : index
    %13 = vector.load %arg1[%12, %c0_4, %c0_5] : memref<8x8x1xi32, #tpu.memory_space<vmem>>, vector<1x8x1xi32>
    %14 = vector.shape_cast %13 : vector<1x8x1xi32> to vector<8x1xi32>
    %15 = vector.broadcast %14 : vector<8x1xi32> to vector<8x32xi32>
    %16 = arith.cmpi eq, %15, %0 : vector<8x32xi32>
    %17 = arith.extui %16 : vector<8x32xi1> to vector<8x32xi32>
    %18 = arith.sitofp %17 : vector<8x32xi32> to vector<8x32xf32>
    %c0_6 = arith.constant 0 : index
    %c0_7 = arith.constant 0 : index
    %19 = vector.load %arg2[%c0_6, %c0_7] : memref<32x32xf32, #tpu.memory_space<vmem>>, vector<32x32xf32>
    %cst_8 = arith.constant dense<0.000000e+00> : vector<8x32xf32>
    %20 = tpu.matmul %18, %19, %cst_8 {dimension_numbers = #tpu.dot_dimension_numbers<[1], [0], [0], [1], [0, 0, 1, 1], [], []>, precision = #tpu.contract_precision<fp32>} : vector<8x32xf32>, vector<32x32xf32>, vector<8x32xf32> -> vector<8x32xf32>
    %21 = arith.maximumf %11, %20 : vector<8x32xf32>
    %c2_i32 = arith.constant 2 : i32
    %22 = arith.index_cast %c2_i32 : i32 to index
    %c0_9 = arith.constant 0 : index
    %c0_10 = arith.constant 0 : index
    %23 = vector.load %arg1[%22, %c0_9, %c0_10] : memref<8x8x1xi32, #tpu.memory_space<vmem>>, vector<1x8x1xi32>
    %24 = vector.shape_cast %23 : vector<1x8x1xi32> to vector<8x1xi32>
    %25 = vector.broadcast %24 : vector<8x1xi32> to vector<8x32xi32>
    %26 = arith.cmpi eq, %25, %0 : vector<8x32xi32>
    %27 = arith.extui %26 : vector<8x32xi1> to vector<8x32xi32>
    %28 = arith.sitofp %27 : vector<8x32xi32> to vector<8x32xf32>
    %c0_11 = arith.constant 0 : index
    %c0_12 = arith.constant 0 : index
    %29 = vector.load %arg2[%c0_11, %c0_12] : memref<32x32xf32, #tpu.memory_space<vmem>>, vector<32x32xf32>
    %cst_13 = arith.constant dense<0.000000e+00> : vector<8x32xf32>
    %30 = tpu.matmul %28, %29, %cst_13 {dimension_numbers = #tpu.dot_dimension_numbers<[1], [0], [0], [1], [0, 0, 1, 1], [], []>, precision = #tpu.contract_precision<fp32>} : vector<8x32xf32>, vector<32x32xf32>, vector<8x32xf32> -> vector<8x32xf32>
    %31 = arith.maximumf %21, %30 : vector<8x32xf32>
    %c3_i32 = arith.constant 3 : i32
    %32 = arith.index_cast %c3_i32 : i32 to index
    %c0_14 = arith.constant 0 : index
    %c0_15 = arith.constant 0 : index
    %33 = vector.load %arg1[%32, %c0_14, %c0_15] : memref<8x8x1xi32, #tpu.memory_space<vmem>>, vector<1x8x1xi32>
    %34 = vector.shape_cast %33 : vector<1x8x1xi32> to vector<8x1xi32>
    %35 = vector.broadcast %34 : vector<8x1xi32> to vector<8x32xi32>
    %36 = arith.cmpi eq, %35, %0 : vector<8x32xi32>
    %37 = arith.extui %36 : vector<8x32xi1> to vector<8x32xi32>
    %38 = arith.sitofp %37 : vector<8x32xi32> to vector<8x32xf32>
    %c0_16 = arith.constant 0 : index
    %c0_17 = arith.constant 0 : index
    %39 = vector.load %arg2[%c0_16, %c0_17] : memref<32x32xf32, #tpu.memory_space<vmem>>, vector<32x32xf32>
    %cst_18 = arith.constant dense<0.000000e+00> : vector<8x32xf32>
    %40 = tpu.matmul %38, %39, %cst_18 {dimension_numbers = #tpu.dot_dimension_numbers<[1], [0], [0], [1], [0, 0, 1, 1], [], []>, precision = #tpu.contract_precision<fp32>} : vector<8x32xf32>, vector<32x32xf32>, vector<8x32xf32> -> vector<8x32xf32>
    %41 = arith.maximumf %31, %40 : vector<8x32xf32>
    %c4_i32 = arith.constant 4 : i32
    %42 = arith.index_cast %c4_i32 : i32 to index
    %c0_19 = arith.constant 0 : index
    %c0_20 = arith.constant 0 : index
    %43 = vector.load %arg1[%42, %c0_19, %c0_20] : memref<8x8x1xi32, #tpu.memory_space<vmem>>, vector<1x8x1xi32>
    %44 = vector.shape_cast %43 : vector<1x8x1xi32> to vector<8x1xi32>
    %45 = vector.broadcast %44 : vector<8x1xi32> to vector<8x32xi32>
    %46 = arith.cmpi eq, %45, %0 : vector<8x32xi32>
    %47 = arith.extui %46 : vector<8x32xi1> to vector<8x32xi32>
    %48 = arith.sitofp %47 : vector<8x32xi32> to vector<8x32xf32>
    %c0_21 = arith.constant 0 : index
    %c0_22 = arith.constant 0 : index
    %49 = vector.load %arg2[%c0_21, %c0_22] : memref<32x32xf32, #tpu.memory_space<vmem>>, vector<32x32xf32>
    %cst_23 = arith.constant dense<0.000000e+00> : vector<8x32xf32>
    %50 = tpu.matmul %48, %49, %cst_23 {dimension_numbers = #tpu.dot_dimension_numbers<[1], [0], [0], [1], [0, 0, 1, 1], [], []>, precision = #tpu.contract_precision<fp32>} : vector<8x32xf32>, vector<32x32xf32>, vector<8x32xf32> -> vector<8x32xf32>
    %51 = arith.maximumf %41, %50 : vector<8x32xf32>
    %c5_i32 = arith.constant 5 : i32
    %52 = arith.index_cast %c5_i32 : i32 to index
    %c0_24 = arith.constant 0 : index
    %c0_25 = arith.constant 0 : index
    %53 = vector.load %arg1[%52, %c0_24, %c0_25] : memref<8x8x1xi32, #tpu.memory_space<vmem>>, vector<1x8x1xi32>
    %54 = vector.shape_cast %53 : vector<1x8x1xi32> to vector<8x1xi32>
    %55 = vector.broadcast %54 : vector<8x1xi32> to vector<8x32xi32>
    %56 = arith.cmpi eq, %55, %0 : vector<8x32xi32>
    %57 = arith.extui %56 : vector<8x32xi1> to vector<8x32xi32>
    %58 = arith.sitofp %57 : vector<8x32xi32> to vector<8x32xf32>
    %c0_26 = arith.constant 0 : index
    %c0_27 = arith.constant 0 : index
    %59 = vector.load %arg2[%c0_26, %c0_27] : memref<32x32xf32, #tpu.memory_space<vmem>>, vector<32x32xf32>
    %cst_28 = arith.constant dense<0.000000e+00> : vector<8x32xf32>
    %60 = tpu.matmul %58, %59, %cst_28 {dimension_numbers = #tpu.dot_dimension_numbers<[1], [0], [0], [1], [0, 0, 1, 1], [], []>, precision = #tpu.contract_precision<fp32>} : vector<8x32xf32>, vector<32x32xf32>, vector<8x32xf32> -> vector<8x32xf32>
    %61 = arith.maximumf %51, %60 : vector<8x32xf32>
    %c6_i32 = arith.constant 6 : i32
    %62 = arith.index_cast %c6_i32 : i32 to index
    %c0_29 = arith.constant 0 : index
    %c0_30 = arith.constant 0 : index
    %63 = vector.load %arg1[%62, %c0_29, %c0_30] : memref<8x8x1xi32, #tpu.memory_space<vmem>>, vector<1x8x1xi32>
    %64 = vector.shape_cast %63 : vector<1x8x1xi32> to vector<8x1xi32>
    %65 = vector.broadcast %64 : vector<8x1xi32> to vector<8x32xi32>
    %66 = arith.cmpi eq, %65, %0 : vector<8x32xi32>
    %67 = arith.extui %66 : vector<8x32xi1> to vector<8x32xi32>
    %68 = arith.sitofp %67 : vector<8x32xi32> to vector<8x32xf32>
    %c0_31 = arith.constant 0 : index
    %c0_32 = arith.constant 0 : index
    %69 = vector.load %arg2[%c0_31, %c0_32] : memref<32x32xf32, #tpu.memory_space<vmem>>, vector<32x32xf32>
    %cst_33 = arith.constant dense<0.000000e+00> : vector<8x32xf32>
    %70 = tpu.matmul %68, %69, %cst_33 {dimension_numbers = #tpu.dot_dimension_numbers<[1], [0], [0], [1], [0, 0, 1, 1], [], []>, precision = #tpu.contract_precision<fp32>} : vector<8x32xf32>, vector<32x32xf32>, vector<8x32xf32> -> vector<8x32xf32>
    %71 = arith.maximumf %61, %70 : vector<8x32xf32>
    %c7_i32 = arith.constant 7 : i32
    %72 = arith.index_cast %c7_i32 : i32 to index
    %c0_34 = arith.constant 0 : index
    %c0_35 = arith.constant 0 : index
    %73 = vector.load %arg1[%72, %c0_34, %c0_35] : memref<8x8x1xi32, #tpu.memory_space<vmem>>, vector<1x8x1xi32>
    %74 = vector.shape_cast %73 : vector<1x8x1xi32> to vector<8x1xi32>
    %75 = vector.broadcast %74 : vector<8x1xi32> to vector<8x32xi32>
    %76 = arith.cmpi eq, %75, %0 : vector<8x32xi32>
    %77 = arith.extui %76 : vector<8x32xi1> to vector<8x32xi32>
    %78 = arith.sitofp %77 : vector<8x32xi32> to vector<8x32xf32>
    %c0_36 = arith.constant 0 : index
    %c0_37 = arith.constant 0 : index
    %79 = vector.load %arg2[%c0_36, %c0_37] : memref<32x32xf32, #tpu.memory_space<vmem>>, vector<32x32xf32>
    %cst_38 = arith.constant dense<0.000000e+00> : vector<8x32xf32>
    %80 = tpu.matmul %78, %79, %cst_38 {dimension_numbers = #tpu.dot_dimension_numbers<[1], [0], [0], [1], [0, 0, 1, 1], [], []>, precision = #tpu.contract_precision<fp32>} : vector<8x32xf32>, vector<32x32xf32>, vector<8x32xf32> -> vector<8x32xf32>
    %81 = arith.maximumf %71, %80 : vector<8x32xf32>
    %c8_i32 = arith.constant 8 : i32
    %c0_39 = arith.constant 0 : index
    %c0_40 = arith.constant 0 : index
    %82 = vector.load %arg3[%c0_39, %c0_40] : memref<32x128xf32, #tpu.memory_space<vmem>>, vector<32x128xf32>
    %cst_41 = arith.constant dense<0.000000e+00> : vector<8x128xf32>
    %83 = tpu.matmul %81, %82, %cst_41 {dimension_numbers = #tpu.dot_dimension_numbers<[1], [0], [0], [1], [0, 0, 1, 1], [], []>} : vector<8x32xf32>, vector<32x128xf32>, vector<8x128xf32> -> vector<8x128xf32>
    %c0_42 = arith.constant 0 : index
    %c0_43 = arith.constant 0 : index
    %84 = vector.load %arg4[%c0_42, %c0_43] : memref<1x128xf32, #tpu.memory_space<vmem>>, vector<1x128xf32>
    %85 = vector.broadcast %84 : vector<1x128xf32> to vector<8x128xf32>
    %86 = arith.addf %83, %85 : vector<8x128xf32>
    %c0_44 = arith.constant 0 : index
    %c0_45 = arith.constant 0 : index
    %87 = vector.load %arg5[%c0_44, %c0_45] : memref<8x128xf32, #tpu.memory_space<vmem>>, vector<8x128xf32>
    tpu.vector_store %arg5[%c0_44, %c0_45], %86 {strides = array<i32>} : memref<8x128xf32, #tpu.memory_space<vmem>>, vector<8x128xf32>,
    return
  }
  func.func @transform_0(%arg0: i32) -> (i32, i32, i32) {
    %c0_i32 = arith.constant 0 : i32
    %c0_i32_0 = arith.constant 0 : i32
    %c0_i32_1 = arith.constant 0 : i32
    return %c0_i32, %arg0, %c0_i32_0 : i32, i32, i32
  }
  func.func @transform_1(%arg0: i32) -> (i32, i32) {
    %c0_i32 = arith.constant 0 : i32
    %c0_i32_0 = arith.constant 0 : i32
    %c0_i32_1 = arith.constant 0 : i32
    return %c0_i32, %c0_i32_0 : i32, i32
  }
  func.func @transform_2(%arg0: i32) -> (i32, i32) {
    %c0_i32 = arith.constant 0 : i32
    %c0_i32_0 = arith.constant 0 : i32
    %c0_i32_1 = arith.constant 0 : i32
    return %c0_i32, %c0_i32_0 : i32, i32
  }
  func.func @transform_3(%arg0: i32) -> (i32, i32) {
    %c0_i32 = arith.constant 0 : i32
    %c0_i32_0 = arith.constant 0 : i32
    %c0_i32_1 = arith.constant 0 : i32
    return %c0_i32, %c0_i32_0 : i32, i32
  }
  func.func @transform_4(%arg0: i32) -> (i32, i32) {
    %c0_i32 = arith.constant 0 : i32
    %c0_i32_0 = arith.constant 0 : i32
    return %arg0, %c0_i32 : i32, i32
  }
}

</mosaic_0001>

<llo_original>
// kernel: tpu_custom_call.1
$region0: #{tpu_custom_call.1}
  #allocation0 [shape = 'u32[]', space=smem, size = 0x4, offset = 0x4, fixed_abs, tag = 'smem constant byte address 0x4 - core index']
  #allocation1 [shape = 'u32[144,128]{1,0:T(1,128)}', space=vmem, size = 0x12000, scoped, tag = 'internal scratch']
  %s0 = inlined_call_operand.vmem [shape: s32[8,16,1], index: 0, kind: input, shape index: {}]
  %s1 = inlined_call_operand.vmem [shape: f32[32,32], index: 1, kind: input, shape index: {}]
  %s2 = inlined_call_operand.vmem [shape: f32[32,128], index: 2, kind: input, shape index: {}]
  %s3 = inlined_call_operand.vmem [shape: f32[1,128], index: 3, kind: input, shape index: {}]
  %s4 = inlined_call_operand.hbm [shape: f32[16,128], index: 4, kind: output, shape index: {}]
  %s5 = sld [smem:[#allocation0]]
  $region87: #{tpu_custom_call.1} parent=0
    _
  %s7 = ssub.s32 1, %s5
  %s8 = scalar_select 0, %s7, %s5
  $region1: #{tpu_custom_call.1} parent=0
    #allocation2 [shape = 'u8[65536]{0}', space=vmem, size = 0x10000, scoped, tag = 'input window, operand 0']
    #allocation3 [shape = 'u8[8192]{0}', space=vmem, size = 0x2000, scoped, tag = 'output window, operand 0']
    #allocation4 [shape = 's32[2]{0}', space=sflag, size = 0x8, scoped, tag = 'scoped memory for tpu_custom_call.1']
    %9 = vsyncpa [#allocation4], 0
    %s10 = scalar_lea.sflag [#allocation4], 1
    %11 = vsyncpa %s10, 0
    loop: start=0, step=1, limit=4
    $region2: #{tpu_custom_call.1} parent=1 // loop_pre_header
      _
    $region3: #{tpu_custom_call.1} parent=1 // loop_header
      %s13 = sphi 0, %s17
      %p14 = scmp.ge.s32.totalorder %s13, 4
      %s23 = sphi 0, %s25
      %s26 = sphi 0, %s23
      %s27 = sphi 0, %s26
      %s43 = sphi 0, %s27
      %s47 = sphi 0, %s47
      %s49 = sphi 0, %s47
      %s50 = sphi 0, %s49
      %s64 = sphi 0, %s50
      %s68 = sphi 0, %s68
      %s70 = sphi 0, %s68
      %s71 = sphi 0, %s70
      %s85 = sphi 0, %s71
      %s89 = sphi 0, %s89
      %s91 = sphi 0, %s89
      %s92 = sphi 0, %s91
      %s106 = sphi 0, %s92
      %s112 = sphi 0, %s114
      %s115 = sphi 0, %s112
      %s116 = sphi 0, %s115
      %s132 = sphi 0, %s116
    $region4: #{tpu_custom_call.1} parent=1 // loop_header_branch
      %16 = sbr.rel (%p14) target = $region8
    $region5: #{tpu_custom_call.1} parent=1 // loop_body
      %s18 = ssub.s32 %s13, 1
      %s19 = ssub.s32 %s13, 2
      %s20 = sadd.s32 %s13, 1
      %s21 = ssub.s32 %s13, %s20
      %p22 = scmp.eq.s32.totalorder %s21, 0
      %s24 = sadd.s32 %s23, 1
      %s25 = scalar_select %p22, %s23, %s24
      %p28 = pneg %p22
      %p29 = scmp.eq.s32.totalorder %s13, 1
      %p30 = por %p28, %p29
      %p31 = scmp.ne.s32.totalorder %s23, %s26
      %p32 = scmp.eq.s32.totalorder %s13, 0
      %p33 = por %p31, %p32
      %p34 = scmp.ne.s32.totalorder %s23, %s26
      %p35 = scmp.eq.s32.totalorder %s18, 1
      %p36 = por %p34, %p35
      %p37 = scmp.ne.s32.totalorder %s26, %s27
      %p38 = scmp.eq.s32.totalorder %s18, 0
      %p39 = por %p37, %p38
      %p40 = scmp.ne.s32.totalorder %s26, %s27
      %p41 = scmp.eq.s32.totalorder %s19, 1
      %p42 = por %p40, %p41
      %p44 = scmp.ne.s32.totalorder %s27, %s43
      %p45 = scmp.eq.s32.totalorder %s19, 0
      %p46 = por %p44, %p45
      %s48 = sadd.s32 %s47, 1
      %p51 = scmp.eq.s32.totalorder %s13, 1
      %p52 = scmp.ne.s32.totalorder %s47, %s49
      %p53 = scmp.eq.s32.totalorder %s13, 0
      %p54 = por %p52, %p53
      %p55 = scmp.ne.s32.totalorder %s47, %s49
      %p56 = scmp.eq.s32.totalorder %s18, 1
      %p57 = por %p55, %p56
      %p58 = scmp.ne.s32.totalorder %s49, %s50
      %p59 = scmp.eq.s32.totalorder %s18, 0
      %p60 = por %p58, %p59
      %p61 = scmp.ne.s32.totalorder %s49, %s50
      %p62 = scmp.eq.s32.totalorder %s19, 1
      %p63 = por %p61, %p62
      %p65 = scmp.ne.s32.totalorder %s50, %s64
      %p66 = scmp.eq.s32.totalorder %s19, 0
      %p67 = por %p65, %p66
      %s69 = sadd.s32 %s68, 1
      %p72 = scmp.eq.s32.totalorder %s13, 1
      %p73 = scmp.ne.s32.totalorder %s68, %s70
      %p74 = scmp.eq.s32.totalorder %s13, 0
      %p75 = por %p73, %p74
      %p76 = scmp.ne.s32.totalorder %s68, %s70
      %p77 = scmp.eq.s32.totalorder %s18, 1
      %p78 = por %p76, %p77
      %p79 = scmp.ne.s32.totalorder %s70, %s71
      %p80 = scmp.eq.s32.totalorder %s18, 0
      %p81 = por %p79, %p80
      %p82 = scmp.ne.s32.totalorder %s70, %s71
      %p83 = scmp.eq.s32.totalorder %s19, 1
      %p84 = por %p82, %p83
      %p86 = scmp.ne.s32.totalorder %s71, %s85
      %p87 = scmp.eq.s32.totalorder %s19, 0
      %p88 = por %p86, %p87
      %s90 = sadd.s32 %s89, 1
      %p93 = scmp.eq.s32.totalorder %s13, 1
      %p94 = scmp.ne.s32.totalorder %s89, %s91
      %p95 = scmp.eq.s32.totalorder %s13, 0
      %p96 = por %p94, %p95
      %p97 = scmp.ne.s32.totalorder %s89, %s91
      %p98 = scmp.eq.s32.totalorder %s18, 1
      %p99 = por %p97, %p98
      %p100 = scmp.ne.s32.totalorder %s91, %s92
      %p101 = scmp.eq.s32.totalorder %s18, 0
      %p102 = por %p100, %p101
      %p103 = scmp.ne.s32.totalorder %s91, %s92
      %p104 = scmp.eq.s32.totalorder %s19, 1
      %p105 = por %p103, %p104
      %p107 = scmp.ne.s32.totalorder %s92, %s106
      %p108 = scmp.eq.s32.totalorder %s19, 0
      %p109 = por %p107, %p108
      %s110 = ssub.s32 %s13, %s20
      %p111 = scmp.eq.s32.totalorder %s110, 0
      %s113 = sadd.s32 %s112, 1
      %s114 = scalar_select %p111, %s112, %s113
      %p117 = pneg %p111
      %p118 = scmp.eq.s32.totalorder %s13, 1
      %p119 = por %p117, %p118
      %p120 = scmp.ne.s32.totalorder %s112, %s115
      %p121 = scmp.eq.s32.totalorder %s13, 0
      %p122 = por %p120, %p121
      %p123 = scmp.ne.s32.totalorder %s112, %s115
      %p124 = scmp.eq.s32.totalorder %s18, 1
      %p125 = por %p123, %p124
      %p126 = scmp.ne.s32.totalorder %s115, %s116
      %p127 = scmp.eq.s32.totalorder %s18, 0
      %p128 = por %p126, %p127
      %p129 = scmp.ne.s32.totalorder %s115, %s116
      %p130 = scmp.eq.s32.totalorder %s19, 1
      %p131 = por %p129, %p130
      %p133 = scmp.ne.s32.totalorder %s116, %s132
      %p134 = scmp.eq.s32.totalorder %s19, 0
      %p135 = por %p133, %p134
      %p136 = scmp.le.s32.totalorder 1, %s13
      %p137 = scmp.lt.s32.totalorder %s13, 3
      %p138 = pnand %p136, %p137
      %p139 = pneg %p138
      // Predicated region
      $region9: #{tpu_custom_call.1} parent=5 // pred_check
        _
      $region10: #{tpu_custom_call.1} parent=5 // pred_check_branch
        %141 = sbr.rel (%p138) target = $region12
      $region11: #{tpu_custom_call.1} parent=5 // pred_region
        %s142 = ssub.s32 %s13, 1
        // Predicated region
        $region13: #{tpu_custom_call.1} parent=11 // pred_check
          %p143 = pneg %p60
        $region14: #{tpu_custom_call.1} parent=11 // pred_check_branch
          %145 = sbr.rel (%p143) target = $region16
        $region15: #{tpu_custom_call.1} parent=11 // pred_region
          _
        $region16: #{tpu_custom_call.1} parent=11 // pred_fallthru
          _
        // Predicated region
        $region17: #{tpu_custom_call.1} parent=11 // pred_check
          %p146 = pneg %p81
        $region18: #{tpu_custom_call.1} parent=11 // pred_check_branch
          %148 = sbr.rel (%p146) target = $region20
        $region19: #{tpu_custom_call.1} parent=11 // pred_region
          _
        $region20: #{tpu_custom_call.1} parent=11 // pred_fallthru
          _
        // Predicated region
        $region21: #{tpu_custom_call.1} parent=11 // pred_check
          %p149 = pneg %p102
        $region22: #{tpu_custom_call.1} parent=11 // pred_check_branch
          %151 = sbr.rel (%p149) target = $region24
        $region23: #{tpu_custom_call.1} parent=11 // pred_region
          _
        $region24: #{tpu_custom_call.1} parent=11 // pred_fallthru
          _
      $region12: #{tpu_custom_call.1} parent=5 // pred_fallthru
        _
      %p152 = scmp.lt.s32.totalorder %s13, 2
      // Predicated region
      $region25: #{tpu_custom_call.1} parent=5 // pred_check
        %p153 = pneg %p152
      $region26: #{tpu_custom_call.1} parent=5 // pred_check_branch
        %155 = sbr.rel (%p153) target = $region28
      $region27: #{tpu_custom_call.1} parent=5 // pred_region
        // Predicated region
        $region29: #{tpu_custom_call.1} parent=27 // pred_check
          %p156 = pneg %p33
        $region30: #{tpu_custom_call.1} parent=27 // pred_check_branch
          %158 = sbr.rel (%p156) target = $region32
        $region31: #{tpu_custom_call.1} parent=27 // pred_region
          %s159 = sand.u32 %s23, 1
          %s160 = sand.u32 %s23, 1
          %s161 = smul.addr %s160, 64
          %s162 = scalar_lea.vmem [#allocation2], %s161
          %s163 = smul.addr %s13, 8
          %s164 = scalar_lea.vmem %s0, %s163
          // Predicated region
          $region33: #{tpu_custom_call.1} parent=31 // pred_check
            _
          $region34: #{tpu_custom_call.1} parent=31 // pred_check_branch
            %166 = sbr.rel (0) target = $region36
          $region35: #{tpu_custom_call.1} parent=31 // pred_region
            // Predicated region
            $region37: #{tpu_custom_call.1} parent=35 // pred_check
              _
            $region38: #{tpu_custom_call.1} parent=35 // pred_check_branch
              %168 = sbr.rel (0) target = $region40
            $region39: #{tpu_custom_call.1} parent=35 // pred_region
              // Predicated region
              $region52: #{tpu_custom_call.1} parent=39 // pred_check
                _
              $region53: #{tpu_custom_call.1} parent=39 // pred_check_branch
                %198 = sbr.rel (0) target = $region55
              $region54: #{tpu_custom_call.1} parent=39 // pred_region
                loop: start=0, step=1, limit=1
                $region56: #{tpu_custom_call.1} parent=54 // loop_pre_header
                  _
                $region57: #{tpu_custom_call.1} parent=54 // loop_header
                  %s200 = sphi 0, %s204
                  %p201 = scmp.ge.s32.totalorder %s200, 1
                  %s205 = sphi %s164, %s164
                  %s206 = sphi %s162, %s162
                $region58: #{tpu_custom_call.1} parent=54 // loop_header_branch
                  %203 = sbr.rel (%p201) target = $region62
                $region59: #{tpu_custom_call.1} parent=54 // loop_body
                  %v207 = vld [vmem:[%s205] sm:$0xff]
                  %208 = vst [vmem:[%s206] sm:$0xff] %v207
                  %v209 = vld [vmem:[%s205 + $0x10] sm:$0xff]
                  %210 = vst [vmem:[%s206 + $0x8] sm:$0xff] %v209
                  %v211 = vld [vmem:[%s205 + $0x20] sm:$0xff]
                  %212 = vst [vmem:[%s206 + $0x10] sm:$0xff] %v211
                  %v213 = vld [vmem:[%s205 + $0x30] sm:$0xff]
                  %214 = vst [vmem:[%s206 + $0x18] sm:$0xff] %v213
                  %v215 = vld [vmem:[%s205 + $0x40] sm:$0xff]
                  %216 = vst [vmem:[%s206 + $0x20] sm:$0xff] %v215
                  %v217 = vld [vmem:[%s205 + $0x50] sm:$0xff]
                  %218 = vst [vmem:[%s206 + $0x28] sm:$0xff] %v217
                  %v219 = vld [vmem:[%s205 + $0x60] sm:$0xff]
                  %220 = vst [vmem:[%s206 + $0x30] sm:$0xff] %v219
                  %v221 = vld [vmem:[%s205 + $0x70] sm:$0xff]
                  %222 = vst [vmem:[%s206 + $0x38] sm:$0xff] %v221
                $region60: #{tpu_custom_call.1} parent=54 // loop_footer
                  %s204 = sadd.s32 1, %s200
                $region61: #{tpu_custom_call.1} parent=54 // loop_footer_branch
                  %199 = sbr.rel target = $region57
                $region62: #{tpu_custom_call.1} parent=54 // loop_exit
                  _
              $region55: #{tpu_custom_call.1} parent=39 // pred_fallthru
                _
              // Predicated region
              $region63: #{tpu_custom_call.1} parent=39 // pred_check
                _
              $region64: #{tpu_custom_call.1} parent=39 // pred_check_branch
                %224 = sbr.rel target = $region66
              $region65: #{tpu_custom_call.1} parent=39 // pred_region
                _
              $region66: #{tpu_custom_call.1} parent=39 // pred_fallthru
                _
            $region40: #{tpu_custom_call.1} parent=35 // pred_fallthru
              _
            // Predicated region
            $region41: #{tpu_custom_call.1} parent=35 // pred_check
              _
            $region42: #{tpu_custom_call.1} parent=35 // pred_check_branch
              %170 = sbr.rel target = $region44
            $region43: #{tpu_custom_call.1} parent=35 // pred_region
              %s172 = ssub.s32 256, 1
              loop: start=0, step=1, limit=1
              $region45: #{tpu_custom_call.1} parent=43 // loop_pre_header
                _
              $region46: #{tpu_custom_call.1} parent=43 // loop_header
                %s174 = sphi 0, %s178
                %p175 = scmp.ge.s32.totalorder %s174, 1
                %s179 = sphi %s164, %s164
                %s180 = sphi %s162, %s162
              $region47: #{tpu_custom_call.1} parent=43 // loop_header_branch
                %177 = sbr.rel (%p175) target = $region51
              $region48: #{tpu_custom_call.1} parent=43 // loop_body
                %v181 = vld [vmem:[%s179] sm:%s172]
                %182 = vst [vmem:[%s180] sm:%s172] %v181
                %v183 = vld [vmem:[%s179 + $0x10] sm:%s172]
                %184 = vst [vmem:[%s180 + $0x8] sm:%s172] %v183
                %v185 = vld [vmem:[%s179 + $0x20] sm:%s172]
                %186 = vst [vmem:[%s180 + $0x10] sm:%s172] %v185
                %v187 = vld [vmem:[%s179 + $0x30] sm:%s172]
                %188 = vst [vmem:[%s180 + $0x18] sm:%s172] %v187
                %v189 = vld [vmem:[%s179 + $0x40] sm:%s172]
                %190 = vst [vmem:[%s180 + $0x20] sm:%s172] %v189
                %v191 = vld [vmem:[%s179 + $0x50] sm:%s172]
                %192 = vst [vmem:[%s180 + $0x28] sm:%s172] %v191
                %v193 = vld [vmem:[%s179 + $0x60] sm:%s172]
                %194 = vst [vmem:[%s180 + $0x30] sm:%s172] %v193
                %v195 = vld [vmem:[%s179 + $0x70] sm:%s172]
                %196 = vst [vmem:[%s180 + $0x38] sm:%s172] %v195
              $region49: #{tpu_custom_call.1} parent=43 // loop_footer
                %s178 = sadd.s32 1, %s174
              $region50: #{tpu_custom_call.1} parent=43 // loop_footer_branch
                %173 = sbr.rel target = $region46
              $region51: #{tpu_custom_call.1} parent=43 // loop_exit
                _
            $region44: #{tpu_custom_call.1} parent=35 // pred_fallthru
              _
          $region36: #{tpu_custom_call.1} parent=31 // pred_fallthru
            _
          %225 = vnop
        $region32: #{tpu_custom_call.1} parent=27 // pred_fallthru
          _
      $region28: #{tpu_custom_call.1} parent=5 // pred_fallthru
        _
      %p226 = scmp.le.s32.totalorder 1, %s13
      %p227 = scmp.lt.s32.totalorder %s13, 3
      %p228 = pnand %p226, %p227
      %p229 = pneg %p228
      // Predicated region
      $region67: #{tpu_custom_call.1} parent=5 // pred_check
        _
      $region68: #{tpu_custom_call.1} parent=5 // pred_check_branch
        %231 = sbr.rel (%p228) target = $region70
      $region69: #{tpu_custom_call.1} parent=5 // pred_region
        %s232 = ssub.s32 %s13, 1
        %s233 = sand.u32 %s26, 1
        %s234 = sand.u32 %s26, 1
        %s235 = smul.addr %s234, 64
        %s236 = scalar_lea.vmem [#allocation2], %s235
        // Predicated region
        $region71: #{tpu_custom_call.1} parent=69 // pred_check
          %p237 = pneg %p39
        $region72: #{tpu_custom_call.1} parent=69 // pred_check_branch
          %239 = sbr.rel (%p237) target = $region74
        $region73: #{tpu_custom_call.1} parent=69 // pred_region
          _
        $region74: #{tpu_custom_call.1} parent=69 // pred_fallthru
          _
        %s240 = sand.u32 %s26, 1
        %s241 = sand.u32 %s26, 1
        %s242 = smul.addr %s241, 64
        %s243 = scalar_lea.vmem [#allocation2], %s242
        %p244 = pneg %p39
        %p245 = pneg %p36
        %p246 = pneg %p60
        %p247 = pneg %p57
        %p248 = pneg %p81
        %p249 = pneg %p78
        %p250 = pneg %p102
        %p251 = pneg %p99
        %p252 = pneg %p128
        %p253 = pneg %p125
        %s254 = sand.u32 %s115, 1
        %s255 = scalar_lea.sflag [#allocation4], %s254
        %s256 = sand.u32 %s115, 1
        %s257 = smul.addr %s256, 8
        %s258 = scalar_lea.vmem [#allocation3], %s257
        %v259 = vlaneseq
        %v260 = vand.u32 %v259, 127
        %v261 = vld [vmem:[%s236] sm:$0xff]
        %262 = vset.pattern.permute.xlu0 0
        %263 = vperm.xlu0 %262, %v261
        %v264 = vpop.permute.xlu0 %263
        %vm265 = vcmp.eq.s32.totalorder %v264, %v260
        %v266 = vsel %vm265, 1, 0
        %v267 = vcvt.s32.f32 %v266
        %v268 = vld [vmem:[%s1] sm:$0xff]
        %v269 = vld [vmem:[%s1 + $0x8] sm:$0xff]
        %v270 = vld [vmem:[%s1 + $0x10] sm:$0xff]
        %v271 = vld [vmem:[%s1 + $0x18] sm:$0xff]
        %vm272 = vcmask 261120
        %v274 = vsel %vm272, %v267, 0
        %276 = vmatprep.subr.mxu0 0.0
        %277 = vmatpush1.msra.mxu0 0.0
        %278 = vmatprep.subr.mxu0 0.0
        %279 = vmatpush1.msra.mxu0 0.0
        %280 = vmatprep.subr.mxu0 0.0
        %281 = vmatpush1.msra.mxu0 0.0
        %282 = vmatprep.subr.mxu0 0.0
        %283 = vmatpush1.msra.mxu0 0.0
        %284 = vmatprep.subr.mxu0 0.0
        %285 = vmatpush1.msra.mxu0 0.0
        %286 = vmatprep.subr.mxu0 0.0
        %287 = vmatpush1.msra.mxu0 0.0
        %288 = vmatprep.subr.mxu0 0.0
        %289 = vmatpush1.msra.mxu0 0.0
        %290 = vmatprep.subr.mxu0 0.0
        %291 = vmatpush1.msra.mxu0 0.0
        %292 = vmatprep.subr.mxu0 0.0
        %293 = vmatpush1.msra.mxu0 0.0
        %294 = vmatprep.subr.mxu0 0.0
        %295 = vmatpush1.msra.mxu0 0.0
        %296 = vmatprep.subr.mxu0 0.0
        %297 = vmatpush1.msra.mxu0 0.0
        %298 = vmatprep.subr.mxu0 0.0
        %299 = vmatpush1.msra.mxu0 0.0
        %300 = vmatprep.subr.mxu0 0.0
        %v301 = vand.u32 %v271, 4294901760
        %302 = vmatpush1.msra.mxu0 %v301
        %303 = vmatprep.subr.mxu0 0.0
        %v304 = vand.u32 %v270, 4294901760
        %305 = vmatpush1.msra.mxu0 %v304
        %306 = vmatprep.subr.mxu0 0.0
        %v307 = vand.u32 %v269, 4294901760
        %308 = vmatpush1.msra.mxu0 %v307
        %309 = vmatprep.subr.mxu0 0.0
        %v310 = vand.u32 %v268, 4294901760
        %311 = vmatpush1.msra.mxu0 %v310
        %312 = vmatprep.subr.mxu0 0.0
        %313 = vmatpush2.msra.mxu0 0.0
        %314 = vmatprep.subr.mxu0 0.0
        %315 = vmatpush2.msra.mxu0 0.0
        %316 = vmatprep.subr.mxu0 0.0
        %317 = vmatpush2.msra.mxu0 0.0
        %318 = vmatprep.subr.mxu0 0.0
        %319 = vmatpush2.msra.mxu0 0.0
        %320 = vmatprep.subr.mxu0 0.0
        %321 = vmatpush2.msra.mxu0 0.0
        %322 = vmatprep.subr.mxu0 0.0
        %323 = vmatpush2.msra.mxu0 0.0
        %324 = vmatprep.subr.mxu0 0.0
        %325 = vmatpush2.msra.mxu0 0.0
        %326 = vmatprep.subr.mxu0 0.0
        %327 = vmatpush2.msra.mxu0 0.0
        %328 = vmatprep.subr.mxu0 0.0
        %329 = vmatpush2.msra.mxu0 0.0
        %330 = vmatprep.subr.mxu0 0.0
        %331 = vmatpush2.msra.mxu0 0.0
        %332 = vmatprep.subr.mxu0 0.0
        %333 = vmatpush2.msra.mxu0 0.0
        %334 = vmatprep.subr.mxu0 0.0
        %335 = vmatpush2.msra.mxu0 0.0
        %336 = vmatprep.subr.mxu0 0.0
        %337 = vmatpush2.msra.mxu0 0.0
        %338 = vmatprep.subr.mxu0 0.0
        %339 = vmatpush2.msra.mxu0 0.0
        %340 = vmatprep.subr.mxu0 0.0
        %341 = vmatpush2.msra.mxu0 0.0
        %342 = vmatprep.subr.mxu0 0.0
        %343 = vmatpush2.msra.mxu0 0.0
        %344 = vmatprep.mubr.f32.mxu0 0.0
        %v345 = vand.u32 %v274, 4294901760
        %v346 = vsub.f32 %v274, %v345
        %v347 = vand.u32 %v346, 4294901760
        %v348 = vsub.f32 %v346, %v347
        %v349 = vand.u32 %v348, 4294901760
        %350 = vmatmul.mubr.f32.gmra.mxu0 %v349
        %v351 = vpop.f32.mrf.mxu0
        %v352 = vadd.f32 0.0, %v351
        %v353 = vpop.f32.mrf.mxu0
        %354 = vdwg.mxu0
        %355 = vmatprep.subr.mxu0 0.0
        %356 = vmatpush1.msra.mxu0 0.0
        %357 = vmatprep.subr.mxu0 0.0
        %358 = vmatpush1.msra.mxu0 0.0
        %359 = vmatprep.subr.mxu0 0.0
        %360 = vmatpush1.msra.mxu0 0.0
        %361 = vmatprep.subr.mxu0 0.0
        %362 = vmatpush1.msra.mxu0 0.0
        %363 = vmatprep.subr.mxu0 0.0
        %364 = vmatpush1.msra.mxu0 0.0
        %365 = vmatprep.subr.mxu0 0.0
        %366 = vmatpush1.msra.mxu0 0.0
        %367 = vmatprep.subr.mxu0 0.0
        %368 = vmatpush1.msra.mxu0 0.0
        %369 = vmatprep.subr.mxu0 0.0
        %370 = vmatpush1.msra.mxu0 0.0
        %371 = vmatprep.subr.mxu0 0.0
        %372 = vmatpush1.msra.mxu0 0.0
        %373 = vmatprep.subr.mxu0 0.0
        %374 = vmatpush1.msra.mxu0 0.0
        %375 = vmatprep.subr.mxu0 0.0
        %376 = vmatpush1.msra.mxu0 0.0
        %377 = vmatprep.subr.mxu0 0.0
        %378 = vmatpush1.msra.mxu0 0.0
        %379 = vmatprep.subr.mxu0 0.0
        %v380 = vand.u32 %v271, 4294901760
        %v381 = vsub.f32 %v271, %v380
        %v382 = vand.u32 %v381, 4294901760
        %v383 = vsub.f32 %v381, %v382
        %v384 = vand.u32 %v383, 4294901760
        %385 = vmatpush1.msra.mxu0 %v384
        %386 = vmatprep.subr.mxu0 0.0
        %v387 = vand.u32 %v270, 4294901760
        %v388 = vsub.f32 %v270, %v387
        %v389 = vand.u32 %v388, 4294901760
        %v390 = vsub.f32 %v388, %v389
        %v391 = vand.u32 %v390, 4294901760
        %392 = vmatpush1.msra.mxu0 %v391
        %393 = vmatprep.subr.mxu0 0.0
        %v394 = vand.u32 %v269, 4294901760
        %v395 = vsub.f32 %v269, %v394
        %v396 = vand.u32 %v395, 4294901760
        %v397 = vsub.f32 %v395, %v396
        %v398 = vand.u32 %v397, 4294901760
        %399 = vmatpush1.msra.mxu0 %v398
        %400 = vmatprep.subr.mxu0 0.0
        %v401 = vand.u32 %v268, 4294901760
        %v402 = vsub.f32 %v268, %v401
        %v403 = vand.u32 %v402, 4294901760
        %v404 = vsub.f32 %v402, %v403
        %v405 = vand.u32 %v404, 4294901760
        %406 = vmatpush1.msra.mxu0 %v405
        %407 = vmatprep.subr.mxu0 0.0
        %408 = vmatpush2.msra.mxu0 0.0
        %409 = vmatprep.subr.mxu0 0.0
        %410 = vmatpush2.msra.mxu0 0.0
        %411 = vmatprep.subr.mxu0 0.0
        %412 = vmatpush2.msra.mxu0 0.0
        %413 = vmatprep.subr.mxu0 0.0
        %414 = vmatpush2.msra.mxu0 0.0
        %415 = vmatprep.subr.mxu0 0.0
        %416 = vmatpush2.msra.mxu0 0.0
        %417 = vmatprep.subr.mxu0 0.0
        %418 = vmatpush2.msra.mxu0 0.0
        %419 = vmatprep.subr.mxu0 0.0
        %420 = vmatpush2.msra.mxu0 0.0
        %421 = vmatprep.subr.mxu0 0.0
        %422 = vmatpush2.msra.mxu0 0.0
        %423 = vmatprep.subr.mxu0 0.0
        %424 = vmatpush2.msra.mxu0 0.0
        %425 = vmatprep.subr.mxu0 0.0
        %426 = vmatpush2.msra.mxu0 0.0
        %427 = vmatprep.subr.mxu0 0.0
        %428 = vmatpush2.msra.mxu0 0.0
        %429 = vmatprep.subr.mxu0 0.0
        %430 = vmatpush2.msra.mxu0 0.0
        %431 = vmatprep.subr.mxu0 0.0
        %432 = vmatpush2.msra.mxu0 0.0
        %433 = vmatprep.subr.mxu0 0.0
        %434 = vmatpush2.msra.mxu0 0.0
        %435 = vmatprep.subr.mxu0 0.0
        %436 = vmatpush2.msra.mxu0 0.0
        %437 = vmatprep.subr.mxu0 0.0
        %438 = vmatpush2.msra.mxu0 0.0
        %439 = vmatprep.mubr.f32.mxu0 0.0
        %v440 = vand.u32 %v274, 4294901760
        %441 = vmatmul.mubr.f32.gmra.mxu0 %v440
        %v442 = vpop.f32.mrf.mxu0
        %v443 = vadd.f32 %v352, %v442
        %v444 = vpop.f32.mrf.mxu0
        %445 = vdwg.mxu0
        %446 = vmatprep.subr.mxu0 0.0
        %447 = vmatpush1.msra.mxu0 0.0
        %448 = vmatprep.subr.mxu0 0.0
        %449 = vmatpush1.msra.mxu0 0.0
        %450 = vmatprep.subr.mxu0 0.0
        %451 = vmatpush1.msra.mxu0 0.0
        %452 = vmatprep.subr.mxu0 0.0
        %453 = vmatpush1.msra.mxu0 0.0
        %454 = vmatprep.subr.mxu0 0.0
        %455 = vmatpush1.msra.mxu0 0.0
        %456 = vmatprep.subr.mxu0 0.0
        %457 = vmatpush1.msra.mxu0 0.0
        %458 = vmatprep.subr.mxu0 0.0
        %459 = vmatpush1.msra.mxu0 0.0
        %460 = vmatprep.subr.mxu0 0.0
        %461 = vmatpush1.msra.mxu0 0.0
        %462 = vmatprep.subr.mxu0 0.0
        %463 = vmatpush1.msra.mxu0 0.0
        %464 = vmatprep.subr.mxu0 0.0
        %465 = vmatpush1.msra.mxu0 0.0
        %466 = vmatprep.subr.mxu0 0.0
        %467 = vmatpush1.msra.mxu0 0.0
        %468 = vmatprep.subr.mxu0 0.0
        %469 = vmatpush1.msra.mxu0 0.0
        %470 = vmatprep.subr.mxu0 0.0
        %v471 = vand.u32 %v271, 4294901760
        %v472 = vsub.f32 %v271, %v471
        %473 = vmatpush1.msra.mxu0 %v472
        %474 = vmatprep.subr.mxu0 0.0
        %v475 = vand.u32 %v270, 4294901760
        %v476 = vsub.f32 %v270, %v475
        %477 = vmatpush1.msra.mxu0 %v476
        %478 = vmatprep.subr.mxu0 0.0
        %v479 = vand.u32 %v269, 4294901760
        %v480 = vsub.f32 %v269, %v479
        %481 = vmatpush1.msra.mxu0 %v480
        %482 = vmatprep.subr.mxu0 0.0
        %v483 = vand.u32 %v268, 4294901760
        %v484 = vsub.f32 %v268, %v483
        %485 = vmatpush1.msra.mxu0 %v484
        %486 = vmatprep.subr.mxu0 0.0
        %487 = vmatpush2.msra.mxu0 0.0
        %488 = vmatprep.subr.mxu0 0.0
        %489 = vmatpush2.msra.mxu0 0.0
        %490 = vmatprep.subr.mxu0 0.0
        %491 = vmatpush2.msra.mxu0 0.0
        %492 = vmatprep.subr.mxu0 0.0
        %493 = vmatpush2.msra.mxu0 0.0
        %494 = vmatprep.subr.mxu0 0.0
        %495 = vmatpush2.msra.mxu0 0.0
        %496 = vmatprep.subr.mxu0 0.0
        %497 = vmatpush2.msra.mxu0 0.0
        %498 = vmatprep.subr.mxu0 0.0
        %499 = vmatpush2.msra.mxu0 0.0
        %500 = vmatprep.subr.mxu0 0.0
        %501 = vmatpush2.msra.mxu0 0.0
        %502 = vmatprep.subr.mxu0 0.0
        %503 = vmatpush2.msra.mxu0 0.0
        %504 = vmatprep.subr.mxu0 0.0
        %505 = vmatpush2.msra.mxu0 0.0
        %506 = vmatprep.subr.mxu0 0.0
        %507 = vmatpush2.msra.mxu0 0.0
        %508 = vmatprep.subr.mxu0 0.0
        %509 = vmatpush2.msra.mxu0 0.0
        %510 = vmatprep.subr.mxu0 0.0
        %511 = vmatpush2.msra.mxu0 0.0
        %512 = vmatprep.subr.mxu0 0.0
        %513 = vmatpush2.msra.mxu0 0.0
        %514 = vmatprep.subr.mxu0 0.0
        %515 = vmatpush2.msra.mxu0 0.0
        %516 = vmatprep.subr.mxu0 0.0
        %517 = vmatpush2.msra.mxu0 0.0
        %518 = vmatprep.mubr.f32.mxu0 0.0
        %v519 = vand.u32 %v274, 4294901760
        %v520 = vsub.f32 %v274, %v519
        %521 = vmatmul.mubr.f32.gmra.mxu0 %v520
        %v522 = vpop.f32.mrf.mxu0
        %v523 = vadd.f32 %v443, %v522
        %v524 = vpop.f32.mrf.mxu0
        %525 = vdwg.mxu0
        %526 = vmatprep.subr.mxu0 0.0
        %527 = vmatpush1.msra.mxu0 0.0
        %528 = vmatprep.subr.mxu0 0.0
        %529 = vmatpush1.msra.mxu0 0.0
        %530 = vmatprep.subr.mxu0 0.0
        %531 = vmatpush1.msra.mxu0 0.0
        %532 = vmatprep.subr.mxu0 0.0
        %533 = vmatpush1.msra.mxu0 0.0
        %534 = vmatprep.subr.mxu0 0.0
        %535 = vmatpush1.msra.mxu0 0.0
        %536 = vmatprep.subr.mxu0 0.0
        %537 = vmatpush1.msra.mxu0 0.0
        %538 = vmatprep.subr.mxu0 0.0
        %539 = vmatpush1.msra.mxu0 0.0
        %540 = vmatprep.subr.mxu0 0.0
        %541 = vmatpush1.msra.mxu0 0.0
        %542 = vmatprep.subr.mxu0 0.0
        %543 = vmatpush1.msra.mxu0 0.0
        %544 = vmatprep.subr.mxu0 0.0
        %545 = vmatpush1.msra.mxu0 0.0
        %546 = vmatprep.subr.mxu0 0.0
        %547 = vmatpush1.msra.mxu0 0.0
        %548 = vmatprep.subr.mxu0 0.0
        %549 = vmatpush1.msra.mxu0 0.0
        %550 = vmatprep.subr.mxu0 0.0
        %v551 = vand.u32 %v271, 4294901760
        %552 = vmatpush1.msra.mxu0 %v551
        %553 = vmatprep.subr.mxu0 0.0
        %v554 = vand.u32 %v270, 4294901760
        %555 = vmatpush1.msra.mxu0 %v554
        %556 = vmatprep.subr.mxu0 0.0
        %v557 = vand.u32 %v269, 4294901760
        %558 = vmatpush1.msra.mxu0 %v557
        %559 = vmatprep.subr.mxu0 0.0
        %v560 = vand.u32 %v268, 4294901760
        %561 = vmatpush1.msra.mxu0 %v560
        %562 = vmatprep.subr.mxu0 0.0
        %563 = vmatpush2.msra.mxu0 0.0
        %564 = vmatprep.subr.mxu0 0.0
        %565 = vmatpush2.msra.mxu0 0.0
        %566 = vmatprep.subr.mxu0 0.0
        %567 = vmatpush2.msra.mxu0 0.0
        %568 = vmatprep.subr.mxu0 0.0
        %569 = vmatpush2.msra.mxu0 0.0
        %570 = vmatprep.subr.mxu0 0.0
        %571 = vmatpush2.msra.mxu0 0.0
        %572 = vmatprep.subr.mxu0 0.0
        %573 = vmatpush2.msra.mxu0 0.0
        %574 = vmatprep.subr.mxu0 0.0
        %575 = vmatpush2.msra.mxu0 0.0
        %576 = vmatprep.subr.mxu0 0.0
        %577 = vmatpush2.msra.mxu0 0.0
        %578 = vmatprep.subr.mxu0 0.0
        %579 = vmatpush2.msra.mxu0 0.0
        %580 = vmatprep.subr.mxu0 0.0
        %581 = vmatpush2.msra.mxu0 0.0
        %582 = vmatprep.subr.mxu0 0.0
        %583 = vmatpush2.msra.mxu0 0.0
        %584 = vmatprep.subr.mxu0 0.0
        %585 = vmatpush2.msra.mxu0 0.0
        %586 = vmatprep.subr.mxu0 0.0
        %587 = vmatpush2.msra.mxu0 0.0
        %588 = vmatprep.subr.mxu0 0.0
        %589 = vmatpush2.msra.mxu0 0.0
        %590 = vmatprep.subr.mxu0 0.0
        %591 = vmatpush2.msra.mxu0 0.0
        %592 = vmatprep.subr.mxu0 0.0
        %593 = vmatpush2.msra.mxu0 0.0
        %594 = vmatprep.mubr.f32.mxu0 0.0
        %v595 = vand.u32 %v274, 4294901760
        %v596 = vsub.f32 %v274, %v595
        %v597 = vand.u32 %v596, 4294901760
        %598 = vmatmul.mubr.f32.gmra.mxu0 %v597
        %v599 = vpop.f32.mrf.mxu0
        %v600 = vadd.f32 %v523, %v599
        %v601 = vpop.f32.mrf.mxu0
        %602 = vdwg.mxu0
        %603 = vmatprep.subr.mxu0 0.0
        %604 = vmatpush1.msra.mxu0 0.0
        %605 = vmatprep.subr.mxu0 0.0
        %606 = vmatpush1.msra.mxu0 0.0
        %607 = vmatprep.subr.mxu0 0.0
        %608 = vmatpush1.msra.mxu0 0.0
        %609 = vmatprep.subr.mxu0 0.0
        %610 = vmatpush1.msra.mxu0 0.0
        %611 = vmatprep.subr.mxu0 0.0
        %612 = vmatpush1.msra.mxu0 0.0
        %613 = vmatprep.subr.mxu0 0.0
        %614 = vmatpush1.msra.mxu0 0.0
        %615 = vmatprep.subr.mxu0 0.0
        %616 = vmatpush1.msra.mxu0 0.0
        %617 = vmatprep.subr.mxu0 0.0
        %618 = vmatpush1.msra.mxu0 0.0
        %619 = vmatprep.subr.mxu0 0.0
        %620 = vmatpush1.msra.mxu0 0.0
        %621 = vmatprep.subr.mxu0 0.0
        %622 = vmatpush1.msra.mxu0 0.0
        %623 = vmatprep.subr.mxu0 0.0
        %624 = vmatpush1.msra.mxu0 0.0
        %625 = vmatprep.subr.mxu0 0.0
        %626 = vmatpush1.msra.mxu0 0.0
        %627 = vmatprep.subr.mxu0 0.0
        %v628 = vand.u32 %v271, 4294901760
        %v629 = vsub.f32 %v271, %v628
        %v630 = vand.u32 %v629, 4294901760
        %631 = vmatpush1.msra.mxu0 %v630
        %632 = vmatprep.subr.mxu0 0.0
        %v633 = vand.u32 %v270, 4294901760
        %v634 = vsub.f32 %v270, %v633
        %v635 = vand.u32 %v634, 4294901760
        %636 = vmatpush1.msra.mxu0 %v635
        %637 = vmatprep.subr.mxu0 0.0
        %v638 = vand.u32 %v269, 4294901760
        %v639 = vsub.f32 %v269, %v638
        %v640 = vand.u32 %v639, 4294901760
        %641 = vmatpush1.msra.mxu0 %v640
        %642 = vmatprep.subr.mxu0 0.0
        %v643 = vand.u32 %v268, 4294901760
        %v644 = vsub.f32 %v268, %v643
        %v645 = vand.u32 %v644, 4294901760
        %646 = vmatpush1.msra.mxu0 %v645
        %647 = vmatprep.subr.mxu0 0.0
        %648 = vmatpush2.msra.mxu0 0.0
        %649 = vmatprep.subr.mxu0 0.0
        %650 = vmatpush2.msra.mxu0 0.0
        %651 = vmatprep.subr.mxu0 0.0
        %652 = vmatpush2.msra.mxu0 0.0
        %653 = vmatprep.subr.mxu0 0.0
        %654 = vmatpush2.msra.mxu0 0.0
        %655 = vmatprep.subr.mxu0 0.0
        %656 = vmatpush2.msra.mxu0 0.0
        %657 = vmatprep.subr.mxu0 0.0
        %658 = vmatpush2.msra.mxu0 0.0
        %659 = vmatprep.subr.mxu0 0.0
        %660 = vmatpush2.msra.mxu0 0.0
        %661 = vmatprep.subr.mxu0 0.0
        %662 = vmatpush2.msra.mxu0 0.0
        %663 = vmatprep.subr.mxu0 0.0
        %664 = vmatpush2.msra.mxu0 0.0
        %665 = vmatprep.subr.mxu0 0.0
        %666 = vmatpush2.msra.mxu0 0.0
        %667 = vmatprep.subr.mxu0 0.0
        %668 = vmatpush2.msra.mxu0 0.0
        %669 = vmatprep.subr.mxu0 0.0
        %670 = vmatpush2.msra.mxu0 0.0
        %671 = vmatprep.subr.mxu0 0.0
        %672 = vmatpush2.msra.mxu0 0.0
        %673 = vmatprep.subr.mxu0 0.0
        %674 = vmatpush2.msra.mxu0 0.0
        %675 = vmatprep.subr.mxu0 0.0
        %676 = vmatpush2.msra.mxu0 0.0
        %677 = vmatprep.subr.mxu0 0.0
        %678 = vmatpush2.msra.mxu0 0.0
        %679 = vmatprep.mubr.f32.mxu0 0.0
        %v680 = vand.u32 %v274, 4294901760
        %681 = vmatmul.mubr.f32.gmra.mxu0 %v680
        %v682 = vpop.f32.mrf.mxu0
        %v683 = vadd.f32 %v600, %v682
        %v684 = vpop.f32.mrf.mxu0
        %685 = vdwg.mxu0
        %686 = vmatprep.subr.mxu0 0.0
        %687 = vmatpush1.msra.mxu0 0.0
        %688 = vmatprep.subr.mxu0 0.0
        %689 = vmatpush1.msra.mxu0 0.0
        %690 = vmatprep.subr.mxu0 0.0
        %691 = vmatpush1.msra.mxu0 0.0
        %692 = vmatprep.subr.mxu0 0.0
        %693 = vmatpush1.msra.mxu0 0.0
        %694 = vmatprep.subr.mxu0 0.0
        %695 = vmatpush1.msra.mxu0 0.0
        %696 = vmatprep.subr.mxu0 0.0
        %697 = vmatpush1.msra.mxu0 0.0
        %698 = vmatprep.subr.mxu0 0.0
        %699 = vmatpush1.msra.mxu0 0.0
        %700 = vmatprep.subr.mxu0 0.0
        %701 = vmatpush1.msra.mxu0 0.0
        %702 = vmatprep.subr.mxu0 0.0
        %703 = vmatpush1.msra.mxu0 0.0
        %704 = vmatprep.subr.mxu0 0.0
        %705 = vmatpush1.msra.mxu0 0.0
        %706 = vmatprep.subr.mxu0 0.0
        %707 = vmatpush1.msra.mxu0 0.0
        %708 = vmatprep.subr.mxu0 0.0
        %709 = vmatpush1.msra.mxu0 0.0
        %710 = vmatprep.subr.mxu0 0.0
        %v711 = vand.u32 %v271, 4294901760
        %712 = vmatpush1.msra.mxu0 %v711
        %713 = vmatprep.subr.mxu0 0.0
        %v714 = vand.u32 %v270, 4294901760
        %715 = vmatpush1.msra.mxu0 %v714
        %716 = vmatprep.subr.mxu0 0.0
        %v717 = vand.u32 %v269, 4294901760
        %718 = vmatpush1.msra.mxu0 %v717
        %719 = vmatprep.subr.mxu0 0.0
        %v720 = vand.u32 %v268, 4294901760
        %721 = vmatpush1.msra.mxu0 %v720
        %722 = vmatprep.subr.mxu0 0.0
        %723 = vmatpush2.msra.mxu0 0.0
        %724 = vmatprep.subr.mxu0 0.0
        %725 = vmatpush2.msra.mxu0 0.0
        %726 = vmatprep.subr.mxu0 0.0
        %727 = vmatpush2.msra.mxu0 0.0
        %728 = vmatprep.subr.mxu0 0.0
        %729 = vmatpush2.msra.mxu0 0.0
        %730 = vmatprep.subr.mxu0 0.0
        %731 = vmatpush2.msra.mxu0 0.0
        %732 = vmatprep.subr.mxu0 0.0
        %733 = vmatpush2.msra.mxu0 0.0
        %734 = vmatprep.subr.mxu0 0.0
        %735 = vmatpush2.msra.mxu0 0.0
        %736 = vmatprep.subr.mxu0 0.0
        %737 = vmatpush2.msra.mxu0 0.0
        %738 = vmatprep.subr.mxu0 0.0
        %739 = vmatpush2.msra.mxu0 0.0
        %740 = vmatprep.subr.mxu0 0.0
        %741 = vmatpush2.msra.mxu0 0.0
        %742 = vmatprep.subr.mxu0 0.0
        %743 = vmatpush2.msra.mxu0 0.0
        %744 = vmatprep.subr.mxu0 0.0
        %745 = vmatpush2.msra.mxu0 0.0
        %746 = vmatprep.subr.mxu0 0.0
        %747 = vmatpush2.msra.mxu0 0.0
        %748 = vmatprep.subr.mxu0 0.0
        %749 = vmatpush2.msra.mxu0 0.0
        %750 = vmatprep.subr.mxu0 0.0
        %751 = vmatpush2.msra.mxu0 0.0
        %752 = vmatprep.subr.mxu0 0.0
        %753 = vmatpush2.msra.mxu0 0.0
        %754 = vmatprep.mubr.f32.mxu0 0.0
        %v755 = vand.u32 %v274, 4294901760
        %756 = vmatmul.mubr.f32.gmra.mxu0 %v755
        %v757 = vpop.f32.mrf.mxu0
        %v758 = vadd.f32 %v683, %v757
        %v759 = vpop.f32.mrf.mxu0
        %760 = vdwg.mxu0
        %s761 = scalar_lea.vmem %s236, 8 [#allocation2]
        %v762 = vld [vmem:[%s761] sm:$0xff]
        %763 = vset.pattern.permute.xlu0 0
        %764 = vperm.xlu0 %763, %v762
        %v765 = vpop.permute.xlu0 %764
        %vm766 = vcmp.eq.s32.totalorder %v765, %v260
        %v767 = vsel %vm766, 1, 0
        %v768 = vcvt.s32.f32 %v767
        %v770 = vsel %vm272, %v768, 0
        %772 = vmatprep.subr.mxu0 0.0
        %773 = vmatpush1.msra.mxu0 0.0
        %774 = vmatprep.subr.mxu0 0.0
        %775 = vmatpush1.msra.mxu0 0.0
        %776 = vmatprep.subr.mxu0 0.0
        %777 = vmatpush1.msra.mxu0 0.0
        %778 = vmatprep.subr.mxu0 0.0
        %779 = vmatpush1.msra.mxu0 0.0
        %780 = vmatprep.subr.mxu0 0.0
        %781 = vmatpush1.msra.mxu0 0.0
        %782 = vmatprep.subr.mxu0 0.0
        %783 = vmatpush1.msra.mxu0 0.0
        %784 = vmatprep.subr.mxu0 0.0
        %785 = vmatpush1.msra.mxu0 0.0
        %786 = vmatprep.subr.mxu0 0.0
        %787 = vmatpush1.msra.mxu0 0.0
        %788 = vmatprep.subr.mxu0 0.0
        %789 = vmatpush1.msra.mxu0 0.0
        %790 = vmatprep.subr.mxu0 0.0
        %791 = vmatpush1.msra.mxu0 0.0
        %792 = vmatprep.subr.mxu0 0.0
        %793 = vmatpush1.msra.mxu0 0.0
        %794 = vmatprep.subr.mxu0 0.0
        %795 = vmatpush1.msra.mxu0 0.0
        %796 = vmatprep.subr.mxu0 0.0
        %v797 = vand.u32 %v271, 4294901760
        %798 = vmatpush1.msra.mxu0 %v797
        %799 = vmatprep.subr.mxu0 0.0
        %v800 = vand.u32 %v270, 4294901760
        %801 = vmatpush1.msra.mxu0 %v800
        %802 = vmatprep.subr.mxu0 0.0
        %v803 = vand.u32 %v269, 4294901760
        %804 = vmatpush1.msra.mxu0 %v803
        %805 = vmatprep.subr.mxu0 0.0
        %v806 = vand.u32 %v268, 4294901760
        %807 = vmatpush1.msra.mxu0 %v806
        %808 = vmatprep.subr.mxu0 0.0
        %809 = vmatpush2.msra.mxu0 0.0
        %810 = vmatprep.subr.mxu0 0.0
        %811 = vmatpush2.msra.mxu0 0.0
        %812 = vmatprep.subr.mxu0 0.0
        %813 = vmatpush2.msra.mxu0 0.0
        %814 = vmatprep.subr.mxu0 0.0
        %815 = vmatpush2.msra.mxu0 0.0
        %816 = vmatprep.subr.mxu0 0.0
        %817 = vmatpush2.msra.mxu0 0.0
        %818 = vmatprep.subr.mxu0 0.0
        %819 = vmatpush2.msra.mxu0 0.0
        %820 = vmatprep.subr.mxu0 0.0
        %821 = vmatpush2.msra.mxu0 0.0
        %822 = vmatprep.subr.mxu0 0.0
        %823 = vmatpush2.msra.mxu0 0.0
        %824 = vmatprep.subr.mxu0 0.0
        %825 = vmatpush2.msra.mxu0 0.0
        %826 = vmatprep.subr.mxu0 0.0
        %827 = vmatpush2.msra.mxu0 0.0
        %828 = vmatprep.subr.mxu0 0.0
        %829 = vmatpush2.msra.mxu0 0.0
        %830 = vmatprep.subr.mxu0 0.0
        %831 = vmatpush2.msra.mxu0 0.0
        %832 = vmatprep.subr.mxu0 0.0
        %833 = vmatpush2.msra.mxu0 0.0
        %834 = vmatprep.subr.mxu0 0.0
        %835 = vmatpush2.msra.mxu0 0.0
        %836 = vmatprep.subr.mxu0 0.0
        %837 = vmatpush2.msra.mxu0 0.0
        %838 = vmatprep.subr.mxu0 0.0
        %839 = vmatpush2.msra.mxu0 0.0
        %840 = vmatprep.mubr.f32.mxu0 0.0
        %v841 = vand.u32 %v770, 4294901760
        %v842 = vsub.f32 %v770, %v841
        %v843 = vand.u32 %v842, 4294901760
        %v844 = vsub.f32 %v842, %v843
        %v845 = vand.u32 %v844, 4294901760
        %846 = vmatmul.mubr.f32.gmra.mxu0 %v845
        %v847 = vpop.f32.mrf.mxu0
        %v848 = vadd.f32 0.0, %v847
        %v849 = vpop.f32.mrf.mxu0
        %850 = vdwg.mxu0
        %851 = vmatprep.subr.mxu0 0.0
        %852 = vmatpush1.msra.mxu0 0.0
        %853 = vmatprep.subr.mxu0 0.0
        %854 = vmatpush1.msra.mxu0 0.0
        %855 = vmatprep.subr.mxu0 0.0
        %856 = vmatpush1.msra.mxu0 0.0
        %857 = vmatprep.subr.mxu0 0.0
        %858 = vmatpush1.msra.mxu0 0.0
        %859 = vmatprep.subr.mxu0 0.0
        %860 = vmatpush1.msra.mxu0 0.0
        %861 = vmatprep.subr.mxu0 0.0
        %862 = vmatpush1.msra.mxu0 0.0
        %863 = vmatprep.subr.mxu0 0.0
        %864 = vmatpush1.msra.mxu0 0.0
        %865 = vmatprep.subr.mxu0 0.0
        %866 = vmatpush1.msra.mxu0 0.0
        %867 = vmatprep.subr.mxu0 0.0
        %868 = vmatpush1.msra.mxu0 0.0
        %869 = vmatprep.subr.mxu0 0.0
        %870 = vmatpush1.msra.mxu0 0.0
        %871 = vmatprep.subr.mxu0 0.0
        %872 = vmatpush1.msra.mxu0 0.0
        %873 = vmatprep.subr.mxu0 0.0
        %874 = vmatpush1.msra.mxu0 0.0
        %875 = vmatprep.subr.mxu0 0.0
        %v876 = vand.u32 %v271, 4294901760
        %v877 = vsub.f32 %v271, %v876
        %v878 = vand.u32 %v877, 4294901760
        %v879 = vsub.f32 %v877, %v878
        %v880 = vand.u32 %v879, 4294901760
        %881 = vmatpush1.msra.mxu0 %v880
        %882 = vmatprep.subr.mxu0 0.0
        %v883 = vand.u32 %v270, 4294901760
        %v884 = vsub.f32 %v270, %v883
        %v885 = vand.u32 %v884, 4294901760
        %v886 = vsub.f32 %v884, %v885
        %v887 = vand.u32 %v886, 4294901760
        %888 = vmatpush1.msra.mxu0 %v887
        %889 = vmatprep.subr.mxu0 0.0
        %v890 = vand.u32 %v269, 4294901760
        %v891 = vsub.f32 %v269, %v890
        %v892 = vand.u32 %v891, 4294901760
        %v893 = vsub.f32 %v891, %v892
        %v894 = vand.u32 %v893, 4294901760
        %895 = vmatpush1.msra.mxu0 %v894
        %896 = vmatprep.subr.mxu0 0.0
        %v897 = vand.u32 %v268, 4294901760
        %v898 = vsub.f32 %v268, %v897
        %v899 = vand.u32 %v898, 4294901760
        %v900 = vsub.f32 %v898, %v899
        %v901 = vand.u32 %v900, 4294901760
        %902 = vmatpush1.msra.mxu0 %v901
        %903 = vmatprep.subr.mxu0 0.0
        %904 = vmatpush2.msra.mxu0 0.0
        %905 = vmatprep.subr.mxu0 0.0
        %906 = vmatpush2.msra.mxu0 0.0
        %907 = vmatprep.subr.mxu0 0.0
        %908 = vmatpush2.msra.mxu0 0.0
        %909 = vmatprep.subr.mxu0 0.0
        %910 = vmatpush2.msra.mxu0 0.0
        %911 = vmatprep.subr.mxu0 0.0
        %912 = vmatpush2.msra.mxu0 0.0
        %913 = vmatprep.subr.mxu0 0.0
        %914 = vmatpush2.msra.mxu0 0.0
        %915 = vmatprep.subr.mxu0 0.0
        %916 = vmatpush2.msra.mxu0 0.0
        %917 = vmatprep.subr.mxu0 0.0
        %918 = vmatpush2.msra.mxu0 0.0
        %919 = vmatprep.subr.mxu0 0.0
        %920 = vmatpush2.msra.mxu0 0.0
        %921 = vmatprep.subr.mxu0 0.0
        %922 = vmatpush2.msra.mxu0 0.0
        %923 = vmatprep.subr.mxu0 0.0
        %924 = vmatpush2.msra.mxu0 0.0
        %925 = vmatprep.subr.mxu0 0.0
        %926 = vmatpush2.msra.mxu0 0.0
        %927 = vmatprep.subr.mxu0 0.0
        %928 = vmatpush2.msra.mxu0 0.0
        %929 = vmatprep.subr.mxu0 0.0
        %930 = vmatpush2.msra.mxu0 0.0
        %931 = vmatprep.subr.mxu0 0.0
        %932 = vmatpush2.msra.mxu0 0.0
        %933 = vmatprep.subr.mxu0 0.0
        %934 = vmatpush2.msra.mxu0 0.0
        %935 = vmatprep.mubr.f32.mxu0 0.0
        %v936 = vand.u32 %v770, 4294901760
        %937 = vmatmul.mubr.f32.gmra.mxu0 %v936
        %v938 = vpop.f32.mrf.mxu0
        %v939 = vadd.f32 %v848, %v938
        %v940 = vpop.f32.mrf.mxu0
        %941 = vdwg.mxu0
        %942 = vmatprep.subr.mxu0 0.0
        %943 = vmatpush1.msra.mxu0 0.0
        %944 = vmatprep.subr.mxu0 0.0
        %945 = vmatpush1.msra.mxu0 0.0
        %946 = vmatprep.subr.mxu0 0.0
        %947 = vmatpush1.msra.mxu0 0.0
        %948 = vmatprep.subr.mxu0 0.0
        %949 = vmatpush1.msra.mxu0 0.0
        %950 = vmatprep.subr.mxu0 0.0
        %951 = vmatpush1.msra.mxu0 0.0
        %952 = vmatprep.subr.mxu0 0.0
        %953 = vmatpush1.msra.mxu0 0.0
        %954 = vmatprep.subr.mxu0 0.0
        %955 = vmatpush1.msra.mxu0 0.0
        %956 = vmatprep.subr.mxu0 0.0
        %957 = vmatpush1.msra.mxu0 0.0
        %958 = vmatprep.subr.mxu0 0.0
        %959 = vmatpush1.msra.mxu0 0.0
        %960 = vmatprep.subr.mxu0 0.0
        %961 = vmatpush1.msra.mxu0 0.0
        %962 = vmatprep.subr.mxu0 0.0
        %963 = vmatpush1.msra.mxu0 0.0
        %964 = vmatprep.subr.mxu0 0.0
        %965 = vmatpush1.msra.mxu0 0.0
        %966 = vmatprep.subr.mxu0 0.0
        %v967 = vand.u32 %v271, 4294901760
        %v968 = vsub.f32 %v271, %v967
        %969 = vmatpush1.msra.mxu0 %v968
        %970 = vmatprep.subr.mxu0 0.0
        %v971 = vand.u32 %v270, 4294901760
        %v972 = vsub.f32 %v270, %v971
        %973 = vmatpush1.msra.mxu0 %v972
        %974 = vmatprep.subr.mxu0 0.0
        %v975 = vand.u32 %v269, 4294901760
        %v976 = vsub.f32 %v269, %v975
        %977 = vmatpush1.msra.mxu0 %v976
        %978 = vmatprep.subr.mxu0 0.0
        %v979 = vand.u32 %v268, 4294901760
        %v980 = vsub.f32 %v268, %v979
        %981 = vmatpush1.msra.mxu0 %v980
        %982 = vmatprep.subr.mxu0 0.0
        %983 = vmatpush2.msra.mxu0 0.0
        %984 = vmatprep.subr.mxu0 0.0
        %985 = vmatpush2.msra.mxu0 0.0
        %986 = vmatprep.subr.mxu0 0.0
        %987 = vmatpush2.msra.mxu0 0.0
        %988 = vmatprep.subr.mxu0 0.0
        %989 = vmatpush2.msra.mxu0 0.0
        %990 = vmatprep.subr.mxu0 0.0
        %991 = vmatpush2.msra.mxu0 0.0
        %992 = vmatprep.subr.mxu0 0.0
        %993 = vmatpush2.msra.mxu0 0.0
        %994 = vmatprep.subr.mxu0 0.0
        %995 = vmatpush2.msra.mxu0 0.0
        %996 = vmatprep.subr.mxu0 0.0
        %997 = vmatpush2.msra.mxu0 0.0
        %998 = vmatprep.subr.mxu0 0.0
        %999 = vmatpush2.msra.mxu0 0.0
        %1000 = vmatprep.subr.mxu0 0.0
        %1001 = vmatpush2.msra.mxu0 0.0
        %1002 = vmatprep.subr.mxu0 0.0
        %1003 = vmatpush2.msra.mxu0 0.0
        %1004 = vmatprep.subr.mxu0 0.0
        %1005 = vmatpush2.msra.mxu0 0.0
        %1006 = vmatprep.subr.mxu0 0.0
        %1007 = vmatpush2.msra.mxu0 0.0
        %1008 = vmatprep.subr.mxu0 0.0
        %1009 = vmatpush2.msra.mxu0 0.0
        %1010 = vmatprep.subr.mxu0 0.0
        %1011 = vmatpush2.msra.mxu0 0.0
        %1012 = vmatprep.subr.mxu0 0.0
        %1013 = vmatpush2.msra.mxu0 0.0
        %1014 = vmatprep.mubr.f32.mxu0 0.0
        %v1015 = vand.u32 %v770, 4294901760
        %v1016 = vsub.f32 %v770, %v1015
        %1017 = vmatmul.mubr.f32.gmra.mxu0 %v1016
        %v1018 = vpop.f32.mrf.mxu0
        %v1019 = vadd.f32 %v939, %v1018
        %v1020 = vpop.f32.mrf.mxu0
        %1021 = vdwg.mxu0
        %1022 = vmatprep.subr.mxu0 0.0
        %1023 = vmatpush1.msra.mxu0 0.0
        %1024 = vmatprep.subr.mxu0 0.0
        %1025 = vmatpush1.msra.mxu0 0.0
        %1026 = vmatprep.subr.mxu0 0.0
        %1027 = vmatpush1.msra.mxu0 0.0
        %1028 = vmatprep.subr.mxu0 0.0
        %1029 = vmatpush1.msra.mxu0 0.0
        %1030 = vmatprep.subr.mxu0 0.0
        %1031 = vmatpush1.msra.mxu0 0.0
        %1032 = vmatprep.subr.mxu0 0.0
        %1033 = vmatpush1.msra.mxu0 0.0
        %1034 = vmatprep.subr.mxu0 0.0
        %1035 = vmatpush1.msra.mxu0 0.0
        %1036 = vmatprep.subr.mxu0 0.0
        %1037 = vmatpush1.msra.mxu0 0.0
        %1038 = vmatprep.subr.mxu0 0.0
        %1039 = vmatpush1.msra.mxu0 0.0
        %1040 = vmatprep.subr.mxu0 0.0
        %1041 = vmatpush1.msra.mxu0 0.0
        %1042 = vmatprep.subr.mxu0 0.0
        %1043 = vmatpush1.msra.mxu0 0.0
        %1044 = vmatprep.subr.mxu0 0.0
        %1045 = vmatpush1.msra.mxu0 0.0
        %1046 = vmatprep.subr.mxu0 0.0
        %v1047 = vand.u32 %v271, 4294901760
        %1048 = vmatpush1.msra.mxu0 %v1047
        %1049 = vmatprep.subr.mxu0 0.0
        %v1050 = vand.u32 %v270, 4294901760
        %1051 = vmatpush1.msra.mxu0 %v1050
        %1052 = vmatprep.subr.mxu0 0.0
        %v1053 = vand.u32 %v269, 4294901760
        %1054 = vmatpush1.msra.mxu0 %v1053
        %1055 = vmatprep.subr.mxu0 0.0
        %v1056 = vand.u32 %v268, 4294901760
        %1057 = vmatpush1.msra.mxu0 %v1056
        %1058 = vmatprep.subr.mxu0 0.0
        %1059 = vmatpush2.msra.mxu0 0.0
        %1060 = vmatprep.subr.mxu0 0.0
        %1061 = vmatpush2.msra.mxu0 0.0
        %1062 = vmatprep.subr.mxu0 0.0
        %1063 = vmatpush2.msra.mxu0 0.0
        %1064 = vmatprep.subr.mxu0 0.0
        %1065 = vmatpush2.msra.mxu0 0.0
        %1066 = vmatprep.subr.mxu0 0.0
        %1067 = vmatpush2.msra.mxu0 0.0
        %1068 = vmatprep.subr.mxu0 0.0
        %1069 = vmatpush2.msra.mxu0 0.0
        %1070 = vmatprep.subr.mxu0 0.0
        %1071 = vmatpush2.msra.mxu0 0.0
        %1072 = vmatprep.subr.mxu0 0.0
        %1073 = vmatpush2.msra.mxu0 0.0
        %1074 = vmatprep.subr.mxu0 0.0
        %1075 = vmatpush2.msra.mxu0 0.0
        %1076 = vmatprep.subr.mxu0 0.0
        %1077 = vmatpush2.msra.mxu0 0.0
        %1078 = vmatprep.subr.mxu0 0.0
        %1079 = vmatpush2.msra.mxu0 0.0
        %1080 = vmatprep.subr.mxu0 0.0
        %1081 = vmatpush2.msra.mxu0 0.0
        %1082 = vmatprep.subr.mxu0 0.0
        %1083 = vmatpush2.msra.mxu0 0.0
        %1084 = vmatprep.subr.mxu0 0.0
        %1085 = vmatpush2.msra.mxu0 0.0
        %1086 = vmatprep.subr.mxu0 0.0
        %1087 = vmatpush2.msra.mxu0 0.0
        %1088 = vmatprep.subr.mxu0 0.0
        %1089 = vmatpush2.msra.mxu0 0.0
        %1090 = vmatprep.mubr.f32.mxu0 0.0
        %v1091 = vand.u32 %v770, 4294901760
        %v1092 = vsub.f32 %v770, %v1091
        %v1093 = vand.u32 %v1092, 4294901760
        %1094 = vmatmul.mubr.f32.gmra.mxu0 %v1093
        %v1095 = vpop.f32.mrf.mxu0
        %v1096 = vadd.f32 %v1019, %v1095
        %v1097 = vpop.f32.mrf.mxu0
        %1098 = vdwg.mxu0
        %1099 = vmatprep.subr.mxu0 0.0
        %1100 = vmatpush1.msra.mxu0 0.0
        %1101 = vmatprep.subr.mxu0 0.0
        %1102 = vmatpush1.msra.mxu0 0.0
        %1103 = vmatprep.subr.mxu0 0.0
        %1104 = vmatpush1.msra.mxu0 0.0
        %1105 = vmatprep.subr.mxu0 0.0
        %1106 = vmatpush1.msra.mxu0 0.0
        %1107 = vmatprep.subr.mxu0 0.0
        %1108 = vmatpush1.msra.mxu0 0.0
        %1109 = vmatprep.subr.mxu0 0.0
        %1110 = vmatpush1.msra.mxu0 0.0
        %1111 = vmatprep.subr.mxu0 0.0
        %1112 = vmatpush1.msra.mxu0 0.0
        %1113 = vmatprep.subr.mxu0 0.0
        %1114 = vmatpush1.msra.mxu0 0.0
        %1115 = vmatprep.subr.mxu0 0.0
        %1116 = vmatpush1.msra.mxu0 0.0
        %1117 = vmatprep.subr.mxu0 0.0
        %1118 = vmatpush1.msra.mxu0 0.0
        %1119 = vmatprep.subr.mxu0 0.0
        %1120 = vmatpush1.msra.mxu0 0.0
        %1121 = vmatprep.subr.mxu0 0.0
        %1122 = vmatpush1.msra.mxu0 0.0
        %1123 = vmatprep.subr.mxu0 0.0
        %v1124 = vand.u32 %v271, 4294901760
        %v1125 = vsub.f32 %v271, %v1124
        %v1126 = vand.u32 %v1125, 4294901760
        %1127 = vmatpush1.msra.mxu0 %v1126
        %1128 = vmatprep.subr.mxu0 0.0
        %v1129 = vand.u32 %v270, 4294901760
        %v1130 = vsub.f32 %v270, %v1129
        %v1131 = vand.u32 %v1130, 4294901760
        %1132 = vmatpush1.msra.mxu0 %v1131
        %1133 = vmatprep.subr.mxu0 0.0
        %v1134 = vand.u32 %v269, 4294901760
        %v1135 = vsub.f32 %v269, %v1134
        %v1136 = vand.u32 %v1135, 4294901760
        %1137 = vmatpush1.msra.mxu0 %v1136
        %1138 = vmatprep.subr.mxu0 0.0
        %v1139 = vand.u32 %v268, 4294901760
        %v1140 = vsub.f32 %v268, %v1139
        %v1141 = vand.u32 %v1140, 4294901760
        %1142 = vmatpush1.msra.mxu0 %v1141
        %1143 = vmatprep.subr.mxu0 0.0
        %1144 = vmatpush2.msra.mxu0 0.0
        %1145 = vmatprep.subr.mxu0 0.0
        %1146 = vmatpush2.msra.mxu0 0.0
        %1147 = vmatprep.subr.mxu0 0.0
        %1148 = vmatpush2.msra.mxu0 0.0
        %1149 = vmatprep.subr.mxu0 0.0
        %1150 = vmatpush2.msra.mxu0 0.0
        %1151 = vmatprep.subr.mxu0 0.0
        %1152 = vmatpush2.msra.mxu0 0.0
        %1153 = vmatprep.subr.mxu0 0.0
        %1154 = vmatpush2.msra.mxu0 0.0
        %1155 = vmatprep.subr.mxu0 0.0
        %1156 = vmatpush2.msra.mxu0 0.0
        %1157 = vmatprep.subr.mxu0 0.0
        %1158 = vmatpush2.msra.mxu0 0.0
        %1159 = vmatprep.subr.mxu0 0.0
        %1160 = vmatpush2.msra.mxu0 0.0
        %1161 = vmatprep.subr.mxu0 0.0
        %1162 = vmatpush2.msra.mxu0 0.0
        %1163 = vmatprep.subr.mxu0 0.0
        %1164 = vmatpush2.msra.mxu0 0.0
        %1165 = vmatprep.subr.mxu0 0.0
        %1166 = vmatpush2.msra.mxu0 0.0
        %1167 = vmatprep.subr.mxu0 0.0
        %1168 = vmatpush2.msra.mxu0 0.0
        %1169 = vmatprep.subr.mxu0 0.0
        %1170 = vmatpush2.msra.mxu0 0.0
        %1171 = vmatprep.subr.mxu0 0.0
        %1172 = vmatpush2.msra.mxu0 0.0
        %1173 = vmatprep.subr.mxu0 0.0
        %1174 = vmatpush2.msra.mxu0 0.0
        %1175 = vmatprep.mubr.f32.mxu0 0.0
        %v1176 = vand.u32 %v770, 4294901760
        %1177 = vmatmul.mubr.f32.gmra.mxu0 %v1176
        %v1178 = vpop.f32.mrf.mxu0
        %v1179 = vadd.f32 %v1096, %v1178
        %v1180 = vpop.f32.mrf.mxu0
        %1181 = vdwg.mxu0
        %1182 = vmatprep.subr.mxu0 0.0
        %1183 = vmatpush1.msra.mxu0 0.0
        %1184 = vmatprep.subr.mxu0 0.0
        %1185 = vmatpush1.msra.mxu0 0.0
        %1186 = vmatprep.subr.mxu0 0.0
        %1187 = vmatpush1.msra.mxu0 0.0
        %1188 = vmatprep.subr.mxu0 0.0
        %1189 = vmatpush1.msra.mxu0 0.0
        %1190 = vmatprep.subr.mxu0 0.0
        %1191 = vmatpush1.msra.mxu0 0.0
        %1192 = vmatprep.subr.mxu0 0.0
        %1193 = vmatpush1.msra.mxu0 0.0
        %1194 = vmatprep.subr.mxu0 0.0
        %1195 = vmatpush1.msra.mxu0 0.0
        %1196 = vmatprep.subr.mxu0 0.0
        %1197 = vmatpush1.msra.mxu0 0.0
        %1198 = vmatprep.subr.mxu0 0.0
        %1199 = vmatpush1.msra.mxu0 0.0
        %1200 = vmatprep.subr.mxu0 0.0
        %1201 = vmatpush1.msra.mxu0 0.0
        %1202 = vmatprep.subr.mxu0 0.0
        %1203 = vmatpush1.msra.mxu0 0.0
        %1204 = vmatprep.subr.mxu0 0.0
        %1205 = vmatpush1.msra.mxu0 0.0
        %1206 = vmatprep.subr.mxu0 0.0
        %v1207 = vand.u32 %v271, 4294901760
        %1208 = vmatpush1.msra.mxu0 %v1207
        %1209 = vmatprep.subr.mxu0 0.0
        %v1210 = vand.u32 %v270, 4294901760
        %1211 = vmatpush1.msra.mxu0 %v1210
        %1212 = vmatprep.subr.mxu0 0.0
        %v1213 = vand.u32 %v269, 4294901760
        %1214 = vmatpush1.msra.mxu0 %v1213
        %1215 = vmatprep.subr.mxu0 0.0
        %v1216 = vand.u32 %v268, 4294901760
        %1217 = vmatpush1.msra.mxu0 %v1216
        %1218 = vmatprep.subr.mxu0 0.0
        %1219 = vmatpush2.msra.mxu0 0.0
        %1220 = vmatprep.subr.mxu0 0.0
        %1221 = vmatpush2.msra.mxu0 0.0
        %1222 = vmatprep.subr.mxu0 0.0
        %1223 = vmatpush2.msra.mxu0 0.0
        %1224 = vmatprep.subr.mxu0 0.0
        %1225 = vmatpush2.msra.mxu0 0.0
        %1226 = vmatprep.subr.mxu0 0.0
        %1227 = vmatpush2.msra.mxu0 0.0
        %1228 = vmatprep.subr.mxu0 0.0
        %1229 = vmatpush2.msra.mxu0 0.0
        %1230 = vmatprep.subr.mxu0 0.0
        %1231 = vmatpush2.msra.mxu0 0.0
        %1232 = vmatprep.subr.mxu0 0.0
        %1233 = vmatpush2.msra.mxu0 0.0
        %1234 = vmatprep.subr.mxu0 0.0
        %1235 = vmatpush2.msra.mxu0 0.0
        %1236 = vmatprep.subr.mxu0 0.0
        %1237 = vmatpush2.msra.mxu0 0.0
        %1238 = vmatprep.subr.mxu0 0.0
        %1239 = vmatpush2.msra.mxu0 0.0
        %1240 = vmatprep.subr.mxu0 0.0
        %1241 = vmatpush2.msra.mxu0 0.0
        %1242 = vmatprep.subr.mxu0 0.0
        %1243 = vmatpush2.msra.mxu0 0.0
        %1244 = vmatprep.subr.mxu0 0.0
        %1245 = vmatpush2.msra.mxu0 0.0
        %1246 = vmatprep.subr.mxu0 0.0
        %1247 = vmatpush2.msra.mxu0 0.0
        %1248 = vmatprep.subr.mxu0 0.0
        %1249 = vmatpush2.msra.mxu0 0.0
        %1250 = vmatprep.mubr.f32.mxu0 0.0
        %v1251 = vand.u32 %v770, 4294901760
        %1252 = vmatmul.mubr.f32.gmra.mxu0 %v1251
        %v1253 = vpop.f32.mrf.mxu0
        %v1254 = vadd.f32 %v1179, %v1253
        %v1255 = vpop.f32.mrf.mxu0
        %1256 = vdwg.mxu0
        %v1257 = vmax.f32 %v758, %v1254
        %s1258 = scalar_lea.vmem %s236, 16 [#allocation2]
        %v1259 = vld [vmem:[%s1258] sm:$0xff]
        %1260 = vset.pattern.permute.xlu0 0
        %1261 = vperm.xlu0 %1260, %v1259
        %v1262 = vpop.permute.xlu0 %1261
        %vm1263 = vcmp.eq.s32.totalorder %v1262, %v260
        %v1264 = vsel %vm1263, 1, 0
        %v1265 = vcvt.s32.f32 %v1264
        %v1267 = vsel %vm272, %v1265, 0
        %1269 = vmatprep.subr.mxu0 0.0
        %1270 = vmatpush1.msra.mxu0 0.0
        %1271 = vmatprep.subr.mxu0 0.0
        %1272 = vmatpush1.msra.mxu0 0.0
        %1273 = vmatprep.subr.mxu0 0.0
        %1274 = vmatpush1.msra.mxu0 0.0
        %1275 = vmatprep.subr.mxu0 0.0
        %1276 = vmatpush1.msra.mxu0 0.0
        %1277 = vmatprep.subr.mxu0 0.0
        %1278 = vmatpush1.msra.mxu0 0.0
        %1279 = vmatprep.subr.mxu0 0.0
        %1280 = vmatpush1.msra.mxu0 0.0
        %1281 = vmatprep.subr.mxu0 0.0
        %1282 = vmatpush1.msra.mxu0 0.0
        %1283 = vmatprep.subr.mxu0 0.0
        %1284 = vmatpush1.msra.mxu0 0.0
        %1285 = vmatprep.subr.mxu0 0.0
        %1286 = vmatpush1.msra.mxu0 0.0
        %1287 = vmatprep.subr.mxu0 0.0
        %1288 = vmatpush1.msra.mxu0 0.0
        %1289 = vmatprep.subr.mxu0 0.0
        %1290 = vmatpush1.msra.mxu0 0.0
        %1291 = vmatprep.subr.mxu0 0.0
        %1292 = vmatpush1.msra.mxu0 0.0
        %1293 = vmatprep.subr.mxu0 0.0
        %v1294 = vand.u32 %v271, 4294901760
        %1295 = vmatpush1.msra.mxu0 %v1294
        %1296 = vmatprep.subr.mxu0 0.0
        %v1297 = vand.u32 %v270, 4294901760
        %1298 = vmatpush1.msra.mxu0 %v1297
        %1299 = vmatprep.subr.mxu0 0.0
        %v1300 = vand.u32 %v269, 4294901760
        %1301 = vmatpush1.msra.mxu0 %v1300
        %1302 = vmatprep.subr.mxu0 0.0
        %v1303 = vand.u32 %v268, 4294901760
        %1304 = vmatpush1.msra.mxu0 %v1303
        %1305 = vmatprep.subr.mxu0 0.0
        %1306 = vmatpush2.msra.mxu0 0.0
        %1307 = vmatprep.subr.mxu0 0.0
        %1308 = vmatpush2.msra.mxu0 0.0
        %1309 = vmatprep.subr.mxu0 0.0
        %1310 = vmatpush2.msra.mxu0 0.0
        %1311 = vmatprep.subr.mxu0 0.0
        %1312 = vmatpush2.msra.mxu0 0.0
        %1313 = vmatprep.subr.mxu0 0.0
        %1314 = vmatpush2.msra.mxu0 0.0
        %1315 = vmatprep.subr.mxu0 0.0
        %1316 = vmatpush2.msra.mxu0 0.0
        %1317 = vmatprep.subr.mxu0 0.0
        %1318 = vmatpush2.msra.mxu0 0.0
        %1319 = vmatprep.subr.mxu0 0.0
        %1320 = vmatpush2.msra.mxu0 0.0
        %1321 = vmatprep.subr.mxu0 0.0
        %1322 = vmatpush2.msra.mxu0 0.0
        %1323 = vmatprep.subr.mxu0 0.0
        %1324 = vmatpush2.msra.mxu0 0.0
        %1325 = vmatprep.subr.mxu0 0.0
        %1326 = vmatpush2.msra.mxu0 0.0
        %1327 = vmatprep.subr.mxu0 0.0
        %1328 = vmatpush2.msra.mxu0 0.0
        %1329 = vmatprep.subr.mxu0 0.0
        %1330 = vmatpush2.msra.mxu0 0.0
        %1331 = vmatprep.subr.mxu0 0.0
        %1332 = vmatpush2.msra.mxu0 0.0
        %1333 = vmatprep.subr.mxu0 0.0
        %1334 = vmatpush2.msra.mxu0 0.0
        %1335 = vmatprep.subr.mxu0 0.0
        %1336 = vmatpush2.msra.mxu0 0.0
        %1337 = vmatprep.mubr.f32.mxu0 0.0
        %v1338 = vand.u32 %v1267, 4294901760
        %v1339 = vsub.f32 %v1267, %v1338
        %v1340 = vand.u32 %v1339, 4294901760
        %v1341 = vsub.f32 %v1339, %v1340
        %v1342 = vand.u32 %v1341, 4294901760
        %1343 = vmatmul.mubr.f32.gmra.mxu0 %v1342
        %v1344 = vpop.f32.mrf.mxu0
        %v1345 = vadd.f32 0.0, %v1344
        %v1346 = vpop.f32.mrf.mxu0
        %1347 = vdwg.mxu0
        %1348 = vmatprep.subr.mxu0 0.0
        %1349 = vmatpush1.msra.mxu0 0.0
        %1350 = vmatprep.subr.mxu0 0.0
        %1351 = vmatpush1.msra.mxu0 0.0
        %1352 = vmatprep.subr.mxu0 0.0
        %1353 = vmatpush1.msra.mxu0 0.0
        %1354 = vmatprep.subr.mxu0 0.0
        %1355 = vmatpush1.msra.mxu0 0.0
        %1356 = vmatprep.subr.mxu0 0.0
        %1357 = vmatpush1.msra.mxu0 0.0
        %1358 = vmatprep.subr.mxu0 0.0
        %1359 = vmatpush1.msra.mxu0 0.0
        %1360 = vmatprep.subr.mxu0 0.0
        %1361 = vmatpush1.msra.mxu0 0.0
        %1362 = vmatprep.subr.mxu0 0.0
        %1363 = vmatpush1.msra.mxu0 0.0
        %1364 = vmatprep.subr.mxu0 0.0
        %1365 = vmatpush1.msra.mxu0 0.0
        %1366 = vmatprep.subr.mxu0 0.0
        %1367 = vmatpush1.msra.mxu0 0.0
        %1368 = vmatprep.subr.mxu0 0.0
        %1369 = vmatpush1.msra.mxu0 0.0
        %1370 = vmatprep.subr.mxu0 0.0
        %1371 = vmatpush1.msra.mxu0 0.0
        %1372 = vmatprep.subr.mxu0 0.0
        %v1373 = vand.u32 %v271, 4294901760
        %v1374 = vsub.f32 %v271, %v1373
        %v1375 = vand.u32 %v1374, 4294901760
        %v1376 = vsub.f32 %v1374, %v1375
        %v1377 = vand.u32 %v1376, 4294901760
        %1378 = vmatpush1.msra.mxu0 %v1377
        %1379 = vmatprep.subr.mxu0 0.0
        %v1380 = vand.u32 %v270, 4294901760
        %v1381 = vsub.f32 %v270, %v1380
        %v1382 = vand.u32 %v1381, 4294901760
        %v1383 = vsub.f32 %v1381, %v1382
        %v1384 = vand.u32 %v1383, 4294901760
        %1385 = vmatpush1.msra.mxu0 %v1384
        %1386 = vmatprep.subr.mxu0 0.0
        %v1387 = vand.u32 %v269, 4294901760
        %v1388 = vsub.f32 %v269, %v1387
        %v1389 = vand.u32 %v1388, 4294901760
        %v1390 = vsub.f32 %v1388, %v1389
        %v1391 = vand.u32 %v1390, 4294901760
        %1392 = vmatpush1.msra.mxu0 %v1391
        %1393 = vmatprep.subr.mxu0 0.0
        %v1394 = vand.u32 %v268, 4294901760
        %v1395 = vsub.f32 %v268, %v1394
        %v1396 = vand.u32 %v1395, 4294901760
        %v1397 = vsub.f32 %v1395, %v1396
        %v1398 = vand.u32 %v1397, 4294901760
        %1399 = vmatpush1.msra.mxu0 %v1398
        %1400 = vmatprep.subr.mxu0 0.0
        %1401 = vmatpush2.msra.mxu0 0.0
        %1402 = vmatprep.subr.mxu0 0.0
        %1403 = vmatpush2.msra.mxu0 0.0
        %1404 = vmatprep.subr.mxu0 0.0
        %1405 = vmatpush2.msra.mxu0 0.0
        %1406 = vmatprep.subr.mxu0 0.0
        %1407 = vmatpush2.msra.mxu0 0.0
        %1408 = vmatprep.subr.mxu0 0.0
        %1409 = vmatpush2.msra.mxu0 0.0
        %1410 = vmatprep.subr.mxu0 0.0
        %1411 = vmatpush2.msra.mxu0 0.0
        %1412 = vmatprep.subr.mxu0 0.0
        %1413 = vmatpush2.msra.mxu0 0.0
        %1414 = vmatprep.subr.mxu0 0.0
        %1415 = vmatpush2.msra.mxu0 0.0
        %1416 = vmatprep.subr.mxu0 0.0
        %1417 = vmatpush2.msra.mxu0 0.0
        %1418 = vmatprep.subr.mxu0 0.0
        %1419 = vmatpush2.msra.mxu0 0.0
        %1420 = vmatprep.subr.mxu0 0.0
        %1421 = vmatpush2.msra.mxu0 0.0
        %1422 = vmatprep.subr.mxu0 0.0
        %1423 = vmatpush2.msra.mxu0 0.0
        %1424 = vmatprep.subr.mxu0 0.0
        %1425 = vmatpush2.msra.mxu0 0.0
        %1426 = vmatprep.subr.mxu0 0.0
        %1427 = vmatpush2.msra.mxu0 0.0
        %1428 = vmatprep.subr.mxu0 0.0
        %1429 = vmatpush2.msra.mxu0 0.0
        %1430 = vmatprep.subr.mxu0 0.0
        %1431 = vmatpush2.msra.mxu0 0.0
        %1432 = vmatprep.mubr.f32.mxu0 0.0
        %v1433 = vand.u32 %v1267, 4294901760
        %1434 = vmatmul.mubr.f32.gmra.mxu0 %v1433
        %v1435 = vpop.f32.mrf.mxu0
        %v1436 = vadd.f32 %v1345, %v1435
        %v1437 = vpop.f32.mrf.mxu0
        %1438 = vdwg.mxu0
        %1439 = vmatprep.subr.mxu0 0.0
        %1440 = vmatpush1.msra.mxu0 0.0
        %1441 = vmatprep.subr.mxu0 0.0
        %1442 = vmatpush1.msra.mxu0 0.0
        %1443 = vmatprep.subr.mxu0 0.0
        %1444 = vmatpush1.msra.mxu0 0.0
        %1445 = vmatprep.subr.mxu0 0.0
        %1446 = vmatpush1.msra.mxu0 0.0
        %1447 = vmatprep.subr.mxu0 0.0
        %1448 = vmatpush1.msra.mxu0 0.0
        %1449 = vmatprep.subr.mxu0 0.0
        %1450 = vmatpush1.msra.mxu0 0.0
        %1451 = vmatprep.subr.mxu0 0.0
        %1452 = vmatpush1.msra.mxu0 0.0
        %1453 = vmatprep.subr.mxu0 0.0
        %1454 = vmatpush1.msra.mxu0 0.0
        %1455 = vmatprep.subr.mxu0 0.0
        %1456 = vmatpush1.msra.mxu0 0.0
        %1457 = vmatprep.subr.mxu0 0.0
        %1458 = vmatpush1.msra.mxu0 0.0
        %1459 = vmatprep.subr.mxu0 0.0
        %1460 = vmatpush1.msra.mxu0 0.0
        %1461 = vmatprep.subr.mxu0 0.0
        %1462 = vmatpush1.msra.mxu0 0.0
        %1463 = vmatprep.subr.mxu0 0.0
        %v1464 = vand.u32 %v271, 4294901760
        %v1465 = vsub.f32 %v271, %v1464
        %1466 = vmatpush1.msra.mxu0 %v1465
        %1467 = vmatprep.subr.mxu0 0.0
        %v1468 = vand.u32 %v270, 4294901760
        %v1469 = vsub.f32 %v270, %v1468
        %1470 = vmatpush1.msra.mxu0 %v1469
        %1471 = vmatprep.subr.mxu0 0.0
        %v1472 = vand.u32 %v269, 4294901760
        %v1473 = vsub.f32 %v269, %v1472
        %1474 = vmatpush1.msra.mxu0 %v1473
        %1475 = vmatprep.subr.mxu0 0.0
        %v1476 = vand.u32 %v268, 4294901760
        %v1477 = vsub.f32 %v268, %v1476
        %1478 = vmatpush1.msra.mxu0 %v1477
        %1479 = vmatprep.subr.mxu0 0.0
        %1480 = vmatpush2.msra.mxu0 0.0
        %1481 = vmatprep.subr.mxu0 0.0
        %1482 = vmatpush2.msra.mxu0 0.0
        %1483 = vmatprep.subr.mxu0 0.0
        %1484 = vmatpush2.msra.mxu0 0.0
        %1485 = vmatprep.subr.mxu0 0.0
        %1486 = vmatpush2.msra.mxu0 0.0
        %1487 = vmatprep.subr.mxu0 0.0
        %1488 = vmatpush2.msra.mxu0 0.0
        %1489 = vmatprep.subr.mxu0 0.0
        %1490 = vmatpush2.msra.mxu0 0.0
        %1491 = vmatprep.subr.mxu0 0.0
        %1492 = vmatpush2.msra.mxu0 0.0
        %1493 = vmatprep.subr.mxu0 0.0
        %1494 = vmatpush2.msra.mxu0 0.0
        %1495 = vmatprep.subr.mxu0 0.0
        %1496 = vmatpush2.msra.mxu0 0.0
        %1497 = vmatprep.subr.mxu0 0.0
        %1498 = vmatpush2.msra.mxu0 0.0
        %1499 = vmatprep.subr.mxu0 0.0
        %1500 = vmatpush2.msra.mxu0 0.0
        %1501 = vmatprep.subr.mxu0 0.0
        %1502 = vmatpush2.msra.mxu0 0.0
        %1503 = vmatprep.subr.mxu0 0.0
        %1504 = vmatpush2.msra.mxu0 0.0
        %1505 = vmatprep.subr.mxu0 0.0
        %1506 = vmatpush2.msra.mxu0 0.0
        %1507 = vmatprep.subr.mxu0 0.0
        %1508 = vmatpush2.msra.mxu0 0.0
        %1509 = vmatprep.subr.mxu0 0.0
        %1510 = vmatpush2.msra.mxu0 0.0
        %1511 = vmatprep.mubr.f32.mxu0 0.0
        %v1512 = vand.u32 %v1267, 4294901760
        %v1513 = vsub.f32 %v1267, %v1512
        %1514 = vmatmul.mubr.f32.gmra.mxu0 %v1513
        %v1515 = vpop.f32.mrf.mxu0
        %v1516 = vadd.f32 %v1436, %v1515
        %v1517 = vpop.f32.mrf.mxu0
        %1518 = vdwg.mxu0
        %1519 = vmatprep.subr.mxu0 0.0
        %1520 = vmatpush1.msra.mxu0 0.0
        %1521 = vmatprep.subr.mxu0 0.0
        %1522 = vmatpush1.msra.mxu0 0.0
        %1523 = vmatprep.subr.mxu0 0.0
        %1524 = vmatpush1.msra.mxu0 0.0
        %1525 = vmatprep.subr.mxu0 0.0
        %1526 = vmatpush1.msra.mxu0 0.0
        %1527 = vmatprep.subr.mxu0 0.0
        %1528 = vmatpush1.msra.mxu0 0.0
        %1529 = vmatprep.subr.mxu0 0.0
        %1530 = vmatpush1.msra.mxu0 0.0
        %1531 = vmatprep.subr.mxu0 0.0
        %1532 = vmatpush1.msra.mxu0 0.0
        %1533 = vmatprep.subr.mxu0 0.0
        %1534 = vmatpush1.msra.mxu0 0.0
        %1535 = vmatprep.subr.mxu0 0.0
        %1536 = vmatpush1.msra.mxu0 0.0
        %1537 = vmatprep.subr.mxu0 0.0
        %1538 = vmatpush1.msra.mxu0 0.0
        %1539 = vmatprep.subr.mxu0 0.0
        %1540 = vmatpush1.msra.mxu0 0.0
        %1541 = vmatprep.subr.mxu0 0.0
        %1542 = vmatpush1.msra.mxu0 0.0
        %1543 = vmatprep.subr.mxu0 0.0
        %v1544 = vand.u32 %v271, 4294901760
        %1545 = vmatpush1.msra.mxu0 %v1544
        %1546 = vmatprep.subr.mxu0 0.0
        %v1547 = vand.u32 %v270, 4294901760
        %1548 = vmatpush1.msra.mxu0 %v1547
        %1549 = vmatprep.subr.mxu0 0.0
        %v1550 = vand.u32 %v269, 4294901760
        %1551 = vmatpush1.msra.mxu0 %v1550
        %1552 = vmatprep.subr.mxu0 0.0
        %v1553 = vand.u32 %v268, 4294901760
        %1554 = vmatpush1.msra.mxu0 %v1553
        %1555 = vmatprep.subr.mxu0 0.0
        %1556 = vmatpush2.msra.mxu0 0.0
        %1557 = vmatprep.subr.mxu0 0.0
        %1558 = vmatpush2.msra.mxu0 0.0
        %1559 = vmatprep.subr.mxu0 0.0
        %1560 = vmatpush2.msra.mxu0 0.0
        %1561 = vmatprep.subr.mxu0 0.0
        %1562 = vmatpush2.msra.mxu0 0.0
        %1563 = vmatprep.subr.mxu0 0.0
        %1564 = vmatpush2.msra.mxu0 0.0
        %1565 = vmatprep.subr.mxu0 0.0
        %1566 = vmatpush2.msra.mxu0 0.0
        %1567 = vmatprep.subr.mxu0 0.0
        %1568 = vmatpush2.msra.mxu0 0.0
        %1569 = vmatprep.subr.mxu0 0.0
        %1570 = vmatpush2.msra.mxu0 0.0
        %1571 = vmatprep.subr.mxu0 0.0
        %1572 = vmatpush2.msra.mxu0 0.0
        %1573 = vmatprep.subr.mxu0 0.0
        %1574 = vmatpush2.msra.mxu0 0.0
        %1575 = vmatprep.subr.mxu0 0.0
        %1576 = vmatpush2.msra.mxu0 0.0
        %1577 = vmatprep.subr.mxu0 0.0
        %1578 = vmatpush2.msra.mxu0 0.0
        %1579 = vmatprep.subr.mxu0 0.0
        %1580 = vmatpush2.msra.mxu0 0.0
        %1581 = vmatprep.subr.mxu0 0.0
        %1582 = vmatpush2.msra.mxu0 0.0
        %1583 = vmatprep.subr.mxu0 0.0
        %1584 = vmatpush2.msra.mxu0 0.0
        %1585 = vmatprep.subr.mxu0 0.0
        %1586 = vmatpush2.msra.mxu0 0.0
        %1587 = vmatprep.mubr.f32.mxu0 0.0
        %v1588 = vand.u32 %v1267, 4294901760
        %v1589 = vsub.f32 %v1267, %v1588
        %v1590 = vand.u32 %v1589, 4294901760
        %1591 = vmatmul.mubr.f32.gmra.mxu0 %v1590
        %v1592 = vpop.f32.mrf.mxu0
        %v1593 = vadd.f32 %v1516, %v1592
        %v1594 = vpop.f32.mrf.mxu0
        %1595 = vdwg.mxu0
        %1596 = vmatprep.subr.mxu0 0.0
        %1597 = vmatpush1.msra.mxu0 0.0
        %1598 = vmatprep.subr.mxu0 0.0
        %1599 = vmatpush1.msra.mxu0 0.0
        %1600 = vmatprep.subr.mxu0 0.0
        %1601 = vmatpush1.msra.mxu0 0.0
        %1602 = vmatprep.subr.mxu0 0.0
        %1603 = vmatpush1.msra.mxu0 0.0
        %1604 = vmatprep.subr.mxu0 0.0
        %1605 = vmatpush1.msra.mxu0 0.0
        %1606 = vmatprep.subr.mxu0 0.0
        %1607 = vmatpush1.msra.mxu0 0.0
        %1608 = vmatprep.subr.mxu0 0.0
        %1609 = vmatpush1.msra.mxu0 0.0
        %1610 = vmatprep.subr.mxu0 0.0
        %1611 = vmatpush1.msra.mxu0 0.0
        %1612 = vmatprep.subr.mxu0 0.0
        %1613 = vmatpush1.msra.mxu0 0.0
        %1614 = vmatprep.subr.mxu0 0.0
        %1615 = vmatpush1.msra.mxu0 0.0
        %1616 = vmatprep.subr.mxu0 0.0
        %1617 = vmatpush1.msra.mxu0 0.0
        %1618 = vmatprep.subr.mxu0 0.0
        %1619 = vmatpush1.msra.mxu0 0.0
        %1620 = vmatprep.subr.mxu0 0.0
        %v1621 = vand.u32 %v271, 4294901760
        %v1622 = vsub.f32 %v271, %v1621
        %v1623 = vand.u32 %v1622, 4294901760
        %1624 = vmatpush1.msra.mxu0 %v1623
        %1625 = vmatprep.subr.mxu0 0.0
        %v1626 = vand.u32 %v270, 4294901760
        %v1627 = vsub.f32 %v270, %v1626
        %v1628 = vand.u32 %v1627, 4294901760
        %1629 = vmatpush1.msra.mxu0 %v1628
        %1630 = vmatprep.subr.mxu0 0.0
        %v1631 = vand.u32 %v269, 4294901760
        %v1632 = vsub.f32 %v269, %v1631
        %v1633 = vand.u32 %v1632, 4294901760
        %1634 = vmatpush1.msra.mxu0 %v1633
        %1635 = vmatprep.subr.mxu0 0.0
        %v1636 = vand.u32 %v268, 4294901760
        %v1637 = vsub.f32 %v268, %v1636
        %v1638 = vand.u32 %v1637, 4294901760
        %1639 = vmatpush1.msra.mxu0 %v1638
        %1640 = vmatprep.subr.mxu0 0.0
        %1641 = vmatpush2.msra.mxu0 0.0
        %1642 = vmatprep.subr.mxu0 0.0
        %1643 = vmatpush2.msra.mxu0 0.0
        %1644 = vmatprep.subr.mxu0 0.0
        %1645 = vmatpush2.msra.mxu0 0.0
        %1646 = vmatprep.subr.mxu0 0.0
        %1647 = vmatpush2.msra.mxu0 0.0
        %1648 = vmatprep.subr.mxu0 0.0
        %1649 = vmatpush2.msra.mxu0 0.0
        %1650 = vmatprep.subr.mxu0 0.0
        %1651 = vmatpush2.msra.mxu0 0.0
        %1652 = vmatprep.subr.mxu0 0.0
        %1653 = vmatpush2.msra.mxu0 0.0
        %1654 = vmatprep.subr.mxu0 0.0
        %1655 = vmatpush2.msra.mxu0 0.0
        %1656 = vmatprep.subr.mxu0 0.0
        %1657 = vmatpush2.msra.mxu0 0.0
        %1658 = vmatprep.subr.mxu0 0.0
        %1659 = vmatpush2.msra.mxu0 0.0
        %1660 = vmatprep.subr.mxu0 0.0
        %1661 = vmatpush2.msra.mxu0 0.0
        %1662 = vmatprep.subr.mxu0 0.0
        %1663 = vmatpush2.msra.mxu0 0.0
        %1664 = vmatprep.subr.mxu0 0.0
        %1665 = vmatpush2.msra.mxu0 0.0
        %1666 = vmatprep.subr.mxu0 0.0
        %1667 = vmatpush2.msra.mxu0 0.0
        %1668 = vmatprep.subr.mxu0 0.0
        %1669 = vmatpush2.msra.mxu0 0.0
        %1670 = vmatprep.subr.mxu0 0.0
        %1671 = vmatpush2.msra.mxu0 0.0
        %1672 = vmatprep.mubr.f32.mxu0 0.0
        %v1673 = vand.u32 %v1267, 4294901760
        %1674 = vmatmul.mubr.f32.gmra.mxu0 %v1673
        %v1675 = vpop.f32.mrf.mxu0
        %v1676 = vadd.f32 %v1593, %v1675
        %v1677 = vpop.f32.mrf.mxu0
        %1678 = vdwg.mxu0
        %1679 = vmatprep.subr.mxu0 0.0
        %1680 = vmatpush1.msra.mxu0 0.0
        %1681 = vmatprep.subr.mxu0 0.0
        %1682 = vmatpush1.msra.mxu0 0.0
        %1683 = vmatprep.subr.mxu0 0.0
        %1684 = vmatpush1.msra.mxu0 0.0
        %1685 = vmatprep.subr.mxu0 0.0
        %1686 = vmatpush1.msra.mxu0 0.0
        %1687 = vmatprep.subr.mxu0 0.0
        %1688 = vmatpush1.msra.mxu0 0.0
        %1689 = vmatprep.subr.mxu0 0.0
        %1690 = vmatpush1.msra.mxu0 0.0
        %1691 = vmatprep.subr.mxu0 0.0
        %1692 = vmatpush1.msra.mxu0 0.0
        %1693 = vmatprep.subr.mxu0 0.0
        %1694 = vmatpush1.msra.mxu0 0.0
        %1695 = vmatprep.subr.mxu0 0.0
        %1696 = vmatpush1.msra.mxu0 0.0
        %1697 = vmatprep.subr.mxu0 0.0
        %1698 = vmatpush1.msra.mxu0 0.0
        %1699 = vmatprep.subr.mxu0 0.0
        %1700 = vmatpush1.msra.mxu0 0.0
        %1701 = vmatprep.subr.mxu0 0.0
        %1702 = vmatpush1.msra.mxu0 0.0
        %1703 = vmatprep.subr.mxu0 0.0
        %v1704 = vand.u32 %v271, 4294901760
        %1705 = vmatpush1.msra.mxu0 %v1704
        %1706 = vmatprep.subr.mxu0 0.0
        %v1707 = vand.u32 %v270, 4294901760
        %1708 = vmatpush1.msra.mxu0 %v1707
        %1709 = vmatprep.subr.mxu0 0.0
        %v1710 = vand.u32 %v269, 4294901760
        %1711 = vmatpush1.msra.mxu0 %v1710
        %1712 = vmatprep.subr.mxu0 0.0
        %v1713 = vand.u32 %v268, 4294901760
        %1714 = vmatpush1.msra.mxu0 %v1713
        %1715 = vmatprep.subr.mxu0 0.0
        %1716 = vmatpush2.msra.mxu0 0.0
        %1717 = vmatprep.subr.mxu0 0.0
        %1718 = vmatpush2.msra.mxu0 0.0
        %1719 = vmatprep.subr.mxu0 0.0
        %1720 = vmatpush2.msra.mxu0 0.0
        %1721 = vmatprep.subr.mxu0 0.0
        %1722 = vmatpush2.msra.mxu0 0.0
        %1723 = vmatprep.subr.mxu0 0.0
        %1724 = vmatpush2.msra.mxu0 0.0
        %1725 = vmatprep.subr.mxu0 0.0
        %1726 = vmatpush2.msra.mxu0 0.0
        %1727 = vmatprep.subr.mxu0 0.0
        %1728 = vmatpush2.msra.mxu0 0.0
        %1729 = vmatprep.subr.mxu0 0.0
        %1730 = vmatpush2.msra.mxu0 0.0
        %1731 = vmatprep.subr.mxu0 0.0
        %1732 = vmatpush2.msra.mxu0 0.0
        %1733 = vmatprep.subr.mxu0 0.0
        %1734 = vmatpush2.msra.mxu0 0.0
        %1735 = vmatprep.subr.mxu0 0.0
        %1736 = vmatpush2.msra.mxu0 0.0
        %1737 = vmatprep.subr.mxu0 0.0
        %1738 = vmatpush2.msra.mxu0 0.0
        %1739 = vmatprep.subr.mxu0 0.0
        %1740 = vmatpush2.msra.mxu0 0.0
        %1741 = vmatprep.subr.mxu0 0.0
        %1742 = vmatpush2.msra.mxu0 0.0
        %1743 = vmatprep.subr.mxu0 0.0
        %1744 = vmatpush2.msra.mxu0 0.0
        %1745 = vmatprep.subr.mxu0 0.0
        %1746 = vmatpush2.msra.mxu0 0.0
        %1747 = vmatprep.mubr.f32.mxu0 0.0
        %v1748 = vand.u32 %v1267, 4294901760
        %1749 = vmatmul.mubr.f32.gmra.mxu0 %v1748
        %v1750 = vpop.f32.mrf.mxu0
        %v1751 = vadd.f32 %v1676, %v1750
        %v1752 = vpop.f32.mrf.mxu0
        %1753 = vdwg.mxu0
        %v1754 = vmax.f32 %v1257, %v1751
        %s1755 = scalar_lea.vmem %s236, 24 [#allocation2]
        %v1756 = vld [vmem:[%s1755] sm:$0xff]
        %1757 = vset.pattern.permute.xlu0 0
        %1758 = vperm.xlu0 %1757, %v1756
        %v1759 = vpop.permute.xlu0 %1758
        %vm1760 = vcmp.eq.s32.totalorder %v1759, %v260
        %v1761 = vsel %vm1760, 1, 0
        %v1762 = vcvt.s32.f32 %v1761
        %v1764 = vsel %vm272, %v1762, 0
        %1766 = vmatprep.subr.mxu0 0.0
        %1767 = vmatpush1.msra.mxu0 0.0
        %1768 = vmatprep.subr.mxu0 0.0
        %1769 = vmatpush1.msra.mxu0 0.0
        %1770 = vmatprep.subr.mxu0 0.0
        %1771 = vmatpush1.msra.mxu0 0.0
        %1772 = vmatprep.subr.mxu0 0.0
        %1773 = vmatpush1.msra.mxu0 0.0
        %1774 = vmatprep.subr.mxu0 0.0
        %1775 = vmatpush1.msra.mxu0 0.0
        %1776 = vmatprep.subr.mxu0 0.0
        %1777 = vmatpush1.msra.mxu0 0.0
        %1778 = vmatprep.subr.mxu0 0.0
        %1779 = vmatpush1.msra.mxu0 0.0
        %1780 = vmatprep.subr.mxu0 0.0
        %1781 = vmatpush1.msra.mxu0 0.0
        %1782 = vmatprep.subr.mxu0 0.0
        %1783 = vmatpush1.msra.mxu0 0.0
        %1784 = vmatprep.subr.mxu0 0.0
        %1785 = vmatpush1.msra.mxu0 0.0
        %1786 = vmatprep.subr.mxu0 0.0
        %1787 = vmatpush1.msra.mxu0 0.0
        %1788 = vmatprep.subr.mxu0 0.0
        %1789 = vmatpush1.msra.mxu0 0.0
        %1790 = vmatprep.subr.mxu0 0.0
        %v1791 = vand.u32 %v271, 4294901760
        %1792 = vmatpush1.msra.mxu0 %v1791
        %1793 = vmatprep.subr.mxu0 0.0
        %v1794 = vand.u32 %v270, 4294901760
        %1795 = vmatpush1.msra.mxu0 %v1794
        %1796 = vmatprep.subr.mxu0 0.0
        %v1797 = vand.u32 %v269, 4294901760
        %1798 = vmatpush1.msra.mxu0 %v1797
        %1799 = vmatprep.subr.mxu0 0.0
        %v1800 = vand.u32 %v268, 4294901760
        %1801 = vmatpush1.msra.mxu0 %v1800
        %1802 = vmatprep.subr.mxu0 0.0
        %1803 = vmatpush2.msra.mxu0 0.0
        %1804 = vmatprep.subr.mxu0 0.0
        %1805 = vmatpush2.msra.mxu0 0.0
        %1806 = vmatprep.subr.mxu0 0.0
        %1807 = vmatpush2.msra.mxu0 0.0
        %1808 = vmatprep.subr.mxu0 0.0
        %1809 = vmatpush2.msra.mxu0 0.0
        %1810 = vmatprep.subr.mxu0 0.0
        %1811 = vmatpush2.msra.mxu0 0.0
        %1812 = vmatprep.subr.mxu0 0.0
        %1813 = vmatpush2.msra.mxu0 0.0
        %1814 = vmatprep.subr.mxu0 0.0
        %1815 = vmatpush2.msra.mxu0 0.0
        %1816 = vmatprep.subr.mxu0 0.0
        %1817 = vmatpush2.msra.mxu0 0.0
        %1818 = vmatprep.subr.mxu0 0.0
        %1819 = vmatpush2.msra.mxu0 0.0
        %1820 = vmatprep.subr.mxu0 0.0
        %1821 = vmatpush2.msra.mxu0 0.0
        %1822 = vmatprep.subr.mxu0 0.0
        %1823 = vmatpush2.msra.mxu0 0.0
        %1824 = vmatprep.subr.mxu0 0.0
        %1825 = vmatpush2.msra.mxu0 0.0
        %1826 = vmatprep.subr.mxu0 0.0
        %1827 = vmatpush2.msra.mxu0 0.0
        %1828 = vmatprep.subr.mxu0 0.0
        %1829 = vmatpush2.msra.mxu0 0.0
        %1830 = vmatprep.subr.mxu0 0.0
        %1831 = vmatpush2.msra.mxu0 0.0
        %1832 = vmatprep.subr.mxu0 0.0
        %1833 = vmatpush2.msra.mxu0 0.0
        %1834 = vmatprep.mubr.f32.mxu0 0.0
        %v1835 = vand.u32 %v1764, 4294901760
        %v1836 = vsub.f32 %v1764, %v1835
        %v1837 = vand.u32 %v1836, 4294901760
        %v1838 = vsub.f32 %v1836, %v1837
        %v1839 = vand.u32 %v1838, 4294901760
        %1840 = vmatmul.mubr.f32.gmra.mxu0 %v1839
        %v1841 = vpop.f32.mrf.mxu0
        %v1842 = vadd.f32 0.0, %v1841
        %v1843 = vpop.f32.mrf.mxu0
        %1844 = vdwg.mxu0
        %1845 = vmatprep.subr.mxu0 0.0
        %1846 = vmatpush1.msra.mxu0 0.0
        %1847 = vmatprep.subr.mxu0 0.0
        %1848 = vmatpush1.msra.mxu0 0.0
        %1849 = vmatprep.subr.mxu0 0.0
        %1850 = vmatpush1.msra.mxu0 0.0
        %1851 = vmatprep.subr.mxu0 0.0
        %1852 = vmatpush1.msra.mxu0 0.0
        %1853 = vmatprep.subr.mxu0 0.0
        %1854 = vmatpush1.msra.mxu0 0.0
        %1855 = vmatprep.subr.mxu0 0.0
        %1856 = vmatpush1.msra.mxu0 0.0
        %1857 = vmatprep.subr.mxu0 0.0
        %1858 = vmatpush1.msra.mxu0 0.0
        %1859 = vmatprep.subr.mxu0 0.0
        %1860 = vmatpush1.msra.mxu0 0.0
        %1861 = vmatprep.subr.mxu0 0.0
        %1862 = vmatpush1.msra.mxu0 0.0
        %1863 = vmatprep.subr.mxu0 0.0
        %1864 = vmatpush1.msra.mxu0 0.0
        %1865 = vmatprep.subr.mxu0 0.0
        %1866 = vmatpush1.msra.mxu0 0.0
        %1867 = vmatprep.subr.mxu0 0.0
        %1868 = vmatpush1.msra.mxu0 0.0
        %1869 = vmatprep.subr.mxu0 0.0
        %v1870 = vand.u32 %v271, 4294901760
        %v1871 = vsub.f32 %v271, %v1870
        %v1872 = vand.u32 %v1871, 4294901760
        %v1873 = vsub.f32 %v1871, %v1872
        %v1874 = vand.u32 %v1873, 4294901760
        %1875 = vmatpush1.msra.mxu0 %v1874
        %1876 = vmatprep.subr.mxu0 0.0
        %v1877 = vand.u32 %v270, 4294901760
        %v1878 = vsub.f32 %v270, %v1877
        %v1879 = vand.u32 %v1878, 4294901760
        %v1880 = vsub.f32 %v1878, %v1879
        %v1881 = vand.u32 %v1880, 4294901760
        %1882 = vmatpush1.msra.mxu0 %v1881
        %1883 = vmatprep.subr.mxu0 0.0
        %v1884 = vand.u32 %v269, 4294901760
        %v1885 = vsub.f32 %v269, %v1884
        %v1886 = vand.u32 %v1885, 4294901760
        %v1887 = vsub.f32 %v1885, %v1886
        %v1888 = vand.u32 %v1887, 4294901760
        %1889 = vmatpush1.msra.mxu0 %v1888
        %1890 = vmatprep.subr.mxu0 0.0
        %v1891 = vand.u32 %v268, 4294901760
        %v1892 = vsub.f32 %v268, %v1891
        %v1893 = vand.u32 %v1892, 4294901760
        %v1894 = vsub.f32 %v1892, %v1893
        %v1895 = vand.u32 %v1894, 4294901760
        %1896 = vmatpush1.msra.mxu0 %v1895
        %1897 = vmatprep.subr.mxu0 0.0
        %1898 = vmatpush2.msra.mxu0 0.0
        %1899 = vmatprep.subr.mxu0 0.0
        %1900 = vmatpush2.msra.mxu0 0.0
        %1901 = vmatprep.subr.mxu0 0.0
        %1902 = vmatpush2.msra.mxu0 0.0
        %1903 = vmatprep.subr.mxu0 0.0
        %1904 = vmatpush2.msra.mxu0 0.0
        %1905 = vmatprep.subr.mxu0 0.0
        %1906 = vmatpush2.msra.mxu0 0.0
        %1907 = vmatprep.subr.mxu0 0.0
        %1908 = vmatpush2.msra.mxu0 0.0
        %1909 = vmatprep.subr.mxu0 0.0
        %1910 = vmatpush2.msra.mxu0 0.0
        %1911 = vmatprep.subr.mxu0 0.0
        %1912 = vmatpush2.msra.mxu0 0.0
        %1913 = vmatprep.subr.mxu0 0.0
        %1914 = vmatpush2.msra.mxu0 0.0
        %1915 = vmatprep.subr.mxu0 0.0
        %1916 = vmatpush2.msra.mxu0 0.0
        %1917 = vmatprep.subr.mxu0 0.0
        %1918 = vmatpush2.msra.mxu0 0.0
        %1919 = vmatprep.subr.mxu0 0.0
        %1920 = vmatpush2.msra.mxu0 0.0
        %1921 = vmatprep.subr.mxu0 0.0
        %1922 = vmatpush2.msra.mxu0 0.0
        %1923 = vmatprep.subr.mxu0 0.0
        %1924 = vmatpush2.msra.mxu0 0.0
        %1925 = vmatprep.subr.mxu0 0.0
        %1926 = vmatpush2.msra.mxu0 0.0
        %1927 = vmatprep.subr.mxu0 0.0
        %1928 = vmatpush2.msra.mxu0 0.0
        %1929 = vmatprep.mubr.f32.mxu0 0.0
        %v1930 = vand.u32 %v1764, 4294901760
        %1931 = vmatmul.mubr.f32.gmra.mxu0 %v1930
        %v1932 = vpop.f32.mrf.mxu0
        %v1933 = vadd.f32 %v1842, %v1932
        %v1934 = vpop.f32.mrf.mxu0
        %1935 = vdwg.mxu0
        %1936 = vmatprep.subr.mxu0 0.0
        %1937 = vmatpush1.msra.mxu0 0.0
        %1938 = vmatprep.subr.mxu0 0.0
        %1939 = vmatpush1.msra.mxu0 0.0
        %1940 = vmatprep.subr.mxu0 0.0
        %1941 = vmatpush1.msra.mxu0 0.0
        %1942 = vmatprep.subr.mxu0 0.0
        %1943 = vmatpush1.msra.mxu0 0.0
        %1944 = vmatprep.subr.mxu0 0.0
        %1945 = vmatpush1.msra.mxu0 0.0
        %1946 = vmatprep.subr.mxu0 0.0
        %1947 = vmatpush1.msra.mxu0 0.0
        %1948 = vmatprep.subr.mxu0 0.0
        %1949 = vmatpush1.msra.mxu0 0.0
        %1950 = vmatprep.subr.mxu0 0.0
        %1951 = vmatpush1.msra.mxu0 0.0
        %1952 = vmatprep.subr.mxu0 0.0
        %1953 = vmatpush1.msra.mxu0 0.0
        %1954 = vmatprep.subr.mxu0 0.0
        %1955 = vmatpush1.msra.mxu0 0.0
        %1956 = vmatprep.subr.mxu0 0.0
        %1957 = vmatpush1.msra.mxu0 0.0
        %1958 = vmatprep.subr.mxu0 0.0
        %1959 = vmatpush1.msra.mxu0 0.0
        %1960 = vmatprep.subr.mxu0 0.0
        %v1961 = vand.u32 %v271, 4294901760
        %v1962 = vsub.f32 %v271, %v1961
        %1963 = vmatpush1.msra.mxu0 %v1962
        %1964 = vmatprep.subr.mxu0 0.0
        %v1965 = vand.u32 %v270, 4294901760
        %v1966 = vsub.f32 %v270, %v1965
        %1967 = vmatpush1.msra.mxu0 %v1966
        %1968 = vmatprep.subr.mxu0 0.0
        %v1969 = vand.u32 %v269, 4294901760
        %v1970 = vsub.f32 %v269, %v1969
        %1971 = vmatpush1.msra.mxu0 %v1970
        %1972 = vmatprep.subr.mxu0 0.0
        %v1973 = vand.u32 %v268, 4294901760
        %v1974 = vsub.f32 %v268, %v1973
        %1975 = vmatpush1.msra.mxu0 %v1974
        %1976 = vmatprep.subr.mxu0 0.0
        %1977 = vmatpush2.msra.mxu0 0.0
        %1978 = vmatprep.subr.mxu0 0.0
        %1979 = vmatpush2.msra.mxu0 0.0
        %1980 = vmatprep.subr.mxu0 0.0
        %1981 = vmatpush2.msra.mxu0 0.0
        %1982 = vmatprep.subr.mxu0 0.0
        %1983 = vmatpush2.msra.mxu0 0.0
        %1984 = vmatprep.subr.mxu0 0.0
        %1985 = vmatpush2.msra.mxu0 0.0
        %1986 = vmatprep.subr.mxu0 0.0
        %1987 = vmatpush2.msra.mxu0 0.0
        %1988 = vmatprep.subr.mxu0 0.0
        %1989 = vmatpush2.msra.mxu0 0.0
        %1990 = vmatprep.subr.mxu0 0.0
        %1991 = vmatpush2.msra.mxu0 0.0
        %1992 = vmatprep.subr.mxu0 0.0
        %1993 = vmatpush2.msra.mxu0 0.0
        %1994 = vmatprep.subr.mxu0 0.0
        %1995 = vmatpush2.msra.mxu0 0.0
        %1996 = vmatprep.subr.mxu0 0.0
        %1997 = vmatpush2.msra.mxu0 0.0
        %1998 = vmatprep.subr.mxu0 0.0
        %1999 = vmatpush2.msra.mxu0 0.0
        %2000 = vmatprep.subr.mxu0 0.0
        %2001 = vmatpush2.msra.mxu0 0.0
        %2002 = vmatprep.subr.mxu0 0.0
        %2003 = vmatpush2.msra.mxu0 0.0
        %2004 = vmatprep.subr.mxu0 0.0
        %2005 = vmatpush2.msra.mxu0 0.0
        %2006 = vmatprep.subr.mxu0 0.0
        %2007 = vmatpush2.msra.mxu0 0.0
        %2008 = vmatprep.mubr.f32.mxu0 0.0
        %v2009 = vand.u32 %v1764, 4294901760
        %v2010 = vsub.f32 %v1764, %v2009
        %2011 = vmatmul.mubr.f32.gmra.mxu0 %v2010
        %v2012 = vpop.f32.mrf.mxu0
        %v2013 = vadd.f32 %v1933, %v2012
        %v2014 = vpop.f32.mrf.mxu0
        %2015 = vdwg.mxu0
        %2016 = vmatprep.subr.mxu0 0.0
        %2017 = vmatpush1.msra.mxu0 0.0
        %2018 = vmatprep.subr.mxu0 0.0
        %2019 = vmatpush1.msra.mxu0 0.0
        %2020 = vmatprep.subr.mxu0 0.0
        %2021 = vmatpush1.msra.mxu0 0.0
        %2022 = vmatprep.subr.mxu0 0.0
        %2023 = vmatpush1.msra.mxu0 0.0
        %2024 = vmatprep.subr.mxu0 0.0
        %2025 = vmatpush1.msra.mxu0 0.0
        %2026 = vmatprep.subr.mxu0 0.0
        %2027 = vmatpush1.msra.mxu0 0.0
        %2028 = vmatprep.subr.mxu0 0.0
        %2029 = vmatpush1.msra.mxu0 0.0
        %2030 = vmatprep.subr.mxu0 0.0
        %2031 = vmatpush1.msra.mxu0 0.0
        %2032 = vmatprep.subr.mxu0 0.0
        %2033 = vmatpush1.msra.mxu0 0.0
        %2034 = vmatprep.subr.mxu0 0.0
        %2035 = vmatpush1.msra.mxu0 0.0
        %2036 = vmatprep.subr.mxu0 0.0
        %2037 = vmatpush1.msra.mxu0 0.0
        %2038 = vmatprep.subr.mxu0 0.0
        %2039 = vmatpush1.msra.mxu0 0.0
        %2040 = vmatprep.subr.mxu0 0.0
        %v2041 = vand.u32 %v271, 4294901760
        %2042 = vmatpush1.msra.mxu0 %v2041
        %2043 = vmatprep.subr.mxu0 0.0
        %v2044 = vand.u32 %v270, 4294901760
        %2045 = vmatpush1.msra.mxu0 %v2044
        %2046 = vmatprep.subr.mxu0 0.0
        %v2047 = vand.u32 %v269, 4294901760
        %2048 = vmatpush1.msra.mxu0 %v2047
        %2049 = vmatprep.subr.mxu0 0.0
        %v2050 = vand.u32 %v268, 4294901760
        %2051 = vmatpush1.msra.mxu0 %v2050
        %2052 = vmatprep.subr.mxu0 0.0
        %2053 = vmatpush2.msra.mxu0 0.0
        %2054 = vmatprep.subr.mxu0 0.0
        %2055 = vmatpush2.msra.mxu0 0.0
        %2056 = vmatprep.subr.mxu0 0.0
        %2057 = vmatpush2.msra.mxu0 0.0
        %2058 = vmatprep.subr.mxu0 0.0
        %2059 = vmatpush2.msra.mxu0 0.0
        %2060 = vmatprep.subr.mxu0 0.0
        %2061 = vmatpush2.msra.mxu0 0.0
        %2062 = vmatprep.subr.mxu0 0.0
        %2063 = vmatpush2.msra.mxu0 0.0
        %2064 = vmatprep.subr.mxu0 0.0
        %2065 = vmatpush2.msra.mxu0 0.0
        %2066 = vmatprep.subr.mxu0 0.0
        %2067 = vmatpush2.msra.mxu0 0.0
        %2068 = vmatprep.subr.mxu0 0.0
        %2069 = vmatpush2.msra.mxu0 0.0
        %2070 = vmatprep.subr.mxu0 0.0
        %2071 = vmatpush2.msra.mxu0 0.0
        %2072 = vmatprep.subr.mxu0 0.0
        %2073 = vmatpush2.msra.mxu0 0.0
        %2074 = vmatprep.subr.mxu0 0.0
        %2075 = vmatpush2.msra.mxu0 0.0
        %2076 = vmatprep.subr.mxu0 0.0
        %2077 = vmatpush2.msra.mxu0 0.0
        %2078 = vmatprep.subr.mxu0 0.0
        %2079 = vmatpush2.msra.mxu0 0.0
        %2080 = vmatprep.subr.mxu0 0.0
        %2081 = vmatpush2.msra.mxu0 0.0
        %2082 = vmatprep.subr.mxu0 0.0
        %2083 = vmatpush2.msra.mxu0 0.0
        %2084 = vmatprep.mubr.f32.mxu0 0.0
        %v2085 = vand.u32 %v1764, 4294901760
        %v2086 = vsub.f32 %v1764, %v2085
        %v2087 = vand.u32 %v2086, 4294901760
        %2088 = vmatmul.mubr.f32.gmra.mxu0 %v2087
        %v2089 = vpop.f32.mrf.mxu0
        %v2090 = vadd.f32 %v2013, %v2089
        %v2091 = vpop.f32.mrf.mxu0
        %2092 = vdwg.mxu0
        %2093 = vmatprep.subr.mxu0 0.0
        %2094 = vmatpush1.msra.mxu0 0.0
        %2095 = vmatprep.subr.mxu0 0.0
        %2096 = vmatpush1.msra.mxu0 0.0
        %2097 = vmatprep.subr.mxu0 0.0
        %2098 = vmatpush1.msra.mxu0 0.0
        %2099 = vmatprep.subr.mxu0 0.0
        %2100 = vmatpush1.msra.mxu0 0.0
        %2101 = vmatprep.subr.mxu0 0.0
        %2102 = vmatpush1.msra.mxu0 0.0
        %2103 = vmatprep.subr.mxu0 0.0
        %2104 = vmatpush1.msra.mxu0 0.0
        %2105 = vmatprep.subr.mxu0 0.0
        %2106 = vmatpush1.msra.mxu0 0.0
        %2107 = vmatprep.subr.mxu0 0.0
        %2108 = vmatpush1.msra.mxu0 0.0
        %2109 = vmatprep.subr.mxu0 0.0
        %2110 = vmatpush1.msra.mxu0 0.0
        %2111 = vmatprep.subr.mxu0 0.0
        %2112 = vmatpush1.msra.mxu0 0.0
        %2113 = vmatprep.subr.mxu0 0.0
        %2114 = vmatpush1.msra.mxu0 0.0
        %2115 = vmatprep.subr.mxu0 0.0
        %2116 = vmatpush1.msra.mxu0 0.0
        %2117 = vmatprep.subr.mxu0 0.0
        %v2118 = vand.u32 %v271, 4294901760
        %v2119 = vsub.f32 %v271, %v2118
        %v2120 = vand.u32 %v2119, 4294901760
        %2121 = vmatpush1.msra.mxu0 %v2120
        %2122 = vmatprep.subr.mxu0 0.0
        %v2123 = vand.u32 %v270, 4294901760
        %v2124 = vsub.f32 %v270, %v2123
        %v2125 = vand.u32 %v2124, 4294901760
        %2126 = vmatpush1.msra.mxu0 %v2125
        %2127 = vmatprep.subr.mxu0 0.0
        %v2128 = vand.u32 %v269, 4294901760
        %v2129 = vsub.f32 %v269, %v2128
        %v2130 = vand.u32 %v2129, 4294901760
        %2131 = vmatpush1.msra.mxu0 %v2130
        %2132 = vmatprep.subr.mxu0 0.0
        %v2133 = vand.u32 %v268, 4294901760
        %v2134 = vsub.f32 %v268, %v2133
        %v2135 = vand.u32 %v2134, 4294901760
        %2136 = vmatpush1.msra.mxu0 %v2135
        %2137 = vmatprep.subr.mxu0 0.0
        %2138 = vmatpush2.msra.mxu0 0.0
        %2139 = vmatprep.subr.mxu0 0.0
        %2140 = vmatpush2.msra.mxu0 0.0
        %2141 = vmatprep.subr.mxu0 0.0
        %2142 = vmatpush2.msra.mxu0 0.0
        %2143 = vmatprep.subr.mxu0 0.0
        %2144 = vmatpush2.msra.mxu0 0.0
        %2145 = vmatprep.subr.mxu0 0.0
        %2146 = vmatpush2.msra.mxu0 0.0
        %2147 = vmatprep.subr.mxu0 0.0
        %2148 = vmatpush2.msra.mxu0 0.0
        %2149 = vmatprep.subr.mxu0 0.0
        %2150 = vmatpush2.msra.mxu0 0.0
        %2151 = vmatprep.subr.mxu0 0.0
        %2152 = vmatpush2.msra.mxu0 0.0
        %2153 = vmatprep.subr.mxu0 0.0
        %2154 = vmatpush2.msra.mxu0 0.0
        %2155 = vmatprep.subr.mxu0 0.0
        %2156 = vmatpush2.msra.mxu0 0.0
        %2157 = vmatprep.subr.mxu0 0.0
        %2158 = vmatpush2.msra.mxu0 0.0
        %2159 = vmatprep.subr.mxu0 0.0
        %2160 = vmatpush2.msra.mxu0 0.0
        %2161 = vmatprep.subr.mxu0 0.0
        %2162 = vmatpush2.msra.mxu0 0.0
        %2163 = vmatprep.subr.mxu0 0.0
        %2164 = vmatpush2.msra.mxu0 0.0
        %2165 = vmatprep.subr.mxu0 0.0
        %2166 = vmatpush2.msra.mxu0 0.0
        %2167 = vmatprep.subr.mxu0 0.0
        %2168 = vmatpush2.msra.mxu0 0.0
        %2169 = vmatprep.mubr.f32.mxu0 0.0
        %v2170 = vand.u32 %v1764, 4294901760
        %2171 = vmatmul.mubr.f32.gmra.mxu0 %v2170
        %v2172 = vpop.f32.mrf.mxu0
        %v2173 = vadd.f32 %v2090, %v2172
        %v2174 = vpop.f32.mrf.mxu0
        %2175 = vdwg.mxu0
        %2176 = vmatprep.subr.mxu0 0.0
        %2177 = vmatpush1.msra.mxu0 0.0
        %2178 = vmatprep.subr.mxu0 0.0
        %2179 = vmatpush1.msra.mxu0 0.0
        %2180 = vmatprep.subr.mxu0 0.0
        %2181 = vmatpush1.msra.mxu0 0.0
        %2182 = vmatprep.subr.mxu0 0.0
        %2183 = vmatpush1.msra.mxu0 0.0
        %2184 = vmatprep.subr.mxu0 0.0
        %2185 = vmatpush1.msra.mxu0 0.0
        %2186 = vmatprep.subr.mxu0 0.0
        %2187 = vmatpush1.msra.mxu0 0.0
        %2188 = vmatprep.subr.mxu0 0.0
        %2189 = vmatpush1.msra.mxu0 0.0
        %2190 = vmatprep.subr.mxu0 0.0
        %2191 = vmatpush1.msra.mxu0 0.0
        %2192 = vmatprep.subr.mxu0 0.0
        %2193 = vmatpush1.msra.mxu0 0.0
        %2194 = vmatprep.subr.mxu0 0.0
        %2195 = vmatpush1.msra.mxu0 0.0
        %2196 = vmatprep.subr.mxu0 0.0
        %2197 = vmatpush1.msra.mxu0 0.0
        %2198 = vmatprep.subr.mxu0 0.0
        %2199 = vmatpush1.msra.mxu0 0.0
        %2200 = vmatprep.subr.mxu0 0.0
        %v2201 = vand.u32 %v271, 4294901760
        %2202 = vmatpush1.msra.mxu0 %v2201
        %2203 = vmatprep.subr.mxu0 0.0
        %v2204 = vand.u32 %v270, 4294901760
        %2205 = vmatpush1.msra.mxu0 %v2204
        %2206 = vmatprep.subr.mxu0 0.0
        %v2207 = vand.u32 %v269, 4294901760
        %2208 = vmatpush1.msra.mxu0 %v2207
        %2209 = vmatprep.subr.mxu0 0.0
        %v2210 = vand.u32 %v268, 4294901760
        %2211 = vmatpush1.msra.mxu0 %v2210
        %2212 = vmatprep.subr.mxu0 0.0
        %2213 = vmatpush2.msra.mxu0 0.0
        %2214 = vmatprep.subr.mxu0 0.0
        %2215 = vmatpush2.msra.mxu0 0.0
        %2216 = vmatprep.subr.mxu0 0.0
        %2217 = vmatpush2.msra.mxu0 0.0
        %2218 = vmatprep.subr.mxu0 0.0
        %2219 = vmatpush2.msra.mxu0 0.0
        %2220 = vmatprep.subr.mxu0 0.0
        %2221 = vmatpush2.msra.mxu0 0.0
        %2222 = vmatprep.subr.mxu0 0.0
        %2223 = vmatpush2.msra.mxu0 0.0
        %2224 = vmatprep.subr.mxu0 0.0
        %2225 = vmatpush2.msra.mxu0 0.0
        %2226 = vmatprep.subr.mxu0 0.0
        %2227 = vmatpush2.msra.mxu0 0.0
        %2228 = vmatprep.subr.mxu0 0.0
        %2229 = vmatpush2.msra.mxu0 0.0
        %2230 = vmatprep.subr.mxu0 0.0
        %2231 = vmatpush2.msra.mxu0 0.0
        %2232 = vmatprep.subr.mxu0 0.0
        %2233 = vmatpush2.msra.mxu0 0.0
        %2234 = vmatprep.subr.mxu0 0.0
        %2235 = vmatpush2.msra.mxu0 0.0
        %2236 = vmatprep.subr.mxu0 0.0
        %2237 = vmatpush2.msra.mxu0 0.0
        %2238 = vmatprep.subr.mxu0 0.0
        %2239 = vmatpush2.msra.mxu0 0.0
        %2240 = vmatprep.subr.mxu0 0.0
        %2241 = vmatpush2.msra.mxu0 0.0
        %2242 = vmatprep.subr.mxu0 0.0
        %2243 = vmatpush2.msra.mxu0 0.0
        %2244 = vmatprep.mubr.f32.mxu0 0.0
        %v2245 = vand.u32 %v1764, 4294901760
        %2246 = vmatmul.mubr.f32.gmra.mxu0 %v2245
        %v2247 = vpop.f32.mrf.mxu0
        %v2248 = vadd.f32 %v2173, %v2247
        %v2249 = vpop.f32.mrf.mxu0
        %2250 = vdwg.mxu0
        %v2251 = vmax.f32 %v1754, %v2248
        %s2252 = scalar_lea.vmem %s236, 32 [#allocation2]
        %v2253 = vld [vmem:[%s2252] sm:$0xff]
        %2254 = vset.pattern.permute.xlu0 0
        %2255 = vperm.xlu0 %2254, %v2253
        %v2256 = vpop.permute.xlu0 %2255
        %vm2257 = vcmp.eq.s32.totalorder %v2256, %v260
        %v2258 = vsel %vm2257, 1, 0
        %v2259 = vcvt.s32.f32 %v2258
        %v2261 = vsel %vm272, %v2259, 0
        %2263 = vmatprep.subr.mxu0 0.0
        %2264 = vmatpush1.msra.mxu0 0.0
        %2265 = vmatprep.subr.mxu0 0.0
        %2266 = vmatpush1.msra.mxu0 0.0
        %2267 = vmatprep.subr.mxu0 0.0
        %2268 = vmatpush1.msra.mxu0 0.0
        %2269 = vmatprep.subr.mxu0 0.0
        %2270 = vmatpush1.msra.mxu0 0.0
        %2271 = vmatprep.subr.mxu0 0.0
        %2272 = vmatpush1.msra.mxu0 0.0
        %2273 = vmatprep.subr.mxu0 0.0
        %2274 = vmatpush1.msra.mxu0 0.0
        %2275 = vmatprep.subr.mxu0 0.0
        %2276 = vmatpush1.msra.mxu0 0.0
        %2277 = vmatprep.subr.mxu0 0.0
        %2278 = vmatpush1.msra.mxu0 0.0
        %2279 = vmatprep.subr.mxu0 0.0
        %2280 = vmatpush1.msra.mxu0 0.0
        %2281 = vmatprep.subr.mxu0 0.0
        %2282 = vmatpush1.msra.mxu0 0.0
        %2283 = vmatprep.subr.mxu0 0.0
        %2284 = vmatpush1.msra.mxu0 0.0
        %2285 = vmatprep.subr.mxu0 0.0
        %2286 = vmatpush1.msra.mxu0 0.0
        %2287 = vmatprep.subr.mxu0 0.0
        %v2288 = vand.u32 %v271, 4294901760
        %2289 = vmatpush1.msra.mxu0 %v2288
        %2290 = vmatprep.subr.mxu0 0.0
        %v2291 = vand.u32 %v270, 4294901760
        %2292 = vmatpush1.msra.mxu0 %v2291
        %2293 = vmatprep.subr.mxu0 0.0
        %v2294 = vand.u32 %v269, 4294901760
        %2295 = vmatpush1.msra.mxu0 %v2294
        %2296 = vmatprep.subr.mxu0 0.0
        %v2297 = vand.u32 %v268, 4294901760
        %2298 = vmatpush1.msra.mxu0 %v2297
        %2299 = vmatprep.subr.mxu0 0.0
        %2300 = vmatpush2.msra.mxu0 0.0
        %2301 = vmatprep.subr.mxu0 0.0
        %2302 = vmatpush2.msra.mxu0 0.0
        %2303 = vmatprep.subr.mxu0 0.0
        %2304 = vmatpush2.msra.mxu0 0.0
        %2305 = vmatprep.subr.mxu0 0.0
        %2306 = vmatpush2.msra.mxu0 0.0
        %2307 = vmatprep.subr.mxu0 0.0
        %2308 = vmatpush2.msra.mxu0 0.0
        %2309 = vmatprep.subr.mxu0 0.0
        %2310 = vmatpush2.msra.mxu0 0.0
        %2311 = vmatprep.subr.mxu0 0.0
        %2312 = vmatpush2.msra.mxu0 0.0
        %2313 = vmatprep.subr.mxu0 0.0
        %2314 = vmatpush2.msra.mxu0 0.0
        %2315 = vmatprep.subr.mxu0 0.0
        %2316 = vmatpush2.msra.mxu0 0.0
        %2317 = vmatprep.subr.mxu0 0.0
        %2318 = vmatpush2.msra.mxu0 0.0
        %2319 = vmatprep.subr.mxu0 0.0
        %2320 = vmatpush2.msra.mxu0 0.0
        %2321 = vmatprep.subr.mxu0 0.0
        %2322 = vmatpush2.msra.mxu0 0.0
        %2323 = vmatprep.subr.mxu0 0.0
        %2324 = vmatpush2.msra.mxu0 0.0
        %2325 = vmatprep.subr.mxu0 0.0
        %2326 = vmatpush2.msra.mxu0 0.0
        %2327 = vmatprep.subr.mxu0 0.0
        %2328 = vmatpush2.msra.mxu0 0.0
        %2329 = vmatprep.subr.mxu0 0.0
        %2330 = vmatpush2.msra.mxu0 0.0
        %2331 = vmatprep.mubr.f32.mxu0 0.0
        %v2332 = vand.u32 %v2261, 4294901760
        %v2333 = vsub.f32 %v2261, %v2332
        %v2334 = vand.u32 %v2333, 4294901760
        %v2335 = vsub.f32 %v2333, %v2334
        %v2336 = vand.u32 %v2335, 4294901760
        %2337 = vmatmul.mubr.f32.gmra.mxu0 %v2336
        %v2338 = vpop.f32.mrf.mxu0
        %v2339 = vadd.f32 0.0, %v2338
        %v2340 = vpop.f32.mrf.mxu0
        %2341 = vdwg.mxu0
        %2342 = vmatprep.subr.mxu0 0.0
        %2343 = vmatpush1.msra.mxu0 0.0
        %2344 = vmatprep.subr.mxu0 0.0
        %2345 = vmatpush1.msra.mxu0 0.0
        %2346 = vmatprep.subr.mxu0 0.0
        %2347 = vmatpush1.msra.mxu0 0.0
        %2348 = vmatprep.subr.mxu0 0.0
        %2349 = vmatpush1.msra.mxu0 0.0
        %2350 = vmatprep.subr.mxu0 0.0
        %2351 = vmatpush1.msra.mxu0 0.0
        %2352 = vmatprep.subr.mxu0 0.0
        %2353 = vmatpush1.msra.mxu0 0.0
        %2354 = vmatprep.subr.mxu0 0.0
        %2355 = vmatpush1.msra.mxu0 0.0
        %2356 = vmatprep.subr.mxu0 0.0
        %2357 = vmatpush1.msra.mxu0 0.0
        %2358 = vmatprep.subr.mxu0 0.0
        %2359 = vmatpush1.msra.mxu0 0.0
        %2360 = vmatprep.subr.mxu0 0.0
        %2361 = vmatpush1.msra.mxu0 0.0
        %2362 = vmatprep.subr.mxu0 0.0
        %2363 = vmatpush1.msra.mxu0 0.0
        %2364 = vmatprep.subr.mxu0 0.0
        %2365 = vmatpush1.msra.mxu0 0.0
        %2366 = vmatprep.subr.mxu0 0.0
        %v2367 = vand.u32 %v271, 4294901760
        %v2368 = vsub.f32 %v271, %v2367
        %v2369 = vand.u32 %v2368, 4294901760
        %v2370 = vsub.f32 %v2368, %v2369
        %v2371 = vand.u32 %v2370, 4294901760
        %2372 = vmatpush1.msra.mxu0 %v2371
        %2373 = vmatprep.subr.mxu0 0.0
        %v2374 = vand.u32 %v270, 4294901760
        %v2375 = vsub.f32 %v270, %v2374
        %v2376 = vand.u32 %v2375, 4294901760
        %v2377 = vsub.f32 %v2375, %v2376
        %v2378 = vand.u32 %v2377, 4294901760
        %2379 = vmatpush1.msra.mxu0 %v2378
        %2380 = vmatprep.subr.mxu0 0.0
        %v2381 = vand.u32 %v269, 4294901760
        %v2382 = vsub.f32 %v269, %v2381
        %v2383 = vand.u32 %v2382, 4294901760
        %v2384 = vsub.f32 %v2382, %v2383
        %v2385 = vand.u32 %v2384, 4294901760
        %2386 = vmatpush1.msra.mxu0 %v2385
        %2387 = vmatprep.subr.mxu0 0.0
        %v2388 = vand.u32 %v268, 4294901760
        %v2389 = vsub.f32 %v268, %v2388
        %v2390 = vand.u32 %v2389, 4294901760
        %v2391 = vsub.f32 %v2389, %v2390
        %v2392 = vand.u32 %v2391, 4294901760
        %2393 = vmatpush1.msra.mxu0 %v2392
        %2394 = vmatprep.subr.mxu0 0.0
        %2395 = vmatpush2.msra.mxu0 0.0
        %2396 = vmatprep.subr.mxu0 0.0
        %2397 = vmatpush2.msra.mxu0 0.0
        %2398 = vmatprep.subr.mxu0 0.0
        %2399 = vmatpush2.msra.mxu0 0.0
        %2400 = vmatprep.subr.mxu0 0.0
        %2401 = vmatpush2.msra.mxu0 0.0
        %2402 = vmatprep.subr.mxu0 0.0
        %2403 = vmatpush2.msra.mxu0 0.0
        %2404 = vmatprep.subr.mxu0 0.0
        %2405 = vmatpush2.msra.mxu0 0.0
        %2406 = vmatprep.subr.mxu0 0.0
        %2407 = vmatpush2.msra.mxu0 0.0
        %2408 = vmatprep.subr.mxu0 0.0
        %2409 = vmatpush2.msra.mxu0 0.0
        %2410 = vmatprep.subr.mxu0 0.0
        %2411 = vmatpush2.msra.mxu0 0.0
        %2412 = vmatprep.subr.mxu0 0.0
        %2413 = vmatpush2.msra.mxu0 0.0
        %2414 = vmatprep.subr.mxu0 0.0
        %2415 = vmatpush2.msra.mxu0 0.0
        %2416 = vmatprep.subr.mxu0 0.0
        %2417 = vmatpush2.msra.mxu0 0.0
        %2418 = vmatprep.subr.mxu0 0.0
        %2419 = vmatpush2.msra.mxu0 0.0
        %2420 = vmatprep.subr.mxu0 0.0
        %2421 = vmatpush2.msra.mxu0 0.0
        %2422 = vmatprep.subr.mxu0 0.0
        %2423 = vmatpush2.msra.mxu0 0.0
        %2424 = vmatprep.subr.mxu0 0.0
        %2425 = vmatpush2.msra.mxu0 0.0
        %2426 = vmatprep.mubr.f32.mxu0 0.0
        %v2427 = vand.u32 %v2261, 4294901760
        %2428 = vmatmul.mubr.f32.gmra.mxu0 %v2427
        %v2429 = vpop.f32.mrf.mxu0
        %v2430 = vadd.f32 %v2339, %v2429
        %v2431 = vpop.f32.mrf.mxu0
        %2432 = vdwg.mxu0
        %2433 = vmatprep.subr.mxu0 0.0
        %2434 = vmatpush1.msra.mxu0 0.0
        %2435 = vmatprep.subr.mxu0 0.0
        %2436 = vmatpush1.msra.mxu0 0.0
        %2437 = vmatprep.subr.mxu0 0.0
        %2438 = vmatpush1.msra.mxu0 0.0
        %2439 = vmatprep.subr.mxu0 0.0
        %2440 = vmatpush1.msra.mxu0 0.0
        %2441 = vmatprep.subr.mxu0 0.0
        %2442 = vmatpush1.msra.mxu0 0.0
        %2443 = vmatprep.subr.mxu0 0.0
        %2444 = vmatpush1.msra.mxu0 0.0
        %2445 = vmatprep.subr.mxu0 0.0
        %2446 = vmatpush1.msra.mxu0 0.0
        %2447 = vmatprep.subr.mxu0 0.0
        %2448 = vmatpush1.msra.mxu0 0.0
        %2449 = vmatprep.subr.mxu0 0.0
        %2450 = vmatpush1.msra.mxu0 0.0
        %2451 = vmatprep.subr.mxu0 0.0
        %2452 = vmatpush1.msra.mxu0 0.0
        %2453 = vmatprep.subr.mxu0 0.0
        %2454 = vmatpush1.msra.mxu0 0.0
        %2455 = vmatprep.subr.mxu0 0.0
        %2456 = vmatpush1.msra.mxu0 0.0
        %2457 = vmatprep.subr.mxu0 0.0
        %v2458 = vand.u32 %v271, 4294901760
        %v2459 = vsub.f32 %v271, %v2458
        %2460 = vmatpush1.msra.mxu0 %v2459
        %2461 = vmatprep.subr.mxu0 0.0
        %v2462 = vand.u32 %v270, 4294901760
        %v2463 = vsub.f32 %v270, %v2462
        %2464 = vmatpush1.msra.mxu0 %v2463
        %2465 = vmatprep.subr.mxu0 0.0
        %v2466 = vand.u32 %v269, 4294901760
        %v2467 = vsub.f32 %v269, %v2466
        %2468 = vmatpush1.msra.mxu0 %v2467
        %2469 = vmatprep.subr.mxu0 0.0
        %v2470 = vand.u32 %v268, 4294901760
        %v2471 = vsub.f32 %v268, %v2470
        %2472 = vmatpush1.msra.mxu0 %v2471
        %2473 = vmatprep.subr.mxu0 0.0
        %2474 = vmatpush2.msra.mxu0 0.0
        %2475 = vmatprep.subr.mxu0 0.0
        %2476 = vmatpush2.msra.mxu0 0.0
        %2477 = vmatprep.subr.mxu0 0.0
        %2478 = vmatpush2.msra.mxu0 0.0
        %2479 = vmatprep.subr.mxu0 0.0
        %2480 = vmatpush2.msra.mxu0 0.0
        %2481 = vmatprep.subr.mxu0 0.0
        %2482 = vmatpush2.msra.mxu0 0.0
        %2483 = vmatprep.subr.mxu0 0.0
        %2484 = vmatpush2.msra.mxu0 0.0
        %2485 = vmatprep.subr.mxu0 0.0
        %2486 = vmatpush2.msra.mxu0 0.0
        %2487 = vmatprep.subr.mxu0 0.0
        %2488 = vmatpush2.msra.mxu0 0.0
        %2489 = vmatprep.subr.mxu0 0.0
        %2490 = vmatpush2.msra.mxu0 0.0
        %2491 = vmatprep.subr.mxu0 0.0
        %2492 = vmatpush2.msra.mxu0 0.0
        %2493 = vmatprep.subr.mxu0 0.0
        %2494 = vmatpush2.msra.mxu0 0.0
        %2495 = vmatprep.subr.mxu0 0.0
        %2496 = vmatpush2.msra.mxu0 0.0
        %2497 = vmatprep.subr.mxu0 0.0
        %2498 = vmatpush2.msra.mxu0 0.0
        %2499 = vmatprep.subr.mxu0 0.0
        %2500 = vmatpush2.msra.mxu0 0.0
        %2501 = vmatprep.subr.mxu0 0.0
        %2502 = vmatpush2.msra.mxu0 0.0
        %2503 = vmatprep.subr.mxu0 0.0
        %2504 = vmatpush2.msra.mxu0 0.0
        %2505 = vmatprep.mubr.f32.mxu0 0.0
        %v2506 = vand.u32 %v2261, 4294901760
        %v2507 = vsub.f32 %v2261, %v2506
        %2508 = vmatmul.mubr.f32.gmra.mxu0 %v2507
        %v2509 = vpop.f32.mrf.mxu0
        %v2510 = vadd.f32 %v2430, %v2509
        %v2511 = vpop.f32.mrf.mxu0
        %2512 = vdwg.mxu0
        %2513 = vmatprep.subr.mxu0 0.0
        %2514 = vmatpush1.msra.mxu0 0.0
        %2515 = vmatprep.subr.mxu0 0.0
        %2516 = vmatpush1.msra.mxu0 0.0
        %2517 = vmatprep.subr.mxu0 0.0
        %2518 = vmatpush1.msra.mxu0 0.0
        %2519 = vmatprep.subr.mxu0 0.0
        %2520 = vmatpush1.msra.mxu0 0.0
        %2521 = vmatprep.subr.mxu0 0.0
        %2522 = vmatpush1.msra.mxu0 0.0
        %2523 = vmatprep.subr.mxu0 0.0
        %2524 = vmatpush1.msra.mxu0 0.0
        %2525 = vmatprep.subr.mxu0 0.0
        %2526 = vmatpush1.msra.mxu0 0.0
        %2527 = vmatprep.subr.mxu0 0.0
        %2528 = vmatpush1.msra.mxu0 0.0
        %2529 = vmatprep.subr.mxu0 0.0
        %2530 = vmatpush1.msra.mxu0 0.0
        %2531 = vmatprep.subr.mxu0 0.0
        %2532 = vmatpush1.msra.mxu0 0.0
        %2533 = vmatprep.subr.mxu0 0.0
        %2534 = vmatpush1.msra.mxu0 0.0
        %2535 = vmatprep.subr.mxu0 0.0
        %2536 = vmatpush1.msra.mxu0 0.0
        %2537 = vmatprep.subr.mxu0 0.0
        %v2538 = vand.u32 %v271, 4294901760
        %2539 = vmatpush1.msra.mxu0 %v2538
        %2540 = vmatprep.subr.mxu0 0.0
        %v2541 = vand.u32 %v270, 4294901760
        %2542 = vmatpush1.msra.mxu0 %v2541
        %2543 = vmatprep.subr.mxu0 0.0
        %v2544 = vand.u32 %v269, 4294901760
        %2545 = vmatpush1.msra.mxu0 %v2544
        %2546 = vmatprep.subr.mxu0 0.0
        %v2547 = vand.u32 %v268, 4294901760
        %2548 = vmatpush1.msra.mxu0 %v2547
        %2549 = vmatprep.subr.mxu0 0.0
        %2550 = vmatpush2.msra.mxu0 0.0
        %2551 = vmatprep.subr.mxu0 0.0
        %2552 = vmatpush2.msra.mxu0 0.0
        %2553 = vmatprep.subr.mxu0 0.0
        %2554 = vmatpush2.msra.mxu0 0.0
        %2555 = vmatprep.subr.mxu0 0.0
        %2556 = vmatpush2.msra.mxu0 0.0
        %2557 = vmatprep.subr.mxu0 0.0
        %2558 = vmatpush2.msra.mxu0 0.0
        %2559 = vmatprep.subr.mxu0 0.0
        %2560 = vmatpush2.msra.mxu0 0.0
        %2561 = vmatprep.subr.mxu0 0.0
        %2562 = vmatpush2.msra.mxu0 0.0
        %2563 = vmatprep.subr.mxu0 0.0
        %2564 = vmatpush2.msra.mxu0 0.0
        %2565 = vmatprep.subr.mxu0 0.0
        %2566 = vmatpush2.msra.mxu0 0.0
        %2567 = vmatprep.subr.mxu0 0.0
        %2568 = vmatpush2.msra.mxu0 0.0
        %2569 = vmatprep.subr.mxu0 0.0
        %2570 = vmatpush2.msra.mxu0 0.0
        %2571 = vmatprep.subr.mxu0 0.0
        %2572 = vmatpush2.msra.mxu0 0.0
        %2573 = vmatprep.subr.mxu0 0.0
        %2574 = vmatpush2.msra.mxu0 0.0
        %2575 = vmatprep.subr.mxu0 0.0
        %2576 = vmatpush2.msra.mxu0 0.0
        %2577 = vmatprep.subr.mxu0 0.0
        %2578 = vmatpush2.msra.mxu0 0.0
        %2579 = vmatprep.subr.mxu0 0.0
        %2580 = vmatpush2.msra.mxu0 0.0
        %2581 = vmatprep.mubr.f32.mxu0 0.0
        %v2582 = vand.u32 %v2261, 4294901760
        %v2583 = vsub.f32 %v2261, %v2582
        %v2584 = vand.u32 %v2583, 4294901760
        %2585 = vmatmul.mubr.f32.gmra.mxu0 %v2584
        %v2586 = vpop.f32.mrf.mxu0
        %v2587 = vadd.f32 %v2510, %v2586
        %v2588 = vpop.f32.mrf.mxu0
        %2589 = vdwg.mxu0
        %2590 = vmatprep.subr.mxu0 0.0
        %2591 = vmatpush1.msra.mxu0 0.0
        %2592 = vmatprep.subr.mxu0 0.0
        %2593 = vmatpush1.msra.mxu0 0.0
        %2594 = vmatprep.subr.mxu0 0.0
        %2595 = vmatpush1.msra.mxu0 0.0
        %2596 = vmatprep.subr.mxu0 0.0
        %2597 = vmatpush1.msra.mxu0 0.0
        %2598 = vmatprep.subr.mxu0 0.0
        %2599 = vmatpush1.msra.mxu0 0.0
        %2600 = vmatprep.subr.mxu0 0.0
        %2601 = vmatpush1.msra.mxu0 0.0
        %2602 = vmatprep.subr.mxu0 0.0
        %2603 = vmatpush1.msra.mxu0 0.0
        %2604 = vmatprep.subr.mxu0 0.0
        %2605 = vmatpush1.msra.mxu0 0.0
        %2606 = vmatprep.subr.mxu0 0.0
        %2607 = vmatpush1.msra.mxu0 0.0
        %2608 = vmatprep.subr.mxu0 0.0
        %2609 = vmatpush1.msra.mxu0 0.0
        %2610 = vmatprep.subr.mxu0 0.0
        %2611 = vmatpush1.msra.mxu0 0.0
        %2612 = vmatprep.subr.mxu0 0.0
        %2613 = vmatpush1.msra.mxu0 0.0
        %2614 = vmatprep.subr.mxu0 0.0
        %v2615 = vand.u32 %v271, 4294901760
        %v2616 = vsub.f32 %v271, %v2615
        %v2617 = vand.u32 %v2616, 4294901760
        %2618 = vmatpush1.msra.mxu0 %v2617
        %2619 = vmatprep.subr.mxu0 0.0
        %v2620 = vand.u32 %v270, 4294901760
        %v2621 = vsub.f32 %v270, %v2620
        %v2622 = vand.u32 %v2621, 4294901760
        %2623 = vmatpush1.msra.mxu0 %v2622
        %2624 = vmatprep.subr.mxu0 0.0
        %v2625 = vand.u32 %v269, 4294901760
        %v2626 = vsub.f32 %v269, %v2625
        %v2627 = vand.u32 %v2626, 4294901760
        %2628 = vmatpush1.msra.mxu0 %v2627
        %2629 = vmatprep.subr.mxu0 0.0
        %v2630 = vand.u32 %v268, 4294901760
        %v2631 = vsub.f32 %v268, %v2630
        %v2632 = vand.u32 %v2631, 4294901760
        %2633 = vmatpush1.msra.mxu0 %v2632
        %2634 = vmatprep.subr.mxu0 0.0
        %2635 = vmatpush2.msra.mxu0 0.0
        %2636 = vmatprep.subr.mxu0 0.0
        %2637 = vmatpush2.msra.mxu0 0.0
        %2638 = vmatprep.subr.mxu0 0.0
        %2639 = vmatpush2.msra.mxu0 0.0
        %2640 = vmatprep.subr.mxu0 0.0
        %2641 = vmatpush2.msra.mxu0 0.0
        %2642 = vmatprep.subr.mxu0 0.0
        %2643 = vmatpush2.msra.mxu0 0.0
        %2644 = vmatprep.subr.mxu0 0.0
        %2645 = vmatpush2.msra.mxu0 0.0
        %2646 = vmatprep.subr.mxu0 0.0
        %2647 = vmatpush2.msra.mxu0 0.0
        %2648 = vmatprep.subr.mxu0 0.0
        %2649 = vmatpush2.msra.mxu0 0.0
        %2650 = vmatprep.subr.mxu0 0.0
        %2651 = vmatpush2.msra.mxu0 0.0
        %2652 = vmatprep.subr.mxu0 0.0
        %2653 = vmatpush2.msra.mxu0 0.0
        %2654 = vmatprep.subr.mxu0 0.0
        %2655 = vmatpush2.msra.mxu0 0.0
        %2656 = vmatprep.subr.mxu0 0.0
        %2657 = vmatpush2.msra.mxu0 0.0
        %2658 = vmatprep.subr.mxu0 0.0
        %2659 = vmatpush2.msra.mxu0 0.0
        %2660 = vmatprep.subr.mxu0 0.0
        %2661 = vmatpush2.msra.mxu0 0.0
        %2662 = vmatprep.subr.mxu0 0.0
        %2663 = vmatpush2.msra.mxu0 0.0
        %2664 = vmatprep.subr.mxu0 0.0
        %2665 = vmatpush2.msra.mxu0 0.0
        %2666 = vmatprep.mubr.f32.mxu0 0.0
        %v2667 = vand.u32 %v2261, 4294901760
        %2668 = vmatmul.mubr.f32.gmra.mxu0 %v2667
        %v2669 = vpop.f32.mrf.mxu0
        %v2670 = vadd.f32 %v2587, %v2669
        %v2671 = vpop.f32.mrf.mxu0
        %2672 = vdwg.mxu0
        %2673 = vmatprep.subr.mxu0 0.0
        %2674 = vmatpush1.msra.mxu0 0.0
        %2675 = vmatprep.subr.mxu0 0.0
        %2676 = vmatpush1.msra.mxu0 0.0
        %2677 = vmatprep.subr.mxu0 0.0
        %2678 = vmatpush1.msra.mxu0 0.0
        %2679 = vmatprep.subr.mxu0 0.0
        %2680 = vmatpush1.msra.mxu0 0.0
        %2681 = vmatprep.subr.mxu0 0.0
        %2682 = vmatpush1.msra.mxu0 0.0
        %2683 = vmatprep.subr.mxu0 0.0
        %2684 = vmatpush1.msra.mxu0 0.0
        %2685 = vmatprep.subr.mxu0 0.0
        %2686 = vmatpush1.msra.mxu0 0.0
        %2687 = vmatprep.subr.mxu0 0.0
        %2688 = vmatpush1.msra.mxu0 0.0
        %2689 = vmatprep.subr.mxu0 0.0
        %2690 = vmatpush1.msra.mxu0 0.0
        %2691 = vmatprep.subr.mxu0 0.0
        %2692 = vmatpush1.msra.mxu0 0.0
        %2693 = vmatprep.subr.mxu0 0.0
        %2694 = vmatpush1.msra.mxu0 0.0
        %2695 = vmatprep.subr.mxu0 0.0
        %2696 = vmatpush1.msra.mxu0 0.0
        %2697 = vmatprep.subr.mxu0 0.0
        %v2698 = vand.u32 %v271, 4294901760
        %2699 = vmatpush1.msra.mxu0 %v2698
        %2700 = vmatprep.subr.mxu0 0.0
        %v2701 = vand.u32 %v270, 4294901760
        %2702 = vmatpush1.msra.mxu0 %v2701
        %2703 = vmatprep.subr.mxu0 0.0
        %v2704 = vand.u32 %v269, 4294901760
        %2705 = vmatpush1.msra.mxu0 %v2704
        %2706 = vmatprep.subr.mxu0 0.0
        %v2707 = vand.u32 %v268, 4294901760
        %2708 = vmatpush1.msra.mxu0 %v2707
        %2709 = vmatprep.subr.mxu0 0.0
        %2710 = vmatpush2.msra.mxu0 0.0
        %2711 = vmatprep.subr.mxu0 0.0
        %2712 = vmatpush2.msra.mxu0 0.0
        %2713 = vmatprep.subr.mxu0 0.0
        %2714 = vmatpush2.msra.mxu0 0.0
        %2715 = vmatprep.subr.mxu0 0.0
        %2716 = vmatpush2.msra.mxu0 0.0
        %2717 = vmatprep.subr.mxu0 0.0
        %2718 = vmatpush2.msra.mxu0 0.0
        %2719 = vmatprep.subr.mxu0 0.0
        %2720 = vmatpush2.msra.mxu0 0.0
        %2721 = vmatprep.subr.mxu0 0.0
        %2722 = vmatpush2.msra.mxu0 0.0
        %2723 = vmatprep.subr.mxu0 0.0
        %2724 = vmatpush2.msra.mxu0 0.0
        %2725 = vmatprep.subr.mxu0 0.0
        %2726 = vmatpush2.msra.mxu0 0.0
        %2727 = vmatprep.subr.mxu0 0.0
        %2728 = vmatpush2.msra.mxu0 0.0
        %2729 = vmatprep.subr.mxu0 0.0
        %2730 = vmatpush2.msra.mxu0 0.0
        %2731 = vmatprep.subr.mxu0 0.0
        %2732 = vmatpush2.msra.mxu0 0.0
        %2733 = vmatprep.subr.mxu0 0.0
        %2734 = vmatpush2.msra.mxu0 0.0
        %2735 = vmatprep.subr.mxu0 0.0
        %2736 = vmatpush2.msra.mxu0 0.0
        %2737 = vmatprep.subr.mxu0 0.0
        %2738 = vmatpush2.msra.mxu0 0.0
        %2739 = vmatprep.subr.mxu0 0.0
        %2740 = vmatpush2.msra.mxu0 0.0
        %2741 = vmatprep.mubr.f32.mxu0 0.0
        %v2742 = vand.u32 %v2261, 4294901760
        %2743 = vmatmul.mubr.f32.gmra.mxu0 %v2742
        %v2744 = vpop.f32.mrf.mxu0
        %v2745 = vadd.f32 %v2670, %v2744
        %v2746 = vpop.f32.mrf.mxu0
        %2747 = vdwg.mxu0
        %v2748 = vmax.f32 %v2251, %v2745
        %s2749 = scalar_lea.vmem %s236, 40 [#allocation2]
        %v2750 = vld [vmem:[%s2749] sm:$0xff]
        %2751 = vset.pattern.permute.xlu0 0
        %2752 = vperm.xlu0 %2751, %v2750
        %v2753 = vpop.permute.xlu0 %2752
        %vm2754 = vcmp.eq.s32.totalorder %v2753, %v260
        %v2755 = vsel %vm2754, 1, 0
        %v2756 = vcvt.s32.f32 %v2755
        %v2758 = vsel %vm272, %v2756, 0
        %2760 = vmatprep.subr.mxu0 0.0
        %2761 = vmatpush1.msra.mxu0 0.0
        %2762 = vmatprep.subr.mxu0 0.0
        %2763 = vmatpush1.msra.mxu0 0.0
        %2764 = vmatprep.subr.mxu0 0.0
        %2765 = vmatpush1.msra.mxu0 0.0
        %2766 = vmatprep.subr.mxu0 0.0
        %2767 = vmatpush1.msra.mxu0 0.0
        %2768 = vmatprep.subr.mxu0 0.0
        %2769 = vmatpush1.msra.mxu0 0.0
        %2770 = vmatprep.subr.mxu0 0.0
        %2771 = vmatpush1.msra.mxu0 0.0
        %2772 = vmatprep.subr.mxu0 0.0
        %2773 = vmatpush1.msra.mxu0 0.0
        %2774 = vmatprep.subr.mxu0 0.0
        %2775 = vmatpush1.msra.mxu0 0.0
        %2776 = vmatprep.subr.mxu0 0.0
        %2777 = vmatpush1.msra.mxu0 0.0
        %2778 = vmatprep.subr.mxu0 0.0
        %2779 = vmatpush1.msra.mxu0 0.0
        %2780 = vmatprep.subr.mxu0 0.0
        %2781 = vmatpush1.msra.mxu0 0.0
        %2782 = vmatprep.subr.mxu0 0.0
        %2783 = vmatpush1.msra.mxu0 0.0
        %2784 = vmatprep.subr.mxu0 0.0
        %v2785 = vand.u32 %v271, 4294901760
        %2786 = vmatpush1.msra.mxu0 %v2785
        %2787 = vmatprep.subr.mxu0 0.0
        %v2788 = vand.u32 %v270, 4294901760
        %2789 = vmatpush1.msra.mxu0 %v2788
        %2790 = vmatprep.subr.mxu0 0.0
        %v2791 = vand.u32 %v269, 4294901760
        %2792 = vmatpush1.msra.mxu0 %v2791
        %2793 = vmatprep.subr.mxu0 0.0
        %v2794 = vand.u32 %v268, 4294901760
        %2795 = vmatpush1.msra.mxu0 %v2794
        %2796 = vmatprep.subr.mxu0 0.0
        %2797 = vmatpush2.msra.mxu0 0.0
        %2798 = vmatprep.subr.mxu0 0.0
        %2799 = vmatpush2.msra.mxu0 0.0
        %2800 = vmatprep.subr.mxu0 0.0
        %2801 = vmatpush2.msra.mxu0 0.0
        %2802 = vmatprep.subr.mxu0 0.0
        %2803 = vmatpush2.msra.mxu0 0.0
        %2804 = vmatprep.subr.mxu0 0.0
        %2805 = vmatpush2.msra.mxu0 0.0
        %2806 = vmatprep.subr.mxu0 0.0
        %2807 = vmatpush2.msra.mxu0 0.0
        %2808 = vmatprep.subr.mxu0 0.0
        %2809 = vmatpush2.msra.mxu0 0.0
        %2810 = vmatprep.subr.mxu0 0.0
        %2811 = vmatpush2.msra.mxu0 0.0
        %2812 = vmatprep.subr.mxu0 0.0
        %2813 = vmatpush2.msra.mxu0 0.0
        %2814 = vmatprep.subr.mxu0 0.0
        %2815 = vmatpush2.msra.mxu0 0.0
        %2816 = vmatprep.subr.mxu0 0.0
        %2817 = vmatpush2.msra.mxu0 0.0
        %2818 = vmatprep.subr.mxu0 0.0
        %2819 = vmatpush2.msra.mxu0 0.0
        %2820 = vmatprep.subr.mxu0 0.0
        %2821 = vmatpush2.msra.mxu0 0.0
        %2822 = vmatprep.subr.mxu0 0.0
        %2823 = vmatpush2.msra.mxu0 0.0
        %2824 = vmatprep.subr.mxu0 0.0
        %2825 = vmatpush2.msra.mxu0 0.0
        %2826 = vmatprep.subr.mxu0 0.0
        %2827 = vmatpush2.msra.mxu0 0.0
        %2828 = vmatprep.mubr.f32.mxu0 0.0
        %v2829 = vand.u32 %v2758, 4294901760
        %v2830 = vsub.f32 %v2758, %v2829
        %v2831 = vand.u32 %v2830, 4294901760
        %v2832 = vsub.f32 %v2830, %v2831
        %v2833 = vand.u32 %v2832, 4294901760
        %2834 = vmatmul.mubr.f32.gmra.mxu0 %v2833
        %v2835 = vpop.f32.mrf.mxu0
        %v2836 = vadd.f32 0.0, %v2835
        %v2837 = vpop.f32.mrf.mxu0
        %2838 = vdwg.mxu0
        %2839 = vmatprep.subr.mxu0 0.0
        %2840 = vmatpush1.msra.mxu0 0.0
        %2841 = vmatprep.subr.mxu0 0.0
        %2842 = vmatpush1.msra.mxu0 0.0
        %2843 = vmatprep.subr.mxu0 0.0
        %2844 = vmatpush1.msra.mxu0 0.0
        %2845 = vmatprep.subr.mxu0 0.0
        %2846 = vmatpush1.msra.mxu0 0.0
        %2847 = vmatprep.subr.mxu0 0.0
        %2848 = vmatpush1.msra.mxu0 0.0
        %2849 = vmatprep.subr.mxu0 0.0
        %2850 = vmatpush1.msra.mxu0 0.0
        %2851 = vmatprep.subr.mxu0 0.0
        %2852 = vmatpush1.msra.mxu0 0.0
        %2853 = vmatprep.subr.mxu0 0.0
        %2854 = vmatpush1.msra.mxu0 0.0
        %2855 = vmatprep.subr.mxu0 0.0
        %2856 = vmatpush1.msra.mxu0 0.0
        %2857 = vmatprep.subr.mxu0 0.0
        %2858 = vmatpush1.msra.mxu0 0.0
        %2859 = vmatprep.subr.mxu0 0.0
        %2860 = vmatpush1.msra.mxu0 0.0
        %2861 = vmatprep.subr.mxu0 0.0
        %2862 = vmatpush1.msra.mxu0 0.0
        %2863 = vmatprep.subr.mxu0 0.0
        %v2864 = vand.u32 %v271, 4294901760
        %v2865 = vsub.f32 %v271, %v2864
        %v2866 = vand.u32 %v2865, 4294901760
        %v2867 = vsub.f32 %v2865, %v2866
        %v2868 = vand.u32 %v2867, 4294901760
        %2869 = vmatpush1.msra.mxu0 %v2868
        %2870 = vmatprep.subr.mxu0 0.0
        %v2871 = vand.u32 %v270, 4294901760
        %v2872 = vsub.f32 %v270, %v2871
        %v2873 = vand.u32 %v2872, 4294901760
        %v2874 = vsub.f32 %v2872, %v2873
        %v2875 = vand.u32 %v2874, 4294901760
        %2876 = vmatpush1.msra.mxu0 %v2875
        %2877 = vmatprep.subr.mxu0 0.0
        %v2878 = vand.u32 %v269, 4294901760
        %v2879 = vsub.f32 %v269, %v2878
        %v2880 = vand.u32 %v2879, 4294901760
        %v2881 = vsub.f32 %v2879, %v2880
        %v2882 = vand.u32 %v2881, 4294901760
        %2883 = vmatpush1.msra.mxu0 %v2882
        %2884 = vmatprep.subr.mxu0 0.0
        %v2885 = vand.u32 %v268, 4294901760
        %v2886 = vsub.f32 %v268, %v2885
        %v2887 = vand.u32 %v2886, 4294901760
        %v2888 = vsub.f32 %v2886, %v2887
        %v2889 = vand.u32 %v2888, 4294901760
        %2890 = vmatpush1.msra.mxu0 %v2889
        %2891 = vmatprep.subr.mxu0 0.0
        %2892 = vmatpush2.msra.mxu0 0.0
        %2893 = vmatprep.subr.mxu0 0.0
        %2894 = vmatpush2.msra.mxu0 0.0
        %2895 = vmatprep.subr.mxu0 0.0
        %2896 = vmatpush2.msra.mxu0 0.0
        %2897 = vmatprep.subr.mxu0 0.0
        %2898 = vmatpush2.msra.mxu0 0.0
        %2899 = vmatprep.subr.mxu0 0.0
        %2900 = vmatpush2.msra.mxu0 0.0
        %2901 = vmatprep.subr.mxu0 0.0
        %2902 = vmatpush2.msra.mxu0 0.0
        %2903 = vmatprep.subr.mxu0 0.0
        %2904 = vmatpush2.msra.mxu0 0.0
        %2905 = vmatprep.subr.mxu0 0.0
        %2906 = vmatpush2.msra.mxu0 0.0
        %2907 = vmatprep.subr.mxu0 0.0
        %2908 = vmatpush2.msra.mxu0 0.0
        %2909 = vmatprep.subr.mxu0 0.0
        %2910 = vmatpush2.msra.mxu0 0.0
        %2911 = vmatprep.subr.mxu0 0.0
        %2912 = vmatpush2.msra.mxu0 0.0
        %2913 = vmatprep.subr.mxu0 0.0
        %2914 = vmatpush2.msra.mxu0 0.0
        %2915 = vmatprep.subr.mxu0 0.0
        %2916 = vmatpush2.msra.mxu0 0.0
        %2917 = vmatprep.subr.mxu0 0.0
        %2918 = vmatpush2.msra.mxu0 0.0
        %2919 = vmatprep.subr.mxu0 0.0
        %2920 = vmatpush2.msra.mxu0 0.0
        %2921 = vmatprep.subr.mxu0 0.0
        %2922 = vmatpush2.msra.mxu0 0.0
        %2923 = vmatprep.mubr.f32.mxu0 0.0
        %v2924 = vand.u32 %v2758, 4294901760
        %2925 = vmatmul.mubr.f32.gmra.mxu0 %v2924
        %v2926 = vpop.f32.mrf.mxu0
        %v2927 = vadd.f32 %v2836, %v2926
        %v2928 = vpop.f32.mrf.mxu0
        %2929 = vdwg.mxu0
        %2930 = vmatprep.subr.mxu0 0.0
        %2931 = vmatpush1.msra.mxu0 0.0
        %2932 = vmatprep.subr.mxu0 0.0
        %2933 = vmatpush1.msra.mxu0 0.0
        %2934 = vmatprep.subr.mxu0 0.0
        %2935 = vmatpush1.msra.mxu0 0.0
        %2936 = vmatprep.subr.mxu0 0.0
        %2937 = vmatpush1.msra.mxu0 0.0
        %2938 = vmatprep.subr.mxu0 0.0
        %2939 = vmatpush1.msra.mxu0 0.0
        %2940 = vmatprep.subr.mxu0 0.0
        %2941 = vmatpush1.msra.mxu0 0.0
        %2942 = vmatprep.subr.mxu0 0.0
        %2943 = vmatpush1.msra.mxu0 0.0
        %2944 = vmatprep.subr.mxu0 0.0
        %2945 = vmatpush1.msra.mxu0 0.0
        %2946 = vmatprep.subr.mxu0 0.0
        %2947 = vmatpush1.msra.mxu0 0.0
        %2948 = vmatprep.subr.mxu0 0.0
        %2949 = vmatpush1.msra.mxu0 0.0
        %2950 = vmatprep.subr.mxu0 0.0
        %2951 = vmatpush1.msra.mxu0 0.0
        %2952 = vmatprep.subr.mxu0 0.0
        %2953 = vmatpush1.msra.mxu0 0.0
        %2954 = vmatprep.subr.mxu0 0.0
        %v2955 = vand.u32 %v271, 4294901760
        %v2956 = vsub.f32 %v271, %v2955
        %2957 = vmatpush1.msra.mxu0 %v2956
        %2958 = vmatprep.subr.mxu0 0.0
        %v2959 = vand.u32 %v270, 4294901760
        %v2960 = vsub.f32 %v270, %v2959
        %2961 = vmatpush1.msra.mxu0 %v2960
        %2962 = vmatprep.subr.mxu0 0.0
        %v2963 = vand.u32 %v269, 4294901760
        %v2964 = vsub.f32 %v269, %v2963
        %2965 = vmatpush1.msra.mxu0 %v2964
        %2966 = vmatprep.subr.mxu0 0.0
        %v2967 = vand.u32 %v268, 4294901760
        %v2968 = vsub.f32 %v268, %v2967
        %2969 = vmatpush1.msra.mxu0 %v2968
        %2970 = vmatprep.subr.mxu0 0.0
        %2971 = vmatpush2.msra.mxu0 0.0
        %2972 = vmatprep.subr.mxu0 0.0
        %2973 = vmatpush2.msra.mxu0 0.0
        %2974 = vmatprep.subr.mxu0 0.0
        %2975 = vmatpush2.msra.mxu0 0.0
        %2976 = vmatprep.subr.mxu0 0.0
        %2977 = vmatpush2.msra.mxu0 0.0
        %2978 = vmatprep.subr.mxu0 0.0
        %2979 = vmatpush2.msra.mxu0 0.0
        %2980 = vmatprep.subr.mxu0 0.0
        %2981 = vmatpush2.msra.mxu0 0.0
        %2982 = vmatprep.subr.mxu0 0.0
        %2983 = vmatpush2.msra.mxu0 0.0
        %2984 = vmatprep.subr.mxu0 0.0
        %2985 = vmatpush2.msra.mxu0 0.0
        %2986 = vmatprep.subr.mxu0 0.0
        %2987 = vmatpush2.msra.mxu0 0.0
        %2988 = vmatprep.subr.mxu0 0.0
        %2989 = vmatpush2.msra.mxu0 0.0
        %2990 = vmatprep.subr.mxu0 0.0
        %2991 = vmatpush2.msra.mxu0 0.0
        %2992 = vmatprep.subr.mxu0 0.0
        %2993 = vmatpush2.msra.mxu0 0.0
        %2994 = vmatprep.subr.mxu0 0.0
        %2995 = vmatpush2.msra.mxu0 0.0
        %2996 = vmatprep.subr.mxu0 0.0
        %2997 = vmatpush2.msra.mxu0 0.0
        %2998 = vmatprep.subr.mxu0 0.0
        %2999 = vmatpush2.msra.mxu0 0.0
        %3000 = vmatprep.subr.mxu0 0.0
        %3001 = vmatpush2.msra.mxu0 0.0
        %3002 = vmatprep.mubr.f32.mxu0 0.0
        %v3003 = vand.u32 %v2758, 4294901760
        %v3004 = vsub.f32 %v2758, %v3003
        %3005 = vmatmul.mubr.f32.gmra.mxu0 %v3004
        %v3006 = vpop.f32.mrf.mxu0
        %v3007 = vadd.f32 %v2927, %v3006
        %v3008 = vpop.f32.mrf.mxu0
        %3009 = vdwg.mxu0
        %3010 = vmatprep.subr.mxu0 0.0
        %3011 = vmatpush1.msra.mxu0 0.0
        %3012 = vmatprep.subr.mxu0 0.0
        %3013 = vmatpush1.msra.mxu0 0.0
        %3014 = vmatprep.subr.mxu0 0.0
        %3015 = vmatpush1.msra.mxu0 0.0
        %3016 = vmatprep.subr.mxu0 0.0
        %3017 = vmatpush1.msra.mxu0 0.0
        %3018 = vmatprep.subr.mxu0 0.0
        %3019 = vmatpush1.msra.mxu0 0.0
        %3020 = vmatprep.subr.mxu0 0.0
        %3021 = vmatpush1.msra.mxu0 0.0
        %3022 = vmatprep.subr.mxu0 0.0
        %3023 = vmatpush1.msra.mxu0 0.0
        %3024 = vmatprep.subr.mxu0 0.0
        %3025 = vmatpush1.msra.mxu0 0.0
        %3026 = vmatprep.subr.mxu0 0.0
        %3027 = vmatpush1.msra.mxu0 0.0
        %3028 = vmatprep.subr.mxu0 0.0
        %3029 = vmatpush1.msra.mxu0 0.0
        %3030 = vmatprep.subr.mxu0 0.0
        %3031 = vmatpush1.msra.mxu0 0.0
        %3032 = vmatprep.subr.mxu0 0.0
        %3033 = vmatpush1.msra.mxu0 0.0
        %3034 = vmatprep.subr.mxu0 0.0
        %v3035 = vand.u32 %v271, 4294901760
        %3036 = vmatpush1.msra.mxu0 %v3035
        %3037 = vmatprep.subr.mxu0 0.0
        %v3038 = vand.u32 %v270, 4294901760
        %3039 = vmatpush1.msra.mxu0 %v3038
        %3040 = vmatprep.subr.mxu0 0.0
        %v3041 = vand.u32 %v269, 4294901760
        %3042 = vmatpush1.msra.mxu0 %v3041
        %3043 = vmatprep.subr.mxu0 0.0
        %v3044 = vand.u32 %v268, 4294901760
        %3045 = vmatpush1.msra.mxu0 %v3044
        %3046 = vmatprep.subr.mxu0 0.0
        %3047 = vmatpush2.msra.mxu0 0.0
        %3048 = vmatprep.subr.mxu0 0.0
        %3049 = vmatpush2.msra.mxu0 0.0
        %3050 = vmatprep.subr.mxu0 0.0
        %3051 = vmatpush2.msra.mxu0 0.0
        %3052 = vmatprep.subr.mxu0 0.0
        %3053 = vmatpush2.msra.mxu0 0.0
        %3054 = vmatprep.subr.mxu0 0.0
        %3055 = vmatpush2.msra.mxu0 0.0
        %3056 = vmatprep.subr.mxu0 0.0
        %3057 = vmatpush2.msra.mxu0 0.0
        %3058 = vmatprep.subr.mxu0 0.0
        %3059 = vmatpush2.msra.mxu0 0.0
        %3060 = vmatprep.subr.mxu0 0.0
        %3061 = vmatpush2.msra.mxu0 0.0
        %3062 = vmatprep.subr.mxu0 0.0
        %3063 = vmatpush2.msra.mxu0 0.0
        %3064 = vmatprep.subr.mxu0 0.0
        %3065 = vmatpush2.msra.mxu0 0.0
        %3066 = vmatprep.subr.mxu0 0.0
        %3067 = vmatpush2.msra.mxu0 0.0
        %3068 = vmatprep.subr.mxu0 0.0
        %3069 = vmatpush2.msra.mxu0 0.0
        %3070 = vmatprep.subr.mxu0 0.0
        %3071 = vmatpush2.msra.mxu0 0.0
        %3072 = vmatprep.subr.mxu0 0.0
        %3073 = vmatpush2.msra.mxu0 0.0
        %3074 = vmatprep.subr.mxu0 0.0
        %3075 = vmatpush2.msra.mxu0 0.0
        %3076 = vmatprep.subr.mxu0 0.0
        %3077 = vmatpush2.msra.mxu0 0.0
        %3078 = vmatprep.mubr.f32.mxu0 0.0
        %v3079 = vand.u32 %v2758, 4294901760
        %v3080 = vsub.f32 %v2758, %v3079
        %v3081 = vand.u32 %v3080, 4294901760
        %3082 = vmatmul.mubr.f32.gmra.mxu0 %v3081
        %v3083 = vpop.f32.mrf.mxu0
        %v3084 = vadd.f32 %v3007, %v3083
        %v3085 = vpop.f32.mrf.mxu0
        %3086 = vdwg.mxu0
        %3087 = vmatprep.subr.mxu0 0.0
        %3088 = vmatpush1.msra.mxu0 0.0
        %3089 = vmatprep.subr.mxu0 0.0
        %3090 = vmatpush1.msra.mxu0 0.0
        %3091 = vmatprep.subr.mxu0 0.0
        %3092 = vmatpush1.msra.mxu0 0.0
        %3093 = vmatprep.subr.mxu0 0.0
        %3094 = vmatpush1.msra.mxu0 0.0
        %3095 = vmatprep.subr.mxu0 0.0
        %3096 = vmatpush1.msra.mxu0 0.0
        %3097 = vmatprep.subr.mxu0 0.0
        %3098 = vmatpush1.msra.mxu0 0.0
        %3099 = vmatprep.subr.mxu0 0.0
        %3100 = vmatpush1.msra.mxu0 0.0
        %3101 = vmatprep.subr.mxu0 0.0
        %3102 = vmatpush1.msra.mxu0 0.0
        %3103 = vmatprep.subr.mxu0 0.0
        %3104 = vmatpush1.msra.mxu0 0.0
        %3105 = vmatprep.subr.mxu0 0.0
        %3106 = vmatpush1.msra.mxu0 0.0
        %3107 = vmatprep.subr.mxu0 0.0
        %3108 = vmatpush1.msra.mxu0 0.0
        %3109 = vmatprep.subr.mxu0 0.0
        %3110 = vmatpush1.msra.mxu0 0.0
        %3111 = vmatprep.subr.mxu0 0.0
        %v3112 = vand.u32 %v271, 4294901760
        %v3113 = vsub.f32 %v271, %v3112
        %v3114 = vand.u32 %v3113, 4294901760
        %3115 = vmatpush1.msra.mxu0 %v3114
        %3116 = vmatprep.subr.mxu0 0.0
        %v3117 = vand.u32 %v270, 4294901760
        %v3118 = vsub.f32 %v270, %v3117
        %v3119 = vand.u32 %v3118, 4294901760
        %3120 = vmatpush1.msra.mxu0 %v3119
        %3121 = vmatprep.subr.mxu0 0.0
        %v3122 = vand.u32 %v269, 4294901760
        %v3123 = vsub.f32 %v269, %v3122
        %v3124 = vand.u32 %v3123, 4294901760
        %3125 = vmatpush1.msra.mxu0 %v3124
        %3126 = vmatprep.subr.mxu0 0.0
        %v3127 = vand.u32 %v268, 4294901760
        %v3128 = vsub.f32 %v268, %v3127
        %v3129 = vand.u32 %v3128, 4294901760
        %3130 = vmatpush1.msra.mxu0 %v3129
        %3131 = vmatprep.subr.mxu0 0.0
        %3132 = vmatpush2.msra.mxu0 0.0
        %3133 = vmatprep.subr.mxu0 0.0
        %3134 = vmatpush2.msra.mxu0 0.0
        %3135 = vmatprep.subr.mxu0 0.0
        %3136 = vmatpush2.msra.mxu0 0.0
        %3137 = vmatprep.subr.mxu0 0.0
        %3138 = vmatpush2.msra.mxu0 0.0
        %3139 = vmatprep.subr.mxu0 0.0
        %3140 = vmatpush2.msra.mxu0 0.0
        %3141 = vmatprep.subr.mxu0 0.0
        %3142 = vmatpush2.msra.mxu0 0.0
        %3143 = vmatprep.subr.mxu0 0.0
        %3144 = vmatpush2.msra.mxu0 0.0
        %3145 = vmatprep.subr.mxu0 0.0
        %3146 = vmatpush2.msra.mxu0 0.0
        %3147 = vmatprep.subr.mxu0 0.0
        %3148 = vmatpush2.msra.mxu0 0.0
        %3149 = vmatprep.subr.mxu0 0.0
        %3150 = vmatpush2.msra.mxu0 0.0
        %3151 = vmatprep.subr.mxu0 0.0
        %3152 = vmatpush2.msra.mxu0 0.0
        %3153 = vmatprep.subr.mxu0 0.0
        %3154 = vmatpush2.msra.mxu0 0.0
        %3155 = vmatprep.subr.mxu0 0.0
        %3156 = vmatpush2.msra.mxu0 0.0
        %3157 = vmatprep.subr.mxu0 0.0
        %3158 = vmatpush2.msra.mxu0 0.0
        %3159 = vmatprep.subr.mxu0 0.0
        %3160 = vmatpush2.msra.mxu0 0.0
        %3161 = vmatprep.subr.mxu0 0.0
        %3162 = vmatpush2.msra.mxu0 0.0
        %3163 = vmatprep.mubr.f32.mxu0 0.0
        %v3164 = vand.u32 %v2758, 4294901760
        %3165 = vmatmul.mubr.f32.gmra.mxu0 %v3164
        %v3166 = vpop.f32.mrf.mxu0
        %v3167 = vadd.f32 %v3084, %v3166
        %v3168 = vpop.f32.mrf.mxu0
        %3169 = vdwg.mxu0
        %3170 = vmatprep.subr.mxu0 0.0
        %3171 = vmatpush1.msra.mxu0 0.0
        %3172 = vmatprep.subr.mxu0 0.0
        %3173 = vmatpush1.msra.mxu0 0.0
        %3174 = vmatprep.subr.mxu0 0.0
        %3175 = vmatpush1.msra.mxu0 0.0
        %3176 = vmatprep.subr.mxu0 0.0
        %3177 = vmatpush1.msra.mxu0 0.0
        %3178 = vmatprep.subr.mxu0 0.0
        %3179 = vmatpush1.msra.mxu0 0.0
        %3180 = vmatprep.subr.mxu0 0.0
        %3181 = vmatpush1.msra.mxu0 0.0
        %3182 = vmatprep.subr.mxu0 0.0
        %3183 = vmatpush1.msra.mxu0 0.0
        %3184 = vmatprep.subr.mxu0 0.0
        %3185 = vmatpush1.msra.mxu0 0.0
        %3186 = vmatprep.subr.mxu0 0.0
        %3187 = vmatpush1.msra.mxu0 0.0
        %3188 = vmatprep.subr.mxu0 0.0
        %3189 = vmatpush1.msra.mxu0 0.0
        %3190 = vmatprep.subr.mxu0 0.0
        %3191 = vmatpush1.msra.mxu0 0.0
        %3192 = vmatprep.subr.mxu0 0.0
        %3193 = vmatpush1.msra.mxu0 0.0
        %3194 = vmatprep.subr.mxu0 0.0
        %v3195 = vand.u32 %v271, 4294901760
        %3196 = vmatpush1.msra.mxu0 %v3195
        %3197 = vmatprep.subr.mxu0 0.0
        %v3198 = vand.u32 %v270, 4294901760
        %3199 = vmatpush1.msra.mxu0 %v3198
        %3200 = vmatprep.subr.mxu0 0.0
        %v3201 = vand.u32 %v269, 4294901760
        %3202 = vmatpush1.msra.mxu0 %v3201
        %3203 = vmatprep.subr.mxu0 0.0
        %v3204 = vand.u32 %v268, 4294901760
        %3205 = vmatpush1.msra.mxu0 %v3204
        %3206 = vmatprep.subr.mxu0 0.0
        %3207 = vmatpush2.msra.mxu0 0.0
        %3208 = vmatprep.subr.mxu0 0.0
        %3209 = vmatpush2.msra.mxu0 0.0
        %3210 = vmatprep.subr.mxu0 0.0
        %3211 = vmatpush2.msra.mxu0 0.0
        %3212 = vmatprep.subr.mxu0 0.0
        %3213 = vmatpush2.msra.mxu0 0.0
        %3214 = vmatprep.subr.mxu0 0.0
        %3215 = vmatpush2.msra.mxu0 0.0
        %3216 = vmatprep.subr.mxu0 0.0
        %3217 = vmatpush2.msra.mxu0 0.0
        %3218 = vmatprep.subr.mxu0 0.0
        %3219 = vmatpush2.msra.mxu0 0.0
        %3220 = vmatprep.subr.mxu0 0.0
        %3221 = vmatpush2.msra.mxu0 0.0
        %3222 = vmatprep.subr.mxu0 0.0
        %3223 = vmatpush2.msra.mxu0 0.0
        %3224 = vmatprep.subr.mxu0 0.0
        %3225 = vmatpush2.msra.mxu0 0.0
        %3226 = vmatprep.subr.mxu0 0.0
        %3227 = vmatpush2.msra.mxu0 0.0
        %3228 = vmatprep.subr.mxu0 0.0
        %3229 = vmatpush2.msra.mxu0 0.0
        %3230 = vmatprep.subr.mxu0 0.0
        %3231 = vmatpush2.msra.mxu0 0.0
        %3232 = vmatprep.subr.mxu0 0.0
        %3233 = vmatpush2.msra.mxu0 0.0
        %3234 = vmatprep.subr.mxu0 0.0
        %3235 = vmatpush2.msra.mxu0 0.0
        %3236 = vmatprep.subr.mxu0 0.0
        %3237 = vmatpush2.msra.mxu0 0.0
        %3238 = vmatprep.mubr.f32.mxu0 0.0
        %v3239 = vand.u32 %v2758, 4294901760
        %3240 = vmatmul.mubr.f32.gmra.mxu0 %v3239
        %v3241 = vpop.f32.mrf.mxu0
        %v3242 = vadd.f32 %v3167, %v3241
        %v3243 = vpop.f32.mrf.mxu0
        %3244 = vdwg.mxu0
        %v3245 = vmax.f32 %v2748, %v3242
        %s3246 = scalar_lea.vmem %s236, 48 [#allocation2]
        %v3247 = vld [vmem:[%s3246] sm:$0xff]
        %3248 = vset.pattern.permute.xlu0 0
        %3249 = vperm.xlu0 %3248, %v3247
        %v3250 = vpop.permute.xlu0 %3249
        %vm3251 = vcmp.eq.s32.totalorder %v3250, %v260
        %v3252 = vsel %vm3251, 1, 0
        %v3253 = vcvt.s32.f32 %v3252
        %v3255 = vsel %vm272, %v3253, 0
        %3257 = vmatprep.subr.mxu0 0.0
        %3258 = vmatpush1.msra.mxu0 0.0
        %3259 = vmatprep.subr.mxu0 0.0
        %3260 = vmatpush1.msra.mxu0 0.0
        %3261 = vmatprep.subr.mxu0 0.0
        %3262 = vmatpush1.msra.mxu0 0.0
        %3263 = vmatprep.subr.mxu0 0.0
        %3264 = vmatpush1.msra.mxu0 0.0
        %3265 = vmatprep.subr.mxu0 0.0
        %3266 = vmatpush1.msra.mxu0 0.0
        %3267 = vmatprep.subr.mxu0 0.0
        %3268 = vmatpush1.msra.mxu0 0.0
        %3269 = vmatprep.subr.mxu0 0.0
        %3270 = vmatpush1.msra.mxu0 0.0
        %3271 = vmatprep.subr.mxu0 0.0
        %3272 = vmatpush1.msra.mxu0 0.0
        %3273 = vmatprep.subr.mxu0 0.0
        %3274 = vmatpush1.msra.mxu0 0.0
        %3275 = vmatprep.subr.mxu0 0.0
        %3276 = vmatpush1.msra.mxu0 0.0
        %3277 = vmatprep.subr.mxu0 0.0
        %3278 = vmatpush1.msra.mxu0 0.0
        %3279 = vmatprep.subr.mxu0 0.0
        %3280 = vmatpush1.msra.mxu0 0.0
        %3281 = vmatprep.subr.mxu0 0.0
        %v3282 = vand.u32 %v271, 4294901760
        %3283 = vmatpush1.msra.mxu0 %v3282
        %3284 = vmatprep.subr.mxu0 0.0
        %v3285 = vand.u32 %v270, 4294901760
        %3286 = vmatpush1.msra.mxu0 %v3285
        %3287 = vmatprep.subr.mxu0 0.0
        %v3288 = vand.u32 %v269, 4294901760
        %3289 = vmatpush1.msra.mxu0 %v3288
        %3290 = vmatprep.subr.mxu0 0.0
        %v3291 = vand.u32 %v268, 4294901760
        %3292 = vmatpush1.msra.mxu0 %v3291
        %3293 = vmatprep.subr.mxu0 0.0
        %3294 = vmatpush2.msra.mxu0 0.0
        %3295 = vmatprep.subr.mxu0 0.0
        %3296 = vmatpush2.msra.mxu0 0.0
        %3297 = vmatprep.subr.mxu0 0.0
        %3298 = vmatpush2.msra.mxu0 0.0
        %3299 = vmatprep.subr.mxu0 0.0
        %3300 = vmatpush2.msra.mxu0 0.0
        %3301 = vmatprep.subr.mxu0 0.0
        %3302 = vmatpush2.msra.mxu0 0.0
        %3303 = vmatprep.subr.mxu0 0.0
        %3304 = vmatpush2.msra.mxu0 0.0
        %3305 = vmatprep.subr.mxu0 0.0
        %3306 = vmatpush2.msra.mxu0 0.0
        %3307 = vmatprep.subr.mxu0 0.0
        %3308 = vmatpush2.msra.mxu0 0.0
        %3309 = vmatprep.subr.mxu0 0.0
        %3310 = vmatpush2.msra.mxu0 0.0
        %3311 = vmatprep.subr.mxu0 0.0
        %3312 = vmatpush2.msra.mxu0 0.0
        %3313 = vmatprep.subr.mxu0 0.0
        %3314 = vmatpush2.msra.mxu0 0.0
        %3315 = vmatprep.subr.mxu0 0.0
        %3316 = vmatpush2.msra.mxu0 0.0
        %3317 = vmatprep.subr.mxu0 0.0
        %3318 = vmatpush2.msra.mxu0 0.0
        %3319 = vmatprep.subr.mxu0 0.0
        %3320 = vmatpush2.msra.mxu0 0.0
        %3321 = vmatprep.subr.mxu0 0.0
        %3322 = vmatpush2.msra.mxu0 0.0
        %3323 = vmatprep.subr.mxu0 0.0
        %3324 = vmatpush2.msra.mxu0 0.0
        %3325 = vmatprep.mubr.f32.mxu0 0.0
        %v3326 = vand.u32 %v3255, 4294901760
        %v3327 = vsub.f32 %v3255, %v3326
        %v3328 = vand.u32 %v3327, 4294901760
        %v3329 = vsub.f32 %v3327, %v3328
        %v3330 = vand.u32 %v3329, 4294901760
        %3331 = vmatmul.mubr.f32.gmra.mxu0 %v3330
        %v3332 = vpop.f32.mrf.mxu0
        %v3333 = vadd.f32 0.0, %v3332
        %v3334 = vpop.f32.mrf.mxu0
        %3335 = vdwg.mxu0
        %3336 = vmatprep.subr.mxu0 0.0
        %3337 = vmatpush1.msra.mxu0 0.0
        %3338 = vmatprep.subr.mxu0 0.0
        %3339 = vmatpush1.msra.mxu0 0.0
        %3340 = vmatprep.subr.mxu0 0.0
        %3341 = vmatpush1.msra.mxu0 0.0
        %3342 = vmatprep.subr.mxu0 0.0
        %3343 = vmatpush1.msra.mxu0 0.0
        %3344 = vmatprep.subr.mxu0 0.0
        %3345 = vmatpush1.msra.mxu0 0.0
        %3346 = vmatprep.subr.mxu0 0.0
        %3347 = vmatpush1.msra.mxu0 0.0
        %3348 = vmatprep.subr.mxu0 0.0
        %3349 = vmatpush1.msra.mxu0 0.0
        %3350 = vmatprep.subr.mxu0 0.0
        %3351 = vmatpush1.msra.mxu0 0.0
        %3352 = vmatprep.subr.mxu0 0.0
        %3353 = vmatpush1.msra.mxu0 0.0
        %3354 = vmatprep.subr.mxu0 0.0
        %3355 = vmatpush1.msra.mxu0 0.0
        %3356 = vmatprep.subr.mxu0 0.0
        %3357 = vmatpush1.msra.mxu0 0.0
        %3358 = vmatprep.subr.mxu0 0.0
        %3359 = vmatpush1.msra.mxu0 0.0
        %3360 = vmatprep.subr.mxu0 0.0
        %v3361 = vand.u32 %v271, 4294901760
        %v3362 = vsub.f32 %v271, %v3361
        %v3363 = vand.u32 %v3362, 4294901760
        %v3364 = vsub.f32 %v3362, %v3363
        %v3365 = vand.u32 %v3364, 4294901760
        %3366 = vmatpush1.msra.mxu0 %v3365
        %3367 = vmatprep.subr.mxu0 0.0
        %v3368 = vand.u32 %v270, 4294901760
        %v3369 = vsub.f32 %v270, %v3368
        %v3370 = vand.u32 %v3369, 4294901760
        %v3371 = vsub.f32 %v3369, %v3370
        %v3372 = vand.u32 %v3371, 4294901760
        %3373 = vmatpush1.msra.mxu0 %v3372
        %3374 = vmatprep.subr.mxu0 0.0
        %v3375 = vand.u32 %v269, 4294901760
        %v3376 = vsub.f32 %v269, %v3375
        %v3377 = vand.u32 %v3376, 4294901760
        %v3378 = vsub.f32 %v3376, %v3377
        %v3379 = vand.u32 %v3378, 4294901760
        %3380 = vmatpush1.msra.mxu0 %v3379
        %3381 = vmatprep.subr.mxu0 0.0
        %v3382 = vand.u32 %v268, 4294901760
        %v3383 = vsub.f32 %v268, %v3382
        %v3384 = vand.u32 %v3383, 4294901760
        %v3385 = vsub.f32 %v3383, %v3384
        %v3386 = vand.u32 %v3385, 4294901760
        %3387 = vmatpush1.msra.mxu0 %v3386
        %3388 = vmatprep.subr.mxu0 0.0
        %3389 = vmatpush2.msra.mxu0 0.0
        %3390 = vmatprep.subr.mxu0 0.0
        %3391 = vmatpush2.msra.mxu0 0.0
        %3392 = vmatprep.subr.mxu0 0.0
        %3393 = vmatpush2.msra.mxu0 0.0
        %3394 = vmatprep.subr.mxu0 0.0
        %3395 = vmatpush2.msra.mxu0 0.0
        %3396 = vmatprep.subr.mxu0 0.0
        %3397 = vmatpush2.msra.mxu0 0.0
        %3398 = vmatprep.subr.mxu0 0.0
        %3399 = vmatpush2.msra.mxu0 0.0
        %3400 = vmatprep.subr.mxu0 0.0
        %3401 = vmatpush2.msra.mxu0 0.0
        %3402 = vmatprep.subr.mxu0 0.0
        %3403 = vmatpush2.msra.mxu0 0.0
        %3404 = vmatprep.subr.mxu0 0.0
        %3405 = vmatpush2.msra.mxu0 0.0
        %3406 = vmatprep.subr.mxu0 0.0
        %3407 = vmatpush2.msra.mxu0 0.0
        %3408 = vmatprep.subr.mxu0 0.0
        %3409 = vmatpush2.msra.mxu0 0.0
        %3410 = vmatprep.subr.mxu0 0.0
        %3411 = vmatpush2.msra.mxu0 0.0
        %3412 = vmatprep.subr.mxu0 0.0
        %3413 = vmatpush2.msra.mxu0 0.0
        %3414 = vmatprep.subr.mxu0 0.0
        %3415 = vmatpush2.msra.mxu0 0.0
        %3416 = vmatprep.subr.mxu0 0.0
        %3417 = vmatpush2.msra.mxu0 0.0
        %3418 = vmatprep.subr.mxu0 0.0
        %3419 = vmatpush2.msra.mxu0 0.0
        %3420 = vmatprep.mubr.f32.mxu0 0.0
        %v3421 = vand.u32 %v3255, 4294901760
        %3422 = vmatmul.mubr.f32.gmra.mxu0 %v3421
        %v3423 = vpop.f32.mrf.mxu0
        %v3424 = vadd.f32 %v3333, %v3423
        %v3425 = vpop.f32.mrf.mxu0
        %3426 = vdwg.mxu0
        %3427 = vmatprep.subr.mxu0 0.0
        %3428 = vmatpush1.msra.mxu0 0.0
        %3429 = vmatprep.subr.mxu0 0.0
        %3430 = vmatpush1.msra.mxu0 0.0
        %3431 = vmatprep.subr.mxu0 0.0
        %3432 = vmatpush1.msra.mxu0 0.0
        %3433 = vmatprep.subr.mxu0 0.0
        %3434 = vmatpush1.msra.mxu0 0.0
        %3435 = vmatprep.subr.mxu0 0.0
        %3436 = vmatpush1.msra.mxu0 0.0
        %3437 = vmatprep.subr.mxu0 0.0
        %3438 = vmatpush1.msra.mxu0 0.0
        %3439 = vmatprep.subr.mxu0 0.0
        %3440 = vmatpush1.msra.mxu0 0.0
        %3441 = vmatprep.subr.mxu0 0.0
        %3442 = vmatpush1.msra.mxu0 0.0
        %3443 = vmatprep.subr.mxu0 0.0
        %3444 = vmatpush1.msra.mxu0 0.0
        %3445 = vmatprep.subr.mxu0 0.0
        %3446 = vmatpush1.msra.mxu0 0.0
        %3447 = vmatprep.subr.mxu0 0.0
        %3448 = vmatpush1.msra.mxu0 0.0
        %3449 = vmatprep.subr.mxu0 0.0
        %3450 = vmatpush1.msra.mxu0 0.0
        %3451 = vmatprep.subr.mxu0 0.0
        %v3452 = vand.u32 %v271, 4294901760
        %v3453 = vsub.f32 %v271, %v3452
        %3454 = vmatpush1.msra.mxu0 %v3453
        %3455 = vmatprep.subr.mxu0 0.0
        %v3456 = vand.u32 %v270, 4294901760
        %v3457 = vsub.f32 %v270, %v3456
        %3458 = vmatpush1.msra.mxu0 %v3457
        %3459 = vmatprep.subr.mxu0 0.0
        %v3460 = vand.u32 %v269, 4294901760
        %v3461 = vsub.f32 %v269, %v3460
        %3462 = vmatpush1.msra.mxu0 %v3461
        %3463 = vmatprep.subr.mxu0 0.0
        %v3464 = vand.u32 %v268, 4294901760
        %v3465 = vsub.f32 %v268, %v3464
        %3466 = vmatpush1.msra.mxu0 %v3465
        %3467 = vmatprep.subr.mxu0 0.0
        %3468 = vmatpush2.msra.mxu0 0.0
        %3469 = vmatprep.subr.mxu0 0.0
        %3470 = vmatpush2.msra.mxu0 0.0
        %3471 = vmatprep.subr.mxu0 0.0
        %3472 = vmatpush2.msra.mxu0 0.0
        %3473 = vmatprep.subr.mxu0 0.0
        %3474 = vmatpush2.msra.mxu0 0.0
        %3475 = vmatprep.subr.mxu0 0.0
        %3476 = vmatpush2.msra.mxu0 0.0
        %3477 = vmatprep.subr.mxu0 0.0
        %3478 = vmatpush2.msra.mxu0 0.0
        %3479 = vmatprep.subr.mxu0 0.0
        %3480 = vmatpush2.msra.mxu0 0.0
        %3481 = vmatprep.subr.mxu0 0.0
        %3482 = vmatpush2.msra.mxu0 0.0
        %3483 = vmatprep.subr.mxu0 0.0
        %3484 = vmatpush2.msra.mxu0 0.0
        %3485 = vmatprep.subr.mxu0 0.0
        %3486 = vmatpush2.msra.mxu0 0.0
        %3487 = vmatprep.subr.mxu0 0.0
        %3488 = vmatpush2.msra.mxu0 0.0
        %3489 = vmatprep.subr.mxu0 0.0
        %3490 = vmatpush2.msra.mxu0 0.0
        %3491 = vmatprep.subr.mxu0 0.0
        %3492 = vmatpush2.msra.mxu0 0.0
        %3493 = vmatprep.subr.mxu0 0.0
        %3494 = vmatpush2.msra.mxu0 0.0
        %3495 = vmatprep.subr.mxu0 0.0
        %3496 = vmatpush2.msra.mxu0 0.0
        %3497 = vmatprep.subr.mxu0 0.0
        %3498 = vmatpush2.msra.mxu0 0.0
        %3499 = vmatprep.mubr.f32.mxu0 0.0
        %v3500 = vand.u32 %v3255, 4294901760
        %v3501 = vsub.f32 %v3255, %v3500
        %3502 = vmatmul.mubr.f32.gmra.mxu0 %v3501
        %v3503 = vpop.f32.mrf.mxu0
        %v3504 = vadd.f32 %v3424, %v3503
        %v3505 = vpop.f32.mrf.mxu0
        %3506 = vdwg.mxu0
        %3507 = vmatprep.subr.mxu0 0.0
        %3508 = vmatpush1.msra.mxu0 0.0
        %3509 = vmatprep.subr.mxu0 0.0
        %3510 = vmatpush1.msra.mxu0 0.0
        %3511 = vmatprep.subr.mxu0 0.0
        %3512 = vmatpush1.msra.mxu0 0.0
        %3513 = vmatprep.subr.mxu0 0.0
        %3514 = vmatpush1.msra.mxu0 0.0
        %3515 = vmatprep.subr.mxu0 0.0
        %3516 = vmatpush1.msra.mxu0 0.0
        %3517 = vmatprep.subr.mxu0 0.0
        %3518 = vmatpush1.msra.mxu0 0.0
        %3519 = vmatprep.subr.mxu0 0.0
        %3520 = vmatpush1.msra.mxu0 0.0
        %3521 = vmatprep.subr.mxu0 0.0
        %3522 = vmatpush1.msra.mxu0 0.0
        %3523 = vmatprep.subr.mxu0 0.0
        %3524 = vmatpush1.msra.mxu0 0.0
        %3525 = vmatprep.subr.mxu0 0.0
        %3526 = vmatpush1.msra.mxu0 0.0
        %3527 = vmatprep.subr.mxu0 0.0
        %3528 = vmatpush1.msra.mxu0 0.0
        %3529 = vmatprep.subr.mxu0 0.0
        %3530 = vmatpush1.msra.mxu0 0.0
        %3531 = vmatprep.subr.mxu0 0.0
        %v3532 = vand.u32 %v271, 4294901760
        %3533 = vmatpush1.msra.mxu0 %v3532
        %3534 = vmatprep.subr.mxu0 0.0
        %v3535 = vand.u32 %v270, 4294901760
        %3536 = vmatpush1.msra.mxu0 %v3535
        %3537 = vmatprep.subr.mxu0 0.0
        %v3538 = vand.u32 %v269, 4294901760
        %3539 = vmatpush1.msra.mxu0 %v3538
        %3540 = vmatprep.subr.mxu0 0.0
        %v3541 = vand.u32 %v268, 4294901760
        %3542 = vmatpush1.msra.mxu0 %v3541
        %3543 = vmatprep.subr.mxu0 0.0
        %3544 = vmatpush2.msra.mxu0 0.0
        %3545 = vmatprep.subr.mxu0 0.0
        %3546 = vmatpush2.msra.mxu0 0.0
        %3547 = vmatprep.subr.mxu0 0.0
        %3548 = vmatpush2.msra.mxu0 0.0
        %3549 = vmatprep.subr.mxu0 0.0
        %3550 = vmatpush2.msra.mxu0 0.0
        %3551 = vmatprep.subr.mxu0 0.0
        %3552 = vmatpush2.msra.mxu0 0.0
        %3553 = vmatprep.subr.mxu0 0.0
        %3554 = vmatpush2.msra.mxu0 0.0
        %3555 = vmatprep.subr.mxu0 0.0
        %3556 = vmatpush2.msra.mxu0 0.0
        %3557 = vmatprep.subr.mxu0 0.0
        %3558 = vmatpush2.msra.mxu0 0.0
        %3559 = vmatprep.subr.mxu0 0.0
        %3560 = vmatpush2.msra.mxu0 0.0
        %3561 = vmatprep.subr.mxu0 0.0
        %3562 = vmatpush2.msra.mxu0 0.0
        %3563 = vmatprep.subr.mxu0 0.0
        %3564 = vmatpush2.msra.mxu0 0.0
        %3565 = vmatprep.subr.mxu0 0.0
        %3566 = vmatpush2.msra.mxu0 0.0
        %3567 = vmatprep.subr.mxu0 0.0
        %3568 = vmatpush2.msra.mxu0 0.0
        %3569 = vmatprep.subr.mxu0 0.0
        %3570 = vmatpush2.msra.mxu0 0.0
        %3571 = vmatprep.subr.mxu0 0.0
        %3572 = vmatpush2.msra.mxu0 0.0
        %3573 = vmatprep.subr.mxu0 0.0
        %3574 = vmatpush2.msra.mxu0 0.0
        %3575 = vmatprep.mubr.f32.mxu0 0.0
        %v3576 = vand.u32 %v3255, 4294901760
        %v3577 = vsub.f32 %v3255, %v3576
        %v3578 = vand.u32 %v3577, 4294901760
        %3579 = vmatmul.mubr.f32.gmra.mxu0 %v3578
        %v3580 = vpop.f32.mrf.mxu0
        %v3581 = vadd.f32 %v3504, %v3580
        %v3582 = vpop.f32.mrf.mxu0
        %3583 = vdwg.mxu0
        %3584 = vmatprep.subr.mxu0 0.0
        %3585 = vmatpush1.msra.mxu0 0.0
        %3586 = vmatprep.subr.mxu0 0.0
        %3587 = vmatpush1.msra.mxu0 0.0
        %3588 = vmatprep.subr.mxu0 0.0
        %3589 = vmatpush1.msra.mxu0 0.0
        %3590 = vmatprep.subr.mxu0 0.0
        %3591 = vmatpush1.msra.mxu0 0.0
        %3592 = vmatprep.subr.mxu0 0.0
        %3593 = vmatpush1.msra.mxu0 0.0
        %3594 = vmatprep.subr.mxu0 0.0
        %3595 = vmatpush1.msra.mxu0 0.0
        %3596 = vmatprep.subr.mxu0 0.0
        %3597 = vmatpush1.msra.mxu0 0.0
        %3598 = vmatprep.subr.mxu0 0.0
        %3599 = vmatpush1.msra.mxu0 0.0
        %3600 = vmatprep.subr.mxu0 0.0
        %3601 = vmatpush1.msra.mxu0 0.0
        %3602 = vmatprep.subr.mxu0 0.0
        %3603 = vmatpush1.msra.mxu0 0.0
        %3604 = vmatprep.subr.mxu0 0.0
        %3605 = vmatpush1.msra.mxu0 0.0
        %3606 = vmatprep.subr.mxu0 0.0
        %3607 = vmatpush1.msra.mxu0 0.0
        %3608 = vmatprep.subr.mxu0 0.0
        %v3609 = vand.u32 %v271, 4294901760
        %v3610 = vsub.f32 %v271, %v3609
        %v3611 = vand.u32 %v3610, 4294901760
        %3612 = vmatpush1.msra.mxu0 %v3611
        %3613 = vmatprep.subr.mxu0 0.0
        %v3614 = vand.u32 %v270, 4294901760
        %v3615 = vsub.f32 %v270, %v3614
        %v3616 = vand.u32 %v3615, 4294901760
        %3617 = vmatpush1.msra.mxu0 %v3616
        %3618 = vmatprep.subr.mxu0 0.0
        %v3619 = vand.u32 %v269, 4294901760
        %v3620 = vsub.f32 %v269, %v3619
        %v3621 = vand.u32 %v3620, 4294901760
        %3622 = vmatpush1.msra.mxu0 %v3621
        %3623 = vmatprep.subr.mxu0 0.0
        %v3624 = vand.u32 %v268, 4294901760
        %v3625 = vsub.f32 %v268, %v3624
        %v3626 = vand.u32 %v3625, 4294901760
        %3627 = vmatpush1.msra.mxu0 %v3626
        %3628 = vmatprep.subr.mxu0 0.0
        %3629 = vmatpush2.msra.mxu0 0.0
        %3630 = vmatprep.subr.mxu0 0.0
        %3631 = vmatpush2.msra.mxu0 0.0
        %3632 = vmatprep.subr.mxu0 0.0
        %3633 = vmatpush2.msra.mxu0 0.0
        %3634 = vmatprep.subr.mxu0 0.0
        %3635 = vmatpush2.msra.mxu0 0.0
        %3636 = vmatprep.subr.mxu0 0.0
        %3637 = vmatpush2.msra.mxu0 0.0
        %3638 = vmatprep.subr.mxu0 0.0
        %3639 = vmatpush2.msra.mxu0 0.0
        %3640 = vmatprep.subr.mxu0 0.0
        %3641 = vmatpush2.msra.mxu0 0.0
        %3642 = vmatprep.subr.mxu0 0.0
        %3643 = vmatpush2.msra.mxu0 0.0
        %3644 = vmatprep.subr.mxu0 0.0
        %3645 = vmatpush2.msra.mxu0 0.0
        %3646 = vmatprep.subr.mxu0 0.0
        %3647 = vmatpush2.msra.mxu0 0.0
        %3648 = vmatprep.subr.mxu0 0.0
        %3649 = vmatpush2.msra.mxu0 0.0
        %3650 = vmatprep.subr.mxu0 0.0
        %3651 = vmatpush2.msra.mxu0 0.0
        %3652 = vmatprep.subr.mxu0 0.0
        %3653 = vmatpush2.msra.mxu0 0.0
        %3654 = vmatprep.subr.mxu0 0.0
        %3655 = vmatpush2.msra.mxu0 0.0
        %3656 = vmatprep.subr.mxu0 0.0
        %3657 = vmatpush2.msra.mxu0 0.0
        %3658 = vmatprep.subr.mxu0 0.0
        %3659 = vmatpush2.msra.mxu0 0.0
        %3660 = vmatprep.mubr.f32.mxu0 0.0
        %v3661 = vand.u32 %v3255, 4294901760
        %3662 = vmatmul.mubr.f32.gmra.mxu0 %v3661
        %v3663 = vpop.f32.mrf.mxu0
        %v3664 = vadd.f32 %v3581, %v3663
        %v3665 = vpop.f32.mrf.mxu0
        %3666 = vdwg.mxu0
        %3667 = vmatprep.subr.mxu0 0.0
        %3668 = vmatpush1.msra.mxu0 0.0
        %3669 = vmatprep.subr.mxu0 0.0
        %3670 = vmatpush1.msra.mxu0 0.0
        %3671 = vmatprep.subr.mxu0 0.0
        %3672 = vmatpush1.msra.mxu0 0.0
        %3673 = vmatprep.subr.mxu0 0.0
        %3674 = vmatpush1.msra.mxu0 0.0
        %3675 = vmatprep.subr.mxu0 0.0
        %3676 = vmatpush1.msra.mxu0 0.0
        %3677 = vmatprep.subr.mxu0 0.0
        %3678 = vmatpush1.msra.mxu0 0.0
        %3679 = vmatprep.subr.mxu0 0.0
        %3680 = vmatpush1.msra.mxu0 0.0
        %3681 = vmatprep.subr.mxu0 0.0
        %3682 = vmatpush1.msra.mxu0 0.0
        %3683 = vmatprep.subr.mxu0 0.0
        %3684 = vmatpush1.msra.mxu0 0.0
        %3685 = vmatprep.subr.mxu0 0.0
        %3686 = vmatpush1.msra.mxu0 0.0
        %3687 = vmatprep.subr.mxu0 0.0
        %3688 = vmatpush1.msra.mxu0 0.0
        %3689 = vmatprep.subr.mxu0 0.0
        %3690 = vmatpush1.msra.mxu0 0.0
        %3691 = vmatprep.subr.mxu0 0.0
        %v3692 = vand.u32 %v271, 4294901760
        %3693 = vmatpush1.msra.mxu0 %v3692
        %3694 = vmatprep.subr.mxu0 0.0
        %v3695 = vand.u32 %v270, 4294901760
        %3696 = vmatpush1.msra.mxu0 %v3695
        %3697 = vmatprep.subr.mxu0 0.0
        %v3698 = vand.u32 %v269, 4294901760
        %3699 = vmatpush1.msra.mxu0 %v3698
        %3700 = vmatprep.subr.mxu0 0.0
        %v3701 = vand.u32 %v268, 4294901760
        %3702 = vmatpush1.msra.mxu0 %v3701
        %3703 = vmatprep.subr.mxu0 0.0
        %3704 = vmatpush2.msra.mxu0 0.0
        %3705 = vmatprep.subr.mxu0 0.0
        %3706 = vmatpush2.msra.mxu0 0.0
        %3707 = vmatprep.subr.mxu0 0.0
        %3708 = vmatpush2.msra.mxu0 0.0
        %3709 = vmatprep.subr.mxu0 0.0
        %3710 = vmatpush2.msra.mxu0 0.0
        %3711 = vmatprep.subr.mxu0 0.0
        %3712 = vmatpush2.msra.mxu0 0.0
        %3713 = vmatprep.subr.mxu0 0.0
        %3714 = vmatpush2.msra.mxu0 0.0
        %3715 = vmatprep.subr.mxu0 0.0
        %3716 = vmatpush2.msra.mxu0 0.0
        %3717 = vmatprep.subr.mxu0 0.0
        %3718 = vmatpush2.msra.mxu0 0.0
        %3719 = vmatprep.subr.mxu0 0.0
        %3720 = vmatpush2.msra.mxu0 0.0
        %3721 = vmatprep.subr.mxu0 0.0
        %3722 = vmatpush2.msra.mxu0 0.0
        %3723 = vmatprep.subr.mxu0 0.0
        %3724 = vmatpush2.msra.mxu0 0.0
        %3725 = vmatprep.subr.mxu0 0.0
        %3726 = vmatpush2.msra.mxu0 0.0
        %3727 = vmatprep.subr.mxu0 0.0
        %3728 = vmatpush2.msra.mxu0 0.0
        %3729 = vmatprep.subr.mxu0 0.0
        %3730 = vmatpush2.msra.mxu0 0.0
        %3731 = vmatprep.subr.mxu0 0.0
        %3732 = vmatpush2.msra.mxu0 0.0
        %3733 = vmatprep.subr.mxu0 0.0
        %3734 = vmatpush2.msra.mxu0 0.0
        %3735 = vmatprep.mubr.f32.mxu0 0.0
        %v3736 = vand.u32 %v3255, 4294901760
        %3737 = vmatmul.mubr.f32.gmra.mxu0 %v3736
        %v3738 = vpop.f32.mrf.mxu0
        %v3739 = vadd.f32 %v3664, %v3738
        %v3740 = vpop.f32.mrf.mxu0
        %3741 = vdwg.mxu0
        %v3742 = vmax.f32 %v3245, %v3739
        %s3743 = scalar_lea.vmem %s236, 56 [#allocation2]
        %v3744 = vld [vmem:[%s3743] sm:$0xff]
        %3745 = vset.pattern.permute.xlu0 0
        %3746 = vperm.xlu0 %3745, %v3744
        %v3747 = vpop.permute.xlu0 %3746
        %vm3748 = vcmp.eq.s32.totalorder %v3747, %v260
        %v3749 = vsel %vm3748, 1, 0
        %v3750 = vcvt.s32.f32 %v3749
        %v3752 = vsel %vm272, %v3750, 0
        %3754 = vmatprep.subr.mxu0 0.0
        %3755 = vmatpush1.msra.mxu0 0.0
        %3756 = vmatprep.subr.mxu0 0.0
        %3757 = vmatpush1.msra.mxu0 0.0
        %3758 = vmatprep.subr.mxu0 0.0
        %3759 = vmatpush1.msra.mxu0 0.0
        %3760 = vmatprep.subr.mxu0 0.0
        %3761 = vmatpush1.msra.mxu0 0.0
        %3762 = vmatprep.subr.mxu0 0.0
        %3763 = vmatpush1.msra.mxu0 0.0
        %3764 = vmatprep.subr.mxu0 0.0
        %3765 = vmatpush1.msra.mxu0 0.0
        %3766 = vmatprep.subr.mxu0 0.0
        %3767 = vmatpush1.msra.mxu0 0.0
        %3768 = vmatprep.subr.mxu0 0.0
        %3769 = vmatpush1.msra.mxu0 0.0
        %3770 = vmatprep.subr.mxu0 0.0
        %3771 = vmatpush1.msra.mxu0 0.0
        %3772 = vmatprep.subr.mxu0 0.0
        %3773 = vmatpush1.msra.mxu0 0.0
        %3774 = vmatprep.subr.mxu0 0.0
        %3775 = vmatpush1.msra.mxu0 0.0
        %3776 = vmatprep.subr.mxu0 0.0
        %3777 = vmatpush1.msra.mxu0 0.0
        %3778 = vmatprep.subr.mxu0 0.0
        %v3779 = vand.u32 %v271, 4294901760
        %3780 = vmatpush1.msra.mxu0 %v3779
        %3781 = vmatprep.subr.mxu0 0.0
        %v3782 = vand.u32 %v270, 4294901760
        %3783 = vmatpush1.msra.mxu0 %v3782
        %3784 = vmatprep.subr.mxu0 0.0
        %v3785 = vand.u32 %v269, 4294901760
        %3786 = vmatpush1.msra.mxu0 %v3785
        %3787 = vmatprep.subr.mxu0 0.0
        %v3788 = vand.u32 %v268, 4294901760
        %3789 = vmatpush1.msra.mxu0 %v3788
        %3790 = vmatprep.subr.mxu0 0.0
        %3791 = vmatpush2.msra.mxu0 0.0
        %3792 = vmatprep.subr.mxu0 0.0
        %3793 = vmatpush2.msra.mxu0 0.0
        %3794 = vmatprep.subr.mxu0 0.0
        %3795 = vmatpush2.msra.mxu0 0.0
        %3796 = vmatprep.subr.mxu0 0.0
        %3797 = vmatpush2.msra.mxu0 0.0
        %3798 = vmatprep.subr.mxu0 0.0
        %3799 = vmatpush2.msra.mxu0 0.0
        %3800 = vmatprep.subr.mxu0 0.0
        %3801 = vmatpush2.msra.mxu0 0.0
        %3802 = vmatprep.subr.mxu0 0.0
        %3803 = vmatpush2.msra.mxu0 0.0
        %3804 = vmatprep.subr.mxu0 0.0
        %3805 = vmatpush2.msra.mxu0 0.0
        %3806 = vmatprep.subr.mxu0 0.0
        %3807 = vmatpush2.msra.mxu0 0.0
        %3808 = vmatprep.subr.mxu0 0.0
        %3809 = vmatpush2.msra.mxu0 0.0
        %3810 = vmatprep.subr.mxu0 0.0
        %3811 = vmatpush2.msra.mxu0 0.0
        %3812 = vmatprep.subr.mxu0 0.0
        %3813 = vmatpush2.msra.mxu0 0.0
        %3814 = vmatprep.subr.mxu0 0.0
        %3815 = vmatpush2.msra.mxu0 0.0
        %3816 = vmatprep.subr.mxu0 0.0
        %3817 = vmatpush2.msra.mxu0 0.0
        %3818 = vmatprep.subr.mxu0 0.0
        %3819 = vmatpush2.msra.mxu0 0.0
        %3820 = vmatprep.subr.mxu0 0.0
        %3821 = vmatpush2.msra.mxu0 0.0
        %3822 = vmatprep.mubr.f32.mxu0 0.0
        %v3823 = vand.u32 %v3752, 4294901760
        %v3824 = vsub.f32 %v3752, %v3823
        %v3825 = vand.u32 %v3824, 4294901760
        %v3826 = vsub.f32 %v3824, %v3825
        %v3827 = vand.u32 %v3826, 4294901760
        %3828 = vmatmul.mubr.f32.gmra.mxu0 %v3827
        %v3829 = vpop.f32.mrf.mxu0
        %v3830 = vadd.f32 0.0, %v3829
        %v3831 = vpop.f32.mrf.mxu0
        %3832 = vdwg.mxu0
        %3833 = vmatprep.subr.mxu0 0.0
        %3834 = vmatpush1.msra.mxu0 0.0
        %3835 = vmatprep.subr.mxu0 0.0
        %3836 = vmatpush1.msra.mxu0 0.0
        %3837 = vmatprep.subr.mxu0 0.0
        %3838 = vmatpush1.msra.mxu0 0.0
        %3839 = vmatprep.subr.mxu0 0.0
        %3840 = vmatpush1.msra.mxu0 0.0
        %3841 = vmatprep.subr.mxu0 0.0
        %3842 = vmatpush1.msra.mxu0 0.0
        %3843 = vmatprep.subr.mxu0 0.0
        %3844 = vmatpush1.msra.mxu0 0.0
        %3845 = vmatprep.subr.mxu0 0.0
        %3846 = vmatpush1.msra.mxu0 0.0
        %3847 = vmatprep.subr.mxu0 0.0
        %3848 = vmatpush1.msra.mxu0 0.0
        %3849 = vmatprep.subr.mxu0 0.0
        %3850 = vmatpush1.msra.mxu0 0.0
        %3851 = vmatprep.subr.mxu0 0.0
        %3852 = vmatpush1.msra.mxu0 0.0
        %3853 = vmatprep.subr.mxu0 0.0
        %3854 = vmatpush1.msra.mxu0 0.0
        %3855 = vmatprep.subr.mxu0 0.0
        %3856 = vmatpush1.msra.mxu0 0.0
        %3857 = vmatprep.subr.mxu0 0.0
        %v3858 = vand.u32 %v271, 4294901760
        %v3859 = vsub.f32 %v271, %v3858
        %v3860 = vand.u32 %v3859, 4294901760
        %v3861 = vsub.f32 %v3859, %v3860
        %v3862 = vand.u32 %v3861, 4294901760
        %3863 = vmatpush1.msra.mxu0 %v3862
        %3864 = vmatprep.subr.mxu0 0.0
        %v3865 = vand.u32 %v270, 4294901760
        %v3866 = vsub.f32 %v270, %v3865
        %v3867 = vand.u32 %v3866, 4294901760
        %v3868 = vsub.f32 %v3866, %v3867
        %v3869 = vand.u32 %v3868, 4294901760
        %3870 = vmatpush1.msra.mxu0 %v3869
        %3871 = vmatprep.subr.mxu0 0.0
        %v3872 = vand.u32 %v269, 4294901760
        %v3873 = vsub.f32 %v269, %v3872
        %v3874 = vand.u32 %v3873, 4294901760
        %v3875 = vsub.f32 %v3873, %v3874
        %v3876 = vand.u32 %v3875, 4294901760
        %3877 = vmatpush1.msra.mxu0 %v3876
        %3878 = vmatprep.subr.mxu0 0.0
        %v3879 = vand.u32 %v268, 4294901760
        %v3880 = vsub.f32 %v268, %v3879
        %v3881 = vand.u32 %v3880, 4294901760
        %v3882 = vsub.f32 %v3880, %v3881
        %v3883 = vand.u32 %v3882, 4294901760
        %3884 = vmatpush1.msra.mxu0 %v3883
        %3885 = vmatprep.subr.mxu0 0.0
        %3886 = vmatpush2.msra.mxu0 0.0
        %3887 = vmatprep.subr.mxu0 0.0
        %3888 = vmatpush2.msra.mxu0 0.0
        %3889 = vmatprep.subr.mxu0 0.0
        %3890 = vmatpush2.msra.mxu0 0.0
        %3891 = vmatprep.subr.mxu0 0.0
        %3892 = vmatpush2.msra.mxu0 0.0
        %3893 = vmatprep.subr.mxu0 0.0
        %3894 = vmatpush2.msra.mxu0 0.0
        %3895 = vmatprep.subr.mxu0 0.0
        %3896 = vmatpush2.msra.mxu0 0.0
        %3897 = vmatprep.subr.mxu0 0.0
        %3898 = vmatpush2.msra.mxu0 0.0
        %3899 = vmatprep.subr.mxu0 0.0
        %3900 = vmatpush2.msra.mxu0 0.0
        %3901 = vmatprep.subr.mxu0 0.0
        %3902 = vmatpush2.msra.mxu0 0.0
        %3903 = vmatprep.subr.mxu0 0.0
        %3904 = vmatpush2.msra.mxu0 0.0
        %3905 = vmatprep.subr.mxu0 0.0
        %3906 = vmatpush2.msra.mxu0 0.0
        %3907 = vmatprep.subr.mxu0 0.0
        %3908 = vmatpush2.msra.mxu0 0.0
        %3909 = vmatprep.subr.mxu0 0.0
        %3910 = vmatpush2.msra.mxu0 0.0
        %3911 = vmatprep.subr.mxu0 0.0
        %3912 = vmatpush2.msra.mxu0 0.0
        %3913 = vmatprep.subr.mxu0 0.0
        %3914 = vmatpush2.msra.mxu0 0.0
        %3915 = vmatprep.subr.mxu0 0.0
        %3916 = vmatpush2.msra.mxu0 0.0
        %3917 = vmatprep.mubr.f32.mxu0 0.0
        %v3918 = vand.u32 %v3752, 4294901760
        %3919 = vmatmul.mubr.f32.gmra.mxu0 %v3918
        %v3920 = vpop.f32.mrf.mxu0
        %v3921 = vadd.f32 %v3830, %v3920
        %v3922 = vpop.f32.mrf.mxu0
        %3923 = vdwg.mxu0
        %3924 = vmatprep.subr.mxu0 0.0
        %3925 = vmatpush1.msra.mxu0 0.0
        %3926 = vmatprep.subr.mxu0 0.0
        %3927 = vmatpush1.msra.mxu0 0.0
        %3928 = vmatprep.subr.mxu0 0.0
        %3929 = vmatpush1.msra.mxu0 0.0
        %3930 = vmatprep.subr.mxu0 0.0
        %3931 = vmatpush1.msra.mxu0 0.0
        %3932 = vmatprep.subr.mxu0 0.0
        %3933 = vmatpush1.msra.mxu0 0.0
        %3934 = vmatprep.subr.mxu0 0.0
        %3935 = vmatpush1.msra.mxu0 0.0
        %3936 = vmatprep.subr.mxu0 0.0
        %3937 = vmatpush1.msra.mxu0 0.0
        %3938 = vmatprep.subr.mxu0 0.0
        %3939 = vmatpush1.msra.mxu0 0.0
        %3940 = vmatprep.subr.mxu0 0.0
        %3941 = vmatpush1.msra.mxu0 0.0
        %3942 = vmatprep.subr.mxu0 0.0
        %3943 = vmatpush1.msra.mxu0 0.0
        %3944 = vmatprep.subr.mxu0 0.0
        %3945 = vmatpush1.msra.mxu0 0.0
        %3946 = vmatprep.subr.mxu0 0.0
        %3947 = vmatpush1.msra.mxu0 0.0
        %3948 = vmatprep.subr.mxu0 0.0
        %v3949 = vand.u32 %v271, 4294901760
        %v3950 = vsub.f32 %v271, %v3949
        %3951 = vmatpush1.msra.mxu0 %v3950
        %3952 = vmatprep.subr.mxu0 0.0
        %v3953 = vand.u32 %v270, 4294901760
        %v3954 = vsub.f32 %v270, %v3953
        %3955 = vmatpush1.msra.mxu0 %v3954
        %3956 = vmatprep.subr.mxu0 0.0
        %v3957 = vand.u32 %v269, 4294901760
        %v3958 = vsub.f32 %v269, %v3957
        %3959 = vmatpush1.msra.mxu0 %v3958
        %3960 = vmatprep.subr.mxu0 0.0
        %v3961 = vand.u32 %v268, 4294901760
        %v3962 = vsub.f32 %v268, %v3961
        %3963 = vmatpush1.msra.mxu0 %v3962
        %3964 = vmatprep.subr.mxu0 0.0
        %3965 = vmatpush2.msra.mxu0 0.0
        %3966 = vmatprep.subr.mxu0 0.0
        %3967 = vmatpush2.msra.mxu0 0.0
        %3968 = vmatprep.subr.mxu0 0.0
        %3969 = vmatpush2.msra.mxu0 0.0
        %3970 = vmatprep.subr.mxu0 0.0
        %3971 = vmatpush2.msra.mxu0 0.0
        %3972 = vmatprep.subr.mxu0 0.0
        %3973 = vmatpush2.msra.mxu0 0.0
        %3974 = vmatprep.subr.mxu0 0.0
        %3975 = vmatpush2.msra.mxu0 0.0
        %3976 = vmatprep.subr.mxu0 0.0
        %3977 = vmatpush2.msra.mxu0 0.0
        %3978 = vmatprep.subr.mxu0 0.0
        %3979 = vmatpush2.msra.mxu0 0.0
        %3980 = vmatprep.subr.mxu0 0.0
        %3981 = vmatpush2.msra.mxu0 0.0
        %3982 = vmatprep.subr.mxu0 0.0
        %3983 = vmatpush2.msra.mxu0 0.0
        %3984 = vmatprep.subr.mxu0 0.0
        %3985 = vmatpush2.msra.mxu0 0.0
        %3986 = vmatprep.subr.mxu0 0.0
        %3987 = vmatpush2.msra.mxu0 0.0
        %3988 = vmatprep.subr.mxu0 0.0
        %3989 = vmatpush2.msra.mxu0 0.0
        %3990 = vmatprep.subr.mxu0 0.0
        %3991 = vmatpush2.msra.mxu0 0.0
        %3992 = vmatprep.subr.mxu0 0.0
        %3993 = vmatpush2.msra.mxu0 0.0
        %3994 = vmatprep.subr.mxu0 0.0
        %3995 = vmatpush2.msra.mxu0 0.0
        %3996 = vmatprep.mubr.f32.mxu0 0.0
        %v3997 = vand.u32 %v3752, 4294901760
        %v3998 = vsub.f32 %v3752, %v3997
        %3999 = vmatmul.mubr.f32.gmra.mxu0 %v3998
        %v4000 = vpop.f32.mrf.mxu0
        %v4001 = vadd.f32 %v3921, %v4000
        %v4002 = vpop.f32.mrf.mxu0
        %4003 = vdwg.mxu0
        %4004 = vmatprep.subr.mxu0 0.0
        %4005 = vmatpush1.msra.mxu0 0.0
        %4006 = vmatprep.subr.mxu0 0.0
        %4007 = vmatpush1.msra.mxu0 0.0
        %4008 = vmatprep.subr.mxu0 0.0
        %4009 = vmatpush1.msra.mxu0 0.0
        %4010 = vmatprep.subr.mxu0 0.0
        %4011 = vmatpush1.msra.mxu0 0.0
        %4012 = vmatprep.subr.mxu0 0.0
        %4013 = vmatpush1.msra.mxu0 0.0
        %4014 = vmatprep.subr.mxu0 0.0
        %4015 = vmatpush1.msra.mxu0 0.0
        %4016 = vmatprep.subr.mxu0 0.0
        %4017 = vmatpush1.msra.mxu0 0.0
        %4018 = vmatprep.subr.mxu0 0.0
        %4019 = vmatpush1.msra.mxu0 0.0
        %4020 = vmatprep.subr.mxu0 0.0
        %4021 = vmatpush1.msra.mxu0 0.0
        %4022 = vmatprep.subr.mxu0 0.0
        %4023 = vmatpush1.msra.mxu0 0.0
        %4024 = vmatprep.subr.mxu0 0.0
        %4025 = vmatpush1.msra.mxu0 0.0
        %4026 = vmatprep.subr.mxu0 0.0
        %4027 = vmatpush1.msra.mxu0 0.0
        %4028 = vmatprep.subr.mxu0 0.0
        %v4029 = vand.u32 %v271, 4294901760
        %4030 = vmatpush1.msra.mxu0 %v4029
        %4031 = vmatprep.subr.mxu0 0.0
        %v4032 = vand.u32 %v270, 4294901760
        %4033 = vmatpush1.msra.mxu0 %v4032
        %4034 = vmatprep.subr.mxu0 0.0
        %v4035 = vand.u32 %v269, 4294901760
        %4036 = vmatpush1.msra.mxu0 %v4035
        %4037 = vmatprep.subr.mxu0 0.0
        %v4038 = vand.u32 %v268, 4294901760
        %4039 = vmatpush1.msra.mxu0 %v4038
        %4040 = vmatprep.subr.mxu0 0.0
        %4041 = vmatpush2.msra.mxu0 0.0
        %4042 = vmatprep.subr.mxu0 0.0
        %4043 = vmatpush2.msra.mxu0 0.0
        %4044 = vmatprep.subr.mxu0 0.0
        %4045 = vmatpush2.msra.mxu0 0.0
        %4046 = vmatprep.subr.mxu0 0.0
        %4047 = vmatpush2.msra.mxu0 0.0
        %4048 = vmatprep.subr.mxu0 0.0
        %4049 = vmatpush2.msra.mxu0 0.0
        %4050 = vmatprep.subr.mxu0 0.0
        %4051 = vmatpush2.msra.mxu0 0.0
        %4052 = vmatprep.subr.mxu0 0.0
        %4053 = vmatpush2.msra.mxu0 0.0
        %4054 = vmatprep.subr.mxu0 0.0
        %4055 = vmatpush2.msra.mxu0 0.0
        %4056 = vmatprep.subr.mxu0 0.0
        %4057 = vmatpush2.msra.mxu0 0.0
        %4058 = vmatprep.subr.mxu0 0.0
        %4059 = vmatpush2.msra.mxu0 0.0
        %4060 = vmatprep.subr.mxu0 0.0
        %4061 = vmatpush2.msra.mxu0 0.0
        %4062 = vmatprep.subr.mxu0 0.0
        %4063 = vmatpush2.msra.mxu0 0.0
        %4064 = vmatprep.subr.mxu0 0.0
        %4065 = vmatpush2.msra.mxu0 0.0
        %4066 = vmatprep.subr.mxu0 0.0
        %4067 = vmatpush2.msra.mxu0 0.0
        %4068 = vmatprep.subr.mxu0 0.0
        %4069 = vmatpush2.msra.mxu0 0.0
        %4070 = vmatprep.subr.mxu0 0.0
        %4071 = vmatpush2.msra.mxu0 0.0
        %4072 = vmatprep.mubr.f32.mxu0 0.0
        %v4073 = vand.u32 %v3752, 4294901760
        %v4074 = vsub.f32 %v3752, %v4073
        %v4075 = vand.u32 %v4074, 4294901760
        %4076 = vmatmul.mubr.f32.gmra.mxu0 %v4075
        %v4077 = vpop.f32.mrf.mxu0
        %v4078 = vadd.f32 %v4001, %v4077
        %v4079 = vpop.f32.mrf.mxu0
        %4080 = vdwg.mxu0
        %4081 = vmatprep.subr.mxu0 0.0
        %4082 = vmatpush1.msra.mxu0 0.0
        %4083 = vmatprep.subr.mxu0 0.0
        %4084 = vmatpush1.msra.mxu0 0.0
        %4085 = vmatprep.subr.mxu0 0.0
        %4086 = vmatpush1.msra.mxu0 0.0
        %4087 = vmatprep.subr.mxu0 0.0
        %4088 = vmatpush1.msra.mxu0 0.0
        %4089 = vmatprep.subr.mxu0 0.0
        %4090 = vmatpush1.msra.mxu0 0.0
        %4091 = vmatprep.subr.mxu0 0.0
        %4092 = vmatpush1.msra.mxu0 0.0
        %4093 = vmatprep.subr.mxu0 0.0
        %4094 = vmatpush1.msra.mxu0 0.0
        %4095 = vmatprep.subr.mxu0 0.0
        %4096 = vmatpush1.msra.mxu0 0.0
        %4097 = vmatprep.subr.mxu0 0.0
        %4098 = vmatpush1.msra.mxu0 0.0
        %4099 = vmatprep.subr.mxu0 0.0
        %4100 = vmatpush1.msra.mxu0 0.0
        %4101 = vmatprep.subr.mxu0 0.0
        %4102 = vmatpush1.msra.mxu0 0.0
        %4103 = vmatprep.subr.mxu0 0.0
        %4104 = vmatpush1.msra.mxu0 0.0
        %4105 = vmatprep.subr.mxu0 0.0
        %v4106 = vand.u32 %v271, 4294901760
        %v4107 = vsub.f32 %v271, %v4106
        %v4108 = vand.u32 %v4107, 4294901760
        %4109 = vmatpush1.msra.mxu0 %v4108
        %4110 = vmatprep.subr.mxu0 0.0
        %v4111 = vand.u32 %v270, 4294901760
        %v4112 = vsub.f32 %v270, %v4111
        %v4113 = vand.u32 %v4112, 4294901760
        %4114 = vmatpush1.msra.mxu0 %v4113
        %4115 = vmatprep.subr.mxu0 0.0
        %v4116 = vand.u32 %v269, 4294901760
        %v4117 = vsub.f32 %v269, %v4116
        %v4118 = vand.u32 %v4117, 4294901760
        %4119 = vmatpush1.msra.mxu0 %v4118
        %4120 = vmatprep.subr.mxu0 0.0
        %v4121 = vand.u32 %v268, 4294901760
        %v4122 = vsub.f32 %v268, %v4121
        %v4123 = vand.u32 %v4122, 4294901760
        %4124 = vmatpush1.msra.mxu0 %v4123
        %4125 = vmatprep.subr.mxu0 0.0
        %4126 = vmatpush2.msra.mxu0 0.0
        %4127 = vmatprep.subr.mxu0 0.0
        %4128 = vmatpush2.msra.mxu0 0.0
        %4129 = vmatprep.subr.mxu0 0.0
        %4130 = vmatpush2.msra.mxu0 0.0
        %4131 = vmatprep.subr.mxu0 0.0
        %4132 = vmatpush2.msra.mxu0 0.0
        %4133 = vmatprep.subr.mxu0 0.0
        %4134 = vmatpush2.msra.mxu0 0.0
        %4135 = vmatprep.subr.mxu0 0.0
        %4136 = vmatpush2.msra.mxu0 0.0
        %4137 = vmatprep.subr.mxu0 0.0
        %4138 = vmatpush2.msra.mxu0 0.0
        %4139 = vmatprep.subr.mxu0 0.0
        %4140 = vmatpush2.msra.mxu0 0.0
        %4141 = vmatprep.subr.mxu0 0.0
        %4142 = vmatpush2.msra.mxu0 0.0
        %4143 = vmatprep.subr.mxu0 0.0
        %4144 = vmatpush2.msra.mxu0 0.0
        %4145 = vmatprep.subr.mxu0 0.0
        %4146 = vmatpush2.msra.mxu0 0.0
        %4147 = vmatprep.subr.mxu0 0.0
        %4148 = vmatpush2.msra.mxu0 0.0
        %4149 = vmatprep.subr.mxu0 0.0
        %4150 = vmatpush2.msra.mxu0 0.0
        %4151 = vmatprep.subr.mxu0 0.0
        %4152 = vmatpush2.msra.mxu0 0.0
        %4153 = vmatprep.subr.mxu0 0.0
        %4154 = vmatpush2.msra.mxu0 0.0
        %4155 = vmatprep.subr.mxu0 0.0
        %4156 = vmatpush2.msra.mxu0 0.0
        %4157 = vmatprep.mubr.f32.mxu0 0.0
        %v4158 = vand.u32 %v3752, 4294901760
        %4159 = vmatmul.mubr.f32.gmra.mxu0 %v4158
        %v4160 = vpop.f32.mrf.mxu0
        %v4161 = vadd.f32 %v4078, %v4160
        %v4162 = vpop.f32.mrf.mxu0
        %4163 = vdwg.mxu0
        %4164 = vmatprep.subr.mxu0 0.0
        %4165 = vmatpush1.msra.mxu0 0.0
        %4166 = vmatprep.subr.mxu0 0.0
        %4167 = vmatpush1.msra.mxu0 0.0
        %4168 = vmatprep.subr.mxu0 0.0
        %4169 = vmatpush1.msra.mxu0 0.0
        %4170 = vmatprep.subr.mxu0 0.0
        %4171 = vmatpush1.msra.mxu0 0.0
        %4172 = vmatprep.subr.mxu0 0.0
        %4173 = vmatpush1.msra.mxu0 0.0
        %4174 = vmatprep.subr.mxu0 0.0
        %4175 = vmatpush1.msra.mxu0 0.0
        %4176 = vmatprep.subr.mxu0 0.0
        %4177 = vmatpush1.msra.mxu0 0.0
        %4178 = vmatprep.subr.mxu0 0.0
        %4179 = vmatpush1.msra.mxu0 0.0
        %4180 = vmatprep.subr.mxu0 0.0
        %4181 = vmatpush1.msra.mxu0 0.0
        %4182 = vmatprep.subr.mxu0 0.0
        %4183 = vmatpush1.msra.mxu0 0.0
        %4184 = vmatprep.subr.mxu0 0.0
        %4185 = vmatpush1.msra.mxu0 0.0
        %4186 = vmatprep.subr.mxu0 0.0
        %4187 = vmatpush1.msra.mxu0 0.0
        %4188 = vmatprep.subr.mxu0 0.0
        %v4189 = vand.u32 %v271, 4294901760
        %4190 = vmatpush1.msra.mxu0 %v4189
        %4191 = vmatprep.subr.mxu0 0.0
        %v4192 = vand.u32 %v270, 4294901760
        %4193 = vmatpush1.msra.mxu0 %v4192
        %4194 = vmatprep.subr.mxu0 0.0
        %v4195 = vand.u32 %v269, 4294901760
        %4196 = vmatpush1.msra.mxu0 %v4195
        %4197 = vmatprep.subr.mxu0 0.0
        %v4198 = vand.u32 %v268, 4294901760
        %4199 = vmatpush1.msra.mxu0 %v4198
        %4200 = vmatprep.subr.mxu0 0.0
        %4201 = vmatpush2.msra.mxu0 0.0
        %4202 = vmatprep.subr.mxu0 0.0
        %4203 = vmatpush2.msra.mxu0 0.0
        %4204 = vmatprep.subr.mxu0 0.0
        %4205 = vmatpush2.msra.mxu0 0.0
        %4206 = vmatprep.subr.mxu0 0.0
        %4207 = vmatpush2.msra.mxu0 0.0
        %4208 = vmatprep.subr.mxu0 0.0
        %4209 = vmatpush2.msra.mxu0 0.0
        %4210 = vmatprep.subr.mxu0 0.0
        %4211 = vmatpush2.msra.mxu0 0.0
        %4212 = vmatprep.subr.mxu0 0.0
        %4213 = vmatpush2.msra.mxu0 0.0
        %4214 = vmatprep.subr.mxu0 0.0
        %4215 = vmatpush2.msra.mxu0 0.0
        %4216 = vmatprep.subr.mxu0 0.0
        %4217 = vmatpush2.msra.mxu0 0.0
        %4218 = vmatprep.subr.mxu0 0.0
        %4219 = vmatpush2.msra.mxu0 0.0
        %4220 = vmatprep.subr.mxu0 0.0
        %4221 = vmatpush2.msra.mxu0 0.0
        %4222 = vmatprep.subr.mxu0 0.0
        %4223 = vmatpush2.msra.mxu0 0.0
        %4224 = vmatprep.subr.mxu0 0.0
        %4225 = vmatpush2.msra.mxu0 0.0
        %4226 = vmatprep.subr.mxu0 0.0
        %4227 = vmatpush2.msra.mxu0 0.0
        %4228 = vmatprep.subr.mxu0 0.0
        %4229 = vmatpush2.msra.mxu0 0.0
        %4230 = vmatprep.subr.mxu0 0.0
        %4231 = vmatpush2.msra.mxu0 0.0
        %4232 = vmatprep.mubr.f32.mxu0 0.0
        %v4233 = vand.u32 %v3752, 4294901760
        %4234 = vmatmul.mubr.f32.gmra.mxu0 %v4233
        %v4235 = vpop.f32.mrf.mxu0
        %v4236 = vadd.f32 %v4161, %v4235
        %v4237 = vpop.f32.mrf.mxu0
        %4238 = vdwg.mxu0
        %v4239 = vmax.f32 %v3742, %v4236
        %v4240 = vld [vmem:[%s2] sm:$0xff]
        %v4241 = vld [vmem:[%s2 + $0x8] sm:$0xff]
        %v4242 = vld [vmem:[%s2 + $0x10] sm:$0xff]
        %v4243 = vld [vmem:[%s2 + $0x18] sm:$0xff]
        %v4244 = vld [vmem:[%s3] sm:$0x1]
        %v4246 = vlaneseq
        %v4247 = vshrl.u32 %v4246, 7
        %v4248 = vsub.s32 0, %v4247
        %v4249 = vrot.slane %v4244, %v4248
        %v4252 = vsel %vm272, %v4239, 0
        %4254 = vmatprep.subr.mxu0 0.0
        %4255 = vmatpush1.msra.mxu0 0.0
        %4256 = vmatprep.subr.mxu0 0.0
        %4257 = vmatpush1.msra.mxu0 0.0
        %4258 = vmatprep.subr.mxu0 0.0
        %4259 = vmatpush1.msra.mxu0 0.0
        %4260 = vmatprep.subr.mxu0 0.0
        %4261 = vmatpush1.msra.mxu0 0.0
        %4262 = vmatprep.subr.mxu0 0.0
        %4263 = vmatpush1.msra.mxu0 0.0
        %4264 = vmatprep.subr.mxu0 0.0
        %4265 = vmatpush1.msra.mxu0 0.0
        %4266 = vmatprep.subr.mxu0 0.0
        %4267 = vmatpush1.msra.mxu0 0.0
        %4268 = vmatprep.subr.mxu0 0.0
        %4269 = vmatpush1.msra.mxu0 0.0
        %4270 = vmatprep.subr.mxu0 0.0
        %4271 = vmatpush1.msra.mxu0 0.0
        %4272 = vmatprep.subr.mxu0 0.0
        %4273 = vmatpush1.msra.mxu0 0.0
        %4274 = vmatprep.subr.mxu0 0.0
        %4275 = vmatpush1.msra.mxu0 0.0
        %4276 = vmatprep.subr.mxu0 0.0
        %4277 = vmatpush1.msra.mxu0 0.0
        %4278 = vmatprep.subr.mxu0 0.0
        %4279 = vmatpush1.msra.mxu0 %v4243
        %4280 = vmatprep.subr.mxu0 0.0
        %4281 = vmatpush1.msra.mxu0 %v4242
        %4282 = vmatprep.subr.mxu0 0.0
        %4283 = vmatpush1.msra.mxu0 %v4241
        %4284 = vmatprep.subr.mxu0 0.0
        %4285 = vmatpush1.msra.mxu0 %v4240
        %4286 = vmatprep.subr.mxu0 0.0
        %4287 = vmatpush2.msra.mxu0 0.0
        %4288 = vmatprep.subr.mxu0 0.0
        %4289 = vmatpush2.msra.mxu0 0.0
        %4290 = vmatprep.subr.mxu0 0.0
        %4291 = vmatpush2.msra.mxu0 0.0
        %4292 = vmatprep.subr.mxu0 0.0
        %4293 = vmatpush2.msra.mxu0 0.0
        %4294 = vmatprep.subr.mxu0 0.0
        %4295 = vmatpush2.msra.mxu0 0.0
        %4296 = vmatprep.subr.mxu0 0.0
        %4297 = vmatpush2.msra.mxu0 0.0
        %4298 = vmatprep.subr.mxu0 0.0
        %4299 = vmatpush2.msra.mxu0 0.0
        %4300 = vmatprep.subr.mxu0 0.0
        %4301 = vmatpush2.msra.mxu0 0.0
        %4302 = vmatprep.subr.mxu0 0.0
        %4303 = vmatpush2.msra.mxu0 0.0
        %4304 = vmatprep.subr.mxu0 0.0
        %4305 = vmatpush2.msra.mxu0 0.0
        %4306 = vmatprep.subr.mxu0 0.0
        %4307 = vmatpush2.msra.mxu0 0.0
        %4308 = vmatprep.subr.mxu0 0.0
        %4309 = vmatpush2.msra.mxu0 0.0
        %4310 = vmatprep.subr.mxu0 0.0
        %4311 = vmatpush2.msra.mxu0 0.0
        %4312 = vmatprep.subr.mxu0 0.0
        %4313 = vmatpush2.msra.mxu0 0.0
        %4314 = vmatprep.subr.mxu0 0.0
        %4315 = vmatpush2.msra.mxu0 0.0
        %4316 = vmatprep.subr.mxu0 0.0
        %4317 = vmatpush2.msra.mxu0 0.0
        %4318 = vmatprep.mubr.f32.mxu0 0.0
        %4319 = vmatmul.mubr.f32.gmra.mxu0 %v4252
        %v4320 = vpop.f32.mrf.mxu0
        %v4321 = vadd.f32 %v4249, %v4320
        %v4322 = vpop.f32.mrf.mxu0
        %4323 = vdwg.mxu0
        %4324 = vst [vmem:[%s258] sm:$0xff] %v4321
        %s4325 = sand.u32 %s115, 1
        %s4326 = scalar_lea.sflag [#allocation4], %s4325
        %s4327 = sand.u32 %s115, 1
        %s4328 = smul.addr %s4327, 8
        %s4329 = scalar_lea.vmem [#allocation3], %s4328
        // Predicated region
        $region75: #{tpu_custom_call.1} parent=69 // pred_check
          %p4330 = pneg %p125
        $region76: #{tpu_custom_call.1} parent=69 // pred_check_branch
          %4332 = sbr.rel (%p4330) target = $region78
        $region77: #{tpu_custom_call.1} parent=69 // pred_region
          %s4334 = ssub.s32 128, 128
          %4335 = vsyncadd %s4326, %s4334
          %s4336 = smul.addr %s18, 128
          %s4337 = scalar_lea.hbm %s4, %s4336
          %s4339 = sshll.u32 %s4329, 4
          %s4340 = int_to_ptr.vmem [resolvable:$true] %s4339
          %4342 = dma.vmem_to_hbm [thread:$0]  %s4340, 128, %s4337, %s4326
        $region78: #{tpu_custom_call.1} parent=69 // pred_fallthru
          _
      $region70: #{tpu_custom_call.1} parent=5 // pred_fallthru
        _
      %p4343 = scmp.le.s32.totalorder 2, %s13
      // Predicated region
      $region79: #{tpu_custom_call.1} parent=5 // pred_check
        %p4344 = pneg %p4343
      $region80: #{tpu_custom_call.1} parent=5 // pred_check_branch
        %4346 = sbr.rel (%p4344) target = $region82
      $region81: #{tpu_custom_call.1} parent=5 // pred_region
        %s4347 = ssub.s32 %s13, 2
        // Predicated region
        $region83: #{tpu_custom_call.1} parent=81 // pred_check
          %p4348 = pneg %p131
        $region84: #{tpu_custom_call.1} parent=81 // pred_check_branch
          %4350 = sbr.rel (%p4348) target = $region86
        $region85: #{tpu_custom_call.1} parent=81 // pred_region
          %s4351 = sand.u32 %s116, 1
          %s4352 = scalar_lea.sflag [#allocation4], %s4351
          %s4353 = sand.u32 %s116, 1
          %s4354 = smul.addr %s4353, 8
          %s4355 = scalar_lea.vmem [#allocation3], %s4354
          %4356 = dma.done %s4352, 128
        $region86: #{tpu_custom_call.1} parent=81 // pred_fallthru
          _
      $region82: #{tpu_custom_call.1} parent=5 // pred_fallthru
        _
    $region6: #{tpu_custom_call.1} parent=1 // loop_footer
      %s17 = sadd.s32 1, %s13
    $region7: #{tpu_custom_call.1} parent=1 // loop_footer_branch
      %12 = sbr.rel target = $region3
    $region8: #{tpu_custom_call.1} parent=1 // loop_exit
      _
    %4357 = vsyncpa [#allocation4], 1
    %s4358 = scalar_lea.sflag [#allocation4], 1
    %4359 = vsyncpa %s4358, 1

// kernel: tpu_custom_call.1
$region0: #{tpu_custom_call.1}
  #allocation0 [shape = 'u32[]', space=smem, size = 0x4, offset = 0x4, fixed_abs, tag = 'smem constant byte address 0x4 - core index']
  #allocation1 [shape = 'u32[144,128]{1,0:T(1,128)}', space=vmem, size = 0x12000, scoped, tag = 'internal scratch']
  %s0 = inlined_call_operand.vmem [shape: s32[8,16,1], index: 0, kind: input, shape index: {}]
  %s1 = inlined_call_operand.vmem [shape: f32[32,32], index: 1, kind: input, shape index: {}]
  %s2 = inlined_call_operand.vmem [shape: f32[32,128], index: 2, kind: input, shape index: {}]
  %s3 = inlined_call_operand.vmem [shape: f32[1,128], index: 3, kind: input, shape index: {}]
  %s4 = inlined_call_operand.hbm [shape: f32[16,128], index: 4, kind: output, shape index: {}]
  %s5 = sld [smem:[#allocation0]]
  $region87: #{tpu_custom_call.1} parent=0
    _
  %s7 = ssub.s32 1, %s5
  %s8 = scalar_select 0, %s7, %s5
  $region1: #{tpu_custom_call.1} parent=0
    #allocation2 [shape = 'u8[65536]{0}', space=vmem, size = 0x10000, scoped, tag = 'input window, operand 0']
    #allocation3 [shape = 'u8[8192]{0}', space=vmem, size = 0x2000, scoped, tag = 'output window, operand 0']
    #allocation4 [shape = 's32[2]{0}', space=sflag, size = 0x8, scoped, tag = 'scoped memory for tpu_custom_call.1']
    %9 = vsyncpa [#allocation4], 0
    %s10 = scalar_lea.sflag [#allocation4], 1
    %11 = vsyncpa %s10, 0
    loop: start=0, step=1, limit=4
    $region2: #{tpu_custom_call.1} parent=1 // loop_pre_header
      _
    $region3: #{tpu_custom_call.1} parent=1 // loop_header
      %s13 = sphi 0, %s17
      %p14 = scmp.ge.s32.totalorder %s13, 4
      %s23 = sphi 0, %s25
      %s26 = sphi 0, %s23
      %s27 = sphi 0, %s26
      %s43 = sphi 0, %s27
      %s47 = sphi 0, %s47
      %s49 = sphi 0, %s47
      %s50 = sphi 0, %s49
      %s64 = sphi 0, %s50
      %s68 = sphi 0, %s68
      %s70 = sphi 0, %s68
      %s71 = sphi 0, %s70
      %s85 = sphi 0, %s71
      %s89 = sphi 0, %s89
      %s91 = sphi 0, %s89
      %s92 = sphi 0, %s91
      %s106 = sphi 0, %s92
      %s112 = sphi 0, %s114
      %s115 = sphi 0, %s112
      %s116 = sphi 0, %s115
      %s132 = sphi 0, %s116
    $region4: #{tpu_custom_call.1} parent=1 // loop_header_branch
      %16 = sbr.rel (%p14) target = $region8
    $region5: #{tpu_custom_call.1} parent=1 // loop_body
      %s18 = ssub.s32 %s13, 1
      %s19 = ssub.s32 %s13, 2
      %s20 = sadd.s32 %s13, 1
      %s21 = ssub.s32 %s13, %s20
      %p22 = scmp.eq.s32.totalorder %s21, 0
      %s24 = sadd.s32 %s23, 1
      %s25 = scalar_select %p22, %s23, %s24
      %p28 = pneg %p22
      %p29 = scmp.eq.s32.totalorder %s13, 1
      %p30 = por %p28, %p29
      %p31 = scmp.ne.s32.totalorder %s23, %s26
      %p32 = scmp.eq.s32.totalorder %s13, 0
      %p33 = por %p31, %p32
      %p34 = scmp.ne.s32.totalorder %s23, %s26
      %p35 = scmp.eq.s32.totalorder %s18, 1
      %p36 = por %p34, %p35
      %p37 = scmp.ne.s32.totalorder %s26, %s27
      %p38 = scmp.eq.s32.totalorder %s18, 0
      %p39 = por %p37, %p38
      %p40 = scmp.ne.s32.totalorder %s26, %s27
      %p41 = scmp.eq.s32.totalorder %s19, 1
      %p42 = por %p40, %p41
      %p44 = scmp.ne.s32.totalorder %s27, %s43
      %p45 = scmp.eq.s32.totalorder %s19, 0
      %p46 = por %p44, %p45
      %s48 = sadd.s32 %s47, 1
      %p51 = scmp.eq.s32.totalorder %s13, 1
      %p52 = scmp.ne.s32.totalorder %s47, %s49
      %p53 = scmp.eq.s32.totalorder %s13, 0
      %p54 = por %p52, %p53
      %p55 = scmp.ne.s32.totalorder %s47, %s49
      %p56 = scmp.eq.s32.totalorder %s18, 1
      %p57 = por %p55, %p56
      %p58 = scmp.ne.s32.totalorder %s49, %s50
      %p59 = scmp.eq.s32.totalorder %s18, 0
      %p60 = por %p58, %p59
      %p61 = scmp.ne.s32.totalorder %s49, %s50
      %p62 = scmp.eq.s32.totalorder %s19, 1
      %p63 = por %p61, %p62
      %p65 = scmp.ne.s32.totalorder %s50, %s64
      %p66 = scmp.eq.s32.totalorder %s19, 0
      %p67 = por %p65, %p66
      %s69 = sadd.s32 %s68, 1
      %p72 = scmp.eq.s32.totalorder %s13, 1
      %p73 = scmp.ne.s32.totalorder %s68, %s70
      %p74 = scmp.eq.s32.totalorder %s13, 0
      %p75 = por %p73, %p74
      %p76 = scmp.ne.s32.totalorder %s68, %s70
      %p77 = scmp.eq.s32.totalorder %s18, 1
      %p78 = por %p76, %p77
      %p79 = scmp.ne.s32.totalorder %s70, %s71
      %p80 = scmp.eq.s32.totalorder %s18, 0
      %p81 = por %p79, %p80
      %p82 = scmp.ne.s32.totalorder %s70, %s71
      %p83 = scmp.eq.s32.totalorder %s19, 1
      %p84 = por %p82, %p83
      %p86 = scmp.ne.s32.totalorder %s71, %s85
      %p87 = scmp.eq.s32.totalorder %s19, 0
      %p88 = por %p86, %p87
      %s90 = sadd.s32 %s89, 1
      %p93 = scmp.eq.s32.totalorder %s13, 1
      %p94 = scmp.ne.s32.totalorder %s89, %s91
      %p95 = scmp.eq.s32.totalorder %s13, 0
      %p96 = por %p94, %p95
      %p97 = scmp.ne.s32.totalorder %s89, %s91
      %p98 = scmp.eq.s32.totalorder %s18, 1
      %p99 = por %p97, %p98
      %p100 = scmp.ne.s32.totalorder %s91, %s92
      %p101 = scmp.eq.s32.totalorder %s18, 0
      %p102 = por %p100, %p101
      %p103 = scmp.ne.s32.totalorder %s91, %s92
      %p104 = scmp.eq.s32.totalorder %s19, 1
      %p105 = por %p103, %p104
      %p107 = scmp.ne.s32.totalorder %s92, %s106
      %p108 = scmp.eq.s32.totalorder %s19, 0
      %p109 = por %p107, %p108
      %s110 = ssub.s32 %s13, %s20
      %p111 = scmp.eq.s32.totalorder %s110, 0
      %s113 = sadd.s32 %s112, 1
      %s114 = scalar_select %p111, %s112, %s113
      %p117 = pneg %p111
      %p118 = scmp.eq.s32.totalorder %s13, 1
      %p119 = por %p117, %p118
      %p120 = scmp.ne.s32.totalorder %s112, %s115
      %p121 = scmp.eq.s32.totalorder %s13, 0
      %p122 = por %p120, %p121
      %p123 = scmp.ne.s32.totalorder %s112, %s115
      %p124 = scmp.eq.s32.totalorder %s18, 1
      %p125 = por %p123, %p124
      %p126 = scmp.ne.s32.totalorder %s115, %s116
      %p127 = scmp.eq.s32.totalorder %s18, 0
      %p128 = por %p126, %p127
      %p129 = scmp.ne.s32.totalorder %s115, %s116
      %p130 = scmp.eq.s32.totalorder %s19, 1
      %p131 = por %p129, %p130
      %p133 = scmp.ne.s32.totalorder %s116, %s132
      %p134 = scmp.eq.s32.totalorder %s19, 0
      %p135 = por %p133, %p134
      %p136 = scmp.le.s32.totalorder 1, %s13
      %p137 = scmp.lt.s32.totalorder %s13, 3
      %p138 = pnand %p136, %p137
      %p139 = pneg %p138
      // Predicated region
      $region9: #{tpu_custom_call.1} parent=5 // pred_check
        _
      $region10: #{tpu_custom_call.1} parent=5 // pred_check_branch
        %141 = sbr.rel (%p138) target = $region12
      $region11: #{tpu_custom_call.1} parent=5 // pred_region
        %s142 = ssub.s32 %s13, 1
        // Predicated region
        $region13: #{tpu_custom_call.1} parent=11 // pred_check
          %p143 = pneg %p60
        $region14: #{tpu_custom_call.1} parent=11 // pred_check_branch
          %145 = sbr.rel (%p143) target = $region16
        $region15: #{tpu_custom_call.1} parent=11 // pred_region
          _
        $region16: #{tpu_custom_call.1} parent=11 // pred_fallthru
          _
        // Predicated region
        $region17: #{tpu_custom_call.1} parent=11 // pred_check
          %p146 = pneg %p81
        $region18: #{tpu_custom_call.1} parent=11 // pred_check_branch
          %148 = sbr.rel (%p146) target = $region20
        $region19: #{tpu_custom_call.1} parent=11 // pred_region
          _
        $region20: #{tpu_custom_call.1} parent=11 // pred_fallthru
          _
        // Predicated region
        $region21: #{tpu_custom_call.1} parent=11 // pred_check
          %p149 = pneg %p102
        $region22: #{tpu_custom_call.1} parent=11 // pred_check_branch
          %151 = sbr.rel (%p149) target = $region24
        $region23: #{tpu_custom_call.1} parent=11 // pred_region
          _
        $region24: #{tpu_custom_call.1} parent=11 // pred_fallthru
          _
      $region12: #{tpu_custom_call.1} parent=5 // pred_fallthru
        _
      %p152 = scmp.lt.s32.totalorder %s13, 2
      // Predicated region
      $region25: #{tpu_custom_call.1} parent=5 // pred_check
        %p153 = pneg %p152
      $region26: #{tpu_custom_call.1} parent=5 // pred_check_branch
        %155 = sbr.rel (%p153) target = $region28
      $region27: #{tpu_custom_call.1} parent=5 // pred_region
        // Predicated region
        $region29: #{tpu_custom_call.1} parent=27 // pred_check
          %p156 = pneg %p33
        $region30: #{tpu_custom_call.1} parent=27 // pred_check_branch
          %158 = sbr.rel (%p156) target = $region32
        $region31: #{tpu_custom_call.1} parent=27 // pred_region
          %s159 = sand.u32 %s23, 1
          %s160 = sand.u32 %s23, 1
          %s161 = smul.addr %s160, 64
          %s162 = scalar_lea.vmem [#allocation2], %s161
          %s163 = smul.addr %s13, 8
          %s164 = scalar_lea.vmem %s0, %s163
          // Predicated region
          $region33: #{tpu_custom_call.1} parent=31 // pred_check
            _
          $region34: #{tpu_custom_call.1} parent=31 // pred_check_branch
            %166 = sbr.rel (0) target = $region36
          $region35: #{tpu_custom_call.1} parent=31 // pred_region
            // Predicated region
            $region37: #{tpu_custom_call.1} parent=35 // pred_check
              _
            $region38: #{tpu_custom_call.1} parent=35 // pred_check_branch
              %168 = sbr.rel (0) target = $region40
            $region39: #{tpu_custom_call.1} parent=35 // pred_region
              // Predicated region
              $region52: #{tpu_custom_call.1} parent=39 // pred_check
                _
              $region53: #{tpu_custom_call.1} parent=39 // pred_check_branch
                %198 = sbr.rel (0) target = $region55
              $region54: #{tpu_custom_call.1} parent=39 // pred_region
                loop: start=0, step=1, limit=1
                $region56: #{tpu_custom_call.1} parent=54 // loop_pre_header
                  _
                $region57: #{tpu_custom_call.1} parent=54 // loop_header
                  %s200 = sphi 0, %s204
                  %p201 = scmp.ge.s32.totalorder %s200, 1
                  %s205 = sphi %s164, %s164
                  %s206 = sphi %s162, %s162
                $region58: #{tpu_custom_call.1} parent=54 // loop_header_branch
                  %203 = sbr.rel (%p201) target = $region62
                $region59: #{tpu_custom_call.1} parent=54 // loop_body
                  %v207 = vld [vmem:[%s205] sm:$0xff]
                  %208 = vst [vmem:[%s206] sm:$0xff] %v207
                  %v209 = vld [vmem:[%s205 + $0x10] sm:$0xff]
                  %210 = vst [vmem:[%s206 + $0x8] sm:$0xff] %v209
                  %v211 = vld [vmem:[%s205 + $0x20] sm:$0xff]
                  %212 = vst [vmem:[%s206 + $0x10] sm:$0xff] %v211
                  %v213 = vld [vmem:[%s205 + $0x30] sm:$0xff]
                  %214 = vst [vmem:[%s206 + $0x18] sm:$0xff] %v213
                  %v215 = vld [vmem:[%s205 + $0x40] sm:$0xff]
                  %216 = vst [vmem:[%s206 + $0x20] sm:$0xff] %v215
                  %v217 = vld [vmem:[%s205 + $0x50] sm:$0xff]
                  %218 = vst [vmem:[%s206 + $0x28] sm:$0xff] %v217
                  %v219 = vld [vmem:[%s205 + $0x60] sm:$0xff]
                  %220 = vst [vmem:[%s206 + $0x30] sm:$0xff] %v219
                  %v221 = vld [vmem:[%s205 + $0x70] sm:$0xff]
                  %222 = vst [vmem:[%s206 + $0x38] sm:$0xff] %v221
                $region60: #{tpu_custom_call.1} parent=54 // loop_footer
                  %s204 = sadd.s32 1, %s200
                $region61: #{tpu_custom_call.1} parent=54 // loop_footer_branch
                  %199 = sbr.rel target = $region57
                $region62: #{tpu_custom_call.1} parent=54 // loop_exit
                  _
              $region55: #{tpu_custom_call.1} parent=39 // pred_fallthru
                _
              // Predicated region
              $region63: #{tpu_custom_call.1} parent=39 // pred_check
                _
              $region64: #{tpu_custom_call.1} parent=39 // pred_check_branch
                %224 = sbr.rel target = $region66
              $region65: #{tpu_custom_call.1} parent=39 // pred_region
                _
              $region66: #{tpu_custom_call.1} parent=39 // pred_fallthru
                _
            $region40: #{tpu_custom_call.1} parent=35 // pred_fallthru
              _
            // Predicated region
            $region41: #{tpu_custom_call.1} parent=35 // pred_check
              _
            $region42: #{tpu_custom_call.1} parent=35 // pred_check_branch
              %170 = sbr.rel target = $region44
            $region43: #{tpu_custom_call.1} parent=35 // pred_region
              %s172 = ssub.s32 256, 1
              loop: start=0, step=1, limit=1
              $region45: #{tpu_custom_call.1} parent=43 // loop_pre_header
                _
              $region46: #{tpu_custom_call.1} parent=43 // loop_header
                %s174 = sphi 0, %s178
                %p175 = scmp.ge.s32.totalorder %s174, 1
                %s179 = sphi %s164, %s164
                %s180 = sphi %s162, %s162
              $region47: #{tpu_custom_call.1} parent=43 // loop_header_branch
                %177 = sbr.rel (%p175) target = $region51
              $region48: #{tpu_custom_call.1} parent=43 // loop_body
                %v181 = vld [vmem:[%s179] sm:%s172]
                %182 = vst [vmem:[%s180] sm:%s172] %v181
                %v183 = vld [vmem:[%s179 + $0x10] sm:%s172]
                %184 = vst [vmem:[%s180 + $0x8] sm:%s172] %v183
                %v185 = vld [vmem:[%s179 + $0x20] sm:%s172]
                %186 = vst [vmem:[%s180 + $0x10] sm:%s172] %v185
                %v187 = vld [vmem:[%s179 + $0x30] sm:%s172]
                %188 = vst [vmem:[%s180 + $0x18] sm:%s172] %v187
                %v189 = vld [vmem:[%s179 + $0x40] sm:%s172]
                %190 = vst [vmem:[%s180 + $0x20] sm:%s172] %v189
                %v191 = vld [vmem:[%s179 + $0x50] sm:%s172]
                %192 = vst [vmem:[%s180 + $0x28] sm:%s172] %v191
                %v193 = vld [vmem:[%s179 + $0x60] sm:%s172]
                %194 = vst [vmem:[%s180 + $0x30] sm:%s172] %v193
                %v195 = vld [vmem:[%s179 + $0x70] sm:%s172]
                %196 = vst [vmem:[%s180 + $0x38] sm:%s172] %v195
              $region49: #{tpu_custom_call.1} parent=43 // loop_footer
                %s178 = sadd.s32 1, %s174
              $region50: #{tpu_custom_call.1} parent=43 // loop_footer_branch
                %173 = sbr.rel target = $region46
              $region51: #{tpu_custom_call.1} parent=43 // loop_exit
                _
            $region44: #{tpu_custom_call.1} parent=35 // pred_fallthru
              _
          $region36: #{tpu_custom_call.1} parent=31 // pred_fallthru
            _
          %225 = vnop
        $region32: #{tpu_custom_call.1} parent=27 // pred_fallthru
          _
      $region28: #{tpu_custom_call.1} parent=5 // pred_fallthru
        _
      %p226 = scmp.le.s32.totalorder 1, %s13
      %p227 = scmp.lt.s32.totalorder %s13, 3
      %p228 = pnand %p226, %p227
      %p229 = pneg %p228
      // Predicated region
      $region67: #{tpu_custom_call.1} parent=5 // pred_check
        _
      $region68: #{tpu_custom_call.1} parent=5 // pred_check_branch
        %231 = sbr.rel (%p228) target = $region70
      $region69: #{tpu_custom_call.1} parent=5 // pred_region
        %s232 = ssub.s32 %s13, 1
        %s233 = sand.u32 %s26, 1
        %s234 = sand.u32 %s26, 1
        %s235 = smul.addr %s234, 64
        %s236 = scalar_lea.vmem [#allocation2], %s235
        // Predicated region
        $region71: #{tpu_custom_call.1} parent=69 // pred_check
          %p237 = pneg %p39
        $region72: #{tpu_custom_call.1} parent=69 // pred_check_branch
          %239 = sbr.rel (%p237) target = $region74
        $region73: #{tpu_custom_call.1} parent=69 // pred_region
          _
        $region74: #{tpu_custom_call.1} parent=69 // pred_fallthru
          _
        %s240 = sand.u32 %s26, 1
        %s241 = sand.u32 %s26, 1
        %s242 = smul.addr %s241, 64
        %s243 = scalar_lea.vmem [#allocation2], %s242
        %p244 = pneg %p39
        %p245 = pneg %p36
        %p246 = pneg %p60
        %p247 = pneg %p57
        %p248 = pneg %p81
        %p249 = pneg %p78
        %p250 = pneg %p102
        %p251 = pneg %p99
        %p252 = pneg %p128
        %p253 = pneg %p125
        %s254 = sand.u32 %s115, 1
        %s255 = scalar_lea.sflag [#allocation4], %s254
        %s256 = sand.u32 %s115, 1
        %s257 = smul.addr %s256, 8
        %s258 = scalar_lea.vmem [#allocation3], %s257
        %v259 = vlaneseq
        %v260 = vand.u32 %v259, 127
        %v261 = vld [vmem:[%s236] sm:$0xff]
        %262 = vset.pattern.permute.xlu0 0
        %263 = vperm.xlu0 %262, %v261
        %v264 = vpop.permute.xlu0 %263
        %vm265 = vcmp.eq.s32.totalorder %v264, %v260
        %v266 = vsel %vm265, 1, 0
        %v267 = vcvt.s32.f32 %v266
        %v268 = vld [vmem:[%s1] sm:$0xff]
        %v269 = vld [vmem:[%s1 + $0x8] sm:$0xff]
        %v270 = vld [vmem:[%s1 + $0x10] sm:$0xff]
        %v271 = vld [vmem:[%s1 + $0x18] sm:$0xff]
        %vm272 = vcmask 261120
        %v274 = vsel %vm272, %v267, 0
        %276 = vmatprep.subr.mxu0 0.0
        %277 = vmatpush1.msra.mxu0 0.0
        %278 = vmatprep.subr.mxu0 0.0
        %279 = vmatpush1.msra.mxu0 0.0
        %280 = vmatprep.subr.mxu0 0.0
        %281 = vmatpush1.msra.mxu0 0.0
        %282 = vmatprep.subr.mxu0 0.0
        %283 = vmatpush1.msra.mxu0 0.0
        %284 = vmatprep.subr.mxu0 0.0
        %285 = vmatpush1.msra.mxu0 0.0
        %286 = vmatprep.subr.mxu0 0.0
        %287 = vmatpush1.msra.mxu0 0.0
        %288 = vmatprep.subr.mxu0 0.0
        %289 = vmatpush1.msra.mxu0 0.0
        %290 = vmatprep.subr.mxu0 0.0
        %291 = vmatpush1.msra.mxu0 0.0
        %292 = vmatprep.subr.mxu0 0.0
        %293 = vmatpush1.msra.mxu0 0.0
        %294 = vmatprep.subr.mxu0 0.0
        %295 = vmatpush1.msra.mxu0 0.0
        %296 = vmatprep.subr.mxu0 0.0
        %297 = vmatpush1.msra.mxu0 0.0
        %298 = vmatprep.subr.mxu0 0.0
        %299 = vmatpush1.msra.mxu0 0.0
        %300 = vmatprep.subr.mxu0 0.0
        %v301 = vand.u32 %v271, 4294901760
        %302 = vmatpush1.msra.mxu0 %v301
        %303 = vmatprep.subr.mxu0 0.0
        %v304 = vand.u32 %v270, 4294901760
        %305 = vmatpush1.msra.mxu0 %v304
        %306 = vmatprep.subr.mxu0 0.0
        %v307 = vand.u32 %v269, 4294901760
        %308 = vmatpush1.msra.mxu0 %v307
        %309 = vmatprep.subr.mxu0 0.0
        %v310 = vand.u32 %v268, 4294901760
        %311 = vmatpush1.msra.mxu0 %v310
        %312 = vmatprep.subr.mxu0 0.0
        %313 = vmatpush2.msra.mxu0 0.0
        %314 = vmatprep.subr.mxu0 0.0
        %315 = vmatpush2.msra.mxu0 0.0
        %316 = vmatprep.subr.mxu0 0.0
        %317 = vmatpush2.msra.mxu0 0.0
        %318 = vmatprep.subr.mxu0 0.0
        %319 = vmatpush2.msra.mxu0 0.0
        %320 = vmatprep.subr.mxu0 0.0
        %321 = vmatpush2.msra.mxu0 0.0
        %322 = vmatprep.subr.mxu0 0.0
        %323 = vmatpush2.msra.mxu0 0.0
        %324 = vmatprep.subr.mxu0 0.0
        %325 = vmatpush2.msra.mxu0 0.0
        %326 = vmatprep.subr.mxu0 0.0
        %327 = vmatpush2.msra.mxu0 0.0
        %328 = vmatprep.subr.mxu0 0.0
        %329 = vmatpush2.msra.mxu0 0.0
        %330 = vmatprep.subr.mxu0 0.0
        %331 = vmatpush2.msra.mxu0 0.0
        %332 = vmatprep.subr.mxu0 0.0
        %333 = vmatpush2.msra.mxu0 0.0
        %334 = vmatprep.subr.mxu0 0.0
        %335 = vmatpush2.msra.mxu0 0.0
        %336 = vmatprep.subr.mxu0 0.0
        %337 = vmatpush2.msra.mxu0 0.0
        %338 = vmatprep.subr.mxu0 0.0
        %339 = vmatpush2.msra.mxu0 0.0
        %340 = vmatprep.subr.mxu0 0.0
        %341 = vmatpush2.msra.mxu0 0.0
        %342 = vmatprep.subr.mxu0 0.0
        %343 = vmatpush2.msra.mxu0 0.0
        %344 = vmatprep.mubr.f32.mxu0 0.0
        %v345 = vand.u32 %v274, 4294901760
        %v346 = vsub.f32 %v274, %v345
        %v347 = vand.u32 %v346, 4294901760
        %v348 = vsub.f32 %v346, %v347
        %v349 = vand.u32 %v348, 4294901760
        %350 = vmatmul.mubr.f32.gmra.mxu0 %v349
        %v351 = vpop.f32.mrf.mxu0
        %v352 = vadd.f32 0.0, %v351
        %v353 = vpop.f32.mrf.mxu0
        %354 = vdwg.mxu0
        %355 = vmatprep.subr.mxu0 0.0
        %356 = vmatpush1.msra.mxu0 0.0
        %357 = vmatprep.subr.mxu0 0.0
        %358 = vmatpush1.msra.mxu0 0.0
        %359 = vmatprep.subr.mxu0 0.0
        %360 = vmatpush1.msra.mxu0 0.0
        %361 = vmatprep.subr.mxu0 0.0
        %362 = vmatpush1.msra.mxu0 0.0
        %363 = vmatprep.subr.mxu0 0.0
        %364 = vmatpush1.msra.mxu0 0.0
        %365 = vmatprep.subr.mxu0 0.0
        %366 = vmatpush1.msra.mxu0 0.0
        %367 = vmatprep.subr.mxu0 0.0
        %368 = vmatpush1.msra.mxu0 0.0
        %369 = vmatprep.subr.mxu0 0.0
        %370 = vmatpush1.msra.mxu0 0.0
        %371 = vmatprep.subr.mxu0 0.0
        %372 = vmatpush1.msra.mxu0 0.0
        %373 = vmatprep.subr.mxu0 0.0
        %374 = vmatpush1.msra.mxu0 0.0
        %375 = vmatprep.subr.mxu0 0.0
        %376 = vmatpush1.msra.mxu0 0.0
        %377 = vmatprep.subr.mxu0 0.0
        %378 = vmatpush1.msra.mxu0 0.0
        %379 = vmatprep.subr.mxu0 0.0
        %v380 = vand.u32 %v271, 4294901760
        %v381 = vsub.f32 %v271, %v380
        %v382 = vand.u32 %v381, 4294901760
        %v383 = vsub.f32 %v381, %v382
        %v384 = vand.u32 %v383, 4294901760
        %385 = vmatpush1.msra.mxu0 %v384
        %386 = vmatprep.subr.mxu0 0.0
        %v387 = vand.u32 %v270, 4294901760
        %v388 = vsub.f32 %v270, %v387
        %v389 = vand.u32 %v388, 4294901760
        %v390 = vsub.f32 %v388, %v389
        %v391 = vand.u32 %v390, 4294901760
        %392 = vmatpush1.msra.mxu0 %v391
        %393 = vmatprep.subr.mxu0 0.0
        %v394 = vand.u32 %v269, 4294901760
        %v395 = vsub.f32 %v269, %v394
        %v396 = vand.u32 %v395, 4294901760
        %v397 = vsub.f32 %v395, %v396
        %v398 = vand.u32 %v397, 4294901760
        %399 = vmatpush1.msra.mxu0 %v398
        %400 = vmatprep.subr.mxu0 0.0
        %v401 = vand.u32 %v268, 4294901760
        %v402 = vsub.f32 %v268, %v401
        %v403 = vand.u32 %v402, 4294901760
        %v404 = vsub.f32 %v402, %v403
        %v405 = vand.u32 %v404, 4294901760
        %406 = vmatpush1.msra.mxu0 %v405
        %407 = vmatprep.subr.mxu0 0.0
        %408 = vmatpush2.msra.mxu0 0.0
        %409 = vmatprep.subr.mxu0 0.0
        %410 = vmatpush2.msra.mxu0 0.0
        %411 = vmatprep.subr.mxu0 0.0
        %412 = vmatpush2.msra.mxu0 0.0
        %413 = vmatprep.subr.mxu0 0.0
        %414 = vmatpush2.msra.mxu0 0.0
        %415 = vmatprep.subr.mxu0 0.0
        %416 = vmatpush2.msra.mxu0 0.0
        %417 = vmatprep.subr.mxu0 0.0
        %418 = vmatpush2.msra.mxu0 0.0
        %419 = vmatprep.subr.mxu0 0.0
        %420 = vmatpush2.msra.mxu0 0.0
        %421 = vmatprep.subr.mxu0 0.0
        %422 = vmatpush2.msra.mxu0 0.0
        %423 = vmatprep.subr.mxu0 0.0
        %424 = vmatpush2.msra.mxu0 0.0
        %425 = vmatprep.subr.mxu0 0.0
        %426 = vmatpush2.msra.mxu0 0.0
        %427 = vmatprep.subr.mxu0 0.0
        %428 = vmatpush2.msra.mxu0 0.0
        %429 = vmatprep.subr.mxu0 0.0
        %430 = vmatpush2.msra.mxu0 0.0
        %431 = vmatprep.subr.mxu0 0.0
        %432 = vmatpush2.msra.mxu0 0.0
        %433 = vmatprep.subr.mxu0 0.0
        %434 = vmatpush2.msra.mxu0 0.0
        %435 = vmatprep.subr.mxu0 0.0
        %436 = vmatpush2.msra.mxu0 0.0
        %437 = vmatprep.subr.mxu0 0.0
        %438 = vmatpush2.msra.mxu0 0.0
        %439 = vmatprep.mubr.f32.mxu0 0.0
        %v440 = vand.u32 %v274, 4294901760
        %441 = vmatmul.mubr.f32.gmra.mxu0 %v440
        %v442 = vpop.f32.mrf.mxu0
        %v443 = vadd.f32 %v352, %v442
        %v444 = vpop.f32.mrf.mxu0
        %445 = vdwg.mxu0
        %446 = vmatprep.subr.mxu0 0.0
        %447 = vmatpush1.msra.mxu0 0.0
        %448 = vmatprep.subr.mxu0 0.0
        %449 = vmatpush1.msra.mxu0 0.0
        %450 = vmatprep.subr.mxu0 0.0
        %451 = vmatpush1.msra.mxu0 0.0
        %452 = vmatprep.subr.mxu0 0.0
        %453 = vmatpush1.msra.mxu0 0.0
        %454 = vmatprep.subr.mxu0 0.0
        %455 = vmatpush1.msra.mxu0 0.0
        %456 = vmatprep.subr.mxu0 0.0
        %457 = vmatpush1.msra.mxu0 0.0
        %458 = vmatprep.subr.mxu0 0.0
        %459 = vmatpush1.msra.mxu0 0.0
        %460 = vmatprep.subr.mxu0 0.0
        %461 = vmatpush1.msra.mxu0 0.0
        %462 = vmatprep.subr.mxu0 0.0
        %463 = vmatpush1.msra.mxu0 0.0
        %464 = vmatprep.subr.mxu0 0.0
        %465 = vmatpush1.msra.mxu0 0.0
        %466 = vmatprep.subr.mxu0 0.0
        %467 = vmatpush1.msra.mxu0 0.0
        %468 = vmatprep.subr.mxu0 0.0
        %469 = vmatpush1.msra.mxu0 0.0
        %470 = vmatprep.subr.mxu0 0.0
        %v471 = vand.u32 %v271, 4294901760
        %v472 = vsub.f32 %v271, %v471
        %473 = vmatpush1.msra.mxu0 %v472
        %474 = vmatprep.subr.mxu0 0.0
        %v475 = vand.u32 %v270, 4294901760
        %v476 = vsub.f32 %v270, %v475
        %477 = vmatpush1.msra.mxu0 %v476
        %478 = vmatprep.subr.mxu0 0.0
        %v479 = vand.u32 %v269, 4294901760
        %v480 = vsub.f32 %v269, %v479
        %481 = vmatpush1.msra.mxu0 %v480
        %482 = vmatprep.subr.mxu0 0.0
        %v483 = vand.u32 %v268, 4294901760
        %v484 = vsub.f32 %v268, %v483
        %485 = vmatpush1.msra.mxu0 %v484
        %486 = vmatprep.subr.mxu0 0.0
        %487 = vmatpush2.msra.mxu0 0.0
        %488 = vmatprep.subr.mxu0 0.0
        %489 = vmatpush2.msra.mxu0 0.0
        %490 = vmatprep.subr.mxu0 0.0
        %491 = vmatpush2.msra.mxu0 0.0
        %492 = vmatprep.subr.mxu0 0.0
        %493 = vmatpush2.msra.mxu0 0.0
        %494 = vmatprep.subr.mxu0 0.0
        %495 = vmatpush2.msra.mxu0 0.0
        %496 = vmatprep.subr.mxu0 0.0
        %497 = vmatpush2.msra.mxu0 0.0
        %498 = vmatprep.subr.mxu0 0.0
        %499 = vmatpush2.msra.mxu0 0.0
        %500 = vmatprep.subr.mxu0 0.0
        %501 = vmatpush2.msra.mxu0 0.0
        %502 = vmatprep.subr.mxu0 0.0
        %503 = vmatpush2.msra.mxu0 0.0
        %504 = vmatprep.subr.mxu0 0.0
        %505 = vmatpush2.msra.mxu0 0.0
        %506 = vmatprep.subr.mxu0 0.0
        %507 = vmatpush2.msra.mxu0 0.0
        %508 = vmatprep.subr.mxu0 0.0
        %509 = vmatpush2.msra.mxu0 0.0
        %510 = vmatprep.subr.mxu0 0.0
        %511 = vmatpush2.msra.mxu0 0.0
        %512 = vmatprep.subr.mxu0 0.0
        %513 = vmatpush2.msra.mxu0 0.0
        %514 = vmatprep.subr.mxu0 0.0
        %515 = vmatpush2.msra.mxu0 0.0
        %516 = vmatprep.subr.mxu0 0.0
        %517 = vmatpush2.msra.mxu0 0.0
        %518 = vmatprep.mubr.f32.mxu0 0.0
        %v519 = vand.u32 %v274, 4294901760
        %v520 = vsub.f32 %v274, %v519
        %521 = vmatmul.mubr.f32.gmra.mxu0 %v520
        %v522 = vpop.f32.mrf.mxu0
        %v523 = vadd.f32 %v443, %v522
        %v524 = vpop.f32.mrf.mxu0
        %525 = vdwg.mxu0
        %526 = vmatprep.subr.mxu0 0.0
        %527 = vmatpush1.msra.mxu0 0.0
        %528 = vmatprep.subr.mxu0 0.0
        %529 = vmatpush1.msra.mxu0 0.0
        %530 = vmatprep.subr.mxu0 0.0
        %531 = vmatpush1.msra.mxu0 0.0
        %532 = vmatprep.subr.mxu0 0.0
        %533 = vmatpush1.msra.mxu0 0.0
        %534 = vmatprep.subr.mxu0 0.0
        %535 = vmatpush1.msra.mxu0 0.0
        %536 = vmatprep.subr.mxu0 0.0
        %537 = vmatpush1.msra.mxu0 0.0
        %538 = vmatprep.subr.mxu0 0.0
        %539 = vmatpush1.msra.mxu0 0.0
        %540 = vmatprep.subr.mxu0 0.0
        %541 = vmatpush1.msra.mxu0 0.0
        %542 = vmatprep.subr.mxu0 0.0
        %543 = vmatpush1.msra.mxu0 0.0
        %544 = vmatprep.subr.mxu0 0.0
        %545 = vmatpush1.msra.mxu0 0.0
        %546 = vmatprep.subr.mxu0 0.0
        %547 = vmatpush1.msra.mxu0 0.0
        %548 = vmatprep.subr.mxu0 0.0
        %549 = vmatpush1.msra.mxu0 0.0
        %550 = vmatprep.subr.mxu0 0.0
        %v551 = vand.u32 %v271, 4294901760
        %552 = vmatpush1.msra.mxu0 %v551
        %553 = vmatprep.subr.mxu0 0.0
        %v554 = vand.u32 %v270, 4294901760
        %555 = vmatpush1.msra.mxu0 %v554
        %556 = vmatprep.subr.mxu0 0.0
        %v557 = vand.u32 %v269, 4294901760
        %558 = vmatpush1.msra.mxu0 %v557
        %559 = vmatprep.subr.mxu0 0.0
        %v560 = vand.u32 %v268, 4294901760
        %561 = vmatpush1.msra.mxu0 %v560
        %562 = vmatprep.subr.mxu0 0.0
        %563 = vmatpush2.msra.mxu0 0.0
        %564 = vmatprep.subr.mxu0 0.0
        %565 = vmatpush2.msra.mxu0 0.0
        %566 = vmatprep.subr.mxu0 0.0
        %567 = vmatpush2.msra.mxu0 0.0
        %568 = vmatprep.subr.mxu0 0.0
        %569 = vmatpush2.msra.mxu0 0.0
        %570 = vmatprep.subr.mxu0 0.0
        %571 = vmatpush2.msra.mxu0 0.0
        %572 = vmatprep.subr.mxu0 0.0
        %573 = vmatpush2.msra.mxu0 0.0
        %574 = vmatprep.subr.mxu0 0.0
        %575 = vmatpush2.msra.mxu0 0.0
        %576 = vmatprep.subr.mxu0 0.0
        %577 = vmatpush2.msra.mxu0 0.0
        %578 = vmatprep.subr.mxu0 0.0
        %579 = vmatpush2.msra.mxu0 0.0
        %580 = vmatprep.subr.mxu0 0.0
        %581 = vmatpush2.msra.mxu0 0.0
        %582 = vmatprep.subr.mxu0 0.0
        %583 = vmatpush2.msra.mxu0 0.0
        %584 = vmatprep.subr.mxu0 0.0
        %585 = vmatpush2.msra.mxu0 0.0
        %586 = vmatprep.subr.mxu0 0.0
        %587 = vmatpush2.msra.mxu0 0.0
        %588 = vmatprep.subr.mxu0 0.0
        %589 = vmatpush2.msra.mxu0 0.0
        %590 = vmatprep.subr.mxu0 0.0
        %591 = vmatpush2.msra.mxu0 0.0
        %592 = vmatprep.subr.mxu0 0.0
        %593 = vmatpush2.msra.mxu0 0.0
        %594 = vmatprep.mubr.f32.mxu0 0.0
        %v595 = vand.u32 %v274, 4294901760
        %v596 = vsub.f32 %v274, %v595
        %v597 = vand.u32 %v596, 4294901760
        %598 = vmatmul.mubr.f32.gmra.mxu0 %v597
        %v599 = vpop.f32.mrf.mxu0
        %v600 = vadd.f32 %v523, %v599
        %v601 = vpop.f32.mrf.mxu0
        %602 = vdwg.mxu0
        %603 = vmatprep.subr.mxu0 0.0
        %604 = vmatpush1.msra.mxu0 0.0
        %605 = vmatprep.subr.mxu0 0.0
        %606 = vmatpush1.msra.mxu0 0.0
        %607 = vmatprep.subr.mxu0 0.0
        %608 = vmatpush1.msra.mxu0 0.0
        %609 = vmatprep.subr.mxu0 0.0
        %610 = vmatpush1.msra.mxu0 0.0
        %611 = vmatprep.subr.mxu0 0.0
        %612 = vmatpush1.msra.mxu0 0.0
        %613 = vmatprep.subr.mxu0 0.0
        %614 = vmatpush1.msra.mxu0 0.0
        %615 = vmatprep.subr.mxu0 0.0
        %616 = vmatpush1.msra.mxu0 0.0
        %617 = vmatprep.subr.mxu0 0.0
        %618 = vmatpush1.msra.mxu0 0.0
        %619 = vmatprep.subr.mxu0 0.0
        %620 = vmatpush1.msra.mxu0 0.0
        %621 = vmatprep.subr.mxu0 0.0
        %622 = vmatpush1.msra.mxu0 0.0
        %623 = vmatprep.subr.mxu0 0.0
        %624 = vmatpush1.msra.mxu0 0.0
        %625 = vmatprep.subr.mxu0 0.0
        %626 = vmatpush1.msra.mxu0 0.0
        %627 = vmatprep.subr.mxu0 0.0
        %v628 = vand.u32 %v271, 4294901760
        %v629 = vsub.f32 %v271, %v628
        %v630 = vand.u32 %v629, 4294901760
        %631 = vmatpush1.msra.mxu0 %v630
        %632 = vmatprep.subr.mxu0 0.0
        %v633 = vand.u32 %v270, 4294901760
        %v634 = vsub.f32 %v270, %v633
        %v635 = vand.u32 %v634, 4294901760
        %636 = vmatpush1.msra.mxu0 %v635
        %637 = vmatprep.subr.mxu0 0.0
        %v638 = vand.u32 %v269, 4294901760
        %v639 = vsub.f32 %v269, %v638
        %v640 = vand.u32 %v639, 4294901760
        %641 = vmatpush1.msra.mxu0 %v640
        %642 = vmatprep.subr.mxu0 0.0
        %v643 = vand.u32 %v268, 4294901760
        %v644 = vsub.f32 %v268, %v643
        %v645 = vand.u32 %v644, 4294901760
        %646 = vmatpush1.msra.mxu0 %v645
        %647 = vmatprep.subr.mxu0 0.0
        %648 = vmatpush2.msra.mxu0 0.0
        %649 = vmatprep.subr.mxu0 0.0
        %650 = vmatpush2.msra.mxu0 0.0
        %651 = vmatprep.subr.mxu0 0.0
        %652 = vmatpush2.msra.mxu0 0.0
        %653 = vmatprep.subr.mxu0 0.0
        %654 = vmatpush2.msra.mxu0 0.0
        %655 = vmatprep.subr.mxu0 0.0
        %656 = vmatpush2.msra.mxu0 0.0
        %657 = vmatprep.subr.mxu0 0.0
        %658 = vmatpush2.msra.mxu0 0.0
        %659 = vmatprep.subr.mxu0 0.0
        %660 = vmatpush2.msra.mxu0 0.0
        %661 = vmatprep.subr.mxu0 0.0
        %662 = vmatpush2.msra.mxu0 0.0
        %663 = vmatprep.subr.mxu0 0.0
        %664 = vmatpush2.msra.mxu0 0.0
        %665 = vmatprep.subr.mxu0 0.0
        %666 = vmatpush2.msra.mxu0 0.0
        %667 = vmatprep.subr.mxu0 0.0
        %668 = vmatpush2.msra.mxu0 0.0
        %669 = vmatprep.subr.mxu0 0.0
        %670 = vmatpush2.msra.mxu0 0.0
        %671 = vmatprep.subr.mxu0 0.0
        %672 = vmatpush2.msra.mxu0 0.0
        %673 = vmatprep.subr.mxu0 0.0
        %674 = vmatpush2.msra.mxu0 0.0
        %675 = vmatprep.subr.mxu0 0.0
        %676 = vmatpush2.msra.mxu0 0.0
        %677 = vmatprep.subr.mxu0 0.0
        %678 = vmatpush2.msra.mxu0 0.0
        %679 = vmatprep.mubr.f32.mxu0 0.0
        %v680 = vand.u32 %v274, 4294901760
        %681 = vmatmul.mubr.f32.gmra.mxu0 %v680
        %v682 = vpop.f32.mrf.mxu0
        %v683 = vadd.f32 %v600, %v682
        %v684 = vpop.f32.mrf.mxu0
        %685 = vdwg.mxu0
        %686 = vmatprep.subr.mxu0 0.0
        %687 = vmatpush1.msra.mxu0 0.0
        %688 = vmatprep.subr.mxu0 0.0
        %689 = vmatpush1.msra.mxu0 0.0
        %690 = vmatprep.subr.mxu0 0.0
        %691 = vmatpush1.msra.mxu0 0.0
        %692 = vmatprep.subr.mxu0 0.0
        %693 = vmatpush1.msra.mxu0 0.0
        %694 = vmatprep.subr.mxu0 0.0
        %695 = vmatpush1.msra.mxu0 0.0
        %696 = vmatprep.subr.mxu0 0.0
        %697 = vmatpush1.msra.mxu0 0.0
        %698 = vmatprep.subr.mxu0 0.0
        %699 = vmatpush1.msra.mxu0 0.0
        %700 = vmatprep.subr.mxu0 0.0
        %701 = vmatpush1.msra.mxu0 0.0
        %702 = vmatprep.subr.mxu0 0.0
        %703 = vmatpush1.msra.mxu0 0.0
        %704 = vmatprep.subr.mxu0 0.0
        %705 = vmatpush1.msra.mxu0 0.0
        %706 = vmatprep.subr.mxu0 0.0
        %707 = vmatpush1.msra.mxu0 0.0
        %708 = vmatprep.subr.mxu0 0.0
        %709 = vmatpush1.msra.mxu0 0.0
        %710 = vmatprep.subr.mxu0 0.0
        %v711 = vand.u32 %v271, 4294901760
        %712 = vmatpush1.msra.mxu0 %v711
        %713 = vmatprep.subr.mxu0 0.0
        %v714 = vand.u32 %v270, 4294901760
        %715 = vmatpush1.msra.mxu0 %v714
        %716 = vmatprep.subr.mxu0 0.0
        %v717 = vand.u32 %v269, 4294901760
        %718 = vmatpush1.msra.mxu0 %v717
        %719 = vmatprep.subr.mxu0 0.0
        %v720 = vand.u32 %v268, 4294901760
        %721 = vmatpush1.msra.mxu0 %v720
        %722 = vmatprep.subr.mxu0 0.0
        %723 = vmatpush2.msra.mxu0 0.0
        %724 = vmatprep.subr.mxu0 0.0
        %725 = vmatpush2.msra.mxu0 0.0
        %726 = vmatprep.subr.mxu0 0.0
        %727 = vmatpush2.msra.mxu0 0.0
        %728 = vmatprep.subr.mxu0 0.0
        %729 = vmatpush2.msra.mxu0 0.0
        %730 = vmatprep.subr.mxu0 0.0
        %731 = vmatpush2.msra.mxu0 0.0
        %732 = vmatprep.subr.mxu0 0.0
        %733 = vmatpush2.msra.mxu0 0.0
        %734 = vmatprep.subr.mxu0 0.0
        %735 = vmatpush2.msra.mxu0 0.0
        %736 = vmatprep.subr.mxu0 0.0
        %737 = vmatpush2.msra.mxu0 0.0
        %738 = vmatprep.subr.mxu0 0.0
        %739 = vmatpush2.msra.mxu0 0.0
        %740 = vmatprep.subr.mxu0 0.0
        %741 = vmatpush2.msra.mxu0 0.0
        %742 = vmatprep.subr.mxu0 0.0
        %743 = vmatpush2.msra.mxu0 0.0
        %744 = vmatprep.subr.mxu0 0.0
        %745 = vmatpush2.msra.mxu0 0.0
        %746 = vmatprep.subr.mxu0 0.0
        %747 = vmatpush2.msra.mxu0 0.0
        %748 = vmatprep.subr.mxu0 0.0
        %749 = vmatpush2.msra.mxu0 0.0
        %750 = vmatprep.subr.mxu0 0.0
        %751 = vmatpush2.msra.mxu0 0.0
        %752 = vmatprep.subr.mxu0 0.0
        %753 = vmatpush2.msra.mxu0 0.0
        %754 = vmatprep.mubr.f32.mxu0 0.0
        %v755 = vand.u32 %v274, 4294901760
        %756 = vmatmul.mubr.f32.gmra.mxu0 %v755
        %v757 = vpop.f32.mrf.mxu0
        %v758 = vadd.f32 %v683, %v757
        %v759 = vpop.f32.mrf.mxu0
        %760 = vdwg.mxu0
        %s761 = scalar_lea.vmem %s236, 8 [#allocation2]
        %v762 = vld [vmem:[%s761] sm:$0xff]
        %763 = vset.pattern.permute.xlu0 0
        %764 = vperm.xlu0 %763, %v762
        %v765 = vpop.permute.xlu0 %764
        %vm766 = vcmp.eq.s32.totalorder %v765, %v260
        %v767 = vsel %vm766, 1, 0
        %v768 = vcvt.s32.f32 %v767
        %v770 = vsel %vm272, %v768, 0
        %772 = vmatprep.subr.mxu0 0.0
        %773 = vmatpush1.msra.mxu0 0.0
        %774 = vmatprep.subr.mxu0 0.0
        %775 = vmatpush1.msra.mxu0 0.0
        %776 = vmatprep.subr.mxu0 0.0
        %777 = vmatpush1.msra.mxu0 0.0
        %778 = vmatprep.subr.mxu0 0.0
        %779 = vmatpush1.msra.mxu0 0.0
        %780 = vmatprep.subr.mxu0 0.0
        %781 = vmatpush1.msra.mxu0 0.0
        %782 = vmatprep.subr.mxu0 0.0
        %783 = vmatpush1.msra.mxu0 0.0
        %784 = vmatprep.subr.mxu0 0.0
        %785 = vmatpush1.msra.mxu0 0.0
        %786 = vmatprep.subr.mxu0 0.0
        %787 = vmatpush1.msra.mxu0 0.0
        %788 = vmatprep.subr.mxu0 0.0
        %789 = vmatpush1.msra.mxu0 0.0
        %790 = vmatprep.subr.mxu0 0.0
        %791 = vmatpush1.msra.mxu0 0.0
        %792 = vmatprep.subr.mxu0 0.0
        %793 = vmatpush1.msra.mxu0 0.0
        %794 = vmatprep.subr.mxu0 0.0
        %795 = vmatpush1.msra.mxu0 0.0
        %796 = vmatprep.subr.mxu0 0.0
        %v797 = vand.u32 %v271, 4294901760
        %798 = vmatpush1.msra.mxu0 %v797
        %799 = vmatprep.subr.mxu0 0.0
        %v800 = vand.u32 %v270, 4294901760
        %801 = vmatpush1.msra.mxu0 %v800
        %802 = vmatprep.subr.mxu0 0.0
        %v803 = vand.u32 %v269, 4294901760
        %804 = vmatpush1.msra.mxu0 %v803
        %805 = vmatprep.subr.mxu0 0.0
        %v806 = vand.u32 %v268, 4294901760
        %807 = vmatpush1.msra.mxu0 %v806
        %808 = vmatprep.subr.mxu0 0.0
        %809 = vmatpush2.msra.mxu0 0.0
        %810 = vmatprep.subr.mxu0 0.0
        %811 = vmatpush2.msra.mxu0 0.0
        %812 = vmatprep.subr.mxu0 0.0
        %813 = vmatpush2.msra.mxu0 0.0
        %814 = vmatprep.subr.mxu0 0.0
        %815 = vmatpush2.msra.mxu0 0.0
        %816 = vmatprep.subr.mxu0 0.0
        %817 = vmatpush2.msra.mxu0 0.0
        %818 = vmatprep.subr.mxu0 0.0
        %819 = vmatpush2.msra.mxu0 0.0
        %820 = vmatprep.subr.mxu0 0.0
        %821 = vmatpush2.msra.mxu0 0.0
        %822 = vmatprep.subr.mxu0 0.0
        %823 = vmatpush2.msra.mxu0 0.0
        %824 = vmatprep.subr.mxu0 0.0
        %825 = vmatpush2.msra.mxu0 0.0
        %826 = vmatprep.subr.mxu0 0.0
        %827 = vmatpush2.msra.mxu0 0.0
        %828 = vmatprep.subr.mxu0 0.0
        %829 = vmatpush2.msra.mxu0 0.0
        %830 = vmatprep.subr.mxu0 0.0
        %831 = vmatpush2.msra.mxu0 0.0
        %832 = vmatprep.subr.mxu0 0.0
        %833 = vmatpush2.msra.mxu0 0.0
        %834 = vmatprep.subr.mxu0 0.0
        %835 = vmatpush2.msra.mxu0 0.0
        %836 = vmatprep.subr.mxu0 0.0
        %837 = vmatpush2.msra.mxu0 0.0
        %838 = vmatprep.subr.mxu0 0.0
        %839 = vmatpush2.msra.mxu0 0.0
        %840 = vmatprep.mubr.f32.mxu0 0.0
        %v841 = vand.u32 %v770, 4294901760
        %v842 = vsub.f32 %v770, %v841
        %v843 = vand.u32 %v842, 4294901760
        %v844 = vsub.f32 %v842, %v843
        %v845 = vand.u32 %v844, 4294901760
        %846 = vmatmul.mubr.f32.gmra.mxu0 %v845
        %v847 = vpop.f32.mrf.mxu0
        %v848 = vadd.f32 0.0, %v847
        %v849 = vpop.f32.mrf.mxu0
        %850 = vdwg.mxu0
        %851 = vmatprep.subr.mxu0 0.0
        %852 = vmatpush1.msra.mxu0 0.0
        %853 = vmatprep.subr.mxu0 0.0
        %854 = vmatpush1.msra.mxu0 0.0
        %855 = vmatprep.subr.mxu0 0.0
        %856 = vmatpush1.msra.mxu0 0.0
        %857 = vmatprep.subr.mxu0 0.0
        %858 = vmatpush1.msra.mxu0 0.0
        %859 = vmatprep.subr.mxu0 0.0
        %860 = vmatpush1.msra.mxu0 0.0
        %861 = vmatprep.subr.mxu0 0.0
        %862 = vmatpush1.msra.mxu0 0.0
        %863 = vmatprep.subr.mxu0 0.0
        %864 = vmatpush1.msra.mxu0 0.0
        %865 = vmatprep.subr.mxu0 0.0
        %866 = vmatpush1.msra.mxu0 0.0
        %867 = vmatprep.subr.mxu0 0.0
        %868 = vmatpush1.msra.mxu0 0.0
        %869 = vmatprep.subr.mxu0 0.0
        %870 = vmatpush1.msra.mxu0 0.0
        %871 = vmatprep.subr.mxu0 0.0
        %872 = vmatpush1.msra.mxu0 0.0
        %873 = vmatprep.subr.mxu0 0.0
        %874 = vmatpush1.msra.mxu0 0.0
        %875 = vmatprep.subr.mxu0 0.0
        %v876 = vand.u32 %v271, 4294901760
        %v877 = vsub.f32 %v271, %v876
        %v878 = vand.u32 %v877, 4294901760
        %v879 = vsub.f32 %v877, %v878
        %v880 = vand.u32 %v879, 4294901760
        %881 = vmatpush1.msra.mxu0 %v880
        %882 = vmatprep.subr.mxu0 0.0
        %v883 = vand.u32 %v270, 4294901760
        %v884 = vsub.f32 %v270, %v883
        %v885 = vand.u32 %v884, 4294901760
        %v886 = vsub.f32 %v884, %v885
        %v887 = vand.u32 %v886, 4294901760
        %888 = vmatpush1.msra.mxu0 %v887
        %889 = vmatprep.subr.mxu0 0.0
        %v890 = vand.u32 %v269, 4294901760
        %v891 = vsub.f32 %v269, %v890
        %v892 = vand.u32 %v891, 4294901760
        %v893 = vsub.f32 %v891, %v892
        %v894 = vand.u32 %v893, 4294901760
        %895 = vmatpush1.msra.mxu0 %v894
        %896 = vmatprep.subr.mxu0 0.0
        %v897 = vand.u32 %v268, 4294901760
        %v898 = vsub.f32 %v268, %v897
        %v899 = vand.u32 %v898, 4294901760
        %v900 = vsub.f32 %v898, %v899
        %v901 = vand.u32 %v900, 4294901760
        %902 = vmatpush1.msra.mxu0 %v901
        %903 = vmatprep.subr.mxu0 0.0
        %904 = vmatpush2.msra.mxu0 0.0
        %905 = vmatprep.subr.mxu0 0.0
        %906 = vmatpush2.msra.mxu0 0.0
        %907 = vmatprep.subr.mxu0 0.0
        %908 = vmatpush2.msra.mxu0 0.0
        %909 = vmatprep.subr.mxu0 0.0
        %910 = vmatpush2.msra.mxu0 0.0
        %911 = vmatprep.subr.mxu0 0.0
        %912 = vmatpush2.msra.mxu0 0.0
        %913 = vmatprep.subr.mxu0 0.0
        %914 = vmatpush2.msra.mxu0 0.0
        %915 = vmatprep.subr.mxu0 0.0
        %916 = vmatpush2.msra.mxu0 0.0
        %917 = vmatprep.subr.mxu0 0.0
        %918 = vmatpush2.msra.mxu0 0.0
        %919 = vmatprep.subr.mxu0 0.0
        %920 = vmatpush2.msra.mxu0 0.0
        %921 = vmatprep.subr.mxu0 0.0
        %922 = vmatpush2.msra.mxu0 0.0
        %923 = vmatprep.subr.mxu0 0.0
        %924 = vmatpush2.msra.mxu0 0.0
        %925 = vmatprep.subr.mxu0 0.0
        %926 = vmatpush2.msra.mxu0 0.0
        %927 = vmatprep.subr.mxu0 0.0
        %928 = vmatpush2.msra.mxu0 0.0
        %929 = vmatprep.subr.mxu0 0.0
        %930 = vmatpush2.msra.mxu0 0.0
        %931 = vmatprep.subr.mxu0 0.0
        %932 = vmatpush2.msra.mxu0 0.0
        %933 = vmatprep.subr.mxu0 0.0
        %934 = vmatpush2.msra.mxu0 0.0
        %935 = vmatprep.mubr.f32.mxu0 0.0
        %v936 = vand.u32 %v770, 4294901760
        %937 = vmatmul.mubr.f32.gmra.mxu0 %v936
        %v938 = vpop.f32.mrf.mxu0
        %v939 = vadd.f32 %v848, %v938
        %v940 = vpop.f32.mrf.mxu0
        %941 = vdwg.mxu0
        %942 = vmatprep.subr.mxu0 0.0
        %943 = vmatpush1.msra.mxu0 0.0
        %944 = vmatprep.subr.mxu0 0.0
        %945 = vmatpush1.msra.mxu0 0.0
        %946 = vmatprep.subr.mxu0 0.0
        %947 = vmatpush1.msra.mxu0 0.0
        %948 = vmatprep.subr.mxu0 0.0
        %949 = vmatpush1.msra.mxu0 0.0
        %950 = vmatprep.subr.mxu0 0.0
        %951 = vmatpush1.msra.mxu0 0.0
        %952 = vmatprep.subr.mxu0 0.0
        %953 = vmatpush1.msra.mxu0 0.0
        %954 = vmatprep.subr.mxu0 0.0
        %955 = vmatpush1.msra.mxu0 0.0
        %956 = vmatprep.subr.mxu0 0.0
        %957 = vmatpush1.msra.mxu0 0.0
        %958 = vmatprep.subr.mxu0 0.0
        %959 = vmatpush1.msra.mxu0 0.0
        %960 = vmatprep.subr.mxu0 0.0
        %961 = vmatpush1.msra.mxu0 0.0
        %962 = vmatprep.subr.mxu0 0.0
        %963 = vmatpush1.msra.mxu0 0.0
        %964 = vmatprep.subr.mxu0 0.0
        %965 = vmatpush1.msra.mxu0 0.0
        %966 = vmatprep.subr.mxu0 0.0
        %v967 = vand.u32 %v271, 4294901760
        %v968 = vsub.f32 %v271, %v967
        %969 = vmatpush1.msra.mxu0 %v968
        %970 = vmatprep.subr.mxu0 0.0
        %v971 = vand.u32 %v270, 4294901760
        %v972 = vsub.f32 %v270, %v971
        %973 = vmatpush1.msra.mxu0 %v972
        %974 = vmatprep.subr.mxu0 0.0
        %v975 = vand.u32 %v269, 4294901760
        %v976 = vsub.f32 %v269, %v975
        %977 = vmatpush1.msra.mxu0 %v976
        %978 = vmatprep.subr.mxu0 0.0
        %v979 = vand.u32 %v268, 4294901760
        %v980 = vsub.f32 %v268, %v979
        %981 = vmatpush1.msra.mxu0 %v980
        %982 = vmatprep.subr.mxu0 0.0
        %983 = vmatpush2.msra.mxu0 0.0
        %984 = vmatprep.subr.mxu0 0.0
        %985 = vmatpush2.msra.mxu0 0.0
        %986 = vmatprep.subr.mxu0 0.0
        %987 = vmatpush2.msra.mxu0 0.0
        %988 = vmatprep.subr.mxu0 0.0
        %989 = vmatpush2.msra.mxu0 0.0
        %990 = vmatprep.subr.mxu0 0.0
        %991 = vmatpush2.msra.mxu0 0.0
        %992 = vmatprep.subr.mxu0 0.0
        %993 = vmatpush2.msra.mxu0 0.0
        %994 = vmatprep.subr.mxu0 0.0
        %995 = vmatpush2.msra.mxu0 0.0
        %996 = vmatprep.subr.mxu0 0.0
        %997 = vmatpush2.msra.mxu0 0.0
        %998 = vmatprep.subr.mxu0 0.0
        %999 = vmatpush2.msra.mxu0 0.0
        %1000 = vmatprep.subr.mxu0 0.0
        %1001 = vmatpush2.msra.mxu0 0.0
        %1002 = vmatprep.subr.mxu0 0.0
        %1003 = vmatpush2.msra.mxu0 0.0
        %1004 = vmatprep.subr.mxu0 0.0
        %1005 = vmatpush2.msra.mxu0 0.0
        %1006 = vmatprep.subr.mxu0 0.0
        %1007 = vmatpush2.msra.mxu0 0.0
        %1008 = vmatprep.subr.mxu0 0.0
        %1009 = vmatpush2.msra.mxu0 0.0
        %1010 = vmatprep.subr.mxu0 0.0
        %1011 = vmatpush2.msra.mxu0 0.0
        %1012 = vmatprep.subr.mxu0 0.0
        %1013 = vmatpush2.msra.mxu0 0.0
        %1014 = vmatprep.mubr.f32.mxu0 0.0
        %v1015 = vand.u32 %v770, 4294901760
        %v1016 = vsub.f32 %v770, %v1015
        %1017 = vmatmul.mubr.f32.gmra.mxu0 %v1016
        %v1018 = vpop.f32.mrf.mxu0
        %v1019 = vadd.f32 %v939, %v1018
        %v1020 = vpop.f32.mrf.mxu0
        %1021 = vdwg.mxu0
        %1022 = vmatprep.subr.mxu0 0.0
        %1023 = vmatpush1.msra.mxu0 0.0
        %1024 = vmatprep.subr.mxu0 0.0
        %1025 = vmatpush1.msra.mxu0 0.0
        %1026 = vmatprep.subr.mxu0 0.0
        %1027 = vmatpush1.msra.mxu0 0.0
        %1028 = vmatprep.subr.mxu0 0.0
        %1029 = vmatpush1.msra.mxu0 0.0
        %1030 = vmatprep.subr.mxu0 0.0
        %1031 = vmatpush1.msra.mxu0 0.0
        %1032 = vmatprep.subr.mxu0 0.0
        %1033 = vmatpush1.msra.mxu0 0.0
        %1034 = vmatprep.subr.mxu0 0.0
        %1035 = vmatpush1.msra.mxu0 0.0
        %1036 = vmatprep.subr.mxu0 0.0
        %1037 = vmatpush1.msra.mxu0 0.0
        %1038 = vmatprep.subr.mxu0 0.0
        %1039 = vmatpush1.msra.mxu0 0.0
        %1040 = vmatprep.subr.mxu0 0.0
        %1041 = vmatpush1.msra.mxu0 0.0
        %1042 = vmatprep.subr.mxu0 0.0
        %1043 = vmatpush1.msra.mxu0 0.0
        %1044 = vmatprep.subr.mxu0 0.0
        %1045 = vmatpush1.msra.mxu0 0.0
        %1046 = vmatprep.subr.mxu0 0.0
        %v1047 = vand.u32 %v271, 4294901760
        %1048 = vmatpush1.msra.mxu0 %v1047
        %1049 = vmatprep.subr.mxu0 0.0
        %v1050 = vand.u32 %v270, 4294901760
        %1051 = vmatpush1.msra.mxu0 %v1050
        %1052 = vmatprep.subr.mxu0 0.0
        %v1053 = vand.u32 %v269, 4294901760
        %1054 = vmatpush1.msra.mxu0 %v1053
        %1055 = vmatprep.subr.mxu0 0.0
        %v1056 = vand.u32 %v268, 4294901760
        %1057 = vmatpush1.msra.mxu0 %v1056
        %1058 = vmatprep.subr.mxu0 0.0
        %1059 = vmatpush2.msra.mxu0 0.0
        %1060 = vmatprep.subr.mxu0 0.0
        %1061 = vmatpush2.msra.mxu0 0.0
        %1062 = vmatprep.subr.mxu0 0.0
        %1063 = vmatpush2.msra.mxu0 0.0
        %1064 = vmatprep.subr.mxu0 0.0
        %1065 = vmatpush2.msra.mxu0 0.0
        %1066 = vmatprep.subr.mxu0 0.0
        %1067 = vmatpush2.msra.mxu0 0.0
        %1068 = vmatprep.subr.mxu0 0.0
        %1069 = vmatpush2.msra.mxu0 0.0
        %1070 = vmatprep.subr.mxu0 0.0
        %1071 = vmatpush2.msra.mxu0 0.0
        %1072 = vmatprep.subr.mxu0 0.0
        %1073 = vmatpush2.msra.mxu0 0.0
        %1074 = vmatprep.subr.mxu0 0.0
        %1075 = vmatpush2.msra.mxu0 0.0
        %1076 = vmatprep.subr.mxu0 0.0
        %1077 = vmatpush2.msra.mxu0 0.0
        %1078 = vmatprep.subr.mxu0 0.0
        %1079 = vmatpush2.msra.mxu0 0.0
        %1080 = vmatprep.subr.mxu0 0.0
        %1081 = vmatpush2.msra.mxu0 0.0
        %1082 = vmatprep.subr.mxu0 0.0
        %1083 = vmatpush2.msra.mxu0 0.0
        %1084 = vmatprep.subr.mxu0 0.0
        %1085 = vmatpush2.msra.mxu0 0.0
        %1086 = vmatprep.subr.mxu0 0.0
        %1087 = vmatpush2.msra.mxu0 0.0
        %1088 = vmatprep.subr.mxu0 0.0
        %1089 = vmatpush2.msra.mxu0 0.0
        %1090 = vmatprep.mubr.f32.mxu0 0.0
        %v1091 = vand.u32 %v770, 4294901760
        %v1092 = vsub.f32 %v770, %v1091
        %v1093 = vand.u32 %v1092, 4294901760
        %1094 = vmatmul.mubr.f32.gmra.mxu0 %v1093
        %v1095 = vpop.f32.mrf.mxu0
        %v1096 = vadd.f32 %v1019, %v1095
        %v1097 = vpop.f32.mrf.mxu0
        %1098 = vdwg.mxu0
        %1099 = vmatprep.subr.mxu0 0.0
        %1100 = vmatpush1.msra.mxu0 0.0
        %1101 = vmatprep.subr.mxu0 0.0
        %1102 = vmatpush1.msra.mxu0 0.0
        %1103 = vmatprep.subr.mxu0 0.0
        %1104 = vmatpush1.msra.mxu0 0.0
        %1105 = vmatprep.subr.mxu0 0.0
        %1106 = vmatpush1.msra.mxu0 0.0
        %1107 = vmatprep.subr.mxu0 0.0
        %1108 = vmatpush1.msra.mxu0 0.0
        %1109 = vmatprep.subr.mxu0 0.0
        %1110 = vmatpush1.msra.mxu0 0.0
        %1111 = vmatprep.subr.mxu0 0.0
        %1112 = vmatpush1.msra.mxu0 0.0
        %1113 = vmatprep.subr.mxu0 0.0
        %1114 = vmatpush1.msra.mxu0 0.0
        %1115 = vmatprep.subr.mxu0 0.0
        %1116 = vmatpush1.msra.mxu0 0.0
        %1117 = vmatprep.subr.mxu0 0.0
        %1118 = vmatpush1.msra.mxu0 0.0
        %1119 = vmatprep.subr.mxu0 0.0
        %1120 = vmatpush1.msra.mxu0 0.0
        %1121 = vmatprep.subr.mxu0 0.0
        %1122 = vmatpush1.msra.mxu0 0.0
        %1123 = vmatprep.subr.mxu0 0.0
        %v1124 = vand.u32 %v271, 4294901760
        %v1125 = vsub.f32 %v271, %v1124
        %v1126 = vand.u32 %v1125, 4294901760
        %1127 = vmatpush1.msra.mxu0 %v1126
        %1128 = vmatprep.subr.mxu0 0.0
        %v1129 = vand.u32 %v270, 4294901760
        %v1130 = vsub.f32 %v270, %v1129
        %v1131 = vand.u32 %v1130, 4294901760
        %1132 = vmatpush1.msra.mxu0 %v1131
        %1133 = vmatprep.subr.mxu0 0.0
        %v1134 = vand.u32 %v269, 4294901760
        %v1135 = vsub.f32 %v269, %v1134
        %v1136 = vand.u32 %v1135, 4294901760
        %1137 = vmatpush1.msra.mxu0 %v1136
        %1138 = vmatprep.subr.mxu0 0.0
        %v1139 = vand.u32 %v268, 4294901760
        %v1140 = vsub.f32 %v268, %v1139
        %v1141 = vand.u32 %v1140, 4294901760
        %1142 = vmatpush1.msra.mxu0 %v1141
        %1143 = vmatprep.subr.mxu0 0.0
        %1144 = vmatpush2.msra.mxu0 0.0
        %1145 = vmatprep.subr.mxu0 0.0
        %1146 = vmatpush2.msra.mxu0 0.0
        %1147 = vmatprep.subr.mxu0 0.0
        %1148 = vmatpush2.msra.mxu0 0.0
        %1149 = vmatprep.subr.mxu0 0.0
        %1150 = vmatpush2.msra.mxu0 0.0
        %1151 = vmatprep.subr.mxu0 0.0
        %1152 = vmatpush2.msra.mxu0 0.0
        %1153 = vmatprep.subr.mxu0 0.0
        %1154 = vmatpush2.msra.mxu0 0.0
        %1155 = vmatprep.subr.mxu0 0.0
        %1156 = vmatpush2.msra.mxu0 0.0
        %1157 = vmatprep.subr.mxu0 0.0
        %1158 = vmatpush2.msra.mxu0 0.0
        %1159 = vmatprep.subr.mxu0 0.0
        %1160 = vmatpush2.msra.mxu0 0.0
        %1161 = vmatprep.subr.mxu0 0.0
        %1162 = vmatpush2.msra.mxu0 0.0
        %1163 = vmatprep.subr.mxu0 0.0
        %1164 = vmatpush2.msra.mxu0 0.0
        %1165 = vmatprep.subr.mxu0 0.0
        %1166 = vmatpush2.msra.mxu0 0.0
        %1167 = vmatprep.subr.mxu0 0.0
        %1168 = vmatpush2.msra.mxu0 0.0
        %1169 = vmatprep.subr.mxu0 0.0
        %1170 = vmatpush2.msra.mxu0 0.0
        %1171 = vmatprep.subr.mxu0 0.0
        %1172 = vmatpush2.msra.mxu0 0.0
        %1173 = vmatprep.subr.mxu0 0.0
        %1174 = vmatpush2.msra.mxu0 0.0
        %1175 = vmatprep.mubr.f32.mxu0 0.0
        %v1176 = vand.u32 %v770, 4294901760
        %1177 = vmatmul.mubr.f32.gmra.mxu0 %v1176
        %v1178 = vpop.f32.mrf.mxu0
        %v1179 = vadd.f32 %v1096, %v1178
        %v1180 = vpop.f32.mrf.mxu0
        %1181 = vdwg.mxu0
        %1182 = vmatprep.subr.mxu0 0.0
        %1183 = vmatpush1.msra.mxu0 0.0
        %1184 = vmatprep.subr.mxu0 0.0
        %1185 = vmatpush1.msra.mxu0 0.0
        %1186 = vmatprep.subr.mxu0 0.0
        %1187 = vmatpush1.msra.mxu0 0.0
        %1188 = vmatprep.subr.mxu0 0.0
        %1189 = vmatpush1.msra.mxu0 0.0
        %1190 = vmatprep.subr.mxu0 0.0
        %1191 = vmatpush1.msra.mxu0 0.0
        %1192 = vmatprep.subr.mxu0 0.0
        %1193 = vmatpush1.msra.mxu0 0.0
        %1194 = vmatprep.subr.mxu0 0.0
        %1195 = vmatpush1.msra.mxu0 0.0
        %1196 = vmatprep.subr.mxu0 0.0
        %1197 = vmatpush1.msra.mxu0 0.0
        %1198 = vmatprep.subr.mxu0 0.0
        %1199 = vmatpush1.msra.mxu0 0.0
        %1200 = vmatprep.subr.mxu0 0.0
        %1201 = vmatpush1.msra.mxu0 0.0
        %1202 = vmatprep.subr.mxu0 0.0
        %1203 = vmatpush1.msra.mxu0 0.0
        %1204 = vmatprep.subr.mxu0 0.0
        %1205 = vmatpush1.msra.mxu0 0.0
        %1206 = vmatprep.subr.mxu0 0.0
        %v1207 = vand.u32 %v271, 4294901760
        %1208 = vmatpush1.msra.mxu0 %v1207
        %1209 = vmatprep.subr.mxu0 0.0
        %v1210 = vand.u32 %v270, 4294901760
        %1211 = vmatpush1.msra.mxu0 %v1210
        %1212 = vmatprep.subr.mxu0 0.0
        %v1213 = vand.u32 %v269, 4294901760
        %1214 = vmatpush1.msra.mxu0 %v1213
        %1215 = vmatprep.subr.mxu0 0.0
        %v1216 = vand.u32 %v268, 4294901760
        %1217 = vmatpush1.msra.mxu0 %v1216
        %1218 = vmatprep.subr.mxu0 0.0
        %1219 = vmatpush2.msra.mxu0 0.0
        %1220 = vmatprep.subr.mxu0 0.0
        %1221 = vmatpush2.msra.mxu0 0.0
        %1222 = vmatprep.subr.mxu0 0.0
        %1223 = vmatpush2.msra.mxu0 0.0
        %1224 = vmatprep.subr.mxu0 0.0
        %1225 = vmatpush2.msra.mxu0 0.0
        %1226 = vmatprep.subr.mxu0 0.0
        %1227 = vmatpush2.msra.mxu0 0.0
        %1228 = vmatprep.subr.mxu0 0.0
        %1229 = vmatpush2.msra.mxu0 0.0
        %1230 = vmatprep.subr.mxu0 0.0
        %1231 = vmatpush2.msra.mxu0 0.0
        %1232 = vmatprep.subr.mxu0 0.0
        %1233 = vmatpush2.msra.mxu0 0.0
        %1234 = vmatprep.subr.mxu0 0.0
        %1235 = vmatpush2.msra.mxu0 0.0
        %1236 = vmatprep.subr.mxu0 0.0
        %1237 = vmatpush2.msra.mxu0 0.0
        %1238 = vmatprep.subr.mxu0 0.0
        %1239 = vmatpush2.msra.mxu0 0.0
        %1240 = vmatprep.subr.mxu0 0.0
        %1241 = vmatpush2.msra.mxu0 0.0
        %1242 = vmatprep.subr.mxu0 0.0
        %1243 = vmatpush2.msra.mxu0 0.0
        %1244 = vmatprep.subr.mxu0 0.0
        %1245 = vmatpush2.msra.mxu0 0.0
        %1246 = vmatprep.subr.mxu0 0.0
        %1247 = vmatpush2.msra.mxu0 0.0
        %1248 = vmatprep.subr.mxu0 0.0
        %1249 = vmatpush2.msra.mxu0 0.0
        %1250 = vmatprep.mubr.f32.mxu0 0.0
        %v1251 = vand.u32 %v770, 4294901760
        %1252 = vmatmul.mubr.f32.gmra.mxu0 %v1251
        %v1253 = vpop.f32.mrf.mxu0
        %v1254 = vadd.f32 %v1179, %v1253
        %v1255 = vpop.f32.mrf.mxu0
        %1256 = vdwg.mxu0
        %v1257 = vmax.f32 %v758, %v1254
        %s1258 = scalar_lea.vmem %s236, 16 [#allocation2]
        %v1259 = vld [vmem:[%s1258] sm:$0xff]
        %1260 = vset.pattern.permute.xlu0 0
        %1261 = vperm.xlu0 %1260, %v1259
        %v1262 = vpop.permute.xlu0 %1261
        %vm1263 = vcmp.eq.s32.totalorder %v1262, %v260
        %v1264 = vsel %vm1263, 1, 0
        %v1265 = vcvt.s32.f32 %v1264
        %v1267 = vsel %vm272, %v1265, 0
        %1269 = vmatprep.subr.mxu0 0.0
        %1270 = vmatpush1.msra.mxu0 0.0
        %1271 = vmatprep.subr.mxu0 0.0
        %1272 = vmatpush1.msra.mxu0 0.0
        %1273 = vmatprep.subr.mxu0 0.0
        %1274 = vmatpush1.msra.mxu0 0.0
        %1275 = vmatprep.subr.mxu0 0.0
        %1276 = vmatpush1.msra.mxu0 0.0
        %1277 = vmatprep.subr.mxu0 0.0
        %1278 = vmatpush1.msra.mxu0 0.0
        %1279 = vmatprep.subr.mxu0 0.0
        %1280 = vmatpush1.msra.mxu0 0.0
        %1281 = vmatprep.subr.mxu0 0.0
        %1282 = vmatpush1.msra.mxu0 0.0
        %1283 = vmatprep.subr.mxu0 0.0
        %1284 = vmatpush1.msra.mxu0 0.0
        %1285 = vmatprep.subr.mxu0 0.0
        %1286 = vmatpush1.msra.mxu0 0.0
        %1287 = vmatprep.subr.mxu0 0.0
        %1288 = vmatpush1.msra.mxu0 0.0
        %1289 = vmatprep.subr.mxu0 0.0
        %1290 = vmatpush1.msra.mxu0 0.0
        %1291 = vmatprep.subr.mxu0 0.0
        %1292 = vmatpush1.msra.mxu0 0.0
        %1293 = vmatprep.subr.mxu0 0.0
        %v1294 = vand.u32 %v271, 4294901760
        %1295 = vmatpush1.msra.mxu0 %v1294
        %1296 = vmatprep.subr.mxu0 0.0
        %v1297 = vand.u32 %v270, 4294901760
        %1298 = vmatpush1.msra.mxu0 %v1297
        %1299 = vmatprep.subr.mxu0 0.0
        %v1300 = vand.u32 %v269, 4294901760
        %1301 = vmatpush1.msra.mxu0 %v1300
        %1302 = vmatprep.subr.mxu0 0.0
        %v1303 = vand.u32 %v268, 4294901760
        %1304 = vmatpush1.msra.mxu0 %v1303
        %1305 = vmatprep.subr.mxu0 0.0
        %1306 = vmatpush2.msra.mxu0 0.0
        %1307 = vmatprep.subr.mxu0 0.0
        %1308 = vmatpush2.msra.mxu0 0.0
        %1309 = vmatprep.subr.mxu0 0.0
        %1310 = vmatpush2.msra.mxu0 0.0
        %1311 = vmatprep.subr.mxu0 0.0
        %1312 = vmatpush2.msra.mxu0 0.0
        %1313 = vmatprep.subr.mxu0 0.0
        %1314 = vmatpush2.msra.mxu0 0.0
        %1315 = vmatprep.subr.mxu0 0.0
        %1316 = vmatpush2.msra.mxu0 0.0
        %1317 = vmatprep.subr.mxu0 0.0
        %1318 = vmatpush2.msra.mxu0 0.0
        %1319 = vmatprep.subr.mxu0 0.0
        %1320 = vmatpush2.msra.mxu0 0.0
        %1321 = vmatprep.subr.mxu0 0.0
        %1322 = vmatpush2.msra.mxu0 0.0
        %1323 = vmatprep.subr.mxu0 0.0
        %1324 = vmatpush2.msra.mxu0 0.0
        %1325 = vmatprep.subr.mxu0 0.0
        %1326 = vmatpush2.msra.mxu0 0.0
        %1327 = vmatprep.subr.mxu0 0.0
        %1328 = vmatpush2.msra.mxu0 0.0
        %1329 = vmatprep.subr.mxu0 0.0
        %1330 = vmatpush2.msra.mxu0 0.0
        %1331 = vmatprep.subr.mxu0 0.0
        %1332 = vmatpush2.msra.mxu0 0.0
        %1333 = vmatprep.subr.mxu0 0.0
        %1334 = vmatpush2.msra.mxu0 0.0
        %1335 = vmatprep.subr.mxu0 0.0
        %1336 = vmatpush2.msra.mxu0 0.0
        %1337 = vmatprep.mubr.f32.mxu0 0.0
        %v1338 = vand.u32 %v1267, 4294901760
        %v1339 = vsub.f32 %v1267, %v1338
        %v1340 = vand.u32 %v1339, 4294901760
        %v1341 = vsub.f32 %v1339, %v1340
        %v1342 = vand.u32 %v1341, 4294901760
        %1343 = vmatmul.mubr.f32.gmra.mxu0 %v1342
        %v1344 = vpop.f32.mrf.mxu0
        %v1345 = vadd.f32 0.0, %v1344
        %v1346 = vpop.f32.mrf.mxu0
        %1347 = vdwg.mxu0
        %1348 = vmatprep.subr.mxu0 0.0
        %1349 = vmatpush1.msra.mxu0 0.0
        %1350 = vmatprep.subr.mxu0 0.0
        %1351 = vmatpush1.msra.mxu0 0.0
        %1352 = vmatprep.subr.mxu0 0.0
        %1353 = vmatpush1.msra.mxu0 0.0
        %1354 = vmatprep.subr.mxu0 0.0
        %1355 = vmatpush1.msra.mxu0 0.0
        %1356 = vmatprep.subr.mxu0 0.0
        %1357 = vmatpush1.msra.mxu0 0.0
        %1358 = vmatprep.subr.mxu0 0.0
        %1359 = vmatpush1.msra.mxu0 0.0
        %1360 = vmatprep.subr.mxu0 0.0
        %1361 = vmatpush1.msra.mxu0 0.0
        %1362 = vmatprep.subr.mxu0 0.0
        %1363 = vmatpush1.msra.mxu0 0.0
        %1364 = vmatprep.subr.mxu0 0.0
        %1365 = vmatpush1.msra.mxu0 0.0
        %1366 = vmatprep.subr.mxu0 0.0
        %1367 = vmatpush1.msra.mxu0 0.0
        %1368 = vmatprep.subr.mxu0 0.0
        %1369 = vmatpush1.msra.mxu0 0.0
        %1370 = vmatprep.subr.mxu0 0.0
        %1371 = vmatpush1.msra.mxu0 0.0
        %1372 = vmatprep.subr.mxu0 0.0
        %v1373 = vand.u32 %v271, 4294901760
        %v1374 = vsub.f32 %v271, %v1373
        %v1375 = vand.u32 %v1374, 4294901760
        %v1376 = vsub.f32 %v1374, %v1375
        %v1377 = vand.u32 %v1376, 4294901760
        %1378 = vmatpush1.msra.mxu0 %v1377
        %1379 = vmatprep.subr.mxu0 0.0
        %v1380 = vand.u32 %v270, 4294901760
        %v1381 = vsub.f32 %v270, %v1380
        %v1382 = vand.u32 %v1381, 4294901760
        %v1383 = vsub.f32 %v1381, %v1382
        %v1384 = vand.u32 %v1383, 4294901760
        %1385 = vmatpush1.msra.mxu0 %v1384
        %1386 = vmatprep.subr.mxu0 0.0
        %v1387 = vand.u32 %v269, 4294901760
        %v1388 = vsub.f32 %v269, %v1387
        %v1389 = vand.u32 %v1388, 4294901760
        %v1390 = vsub.f32 %v1388, %v1389
        %v1391 = vand.u32 %v1390, 4294901760
        %1392 = vmatpush1.msra.mxu0 %v1391
        %1393 = vmatprep.subr.mxu0 0.0
        %v1394 = vand.u32 %v268, 4294901760
        %v1395 = vsub.f32 %v268, %v1394
        %v1396 = vand.u32 %v1395, 4294901760
        %v1397 = vsub.f32 %v1395, %v1396
        %v1398 = vand.u32 %v1397, 4294901760
        %1399 = vmatpush1.msra.mxu0 %v1398
        %1400 = vmatprep.subr.mxu0 0.0
        %1401 = vmatpush2.msra.mxu0 0.0
        %1402 = vmatprep.subr.mxu0 0.0
        %1403 = vmatpush2.msra.mxu0 0.0
        %1404 = vmatprep.subr.mxu0 0.0
        %1405 = vmatpush2.msra.mxu0 0.0
        %1406 = vmatprep.subr.mxu0 0.0
        %1407 = vmatpush2.msra.mxu0 0.0
        %1408 = vmatprep.subr.mxu0 0.0
        %1409 = vmatpush2.msra.mxu0 0.0
        %1410 = vmatprep.subr.mxu0 0.0
        %1411 = vmatpush2.msra.mxu0 0.0
        %1412 = vmatprep.subr.mxu0 0.0
        %1413 = vmatpush2.msra.mxu0 0.0
        %1414 = vmatprep.subr.mxu0 0.0
        %1415 = vmatpush2.msra.mxu0 0.0
        %1416 = vmatprep.subr.mxu0 0.0
        %1417 = vmatpush2.msra.mxu0 0.0
        %1418 = vmatprep.subr.mxu0 0.0
        %1419 = vmatpush2.msra.mxu0 0.0
        %1420 = vmatprep.subr.mxu0 0.0
        %1421 = vmatpush2.msra.mxu0 0.0
        %1422 = vmatprep.subr.mxu0 0.0
        %1423 = vmatpush2.msra.mxu0 0.0
        %1424 = vmatprep.subr.mxu0 0.0
        %1425 = vmatpush2.msra.mxu0 0.0
        %1426 = vmatprep.subr.mxu0 0.0
        %1427 = vmatpush2.msra.mxu0 0.0
        %1428 = vmatprep.subr.mxu0 0.0
        %1429 = vmatpush2.msra.mxu0 0.0
        %1430 = vmatprep.subr.mxu0 0.0
        %1431 = vmatpush2.msra.mxu0 0.0
        %1432 = vmatprep.mubr.f32.mxu0 0.0
        %v1433 = vand.u32 %v1267, 4294901760
        %1434 = vmatmul.mubr.f32.gmra.mxu0 %v1433
        %v1435 = vpop.f32.mrf.mxu0
        %v1436 = vadd.f32 %v1345, %v1435
        %v1437 = vpop.f32.mrf.mxu0
        %1438 = vdwg.mxu0
        %1439 = vmatprep.subr.mxu0 0.0
        %1440 = vmatpush1.msra.mxu0 0.0
        %1441 = vmatprep.subr.mxu0 0.0
        %1442 = vmatpush1.msra.mxu0 0.0
        %1443 = vmatprep.subr.mxu0 0.0
        %1444 = vmatpush1.msra.mxu0 0.0
        %1445 = vmatprep.subr.mxu0 0.0
        %1446 = vmatpush1.msra.mxu0 0.0
        %1447 = vmatprep.subr.mxu0 0.0
        %1448 = vmatpush1.msra.mxu0 0.0
        %1449 = vmatprep.subr.mxu0 0.0
        %1450 = vmatpush1.msra.mxu0 0.0
        %1451 = vmatprep.subr.mxu0 0.0
        %1452 = vmatpush1.msra.mxu0 0.0
        %1453 = vmatprep.subr.mxu0 0.0
        %1454 = vmatpush1.msra.mxu0 0.0
        %1455 = vmatprep.subr.mxu0 0.0
        %1456 = vmatpush1.msra.mxu0 0.0
        %1457 = vmatprep.subr.mxu0 0.0
        %1458 = vmatpush1.msra.mxu0 0.0
        %1459 = vmatprep.subr.mxu0 0.0
        %1460 = vmatpush1.msra.mxu0 0.0
        %1461 = vmatprep.subr.mxu0 0.0
        %1462 = vmatpush1.msra.mxu0 0.0
        %1463 = vmatprep.subr.mxu0 0.0
        %v1464 = vand.u32 %v271, 4294901760
        %v1465 = vsub.f32 %v271, %v1464
        %1466 = vmatpush1.msra.mxu0 %v1465
        %1467 = vmatprep.subr.mxu0 0.0
        %v1468 = vand.u32 %v270, 4294901760
        %v1469 = vsub.f32 %v270, %v1468
        %1470 = vmatpush1.msra.mxu0 %v1469
        %1471 = vmatprep.subr.mxu0 0.0
        %v1472 = vand.u32 %v269, 4294901760
        %v1473 = vsub.f32 %v269, %v1472
        %1474 = vmatpush1.msra.mxu0 %v1473
        %1475 = vmatprep.subr.mxu0 0.0
        %v1476 = vand.u32 %v268, 4294901760
        %v1477 = vsub.f32 %v268, %v1476
        %1478 = vmatpush1.msra.mxu0 %v1477
        %1479 = vmatprep.subr.mxu0 0.0
        %1480 = vmatpush2.msra.mxu0 0.0
        %1481 = vmatprep.subr.mxu0 0.0
        %1482 = vmatpush2.msra.mxu0 0.0
        %1483 = vmatprep.subr.mxu0 0.0
        %1484 = vmatpush2.msra.mxu0 0.0
        %1485 = vmatprep.subr.mxu0 0.0
        %1486 = vmatpush2.msra.mxu0 0.0
        %1487 = vmatprep.subr.mxu0 0.0
        %1488 = vmatpush2.msra.mxu0 0.0
        %1489 = vmatprep.subr.mxu0 0.0
        %1490 = vmatpush2.msra.mxu0 0.0
        %1491 = vmatprep.subr.mxu0 0.0
        %1492 = vmatpush2.msra.mxu0 0.0
        %1493 = vmatprep.subr.mxu0 0.0
        %1494 = vmatpush2.msra.mxu0 0.0
        %1495 = vmatprep.subr.mxu0 0.0
        %1496 = vmatpush2.msra.mxu0 0.0
        %1497 = vmatprep.subr.mxu0 0.0
        %1498 = vmatpush2.msra.mxu0 0.0
        %1499 = vmatprep.subr.mxu0 0.0
        %1500 = vmatpush2.msra.mxu0 0.0
        %1501 = vmatprep.subr.mxu0 0.0
        %1502 = vmatpush2.msra.mxu0 0.0
        %1503 = vmatprep.subr.mxu0 0.0
        %1504 = vmatpush2.msra.mxu0 0.0
        %1505 = vmatprep.subr.mxu0 0.0
        %1506 = vmatpush2.msra.mxu0 0.0
        %1507 = vmatprep.subr.mxu0 0.0
        %1508 = vmatpush2.msra.mxu0 0.0
        %1509 = vmatprep.subr.mxu0 0.0
        %1510 = vmatpush2.msra.mxu0 0.0
        %1511 = vmatprep.mubr.f32.mxu0 0.0
        %v1512 = vand.u32 %v1267, 4294901760
        %v1513 = vsub.f32 %v1267, %v1512
        %1514 = vmatmul.mubr.f32.gmra.mxu0 %v1513
        %v1515 = vpop.f32.mrf.mxu0
        %v1516 = vadd.f32 %v1436, %v1515
        %v1517 = vpop.f32.mrf.mxu0
        %1518 = vdwg.mxu0
        %1519 = vmatprep.subr.mxu0 0.0
        %1520 = vmatpush1.msra.mxu0 0.0
        %1521 = vmatprep.subr.mxu0 0.0
        %1522 = vmatpush1.msra.mxu0 0.0
        %1523 = vmatprep.subr.mxu0 0.0
        %1524 = vmatpush1.msra.mxu0 0.0
        %1525 = vmatprep.subr.mxu0 0.0
        %1526 = vmatpush1.msra.mxu0 0.0
        %1527 = vmatprep.subr.mxu0 0.0
        %1528 = vmatpush1.msra.mxu0 0.0
        %1529 = vmatprep.subr.mxu0 0.0
        %1530 = vmatpush1.msra.mxu0 0.0
        %1531 = vmatprep.subr.mxu0 0.0
        %1532 = vmatpush1.msra.mxu0 0.0
        %1533 = vmatprep.subr.mxu0 0.0
        %1534 = vmatpush1.msra.mxu0 0.0
        %1535 = vmatprep.subr.mxu0 0.0
        %1536 = vmatpush1.msra.mxu0 0.0
        %1537 = vmatprep.subr.mxu0 0.0
        %1538 = vmatpush1.msra.mxu0 0.0
        %1539 = vmatprep.subr.mxu0 0.0
        %1540 = vmatpush1.msra.mxu0 0.0
        %1541 = vmatprep.subr.mxu0 0.0
        %1542 = vmatpush1.msra.mxu0 0.0
        %1543 = vmatprep.subr.mxu0 0.0
        %v1544 = vand.u32 %v271, 4294901760
        %1545 = vmatpush1.msra.mxu0 %v1544
        %1546 = vmatprep.subr.mxu0 0.0
        %v1547 = vand.u32 %v270, 4294901760
        %1548 = vmatpush1.msra.mxu0 %v1547
        %1549 = vmatprep.subr.mxu0 0.0
        %v1550 = vand.u32 %v269, 4294901760
        %1551 = vmatpush1.msra.mxu0 %v1550
        %1552 = vmatprep.subr.mxu0 0.0
        %v1553 = vand.u32 %v268, 4294901760
        %1554 = vmatpush1.msra.mxu0 %v1553
        %1555 = vmatprep.subr.mxu0 0.0
        %1556 = vmatpush2.msra.mxu0 0.0
        %1557 = vmatprep.subr.mxu0 0.0
        %1558 = vmatpush2.msra.mxu0 0.0
        %1559 = vmatprep.subr.mxu0 0.0
        %1560 = vmatpush2.msra.mxu0 0.0
        %1561 = vmatprep.subr.mxu0 0.0
        %1562 = vmatpush2.msra.mxu0 0.0
        %1563 = vmatprep.subr.mxu0 0.0
        %1564 = vmatpush2.msra.mxu0 0.0
        %1565 = vmatprep.subr.mxu0 0.0
        %1566 = vmatpush2.msra.mxu0 0.0
        %1567 = vmatprep.subr.mxu0 0.0
        %1568 = vmatpush2.msra.mxu0 0.0
        %1569 = vmatprep.subr.mxu0 0.0
        %1570 = vmatpush2.msra.mxu0 0.0
        %1571 = vmatprep.subr.mxu0 0.0
        %1572 = vmatpush2.msra.mxu0 0.0
        %1573 = vmatprep.subr.mxu0 0.0
        %1574 = vmatpush2.msra.mxu0 0.0
        %1575 = vmatprep.subr.mxu0 0.0
        %1576 = vmatpush2.msra.mxu0 0.0
        %1577 = vmatprep.subr.mxu0 0.0
        %1578 = vmatpush2.msra.mxu0 0.0
        %1579 = vmatprep.subr.mxu0 0.0
        %1580 = vmatpush2.msra.mxu0 0.0
        %1581 = vmatprep.subr.mxu0 0.0
        %1582 = vmatpush2.msra.mxu0 0.0
        %1583 = vmatprep.subr.mxu0 0.0
        %1584 = vmatpush2.msra.mxu0 0.0
        %1585 = vmatprep.subr.mxu0 0.0
        %1586 = vmatpush2.msra.mxu0 0.0
        %1587 = vmatprep.mubr.f32.mxu0 0.0
        %v1588 = vand.u32 %v1267, 4294901760
        %v1589 = vsub.f32 %v1267, %v1588
        %v1590 = vand.u32 %v1589, 4294901760
        %1591 = vmatmul.mubr.f32.gmra.mxu0 %v1590
        %v1592 = vpop.f32.mrf.mxu0
        %v1593 = vadd.f32 %v1516, %v1592
        %v1594 = vpop.f32.mrf.mxu0
        %1595 = vdwg.mxu0
        %1596 = vmatprep.subr.mxu0 0.0
        %1597 = vmatpush1.msra.mxu0 0.0
        %1598 = vmatprep.subr.mxu0 0.0
        %1599 = vmatpush1.msra.mxu0 0.0
        %1600 = vmatprep.subr.mxu0 0.0
        %1601 = vmatpush1.msra.mxu0 0.0
        %1602 = vmatprep.subr.mxu0 0.0
        %1603 = vmatpush1.msra.mxu0 0.0
        %1604 = vmatprep.subr.mxu0 0.0
        %1605 = vmatpush1.msra.mxu0 0.0
        %1606 = vmatprep.subr.mxu0 0.0
        %1607 = vmatpush1.msra.mxu0 0.0
        %1608 = vmatprep.subr.mxu0 0.0
        %1609 = vmatpush1.msra.mxu0 0.0
        %1610 = vmatprep.subr.mxu0 0.0
        %1611 = vmatpush1.msra.mxu0 0.0
        %1612 = vmatprep.subr.mxu0 0.0
        %1613 = vmatpush1.msra.mxu0 0.0
        %1614 = vmatprep.subr.mxu0 0.0
        %1615 = vmatpush1.msra.mxu0 0.0
        %1616 = vmatprep.subr.mxu0 0.0
        %1617 = vmatpush1.msra.mxu0 0.0
        %1618 = vmatprep.subr.mxu0 0.0
        %1619 = vmatpush1.msra.mxu0 0.0
        %1620 = vmatprep.subr.mxu0 0.0
        %v1621 = vand.u32 %v271, 4294901760
        %v1622 = vsub.f32 %v271, %v1621
        %v1623 = vand.u32 %v1622, 4294901760
        %1624 = vmatpush1.msra.mxu0 %v1623
        %1625 = vmatprep.subr.mxu0 0.0
        %v1626 = vand.u32 %v270, 4294901760
        %v1627 = vsub.f32 %v270, %v1626
        %v1628 = vand.u32 %v1627, 4294901760
        %1629 = vmatpush1.msra.mxu0 %v1628
        %1630 = vmatprep.subr.mxu0 0.0
        %v1631 = vand.u32 %v269, 4294901760
        %v1632 = vsub.f32 %v269, %v1631
        %v1633 = vand.u32 %v1632, 4294901760
        %1634 = vmatpush1.msra.mxu0 %v1633
        %1635 = vmatprep.subr.mxu0 0.0
        %v1636 = vand.u32 %v268, 4294901760
        %v1637 = vsub.f32 %v268, %v1636
        %v1638 = vand.u32 %v1637, 4294901760
        %1639 = vmatpush1.msra.mxu0 %v1638
        %1640 = vmatprep.subr.mxu0 0.0
        %1641 = vmatpush2.msra.mxu0 0.0
        %1642 = vmatprep.subr.mxu0 0.0
        %1643 = vmatpush2.msra.mxu0 0.0
        %1644 = vmatprep.subr.mxu0 0.0
        %1645 = vmatpush2.msra.mxu0 0.0
        %1646 = vmatprep.subr.mxu0 0.0
        %1647 = vmatpush2.msra.mxu0 0.0
        %1648 = vmatprep.subr.mxu0 0.0
        %1649 = vmatpush2.msra.mxu0 0.0
        %1650 = vmatprep.subr.mxu0 0.0
        %1651 = vmatpush2.msra.mxu0 0.0
        %1652 = vmatprep.subr.mxu0 0.0
        %1653 = vmatpush2.msra.mxu0 0.0
        %1654 = vmatprep.subr.mxu0 0.0
        %1655 = vmatpush2.msra.mxu0 0.0
        %1656 = vmatprep.subr.mxu0 0.0
        %1657 = vmatpush2.msra.mxu0 0.0
        %1658 = vmatprep.subr.mxu0 0.0
        %1659 = vmatpush2.msra.mxu0 0.0
        %1660 = vmatprep.subr.mxu0 0.0
        %1661 = vmatpush2.msra.mxu0 0.0
        %1662 = vmatprep.subr.mxu0 0.0
        %1663 = vmatpush2.msra.mxu0 0.0
        %1664 = vmatprep.subr.mxu0 0.0
        %1665 = vmatpush2.msra.mxu0 0.0
        %1666 = vmatprep.subr.mxu0 0.0
        %1667 = vmatpush2.msra.mxu0 0.0
        %1668 = vmatprep.subr.mxu0 0.0
        %1669 = vmatpush2.msra.mxu0 0.0
        %1670 = vmatprep.subr.mxu0 0.0
        %1671 = vmatpush2.msra.mxu0 0.0
        %1672 = vmatprep.mubr.f32.mxu0 0.0
        %v1673 = vand.u32 %v1267, 4294901760
        %1674 = vmatmul.mubr.f32.gmra.mxu0 %v1673
        %v1675 = vpop.f32.mrf.mxu0
        %v1676 = vadd.f32 %v1593, %v1675
        %v1677 = vpop.f32.mrf.mxu0
        %1678 = vdwg.mxu0
        %1679 = vmatprep.subr.mxu0 0.0
        %1680 = vmatpush1.msra.mxu0 0.0
        %1681 = vmatprep.subr.mxu0 0.0
        %1682 = vmatpush1.msra.mxu0 0.0
        %1683 = vmatprep.subr.mxu0 0.0
        %1684 = vmatpush1.msra.mxu0 0.0
        %1685 = vmatprep.subr.mxu0 0.0
        %1686 = vmatpush1.msra.mxu0 0.0
        %1687 = vmatprep.subr.mxu0 0.0
        %1688 = vmatpush1.msra.mxu0 0.0
        %1689 = vmatprep.subr.mxu0 0.0
        %1690 = vmatpush1.msra.mxu0 0.0
        %1691 = vmatprep.subr.mxu0 0.0
        %1692 = vmatpush1.msra.mxu0 0.0
        %1693 = vmatprep.subr.mxu0 0.0
        %1694 = vmatpush1.msra.mxu0 0.0
        %1695 = vmatprep.subr.mxu0 0.0
        %1696 = vmatpush1.msra.mxu0 0.0
        %1697 = vmatprep.subr.mxu0 0.0
        %1698 = vmatpush1.msra.mxu0 0.0
        %1699 = vmatprep.subr.mxu0 0.0
        %1700 = vmatpush1.msra.mxu0 0.0
        %1701 = vmatprep.subr.mxu0 0.0
        %1702 = vmatpush1.msra.mxu0 0.0
        %1703 = vmatprep.subr.mxu0 0.0
        %v1704 = vand.u32 %v271, 4294901760
        %1705 = vmatpush1.msra.mxu0 %v1704
        %1706 = vmatprep.subr.mxu0 0.0
        %v1707 = vand.u32 %v270, 4294901760
        %1708 = vmatpush1.msra.mxu0 %v1707
        %1709 = vmatprep.subr.mxu0 0.0
        %v1710 = vand.u32 %v269, 4294901760
        %1711 = vmatpush1.msra.mxu0 %v1710
        %1712 = vmatprep.subr.mxu0 0.0
        %v1713 = vand.u32 %v268, 4294901760
        %1714 = vmatpush1.msra.mxu0 %v1713
        %1715 = vmatprep.subr.mxu0 0.0
        %1716 = vmatpush2.msra.mxu0 0.0
        %1717 = vmatprep.subr.mxu0 0.0
        %1718 = vmatpush2.msra.mxu0 0.0
        %1719 = vmatprep.subr.mxu0 0.0
        %1720 = vmatpush2.msra.mxu0 0.0
        %1721 = vmatprep.subr.mxu0 0.0
        %1722 = vmatpush2.msra.mxu0 0.0
        %1723 = vmatprep.subr.mxu0 0.0
        %1724 = vmatpush2.msra.mxu0 0.0
        %1725 = vmatprep.subr.mxu0 0.0
        %1726 = vmatpush2.msra.mxu0 0.0
        %1727 = vmatprep.subr.mxu0 0.0
        %1728 = vmatpush2.msra.mxu0 0.0
        %1729 = vmatprep.subr.mxu0 0.0
        %1730 = vmatpush2.msra.mxu0 0.0
        %1731 = vmatprep.subr.mxu0 0.0
        %1732 = vmatpush2.msra.mxu0 0.0
        %1733 = vmatprep.subr.mxu0 0.0
        %1734 = vmatpush2.msra.mxu0 0.0
        %1735 = vmatprep.subr.mxu0 0.0
        %1736 = vmatpush2.msra.mxu0 0.0
        %1737 = vmatprep.subr.mxu0 0.0
        %1738 = vmatpush2.msra.mxu0 0.0
        %1739 = vmatprep.subr.mxu0 0.0
        %1740 = vmatpush2.msra.mxu0 0.0
        %1741 = vmatprep.subr.mxu0 0.0
        %1742 = vmatpush2.msra.mxu0 0.0
        %1743 = vmatprep.subr.mxu0 0.0
        %1744 = vmatpush2.msra.mxu0 0.0
        %1745 = vmatprep.subr.mxu0 0.0
        %1746 = vmatpush2.msra.mxu0 0.0
        %1747 = vmatprep.mubr.f32.mxu0 0.0
        %v1748 = vand.u32 %v1267, 4294901760
        %1749 = vmatmul.mubr.f32.gmra.mxu0 %v1748
        %v1750 = vpop.f32.mrf.mxu0
        %v1751 = vadd.f32 %v1676, %v1750
        %v1752 = vpop.f32.mrf.mxu0
        %1753 = vdwg.mxu0
        %v1754 = vmax.f32 %v1257, %v1751
        %s1755 = scalar_lea.vmem %s236, 24 [#allocation2]
        %v1756 = vld [vmem:[%s1755] sm:$0xff]
        %1757 = vset.pattern.permute.xlu0 0
        %1758 = vperm.xlu0 %1757, %v1756
        %v1759 = vpop.permute.xlu0 %1758
        %vm1760 = vcmp.eq.s32.totalorder %v1759, %v260
        %v1761 = vsel %vm1760, 1, 0
        %v1762 = vcvt.s32.f32 %v1761
        %v1764 = vsel %vm272, %v1762, 0
        %1766 = vmatprep.subr.mxu0 0.0
        %1767 = vmatpush1.msra.mxu0 0.0
        %1768 = vmatprep.subr.mxu0 0.0
        %1769 = vmatpush1.msra.mxu0 0.0
        %1770 = vmatprep.subr.mxu0 0.0
        %1771 = vmatpush1.msra.mxu0 0.0
        %1772 = vmatprep.subr.mxu0 0.0
        %1773 = vmatpush1.msra.mxu0 0.0
        %1774 = vmatprep.subr.mxu0 0.0
        %1775 = vmatpush1.msra.mxu0 0.0
        %1776 = vmatprep.subr.mxu0 0.0
        %1777 = vmatpush1.msra.mxu0 0.0
        %1778 = vmatprep.subr.mxu0 0.0
        %1779 = vmatpush1.msra.mxu0 0.0
        %1780 = vmatprep.subr.mxu0 0.0
        %1781 = vmatpush1.msra.mxu0 0.0
        %1782 = vmatprep.subr.mxu0 0.0
        %1783 = vmatpush1.msra.mxu0 0.0
        %1784 = vmatprep.subr.mxu0 0.0
        %1785 = vmatpush1.msra.mxu0 0.0
        %1786 = vmatprep.subr.mxu0 0.0
        %1787 = vmatpush1.msra.mxu0 0.0
        %1788 = vmatprep.subr.mxu0 0.0
        %1789 = vmatpush1.msra.mxu0 0.0
        %1790 = vmatprep.subr.mxu0 0.0
        %v1791 = vand.u32 %v271, 4294901760
        %1792 = vmatpush1.msra.mxu0 %v1791
        %1793 = vmatprep.subr.mxu0 0.0
        %v1794 = vand.u32 %v270, 4294901760
        %1795 = vmatpush1.msra.mxu0 %v1794
        %1796 = vmatprep.subr.mxu0 0.0
        %v1797 = vand.u32 %v269, 4294901760
        %1798 = vmatpush1.msra.mxu0 %v1797
        %1799 = vmatprep.subr.mxu0 0.0
        %v1800 = vand.u32 %v268, 4294901760
        %1801 = vmatpush1.msra.mxu0 %v1800
        %1802 = vmatprep.subr.mxu0 0.0
        %1803 = vmatpush2.msra.mxu0 0.0
        %1804 = vmatprep.subr.mxu0 0.0
        %1805 = vmatpush2.msra.mxu0 0.0
        %1806 = vmatprep.subr.mxu0 0.0
        %1807 = vmatpush2.msra.mxu0 0.0
        %1808 = vmatprep.subr.mxu0 0.0
        %1809 = vmatpush2.msra.mxu0 0.0
        %1810 = vmatprep.subr.mxu0 0.0
        %1811 = vmatpush2.msra.mxu0 0.0
        %1812 = vmatprep.subr.mxu0 0.0
        %1813 = vmatpush2.msra.mxu0 0.0
        %1814 = vmatprep.subr.mxu0 0.0
        %1815 = vmatpush2.msra.mxu0 0.0
        %1816 = vmatprep.subr.mxu0 0.0
        %1817 = vmatpush2.msra.mxu0 0.0
        %1818 = vmatprep.subr.mxu0 0.0
        %1819 = vmatpush2.msra.mxu0 0.0
        %1820 = vmatprep.subr.mxu0 0.0
        %1821 = vmatpush2.msra.mxu0 0.0
        %1822 = vmatprep.subr.mxu0 0.0
        %1823 = vmatpush2.msra.mxu0 0.0
        %1824 = vmatprep.subr.mxu0 0.0
        %1825 = vmatpush2.msra.mxu0 0.0
        %1826 = vmatprep.subr.mxu0 0.0
        %1827 = vmatpush2.msra.mxu0 0.0
        %1828 = vmatprep.subr.mxu0 0.0
        %1829 = vmatpush2.msra.mxu0 0.0
        %1830 = vmatprep.subr.mxu0 0.0
        %1831 = vmatpush2.msra.mxu0 0.0
        %1832 = vmatprep.subr.mxu0 0.0
        %1833 = vmatpush2.msra.mxu0 0.0
        %1834 = vmatprep.mubr.f32.mxu0 0.0
        %v1835 = vand.u32 %v1764, 4294901760
        %v1836 = vsub.f32 %v1764, %v1835
        %v1837 = vand.u32 %v1836, 4294901760
        %v1838 = vsub.f32 %v1836, %v1837
        %v1839 = vand.u32 %v1838, 4294901760
        %1840 = vmatmul.mubr.f32.gmra.mxu0 %v1839
        %v1841 = vpop.f32.mrf.mxu0
        %v1842 = vadd.f32 0.0, %v1841
        %v1843 = vpop.f32.mrf.mxu0
        %1844 = vdwg.mxu0
        %1845 = vmatprep.subr.mxu0 0.0
        %1846 = vmatpush1.msra.mxu0 0.0
        %1847 = vmatprep.subr.mxu0 0.0
        %1848 = vmatpush1.msra.mxu0 0.0
        %1849 = vmatprep.subr.mxu0 0.0
        %1850 = vmatpush1.msra.mxu0 0.0
        %1851 = vmatprep.subr.mxu0 0.0
        %1852 = vmatpush1.msra.mxu0 0.0
        %1853 = vmatprep.subr.mxu0 0.0
        %1854 = vmatpush1.msra.mxu0 0.0
        %1855 = vmatprep.subr.mxu0 0.0
        %1856 = vmatpush1.msra.mxu0 0.0
        %1857 = vmatprep.subr.mxu0 0.0
        %1858 = vmatpush1.msra.mxu0 0.0
        %1859 = vmatprep.subr.mxu0 0.0
        %1860 = vmatpush1.msra.mxu0 0.0
        %1861 = vmatprep.subr.mxu0 0.0
        %1862 = vmatpush1.msra.mxu0 0.0
        %1863 = vmatprep.subr.mxu0 0.0
        %1864 = vmatpush1.msra.mxu0 0.0
        %1865 = vmatprep.subr.mxu0 0.0
        %1866 = vmatpush1.msra.mxu0 0.0
        %1867 = vmatprep.subr.mxu0 0.0
        %1868 = vmatpush1.msra.mxu0 0.0
        %1869 = vmatprep.subr.mxu0 0.0
        %v1870 = vand.u32 %v271, 4294901760
        %v1871 = vsub.f32 %v271, %v1870
        %v1872 = vand.u32 %v1871, 4294901760
        %v1873 = vsub.f32 %v1871, %v1872
        %v1874 = vand.u32 %v1873, 4294901760
        %1875 = vmatpush1.msra.mxu0 %v1874
        %1876 = vmatprep.subr.mxu0 0.0
        %v1877 = vand.u32 %v270, 4294901760
        %v1878 = vsub.f32 %v270, %v1877
        %v1879 = vand.u32 %v1878, 4294901760
        %v1880 = vsub.f32 %v1878, %v1879
        %v1881 = vand.u32 %v1880, 4294901760
        %1882 = vmatpush1.msra.mxu0 %v1881
        %1883 = vmatprep.subr.mxu0 0.0
        %v1884 = vand.u32 %v269, 4294901760
        %v1885 = vsub.f32 %v269, %v1884
        %v1886 = vand.u32 %v1885, 4294901760
        %v1887 = vsub.f32 %v1885, %v1886
        %v1888 = vand.u32 %v1887, 4294901760
        %1889 = vmatpush1.msra.mxu0 %v1888
        %1890 = vmatprep.subr.mxu0 0.0
        %v1891 = vand.u32 %v268, 4294901760
        %v1892 = vsub.f32 %v268, %v1891
        %v1893 = vand.u32 %v1892, 4294901760
        %v1894 = vsub.f32 %v1892, %v1893
        %v1895 = vand.u32 %v1894, 4294901760
        %1896 = vmatpush1.msra.mxu0 %v1895
        %1897 = vmatprep.subr.mxu0 0.0
        %1898 = vmatpush2.msra.mxu0 0.0
        %1899 = vmatprep.subr.mxu0 0.0
        %1900 = vmatpush2.msra.mxu0 0.0
        %1901 = vmatprep.subr.mxu0 0.0
        %1902 = vmatpush2.msra.mxu0 0.0
        %1903 = vmatprep.subr.mxu0 0.0
        %1904 = vmatpush2.msra.mxu0 0.0
        %1905 = vmatprep.subr.mxu0 0.0
        %1906 = vmatpush2.msra.mxu0 0.0
        %1907 = vmatprep.subr.mxu0 0.0
        %1908 = vmatpush2.msra.mxu0 0.0
        %1909 = vmatprep.subr.mxu0 0.0
        %1910 = vmatpush2.msra.mxu0 0.0
        %1911 = vmatprep.subr.mxu0 0.0
        %1912 = vmatpush2.msra.mxu0 0.0
        %1913 = vmatprep.subr.mxu0 0.0
        %1914 = vmatpush2.msra.mxu0 0.0
        %1915 = vmatprep.subr.mxu0 0.0
        %1916 = vmatpush2.msra.mxu0 0.0
        %1917 = vmatprep.subr.mxu0 0.0
        %1918 = vmatpush2.msra.mxu0 0.0
        %1919 = vmatprep.subr.mxu0 0.0
        %1920 = vmatpush2.msra.mxu0 0.0
        %1921 = vmatprep.subr.mxu0 0.0
        %1922 = vmatpush2.msra.mxu0 0.0
        %1923 = vmatprep.subr.mxu0 0.0
        %1924 = vmatpush2.msra.mxu0 0.0
        %1925 = vmatprep.subr.mxu0 0.0
        %1926 = vmatpush2.msra.mxu0 0.0
        %1927 = vmatprep.subr.mxu0 0.0
        %1928 = vmatpush2.msra.mxu0 0.0
        %1929 = vmatprep.mubr.f32.mxu0 0.0
        %v1930 = vand.u32 %v1764, 4294901760
        %1931 = vmatmul.mubr.f32.gmra.mxu0 %v1930
        %v1932 = vpop.f32.mrf.mxu0
        %v1933 = vadd.f32 %v1842, %v1932
        %v1934 = vpop.f32.mrf.mxu0
        %1935 = vdwg.mxu0
        %1936 = vmatprep.subr.mxu0 0.0
        %1937 = vmatpush1.msra.mxu0 0.0
        %1938 = vmatprep.subr.mxu0 0.0
        %1939 = vmatpush1.msra.mxu0 0.0
        %1940 = vmatprep.subr.mxu0 0.0
        %1941 = vmatpush1.msra.mxu0 0.0
        %1942 = vmatprep.subr.mxu0 0.0
        %1943 = vmatpush1.msra.mxu0 0.0
        %1944 = vmatprep.subr.mxu0 0.0
        %1945 = vmatpush1.msra.mxu0 0.0
        %1946 = vmatprep.subr.mxu0 0.0
        %1947 = vmatpush1.msra.mxu0 0.0
        %1948 = vmatprep.subr.mxu0 0.0
        %1949 = vmatpush1.msra.mxu0 0.0
        %1950 = vmatprep.subr.mxu0 0.0
        %1951 = vmatpush1.msra.mxu0 0.0
        %1952 = vmatprep.subr.mxu0 0.0
        %1953 = vmatpush1.msra.mxu0 0.0
        %1954 = vmatprep.subr.mxu0 0.0
        %1955 = vmatpush1.msra.mxu0 0.0
        %1956 = vmatprep.subr.mxu0 0.0
        %1957 = vmatpush1.msra.mxu0 0.0
        %1958 = vmatprep.subr.mxu0 0.0
        %1959 = vmatpush1.msra.mxu0 0.0
        %1960 = vmatprep.subr.mxu0 0.0
        %v1961 = vand.u32 %v271, 4294901760
        %v1962 = vsub.f32 %v271, %v1961
        %1963 = vmatpush1.msra.mxu0 %v1962
        %1964 = vmatprep.subr.mxu0 0.0
        %v1965 = vand.u32 %v270, 4294901760
        %v1966 = vsub.f32 %v270, %v1965
        %1967 = vmatpush1.msra.mxu0 %v1966
        %1968 = vmatprep.subr.mxu0 0.0
        %v1969 = vand.u32 %v269, 4294901760
        %v1970 = vsub.f32 %v269, %v1969
        %1971 = vmatpush1.msra.mxu0 %v1970
        %1972 = vmatprep.subr.mxu0 0.0
        %v1973 = vand.u32 %v268, 4294901760
        %v1974 = vsub.f32 %v268, %v1973
        %1975 = vmatpush1.msra.mxu0 %v1974
        %1976 = vmatprep.subr.mxu0 0.0
        %1977 = vmatpush2.msra.mxu0 0.0
        %1978 = vmatprep.subr.mxu0 0.0
        %1979 = vmatpush2.msra.mxu0 0.0
        %1980 = vmatprep.subr.mxu0 0.0
        %1981 = vmatpush2.msra.mxu0 0.0
        %1982 = vmatprep.subr.mxu0 0.0
        %1983 = vmatpush2.msra.mxu0 0.0
        %1984 = vmatprep.subr.mxu0 0.0
        %1985 = vmatpush2.msra.mxu0 0.0
        %1986 = vmatprep.subr.mxu0 0.0
        %1987 = vmatpush2.msra.mxu0 0.0
        %1988 = vmatprep.subr.mxu0 0.0
        %1989 = vmatpush2.msra.mxu0 0.0
        %1990 = vmatprep.subr.mxu0 0.0
        %1991 = vmatpush2.msra.mxu0 0.0
        %1992 = vmatprep.subr.mxu0 0.0
        %1993 = vmatpush2.msra.mxu0 0.0
        %1994 = vmatprep.subr.mxu0 0.0
        %1995 = vmatpush2.msra.mxu0 0.0
        %1996 = vmatprep.subr.mxu0 0.0
        %1997 = vmatpush2.msra.mxu0 0.0
        %1998 = vmatprep.subr.mxu0 0.0
        %1999 = vmatpush2.msra.mxu0 0.0
        %2000 = vmatprep.subr.mxu0 0.0
        %2001 = vmatpush2.msra.mxu0 0.0
        %2002 = vmatprep.subr.mxu0 0.0
        %2003 = vmatpush2.msra.mxu0 0.0
        %2004 = vmatprep.subr.mxu0 0.0
        %2005 = vmatpush2.msra.mxu0 0.0
        %2006 = vmatprep.subr.mxu0 0.0
        %2007 = vmatpush2.msra.mxu0 0.0
        %2008 = vmatprep.mubr.f32.mxu0 0.0
        %v2009 = vand.u32 %v1764, 4294901760
        %v2010 = vsub.f32 %v1764, %v2009
        %2011 = vmatmul.mubr.f32.gmra.mxu0 %v2010
        %v2012 = vpop.f32.mrf.mxu0
        %v2013 = vadd.f32 %v1933, %v2012
        %v2014 = vpop.f32.mrf.mxu0
        %2015 = vdwg.mxu0
        %2016 = vmatprep.subr.mxu0 0.0
        %2017 = vmatpush1.msra.mxu0 0.0
        %2018 = vmatprep.subr.mxu0 0.0
        %2019 = vmatpush1.msra.mxu0 0.0
        %2020 = vmatprep.subr.mxu0 0.0
        %2021 = vmatpush1.msra.mxu0 0.0
        %2022 = vmatprep.subr.mxu0 0.0
        %2023 = vmatpush1.msra.mxu0 0.0
        %2024 = vmatprep.subr.mxu0 0.0
        %2025 = vmatpush1.msra.mxu0 0.0
        %2026 = vmatprep.subr.mxu0 0.0
        %2027 = vmatpush1.msra.mxu0 0.0
        %2028 = vmatprep.subr.mxu0 0.0
        %2029 = vmatpush1.msra.mxu0 0.0
        %2030 = vmatprep.subr.mxu0 0.0
        %2031 = vmatpush1.msra.mxu0 0.0
        %2032 = vmatprep.subr.mxu0 0.0
        %2033 = vmatpush1.msra.mxu0 0.0
        %2034 = vmatprep.subr.mxu0 0.0
        %2035 = vmatpush1.msra.mxu0 0.0
        %2036 = vmatprep.subr.mxu0 0.0
        %2037 = vmatpush1.msra.mxu0 0.0
        %2038 = vmatprep.subr.mxu0 0.0
        %2039 = vmatpush1.msra.mxu0 0.0
        %2040 = vmatprep.subr.mxu0 0.0
        %v2041 = vand.u32 %v271, 4294901760
        %2042 = vmatpush1.msra.mxu0 %v2041
        %2043 = vmatprep.subr.mxu0 0.0
        %v2044 = vand.u32 %v270, 4294901760
        %2045 = vmatpush1.msra.mxu0 %v2044
        %2046 = vmatprep.subr.mxu0 0.0
        %v2047 = vand.u32 %v269, 4294901760
        %2048 = vmatpush1.msra.mxu0 %v2047
        %2049 = vmatprep.subr.mxu0 0.0
        %v2050 = vand.u32 %v268, 4294901760
        %2051 = vmatpush1.msra.mxu0 %v2050
        %2052 = vmatprep.subr.mxu0 0.0
        %2053 = vmatpush2.msra.mxu0 0.0
        %2054 = vmatprep.subr.mxu0 0.0
        %2055 = vmatpush2.msra.mxu0 0.0
        %2056 = vmatprep.subr.mxu0 0.0
        %2057 = vmatpush2.msra.mxu0 0.0
        %2058 = vmatprep.subr.mxu0 0.0
        %2059 = vmatpush2.msra.mxu0 0.0
        %2060 = vmatprep.subr.mxu0 0.0
        %2061 = vmatpush2.msra.mxu0 0.0
        %2062 = vmatprep.subr.mxu0 0.0
        %2063 = vmatpush2.msra.mxu0 0.0
        %2064 = vmatprep.subr.mxu0 0.0
        %2065 = vmatpush2.msra.mxu0 0.0
        %2066 = vmatprep.subr.mxu0 0.0
        %2067 = vmatpush2.msra.mxu0 0.0
        %2068 = vmatprep.subr.mxu0 0.0
        %2069 = vmatpush2.msra.mxu0 0.0
        %2070 = vmatprep.subr.mxu0 0.0
        %2071 = vmatpush2.msra.mxu0 0.0
        %2072 = vmatprep.subr.mxu0 0.0
        %2073 = vmatpush2.msra.mxu0 0.0
        %2074 = vmatprep.subr.mxu0 0.0
        %2075 = vmatpush2.msra.mxu0 0.0
        %2076 = vmatprep.subr.mxu0 0.0
        %2077 = vmatpush2.msra.mxu0 0.0
        %2078 = vmatprep.subr.mxu0 0.0
        %2079 = vmatpush2.msra.mxu0 0.0
        %2080 = vmatprep.subr.mxu0 0.0
        %2081 = vmatpush2.msra.mxu0 0.0
        %2082 = vmatprep.subr.mxu0 0.0
        %2083 = vmatpush2.msra.mxu0 0.0
        %2084 = vmatprep.mubr.f32.mxu0 0.0
        %v2085 = vand.u32 %v1764, 4294901760
        %v2086 = vsub.f32 %v1764, %v2085
        %v2087 = vand.u32 %v2086, 4294901760
        %2088 = vmatmul.mubr.f32.gmra.mxu0 %v2087
        %v2089 = vpop.f32.mrf.mxu0
        %v2090 = vadd.f32 %v2013, %v2089
        %v2091 = vpop.f32.mrf.mxu0
        %2092 = vdwg.mxu0
        %2093 = vmatprep.subr.mxu0 0.0
        %2094 = vmatpush1.msra.mxu0 0.0
        %2095 = vmatprep.subr.mxu0 0.0
        %2096 = vmatpush1.msra.mxu0 0.0
        %2097 = vmatprep.subr.mxu0 0.0
        %2098 = vmatpush1.msra.mxu0 0.0
        %2099 = vmatprep.subr.mxu0 0.0
        %2100 = vmatpush1.msra.mxu0 0.0
        %2101 = vmatprep.subr.mxu0 0.0
        %2102 = vmatpush1.msra.mxu0 0.0
        %2103 = vmatprep.subr.mxu0 0.0
        %2104 = vmatpush1.msra.mxu0 0.0
        %2105 = vmatprep.subr.mxu0 0.0
        %2106 = vmatpush1.msra.mxu0 0.0
        %2107 = vmatprep.subr.mxu0 0.0
        %2108 = vmatpush1.msra.mxu0 0.0
        %2109 = vmatprep.subr.mxu0 0.0
        %2110 = vmatpush1.msra.mxu0 0.0
        %2111 = vmatprep.subr.mxu0 0.0
        %2112 = vmatpush1.msra.mxu0 0.0
        %2113 = vmatprep.subr.mxu0 0.0
        %2114 = vmatpush1.msra.mxu0 0.0
        %2115 = vmatprep.subr.mxu0 0.0
        %2116 = vmatpush1.msra.mxu0 0.0
        %2117 = vmatprep.subr.mxu0 0.0
        %v2118 = vand.u32 %v271, 4294901760
        %v2119 = vsub.f32 %v271, %v2118
        %v2120 = vand.u32 %v2119, 4294901760
        %2121 = vmatpush1.msra.mxu0 %v2120
        %2122 = vmatprep.subr.mxu0 0.0
        %v2123 = vand.u32 %v270, 4294901760
        %v2124 = vsub.f32 %v270, %v2123
        %v2125 = vand.u32 %v2124, 4294901760
        %2126 = vmatpush1.msra.mxu0 %v2125
        %2127 = vmatprep.subr.mxu0 0.0
        %v2128 = vand.u32 %v269, 4294901760
        %v2129 = vsub.f32 %v269, %v2128
        %v2130 = vand.u32 %v2129, 4294901760
        %2131 = vmatpush1.msra.mxu0 %v2130
        %2132 = vmatprep.subr.mxu0 0.0
        %v2133 = vand.u32 %v268, 4294901760
        %v2134 = vsub.f32 %v268, %v2133
        %v2135 = vand.u32 %v2134, 4294901760
        %2136 = vmatpush1.msra.mxu0 %v2135
        %2137 = vmatprep.subr.mxu0 0.0
        %2138 = vmatpush2.msra.mxu0 0.0
        %2139 = vmatprep.subr.mxu0 0.0
        %2140 = vmatpush2.msra.mxu0 0.0
        %2141 = vmatprep.subr.mxu0 0.0
        %2142 = vmatpush2.msra.mxu0 0.0
        %2143 = vmatprep.subr.mxu0 0.0
        %2144 = vmatpush2.msra.mxu0 0.0
        %2145 = vmatprep.subr.mxu0 0.0
        %2146 = vmatpush2.msra.mxu0 0.0
        %2147 = vmatprep.subr.mxu0 0.0
        %2148 = vmatpush2.msra.mxu0 0.0
        %2149 = vmatprep.subr.mxu0 0.0
        %2150 = vmatpush2.msra.mxu0 0.0
        %2151 = vmatprep.subr.mxu0 0.0
        %2152 = vmatpush2.msra.mxu0 0.0
        %2153 = vmatprep.subr.mxu0 0.0
        %2154 = vmatpush2.msra.mxu0 0.0
        %2155 = vmatprep.subr.mxu0 0.0
        %2156 = vmatpush2.msra.mxu0 0.0
        %2157 = vmatprep.subr.mxu0 0.0
        %2158 = vmatpush2.msra.mxu0 0.0
        %2159 = vmatprep.subr.mxu0 0.0
        %2160 = vmatpush2.msra.mxu0 0.0
        %2161 = vmatprep.subr.mxu0 0.0
        %2162 = vmatpush2.msra.mxu0 0.0
        %2163 = vmatprep.subr.mxu0 0.0
        %2164 = vmatpush2.msra.mxu0 0.0
        %2165 = vmatprep.subr.mxu0 0.0
        %2166 = vmatpush2.msra.mxu0 0.0
        %2167 = vmatprep.subr.mxu0 0.0
        %2168 = vmatpush2.msra.mxu0 0.0
        %2169 = vmatprep.mubr.f32.mxu0 0.0
        %v2170 = vand.u32 %v1764, 4294901760
        %2171 = vmatmul.mubr.f32.gmra.mxu0 %v2170
        %v2172 = vpop.f32.mrf.mxu0
        %v2173 = vadd.f32 %v2090, %v2172
        %v2174 = vpop.f32.mrf.mxu0
        %2175 = vdwg.mxu0
        %2176 = vmatprep.subr.mxu0 0.0
        %2177 = vmatpush1.msra.mxu0 0.0
        %2178 = vmatprep.subr.mxu0 0.0
        %2179 = vmatpush1.msra.mxu0 0.0
        %2180 = vmatprep.subr.mxu0 0.0
        %2181 = vmatpush1.msra.mxu0 0.0
        %2182 = vmatprep.subr.mxu0 0.0
        %2183 = vmatpush1.msra.mxu0 0.0
        %2184 = vmatprep.subr.mxu0 0.0
        %2185 = vmatpush1.msra.mxu0 0.0
        %2186 = vmatprep.subr.mxu0 0.0
        %2187 = vmatpush1.msra.mxu0 0.0
        %2188 = vmatprep.subr.mxu0 0.0
        %2189 = vmatpush1.msra.mxu0 0.0
        %2190 = vmatprep.subr.mxu0 0.0
        %2191 = vmatpush1.msra.mxu0 0.0
        %2192 = vmatprep.subr.mxu0 0.0
        %2193 = vmatpush1.msra.mxu0 0.0
        %2194 = vmatprep.subr.mxu0 0.0
        %2195 = vmatpush1.msra.mxu0 0.0
        %2196 = vmatprep.subr.mxu0 0.0
        %2197 = vmatpush1.msra.mxu0 0.0
        %2198 = vmatprep.subr.mxu0 0.0
        %2199 = vmatpush1.msra.mxu0 0.0
        %2200 = vmatprep.subr.mxu0 0.0
        %v2201 = vand.u32 %v271, 4294901760
        %2202 = vmatpush1.msra.mxu0 %v2201
        %2203 = vmatprep.subr.mxu0 0.0
        %v2204 = vand.u32 %v270, 4294901760
        %2205 = vmatpush1.msra.mxu0 %v2204
        %2206 = vmatprep.subr.mxu0 0.0
        %v2207 = vand.u32 %v269, 4294901760
        %2208 = vmatpush1.msra.mxu0 %v2207
        %2209 = vmatprep.subr.mxu0 0.0
        %v2210 = vand.u32 %v268, 4294901760
        %2211 = vmatpush1.msra.mxu0 %v2210
        %2212 = vmatprep.subr.mxu0 0.0
        %2213 = vmatpush2.msra.mxu0 0.0
        %2214 = vmatprep.subr.mxu0 0.0
        %2215 = vmatpush2.msra.mxu0 0.0
        %2216 = vmatprep.subr.mxu0 0.0
        %2217 = vmatpush2.msra.mxu0 0.0
        %2218 = vmatprep.subr.mxu0 0.0
        %2219 = vmatpush2.msra.mxu0 0.0
        %2220 = vmatprep.subr.mxu0 0.0
        %2221 = vmatpush2.msra.mxu0 0.0
        %2222 = vmatprep.subr.mxu0 0.0
        %2223 = vmatpush2.msra.mxu0 0.0
        %2224 = vmatprep.subr.mxu0 0.0
        %2225 = vmatpush2.msra.mxu0 0.0
        %2226 = vmatprep.subr.mxu0 0.0
        %2227 = vmatpush2.msra.mxu0 0.0
        %2228 = vmatprep.subr.mxu0 0.0
        %2229 = vmatpush2.msra.mxu0 0.0
        %2230 = vmatprep.subr.mxu0 0.0
        %2231 = vmatpush2.msra.mxu0 0.0
        %2232 = vmatprep.subr.mxu0 0.0
        %2233 = vmatpush2.msra.mxu0 0.0
        %2234 = vmatprep.subr.mxu0 0.0
        %2235 = vmatpush2.msra.mxu0 0.0
        %2236 = vmatprep.subr.mxu0 0.0
        %2237 = vmatpush2.msra.mxu0 0.0
        %2238 = vmatprep.subr.mxu0 0.0
        %2239 = vmatpush2.msra.mxu0 0.0
        %2240 = vmatprep.subr.mxu0 0.0
        %2241 = vmatpush2.msra.mxu0 0.0
        %2242 = vmatprep.subr.mxu0 0.0
        %2243 = vmatpush2.msra.mxu0 0.0
        %2244 = vmatprep.mubr.f32.mxu0 0.0
        %v2245 = vand.u32 %v1764, 4294901760
        %2246 = vmatmul.mubr.f32.gmra.mxu0 %v2245
        %v2247 = vpop.f32.mrf.mxu0
        %v2248 = vadd.f32 %v2173, %v2247
        %v2249 = vpop.f32.mrf.mxu0
        %2250 = vdwg.mxu0
        %v2251 = vmax.f32 %v1754, %v2248
        %s2252 = scalar_lea.vmem %s236, 32 [#allocation2]
        %v2253 = vld [vmem:[%s2252] sm:$0xff]
        %2254 = vset.pattern.permute.xlu0 0
        %2255 = vperm.xlu0 %2254, %v2253
        %v2256 = vpop.permute.xlu0 %2255
        %vm2257 = vcmp.eq.s32.totalorder %v2256, %v260
        %v2258 = vsel %vm2257, 1, 0
        %v2259 = vcvt.s32.f32 %v2258
        %v2261 = vsel %vm272, %v2259, 0
        %2263 = vmatprep.subr.mxu0 0.0
        %2264 = vmatpush1.msra.mxu0 0.0
        %2265 = vmatprep.subr.mxu0 0.0
        %2266 = vmatpush1.msra.mxu0 0.0
        %2267 = vmatprep.subr.mxu0 0.0
        %2268 = vmatpush1.msra.mxu0 0.0
        %2269 = vmatprep.subr.mxu0 0.0
        %2270 = vmatpush1.msra.mxu0 0.0
        %2271 = vmatprep.subr.mxu0 0.0
        %2272 = vmatpush1.msra.mxu0 0.0
        %2273 = vmatprep.subr.mxu0 0.0
        %2274 = vmatpush1.msra.mxu0 0.0
        %2275 = vmatprep.subr.mxu0 0.0
        %2276 = vmatpush1.msra.mxu0 0.0
        %2277 = vmatprep.subr.mxu0 0.0
        %2278 = vmatpush1.msra.mxu0 0.0
        %2279 = vmatprep.subr.mxu0 0.0
        %2280 = vmatpush1.msra.mxu0 0.0
        %2281 = vmatprep.subr.mxu0 0.0
        %2282 = vmatpush1.msra.mxu0 0.0
        %2283 = vmatprep.subr.mxu0 0.0
        %2284 = vmatpush1.msra.mxu0 0.0
        %2285 = vmatprep.subr.mxu0 0.0
        %2286 = vmatpush1.msra.mxu0 0.0
        %2287 = vmatprep.subr.mxu0 0.0
        %v2288 = vand.u32 %v271, 4294901760
        %2289 = vmatpush1.msra.mxu0 %v2288
        %2290 = vmatprep.subr.mxu0 0.0
        %v2291 = vand.u32 %v270, 4294901760
        %2292 = vmatpush1.msra.mxu0 %v2291
        %2293 = vmatprep.subr.mxu0 0.0
        %v2294 = vand.u32 %v269, 4294901760
        %2295 = vmatpush1.msra.mxu0 %v2294
        %2296 = vmatprep.subr.mxu0 0.0
        %v2297 = vand.u32 %v268, 4294901760
        %2298 = vmatpush1.msra.mxu0 %v2297
        %2299 = vmatprep.subr.mxu0 0.0
        %2300 = vmatpush2.msra.mxu0 0.0
        %2301 = vmatprep.subr.mxu0 0.0
        %2302 = vmatpush2.msra.mxu0 0.0
        %2303 = vmatprep.subr.mxu0 0.0
        %2304 = vmatpush2.msra.mxu0 0.0
        %2305 = vmatprep.subr.mxu0 0.0
        %2306 = vmatpush2.msra.mxu0 0.0
        %2307 = vmatprep.subr.mxu0 0.0
        %2308 = vmatpush2.msra.mxu0 0.0
        %2309 = vmatprep.subr.mxu0 0.0
        %2310 = vmatpush2.msra.mxu0 0.0
        %2311 = vmatprep.subr.mxu0 0.0
        %2312 = vmatpush2.msra.mxu0 0.0
        %2313 = vmatprep.subr.mxu0 0.0
        %2314 = vmatpush2.msra.mxu0 0.0
        %2315 = vmatprep.subr.mxu0 0.0
        %2316 = vmatpush2.msra.mxu0 0.0
        %2317 = vmatprep.subr.mxu0 0.0
        %2318 = vmatpush2.msra.mxu0 0.0
        %2319 = vmatprep.subr.mxu0 0.0
        %2320 = vmatpush2.msra.mxu0 0.0
        %2321 = vmatprep.subr.mxu0 0.0
        %2322 = vmatpush2.msra.mxu0 0.0
        %2323 = vmatprep.subr.mxu0 0.0
        %2324 = vmatpush2.msra.mxu0 0.0
        %2325 = vmatprep.subr.mxu0 0.0
        %2326 = vmatpush2.msra.mxu0 0.0
        %2327 = vmatprep.subr.mxu0 0.0
        %2328 = vmatpush2.msra.mxu0 0.0
        %2329 = vmatprep.subr.mxu0 0.0
        %2330 = vmatpush2.msra.mxu0 0.0
        %2331 = vmatprep.mubr.f32.mxu0 0.0
        %v2332 = vand.u32 %v2261, 4294901760
        %v2333 = vsub.f32 %v2261, %v2332
        %v2334 = vand.u32 %v2333, 4294901760
        %v2335 = vsub.f32 %v2333, %v2334
        %v2336 = vand.u32 %v2335, 4294901760
        %2337 = vmatmul.mubr.f32.gmra.mxu0 %v2336
        %v2338 = vpop.f32.mrf.mxu0
        %v2339 = vadd.f32 0.0, %v2338
        %v2340 = vpop.f32.mrf.mxu0
        %2341 = vdwg.mxu0
        %2342 = vmatprep.subr.mxu0 0.0
        %2343 = vmatpush1.msra.mxu0 0.0
        %2344 = vmatprep.subr.mxu0 0.0
        %2345 = vmatpush1.msra.mxu0 0.0
        %2346 = vmatprep.subr.mxu0 0.0
        %2347 = vmatpush1.msra.mxu0 0.0
        %2348 = vmatprep.subr.mxu0 0.0
        %2349 = vmatpush1.msra.mxu0 0.0
        %2350 = vmatprep.subr.mxu0 0.0
        %2351 = vmatpush1.msra.mxu0 0.0
        %2352 = vmatprep.subr.mxu0 0.0
        %2353 = vmatpush1.msra.mxu0 0.0
        %2354 = vmatprep.subr.mxu0 0.0
        %2355 = vmatpush1.msra.mxu0 0.0
        %2356 = vmatprep.subr.mxu0 0.0
        %2357 = vmatpush1.msra.mxu0 0.0
        %2358 = vmatprep.subr.mxu0 0.0
        %2359 = vmatpush1.msra.mxu0 0.0
        %2360 = vmatprep.subr.mxu0 0.0
        %2361 = vmatpush1.msra.mxu0 0.0
        %2362 = vmatprep.subr.mxu0 0.0
        %2363 = vmatpush1.msra.mxu0 0.0
        %2364 = vmatprep.subr.mxu0 0.0
        %2365 = vmatpush1.msra.mxu0 0.0
        %2366 = vmatprep.subr.mxu0 0.0
        %v2367 = vand.u32 %v271, 4294901760
        %v2368 = vsub.f32 %v271, %v2367
        %v2369 = vand.u32 %v2368, 4294901760
        %v2370 = vsub.f32 %v2368, %v2369
        %v2371 = vand.u32 %v2370, 4294901760
        %2372 = vmatpush1.msra.mxu0 %v2371
        %2373 = vmatprep.subr.mxu0 0.0
        %v2374 = vand.u32 %v270, 4294901760
        %v2375 = vsub.f32 %v270, %v2374
        %v2376 = vand.u32 %v2375, 4294901760
        %v2377 = vsub.f32 %v2375, %v2376
        %v2378 = vand.u32 %v2377, 4294901760
        %2379 = vmatpush1.msra.mxu0 %v2378
        %2380 = vmatprep.subr.mxu0 0.0
        %v2381 = vand.u32 %v269, 4294901760
        %v2382 = vsub.f32 %v269, %v2381
        %v2383 = vand.u32 %v2382, 4294901760
        %v2384 = vsub.f32 %v2382, %v2383
        %v2385 = vand.u32 %v2384, 4294901760
        %2386 = vmatpush1.msra.mxu0 %v2385
        %2387 = vmatprep.subr.mxu0 0.0
        %v2388 = vand.u32 %v268, 4294901760
        %v2389 = vsub.f32 %v268, %v2388
        %v2390 = vand.u32 %v2389, 4294901760
        %v2391 = vsub.f32 %v2389, %v2390
        %v2392 = vand.u32 %v2391, 4294901760
        %2393 = vmatpush1.msra.mxu0 %v2392
        %2394 = vmatprep.subr.mxu0 0.0
        %2395 = vmatpush2.msra.mxu0 0.0
        %2396 = vmatprep.subr.mxu0 0.0
        %2397 = vmatpush2.msra.mxu0 0.0
        %2398 = vmatprep.subr.mxu0 0.0
        %2399 = vmatpush2.msra.mxu0 0.0
        %2400 = vmatprep.subr.mxu0 0.0
        %2401 = vmatpush2.msra.mxu0 0.0
        %2402 = vmatprep.subr.mxu0 0.0
        %2403 = vmatpush2.msra.mxu0 0.0
        %2404 = vmatprep.subr.mxu0 0.0
        %2405 = vmatpush2.msra.mxu0 0.0
        %2406 = vmatprep.subr.mxu0 0.0
        %2407 = vmatpush2.msra.mxu0 0.0
        %2408 = vmatprep.subr.mxu0 0.0
        %2409 = vmatpush2.msra.mxu0 0.0
        %2410 = vmatprep.subr.mxu0 0.0
        %2411 = vmatpush2.msra.mxu0 0.0
        %2412 = vmatprep.subr.mxu0 0.0
        %2413 = vmatpush2.msra.mxu0 0.0
        %2414 = vmatprep.subr.mxu0 0.0
        %2415 = vmatpush2.msra.mxu0 0.0
        %2416 = vmatprep.subr.mxu0 0.0
        %2417 = vmatpush2.msra.mxu0 0.0
        %2418 = vmatprep.subr.mxu0 0.0
        %2419 = vmatpush2.msra.mxu0 0.0
        %2420 = vmatprep.subr.mxu0 0.0
        %2421 = vmatpush2.msra.mxu0 0.0
        %2422 = vmatprep.subr.mxu0 0.0
        %2423 = vmatpush2.msra.mxu0 0.0
        %2424 = vmatprep.subr.mxu0 0.0
        %2425 = vmatpush2.msra.mxu0 0.0
        %2426 = vmatprep.mubr.f32.mxu0 0.0
        %v2427 = vand.u32 %v2261, 4294901760
        %2428 = vmatmul.mubr.f32.gmra.mxu0 %v2427
        %v2429 = vpop.f32.mrf.mxu0
        %v2430 = vadd.f32 %v2339, %v2429
        %v2431 = vpop.f32.mrf.mxu0
        %2432 = vdwg.mxu0
        %2433 = vmatprep.subr.mxu0 0.0
        %2434 = vmatpush1.msra.mxu0 0.0
        %2435 = vmatprep.subr.mxu0 0.0
        %2436 = vmatpush1.msra.mxu0 0.0
        %2437 = vmatprep.subr.mxu0 0.0
        %2438 = vmatpush1.msra.mxu0 0.0
        %2439 = vmatprep.subr.mxu0 0.0
        %2440 = vmatpush1.msra.mxu0 0.0
        %2441 = vmatprep.subr.mxu0 0.0
        %2442 = vmatpush1.msra.mxu0 0.0
        %2443 = vmatprep.subr.mxu0 0.0
        %2444 = vmatpush1.msra.mxu0 0.0
        %2445 = vmatprep.subr.mxu0 0.0
        %2446 = vmatpush1.msra.mxu0 0.0
        %2447 = vmatprep.subr.mxu0 0.0
        %2448 = vmatpush1.msra.mxu0 0.0
        %2449 = vmatprep.subr.mxu0 0.0
        %2450 = vmatpush1.msra.mxu0 0.0
        %2451 = vmatprep.subr.mxu0 0.0
        %2452 = vmatpush1.msra.mxu0 0.0
        %2453 = vmatprep.subr.mxu0 0.0
        %2454 = vmatpush1.msra.mxu0 0.0
        %2455 = vmatprep.subr.mxu0 0.0
        %2456 = vmatpush1.msra.mxu0 0.0
        %2457 = vmatprep.subr.mxu0 0.0
        %v2458 = vand.u32 %v271, 4294901760
        %v2459 = vsub.f32 %v271, %v2458
        %2460 = vmatpush1.msra.mxu0 %v2459
        %2461 = vmatprep.subr.mxu0 0.0
        %v2462 = vand.u32 %v270, 4294901760
        %v2463 = vsub.f32 %v270, %v2462
        %2464 = vmatpush1.msra.mxu0 %v2463
        %2465 = vmatprep.subr.mxu0 0.0
        %v2466 = vand.u32 %v269, 4294901760
        %v2467 = vsub.f32 %v269, %v2466
        %2468 = vmatpush1.msra.mxu0 %v2467
        %2469 = vmatprep.subr.mxu0 0.0
        %v2470 = vand.u32 %v268, 4294901760
        %v2471 = vsub.f32 %v268, %v2470
        %2472 = vmatpush1.msra.mxu0 %v2471
        %2473 = vmatprep.subr.mxu0 0.0
        %2474 = vmatpush2.msra.mxu0 0.0
        %2475 = vmatprep.subr.mxu0 0.0
        %2476 = vmatpush2.msra.mxu0 0.0
        %2477 = vmatprep.subr.mxu0 0.0
        %2478 = vmatpush2.msra.mxu0 0.0
        %2479 = vmatprep.subr.mxu0 0.0
        %2480 = vmatpush2.msra.mxu0 0.0
        %2481 = vmatprep.subr.mxu0 0.0
        %2482 = vmatpush2.msra.mxu0 0.0
        %2483 = vmatprep.subr.mxu0 0.0
        %2484 = vmatpush2.msra.mxu0 0.0
        %2485 = vmatprep.subr.mxu0 0.0
        %2486 = vmatpush2.msra.mxu0 0.0
        %2487 = vmatprep.subr.mxu0 0.0
        %2488 = vmatpush2.msra.mxu0 0.0
        %2489 = vmatprep.subr.mxu0 0.0
        %2490 = vmatpush2.msra.mxu0 0.0
        %2491 = vmatprep.subr.mxu0 0.0
        %2492 = vmatpush2.msra.mxu0 0.0
        %2493 = vmatprep.subr.mxu0 0.0
        %2494 = vmatpush2.msra.mxu0 0.0
        %2495 = vmatprep.subr.mxu0 0.0
        %2496 = vmatpush2.msra.mxu0 0.0
        %2497 = vmatprep.subr.mxu0 0.0
        %2498 = vmatpush2.msra.mxu0 0.0
        %2499 = vmatprep.subr.mxu0 0.0
        %2500 = vmatpush2.msra.mxu0 0.0
        %2501 = vmatprep.subr.mxu0 0.0
        %2502 = vmatpush2.msra.mxu0 0.0
        %2503 = vmatprep.subr.mxu0 0.0
        %2504 = vmatpush2.msra.mxu0 0.0
        %2505 = vmatprep.mubr.f32.mxu0 0.0
        %v2506 = vand.u32 %v2261, 4294901760
        %v2507 = vsub.f32 %v2261, %v2506
        %2508 = vmatmul.mubr.f32.gmra.mxu0 %v2507
        %v2509 = vpop.f32.mrf.mxu0
        %v2510 = vadd.f32 %v2430, %v2509
        %v2511 = vpop.f32.mrf.mxu0
        %2512 = vdwg.mxu0
        %2513 = vmatprep.subr.mxu0 0.0
        %2514 = vmatpush1.msra.mxu0 0.0
        %2515 = vmatprep.subr.mxu0 0.0
        %2516 = vmatpush1.msra.mxu0 0.0
        %2517 = vmatprep.subr.mxu0 0.0
        %2518 = vmatpush1.msra.mxu0 0.0
        %2519 = vmatprep.subr.mxu0 0.0
        %2520 = vmatpush1.msra.mxu0 0.0
        %2521 = vmatprep.subr.mxu0 0.0
        %2522 = vmatpush1.msra.mxu0 0.0
        %2523 = vmatprep.subr.mxu0 0.0
        %2524 = vmatpush1.msra.mxu0 0.0
        %2525 = vmatprep.subr.mxu0 0.0
        %2526 = vmatpush1.msra.mxu0 0.0
        %2527 = vmatprep.subr.mxu0 0.0
        %2528 = vmatpush1.msra.mxu0 0.0
        %2529 = vmatprep.subr.mxu0 0.0
        %2530 = vmatpush1.msra.mxu0 0.0
        %2531 = vmatprep.subr.mxu0 0.0
        %2532 = vmatpush1.msra.mxu0 0.0
        %2533 = vmatprep.subr.mxu0 0.0
        %2534 = vmatpush1.msra.mxu0 0.0
        %2535 = vmatprep.subr.mxu0 0.0
        %2536 = vmatpush1.msra.mxu0 0.0
        %2537 = vmatprep.subr.mxu0 0.0
        %v2538 = vand.u32 %v271, 4294901760
        %2539 = vmatpush1.msra.mxu0 %v2538
        %2540 = vmatprep.subr.mxu0 0.0
        %v2541 = vand.u32 %v270, 4294901760
        %2542 = vmatpush1.msra.mxu0 %v2541
        %2543 = vmatprep.subr.mxu0 0.0
        %v2544 = vand.u32 %v269, 4294901760
        %2545 = vmatpush1.msra.mxu0 %v2544
        %2546 = vmatprep.subr.mxu0 0.0
        %v2547 = vand.u32 %v268, 4294901760
        %2548 = vmatpush1.msra.mxu0 %v2547
        %2549 = vmatprep.subr.mxu0 0.0
        %2550 = vmatpush2.msra.mxu0 0.0
        %2551 = vmatprep.subr.mxu0 0.0
        %2552 = vmatpush2.msra.mxu0 0.0
        %2553 = vmatprep.subr.mxu0 0.0
        %2554 = vmatpush2.msra.mxu0 0.0
        %2555 = vmatprep.subr.mxu0 0.0
        %2556 = vmatpush2.msra.mxu0 0.0
        %2557 = vmatprep.subr.mxu0 0.0
        %2558 = vmatpush2.msra.mxu0 0.0
        %2559 = vmatprep.subr.mxu0 0.0
        %2560 = vmatpush2.msra.mxu0 0.0
        %2561 = vmatprep.subr.mxu0 0.0
        %2562 = vmatpush2.msra.mxu0 0.0
        %2563 = vmatprep.subr.mxu0 0.0
        %2564 = vmatpush2.msra.mxu0 0.0
        %2565 = vmatprep.subr.mxu0 0.0
        %2566 = vmatpush2.msra.mxu0 0.0
        %2567 = vmatprep.subr.mxu0 0.0
        %2568 = vmatpush2.msra.mxu0 0.0
        %2569 = vmatprep.subr.mxu0 0.0
        %2570 = vmatpush2.msra.mxu0 0.0
        %2571 = vmatprep.subr.mxu0 0.0
        %2572 = vmatpush2.msra.mxu0 0.0
        %2573 = vmatprep.subr.mxu0 0.0
        %2574 = vmatpush2.msra.mxu0 0.0
        %2575 = vmatprep.subr.mxu0 0.0
        %2576 = vmatpush2.msra.mxu0 0.0
        %2577 = vmatprep.subr.mxu0 0.0
        %2578 = vmatpush2.msra.mxu0 0.0
        %2579 = vmatprep.subr.mxu0 0.0
        %2580 = vmatpush2.msra.mxu0 0.0
        %2581 = vmatprep.mubr.f32.mxu0 0.0
        %v2582 = vand.u32 %v2261, 4294901760
        %v2583 = vsub.f32 %v2261, %v2582
        %v2584 = vand.u32 %v2583, 4294901760
        %2585 = vmatmul.mubr.f32.gmra.mxu0 %v2584
        %v2586 = vpop.f32.mrf.mxu0
        %v2587 = vadd.f32 %v2510, %v2586
        %v2588 = vpop.f32.mrf.mxu0
        %2589 = vdwg.mxu0
        %2590 = vmatprep.subr.mxu0 0.0
        %2591 = vmatpush1.msra.mxu0 0.0
        %2592 = vmatprep.subr.mxu0 0.0
        %2593 = vmatpush1.msra.mxu0 0.0
        %2594 = vmatprep.subr.mxu0 0.0
        %2595 = vmatpush1.msra.mxu0 0.0
        %2596 = vmatprep.subr.mxu0 0.0
        %2597 = vmatpush1.msra.mxu0 0.0
        %2598 = vmatprep.subr.mxu0 0.0
        %2599 = vmatpush1.msra.mxu0 0.0
        %2600 = vmatprep.subr.mxu0 0.0
        %2601 = vmatpush1.msra.mxu0 0.0
        %2602 = vmatprep.subr.mxu0 0.0
        %2603 = vmatpush1.msra.mxu0 0.0
        %2604 = vmatprep.subr.mxu0 0.0
        %2605 = vmatpush1.msra.mxu0 0.0
        %2606 = vmatprep.subr.mxu0 0.0
        %2607 = vmatpush1.msra.mxu0 0.0
        %2608 = vmatprep.subr.mxu0 0.0
        %2609 = vmatpush1.msra.mxu0 0.0
        %2610 = vmatprep.subr.mxu0 0.0
        %2611 = vmatpush1.msra.mxu0 0.0
        %2612 = vmatprep.subr.mxu0 0.0
        %2613 = vmatpush1.msra.mxu0 0.0
        %2614 = vmatprep.subr.mxu0 0.0
        %v2615 = vand.u32 %v271, 4294901760
        %v2616 = vsub.f32 %v271, %v2615
        %v2617 = vand.u32 %v2616, 4294901760
        %2618 = vmatpush1.msra.mxu0 %v2617
        %2619 = vmatprep.subr.mxu0 0.0
        %v2620 = vand.u32 %v270, 4294901760
        %v2621 = vsub.f32 %v270, %v2620
        %v2622 = vand.u32 %v2621, 4294901760
        %2623 = vmatpush1.msra.mxu0 %v2622
        %2624 = vmatprep.subr.mxu0 0.0
        %v2625 = vand.u32 %v269, 4294901760
        %v2626 = vsub.f32 %v269, %v2625
        %v2627 = vand.u32 %v2626, 4294901760
        %2628 = vmatpush1.msra.mxu0 %v2627
        %2629 = vmatprep.subr.mxu0 0.0
        %v2630 = vand.u32 %v268, 4294901760
        %v2631 = vsub.f32 %v268, %v2630
        %v2632 = vand.u32 %v2631, 4294901760
        %2633 = vmatpush1.msra.mxu0 %v2632
        %2634 = vmatprep.subr.mxu0 0.0
        %2635 = vmatpush2.msra.mxu0 0.0
        %2636 = vmatprep.subr.mxu0 0.0
        %2637 = vmatpush2.msra.mxu0 0.0
        %2638 = vmatprep.subr.mxu0 0.0
        %2639 = vmatpush2.msra.mxu0 0.0
        %2640 = vmatprep.subr.mxu0 0.0
        %2641 = vmatpush2.msra.mxu0 0.0
        %2642 = vmatprep.subr.mxu0 0.0
        %2643 = vmatpush2.msra.mxu0 0.0
        %2644 = vmatprep.subr.mxu0 0.0
        %2645 = vmatpush2.msra.mxu0 0.0
        %2646 = vmatprep.subr.mxu0 0.0
        %2647 = vmatpush2.msra.mxu0 0.0
        %2648 = vmatprep.subr.mxu0 0.0
        %2649 = vmatpush2.msra.mxu0 0.0
        %2650 = vmatprep.subr.mxu0 0.0
        %2651 = vmatpush2.msra.mxu0 0.0
        %2652 = vmatprep.subr.mxu0 0.0
        %2653 = vmatpush2.msra.mxu0 0.0
        %2654 = vmatprep.subr.mxu0 0.0
        %2655 = vmatpush2.msra.mxu0 0.0
        %2656 = vmatprep.subr.mxu0 0.0
        %2657 = vmatpush2.msra.mxu0 0.0
        %2658 = vmatprep.subr.mxu0 0.0
        %2659 = vmatpush2.msra.mxu0 0.0
        %2660 = vmatprep.subr.mxu0 0.0
        %2661 = vmatpush2.msra.mxu0 0.0
        %2662 = vmatprep.subr.mxu0 0.0
        %2663 = vmatpush2.msra.mxu0 0.0
        %2664 = vmatprep.subr.mxu0 0.0
        %2665 = vmatpush2.msra.mxu0 0.0
        %2666 = vmatprep.mubr.f32.mxu0 0.0
        %v2667 = vand.u32 %v2261, 4294901760
        %2668 = vmatmul.mubr.f32.gmra.mxu0 %v2667
        %v2669 = vpop.f32.mrf.mxu0
        %v2670 = vadd.f32 %v2587, %v2669
        %v2671 = vpop.f32.mrf.mxu0
        %2672 = vdwg.mxu0
        %2673 = vmatprep.subr.mxu0 0.0
        %2674 = vmatpush1.msra.mxu0 0.0
        %2675 = vmatprep.subr.mxu0 0.0
        %2676 = vmatpush1.msra.mxu0 0.0
        %2677 = vmatprep.subr.mxu0 0.0
        %2678 = vmatpush1.msra.mxu0 0.0
        %2679 = vmatprep.subr.mxu0 0.0
        %2680 = vmatpush1.msra.mxu0 0.0
        %2681 = vmatprep.subr.mxu0 0.0
        %2682 = vmatpush1.msra.mxu0 0.0
        %2683 = vmatprep.subr.mxu0 0.0
        %2684 = vmatpush1.msra.mxu0 0.0
        %2685 = vmatprep.subr.mxu0 0.0
        %2686 = vmatpush1.msra.mxu0 0.0
        %2687 = vmatprep.subr.mxu0 0.0
        %2688 = vmatpush1.msra.mxu0 0.0
        %2689 = vmatprep.subr.mxu0 0.0
        %2690 = vmatpush1.msra.mxu0 0.0
        %2691 = vmatprep.subr.mxu0 0.0
        %2692 = vmatpush1.msra.mxu0 0.0
        %2693 = vmatprep.subr.mxu0 0.0
        %2694 = vmatpush1.msra.mxu0 0.0
        %2695 = vmatprep.subr.mxu0 0.0
        %2696 = vmatpush1.msra.mxu0 0.0
        %2697 = vmatprep.subr.mxu0 0.0
        %v2698 = vand.u32 %v271, 4294901760
        %2699 = vmatpush1.msra.mxu0 %v2698
        %2700 = vmatprep.subr.mxu0 0.0
        %v2701 = vand.u32 %v270, 4294901760
        %2702 = vmatpush1.msra.mxu0 %v2701
        %2703 = vmatprep.subr.mxu0 0.0
        %v2704 = vand.u32 %v269, 4294901760
        %2705 = vmatpush1.msra.mxu0 %v2704
        %2706 = vmatprep.subr.mxu0 0.0
        %v2707 = vand.u32 %v268, 4294901760
        %2708 = vmatpush1.msra.mxu0 %v2707
        %2709 = vmatprep.subr.mxu0 0.0
        %2710 = vmatpush2.msra.mxu0 0.0
        %2711 = vmatprep.subr.mxu0 0.0
        %2712 = vmatpush2.msra.mxu0 0.0
        %2713 = vmatprep.subr.mxu0 0.0
        %2714 = vmatpush2.msra.mxu0 0.0
        %2715 = vmatprep.subr.mxu0 0.0
        %2716 = vmatpush2.msra.mxu0 0.0
        %2717 = vmatprep.subr.mxu0 0.0
        %2718 = vmatpush2.msra.mxu0 0.0
        %2719 = vmatprep.subr.mxu0 0.0
        %2720 = vmatpush2.msra.mxu0 0.0
        %2721 = vmatprep.subr.mxu0 0.0
        %2722 = vmatpush2.msra.mxu0 0.0
        %2723 = vmatprep.subr.mxu0 0.0
        %2724 = vmatpush2.msra.mxu0 0.0
        %2725 = vmatprep.subr.mxu0 0.0
        %2726 = vmatpush2.msra.mxu0 0.0
        %2727 = vmatprep.subr.mxu0 0.0
        %2728 = vmatpush2.msra.mxu0 0.0
        %2729 = vmatprep.subr.mxu0 0.0
        %2730 = vmatpush2.msra.mxu0 0.0
        %2731 = vmatprep.subr.mxu0 0.0
        %2732 = vmatpush2.msra.mxu0 0.0
        %2733 = vmatprep.subr.mxu0 0.0
        %2734 = vmatpush2.msra.mxu0 0.0
        %2735 = vmatprep.subr.mxu0 0.0
        %2736 = vmatpush2.msra.mxu0 0.0
        %2737 = vmatprep.subr.mxu0 0.0
        %2738 = vmatpush2.msra.mxu0 0.0
        %2739 = vmatprep.subr.mxu0 0.0
        %2740 = vmatpush2.msra.mxu0 0.0
        %2741 = vmatprep.mubr.f32.mxu0 0.0
        %v2742 = vand.u32 %v2261, 4294901760
        %2743 = vmatmul.mubr.f32.gmra.mxu0 %v2742
        %v2744 = vpop.f32.mrf.mxu0
        %v2745 = vadd.f32 %v2670, %v2744
        %v2746 = vpop.f32.mrf.mxu0
        %2747 = vdwg.mxu0
        %v2748 = vmax.f32 %v2251, %v2745
        %s2749 = scalar_lea.vmem %s236, 40 [#allocation2]
        %v2750 = vld [vmem:[%s2749] sm:$0xff]
        %2751 = vset.pattern.permute.xlu0 0
        %2752 = vperm.xlu0 %2751, %v2750
        %v2753 = vpop.permute.xlu0 %2752
        %vm2754 = vcmp.eq.s32.totalorder %v2753, %v260
        %v2755 = vsel %vm2754, 1, 0
        %v2756 = vcvt.s32.f32 %v2755
        %v2758 = vsel %vm272, %v2756, 0
        %2760 = vmatprep.subr.mxu0 0.0
        %2761 = vmatpush1.msra.mxu0 0.0
        %2762 = vmatprep.subr.mxu0 0.0
        %2763 = vmatpush1.msra.mxu0 0.0
        %2764 = vmatprep.subr.mxu0 0.0
        %2765 = vmatpush1.msra.mxu0 0.0
        %2766 = vmatprep.subr.mxu0 0.0
        %2767 = vmatpush1.msra.mxu0 0.0
        %2768 = vmatprep.subr.mxu0 0.0
        %2769 = vmatpush1.msra.mxu0 0.0
        %2770 = vmatprep.subr.mxu0 0.0
        %2771 = vmatpush1.msra.mxu0 0.0
        %2772 = vmatprep.subr.mxu0 0.0
        %2773 = vmatpush1.msra.mxu0 0.0
        %2774 = vmatprep.subr.mxu0 0.0
        %2775 = vmatpush1.msra.mxu0 0.0
        %2776 = vmatprep.subr.mxu0 0.0
        %2777 = vmatpush1.msra.mxu0 0.0
        %2778 = vmatprep.subr.mxu0 0.0
        %2779 = vmatpush1.msra.mxu0 0.0
        %2780 = vmatprep.subr.mxu0 0.0
        %2781 = vmatpush1.msra.mxu0 0.0
        %2782 = vmatprep.subr.mxu0 0.0
        %2783 = vmatpush1.msra.mxu0 0.0
        %2784 = vmatprep.subr.mxu0 0.0
        %v2785 = vand.u32 %v271, 4294901760
        %2786 = vmatpush1.msra.mxu0 %v2785
        %2787 = vmatprep.subr.mxu0 0.0
        %v2788 = vand.u32 %v270, 4294901760
        %2789 = vmatpush1.msra.mxu0 %v2788
        %2790 = vmatprep.subr.mxu0 0.0
        %v2791 = vand.u32 %v269, 4294901760
        %2792 = vmatpush1.msra.mxu0 %v2791
        %2793 = vmatprep.subr.mxu0 0.0
        %v2794 = vand.u32 %v268, 4294901760
        %2795 = vmatpush1.msra.mxu0 %v2794
        %2796 = vmatprep.subr.mxu0 0.0
        %2797 = vmatpush2.msra.mxu0 0.0
        %2798 = vmatprep.subr.mxu0 0.0
        %2799 = vmatpush2.msra.mxu0 0.0
        %2800 = vmatprep.subr.mxu0 0.0
        %2801 = vmatpush2.msra.mxu0 0.0
        %2802 = vmatprep.subr.mxu0 0.0
        %2803 = vmatpush2.msra.mxu0 0.0
        %2804 = vmatprep.subr.mxu0 0.0
        %2805 = vmatpush2.msra.mxu0 0.0
        %2806 = vmatprep.subr.mxu0 0.0
        %2807 = vmatpush2.msra.mxu0 0.0
        %2808 = vmatprep.subr.mxu0 0.0
        %2809 = vmatpush2.msra.mxu0 0.0
        %2810 = vmatprep.subr.mxu0 0.0
        %2811 = vmatpush2.msra.mxu0 0.0
        %2812 = vmatprep.subr.mxu0 0.0
        %2813 = vmatpush2.msra.mxu0 0.0
        %2814 = vmatprep.subr.mxu0 0.0
        %2815 = vmatpush2.msra.mxu0 0.0
        %2816 = vmatprep.subr.mxu0 0.0
        %2817 = vmatpush2.msra.mxu0 0.0
        %2818 = vmatprep.subr.mxu0 0.0
        %2819 = vmatpush2.msra.mxu0 0.0
        %2820 = vmatprep.subr.mxu0 0.0
        %2821 = vmatpush2.msra.mxu0 0.0
        %2822 = vmatprep.subr.mxu0 0.0
        %2823 = vmatpush2.msra.mxu0 0.0
        %2824 = vmatprep.subr.mxu0 0.0
        %2825 = vmatpush2.msra.mxu0 0.0
        %2826 = vmatprep.subr.mxu0 0.0
        %2827 = vmatpush2.msra.mxu0 0.0
        %2828 = vmatprep.mubr.f32.mxu0 0.0
        %v2829 = vand.u32 %v2758, 4294901760
        %v2830 = vsub.f32 %v2758, %v2829
        %v2831 = vand.u32 %v2830, 4294901760
        %v2832 = vsub.f32 %v2830, %v2831
        %v2833 = vand.u32 %v2832, 4294901760
        %2834 = vmatmul.mubr.f32.gmra.mxu0 %v2833
        %v2835 = vpop.f32.mrf.mxu0
        %v2836 = vadd.f32 0.0, %v2835
        %v2837 = vpop.f32.mrf.mxu0
        %2838 = vdwg.mxu0
        %2839 = vmatprep.subr.mxu0 0.0
        %2840 = vmatpush1.msra.mxu0 0.0
        %2841 = vmatprep.subr.mxu0 0.0
        %2842 = vmatpush1.msra.mxu0 0.0
        %2843 = vmatprep.subr.mxu0 0.0
        %2844 = vmatpush1.msra.mxu0 0.0
        %2845 = vmatprep.subr.mxu0 0.0
        %2846 = vmatpush1.msra.mxu0 0.0
        %2847 = vmatprep.subr.mxu0 0.0
        %2848 = vmatpush1.msra.mxu0 0.0
        %2849 = vmatprep.subr.mxu0 0.0
        %2850 = vmatpush1.msra.mxu0 0.0
        %2851 = vmatprep.subr.mxu0 0.0
        %2852 = vmatpush1.msra.mxu0 0.0
        %2853 = vmatprep.subr.mxu0 0.0
        %2854 = vmatpush1.msra.mxu0 0.0
        %2855 = vmatprep.subr.mxu0 0.0
        %2856 = vmatpush1.msra.mxu0 0.0
        %2857 = vmatprep.subr.mxu0 0.0
        %2858 = vmatpush1.msra.mxu0 0.0
        %2859 = vmatprep.subr.mxu0 0.0
        %2860 = vmatpush1.msra.mxu0 0.0
        %2861 = vmatprep.subr.mxu0 0.0
        %2862 = vmatpush1.msra.mxu0 0.0
        %2863 = vmatprep.subr.mxu0 0.0
        %v2864 = vand.u32 %v271, 4294901760
        %v2865 = vsub.f32 %v271, %v2864
        %v2866 = vand.u32 %v2865, 4294901760
        %v2867 = vsub.f32 %v2865, %v2866
        %v2868 = vand.u32 %v2867, 4294901760
        %2869 = vmatpush1.msra.mxu0 %v2868
        %2870 = vmatprep.subr.mxu0 0.0
        %v2871 = vand.u32 %v270, 4294901760
        %v2872 = vsub.f32 %v270, %v2871
        %v2873 = vand.u32 %v2872, 4294901760
        %v2874 = vsub.f32 %v2872, %v2873
        %v2875 = vand.u32 %v2874, 4294901760
        %2876 = vmatpush1.msra.mxu0 %v2875
        %2877 = vmatprep.subr.mxu0 0.0
        %v2878 = vand.u32 %v269, 4294901760
        %v2879 = vsub.f32 %v269, %v2878
        %v2880 = vand.u32 %v2879, 4294901760
        %v2881 = vsub.f32 %v2879, %v2880
        %v2882 = vand.u32 %v2881, 4294901760
        %2883 = vmatpush1.msra.mxu0 %v2882
        %2884 = vmatprep.subr.mxu0 0.0
        %v2885 = vand.u32 %v268, 4294901760
        %v2886 = vsub.f32 %v268, %v2885
        %v2887 = vand.u32 %v2886, 4294901760
        %v2888 = vsub.f32 %v2886, %v2887
        %v2889 = vand.u32 %v2888, 4294901760
        %2890 = vmatpush1.msra.mxu0 %v2889
        %2891 = vmatprep.subr.mxu0 0.0
        %2892 = vmatpush2.msra.mxu0 0.0
        %2893 = vmatprep.subr.mxu0 0.0
        %2894 = vmatpush2.msra.mxu0 0.0
        %2895 = vmatprep.subr.mxu0 0.0
        %2896 = vmatpush2.msra.mxu0 0.0
        %2897 = vmatprep.subr.mxu0 0.0
        %2898 = vmatpush2.msra.mxu0 0.0
        %2899 = vmatprep.subr.mxu0 0.0
        %2900 = vmatpush2.msra.mxu0 0.0
        %2901 = vmatprep.subr.mxu0 0.0
        %2902 = vmatpush2.msra.mxu0 0.0
        %2903 = vmatprep.subr.mxu0 0.0
        %2904 = vmatpush2.msra.mxu0 0.0
        %2905 = vmatprep.subr.mxu0 0.0
        %2906 = vmatpush2.msra.mxu0 0.0
        %2907 = vmatprep.subr.mxu0 0.0
        %2908 = vmatpush2.msra.mxu0 0.0
        %2909 = vmatprep.subr.mxu0 0.0
        %2910 = vmatpush2.msra.mxu0 0.0
        %2911 = vmatprep.subr.mxu0 0.0
        %2912 = vmatpush2.msra.mxu0 0.0
        %2913 = vmatprep.subr.mxu0 0.0
        %2914 = vmatpush2.msra.mxu0 0.0
        %2915 = vmatprep.subr.mxu0 0.0
        %2916 = vmatpush2.msra.mxu0 0.0
        %2917 = vmatprep.subr.mxu0 0.0
        %2918 = vmatpush2.msra.mxu0 0.0
        %2919 = vmatprep.subr.mxu0 0.0
        %2920 = vmatpush2.msra.mxu0 0.0
        %2921 = vmatprep.subr.mxu0 0.0
        %2922 = vmatpush2.msra.mxu0 0.0
        %2923 = vmatprep.mubr.f32.mxu0 0.0
        %v2924 = vand.u32 %v2758, 4294901760
        %2925 = vmatmul.mubr.f32.gmra.mxu0 %v2924
        %v2926 = vpop.f32.mrf.mxu0
        %v2927 = vadd.f32 %v2836, %v2926
        %v2928 = vpop.f32.mrf.mxu0
        %2929 = vdwg.mxu0
        %2930 = vmatprep.subr.mxu0 0.0
        %2931 = vmatpush1.msra.mxu0 0.0
        %2932 = vmatprep.subr.mxu0 0.0
        %2933 = vmatpush1.msra.mxu0 0.0
        %2934 = vmatprep.subr.mxu0 0.0
        %2935 = vmatpush1.msra.mxu0 0.0
        %2936 = vmatprep.subr.mxu0 0.0
        %2937 = vmatpush1.msra.mxu0 0.0
        %2938 = vmatprep.subr.mxu0 0.0
        %2939 = vmatpush1.msra.mxu0 0.0
        %2940 = vmatprep.subr.mxu0 0.0
        %2941 = vmatpush1.msra.mxu0 0.0
        %2942 = vmatprep.subr.mxu0 0.0
        %2943 = vmatpush1.msra.mxu0 0.0
        %2944 = vmatprep.subr.mxu0 0.0
        %2945 = vmatpush1.msra.mxu0 0.0
        %2946 = vmatprep.subr.mxu0 0.0
        %2947 = vmatpush1.msra.mxu0 0.0
        %2948 = vmatprep.subr.mxu0 0.0
        %2949 = vmatpush1.msra.mxu0 0.0
        %2950 = vmatprep.subr.mxu0 0.0
        %2951 = vmatpush1.msra.mxu0 0.0
        %2952 = vmatprep.subr.mxu0 0.0
        %2953 = vmatpush1.msra.mxu0 0.0
        %2954 = vmatprep.subr.mxu0 0.0
        %v2955 = vand.u32 %v271, 4294901760
        %v2956 = vsub.f32 %v271, %v2955
        %2957 = vmatpush1.msra.mxu0 %v2956
        %2958 = vmatprep.subr.mxu0 0.0
        %v2959 = vand.u32 %v270, 4294901760
        %v2960 = vsub.f32 %v270, %v2959
        %2961 = vmatpush1.msra.mxu0 %v2960
        %2962 = vmatprep.subr.mxu0 0.0
        %v2963 = vand.u32 %v269, 4294901760
        %v2964 = vsub.f32 %v269, %v2963
        %2965 = vmatpush1.msra.mxu0 %v2964
        %2966 = vmatprep.subr.mxu0 0.0
        %v2967 = vand.u32 %v268, 4294901760
        %v2968 = vsub.f32 %v268, %v2967
        %2969 = vmatpush1.msra.mxu0 %v2968
        %2970 = vmatprep.subr.mxu0 0.0
        %2971 = vmatpush2.msra.mxu0 0.0
        %2972 = vmatprep.subr.mxu0 0.0
        %2973 = vmatpush2.msra.mxu0 0.0
        %2974 = vmatprep.subr.mxu0 0.0
        %2975 = vmatpush2.msra.mxu0 0.0
        %2976 = vmatprep.subr.mxu0 0.0
        %2977 = vmatpush2.msra.mxu0 0.0
        %2978 = vmatprep.subr.mxu0 0.0
        %2979 = vmatpush2.msra.mxu0 0.0
        %2980 = vmatprep.subr.mxu0 0.0
        %2981 = vmatpush2.msra.mxu0 0.0
        %2982 = vmatprep.subr.mxu0 0.0
        %2983 = vmatpush2.msra.mxu0 0.0
        %2984 = vmatprep.subr.mxu0 0.0
        %2985 = vmatpush2.msra.mxu0 0.0
        %2986 = vmatprep.subr.mxu0 0.0
        %2987 = vmatpush2.msra.mxu0 0.0
        %2988 = vmatprep.subr.mxu0 0.0
        %2989 = vmatpush2.msra.mxu0 0.0
        %2990 = vmatprep.subr.mxu0 0.0
        %2991 = vmatpush2.msra.mxu0 0.0
        %2992 = vmatprep.subr.mxu0 0.0
        %2993 = vmatpush2.msra.mxu0 0.0
        %2994 = vmatprep.subr.mxu0 0.0
        %2995 = vmatpush2.msra.mxu0 0.0
        %2996 = vmatprep.subr.mxu0 0.0
        %2997 = vmatpush2.msra.mxu0 0.0
        %2998 = vmatprep.subr.mxu0 0.0
        %2999 = vmatpush2.msra.mxu0 0.0
        %3000 = vmatprep.subr.mxu0 0.0
        %3001 = vmatpush2.msra.mxu0 0.0
        %3002 = vmatprep.mubr.f32.mxu0 0.0
        %v3003 = vand.u32 %v2758, 4294901760
        %v3004 = vsub.f32 %v2758, %v3003
        %3005 = vmatmul.mubr.f32.gmra.mxu0 %v3004
        %v3006 = vpop.f32.mrf.mxu0
        %v3007 = vadd.f32 %v2927, %v3006
        %v3008 = vpop.f32.mrf.mxu0
        %3009 = vdwg.mxu0
        %3010 = vmatprep.subr.mxu0 0.0
        %3011 = vmatpush1.msra.mxu0 0.0
        %3012 = vmatprep.subr.mxu0 0.0
        %3013 = vmatpush1.msra.mxu0 0.0
        %3014 = vmatprep.subr.mxu0 0.0
        %3015 = vmatpush1.msra.mxu0 0.0
        %3016 = vmatprep.subr.mxu0 0.0
        %3017 = vmatpush1.msra.mxu0 0.0
        %3018 = vmatprep.subr.mxu0 0.0
        %3019 = vmatpush1.msra.mxu0 0.0
        %3020 = vmatprep.subr.mxu0 0.0
        %3021 = vmatpush1.msra.mxu0 0.0
        %3022 = vmatprep.subr.mxu0 0.0
        %3023 = vmatpush1.msra.mxu0 0.0
        %3024 = vmatprep.subr.mxu0 0.0
        %3025 = vmatpush1.msra.mxu0 0.0
        %3026 = vmatprep.subr.mxu0 0.0
        %3027 = vmatpush1.msra.mxu0 0.0
        %3028 = vmatprep.subr.mxu0 0.0
        %3029 = vmatpush1.msra.mxu0 0.0
        %3030 = vmatprep.subr.mxu0 0.0
        %3031 = vmatpush1.msra.mxu0 0.0
        %3032 = vmatprep.subr.mxu0 0.0
        %3033 = vmatpush1.msra.mxu0 0.0
        %3034 = vmatprep.subr.mxu0 0.0
        %v3035 = vand.u32 %v271, 4294901760
        %3036 = vmatpush1.msra.mxu0 %v3035
        %3037 = vmatprep.subr.mxu0 0.0
        %v3038 = vand.u32 %v270, 4294901760
        %3039 = vmatpush1.msra.mxu0 %v3038
        %3040 = vmatprep.subr.mxu0 0.0
        %v3041 = vand.u32 %v269, 4294901760
        %3042 = vmatpush1.msra.mxu0 %v3041
        %3043 = vmatprep.subr.mxu0 0.0
        %v3044 = vand.u32 %v268, 4294901760
        %3045 = vmatpush1.msra.mxu0 %v3044
        %3046 = vmatprep.subr.mxu0 0.0
        %3047 = vmatpush2.msra.mxu0 0.0
        %3048 = vmatprep.subr.mxu0 0.0
        %3049 = vmatpush2.msra.mxu0 0.0
        %3050 = vmatprep.subr.mxu0 0.0
        %3051 = vmatpush2.msra.mxu0 0.0
        %3052 = vmatprep.subr.mxu0 0.0
        %3053 = vmatpush2.msra.mxu0 0.0
        %3054 = vmatprep.subr.mxu0 0.0
        %3055 = vmatpush2.msra.mxu0 0.0
        %3056 = vmatprep.subr.mxu0 0.0
        %3057 = vmatpush2.msra.mxu0 0.0
        %3058 = vmatprep.subr.mxu0 0.0
        %3059 = vmatpush2.msra.mxu0 0.0
        %3060 = vmatprep.subr.mxu0 0.0
        %3061 = vmatpush2.msra.mxu0 0.0
        %3062 = vmatprep.subr.mxu0 0.0
        %3063 = vmatpush2.msra.mxu0 0.0
        %3064 = vmatprep.subr.mxu0 0.0
        %3065 = vmatpush2.msra.mxu0 0.0
        %3066 = vmatprep.subr.mxu0 0.0
        %3067 = vmatpush2.msra.mxu0 0.0
        %3068 = vmatprep.subr.mxu0 0.0
        %3069 = vmatpush2.msra.mxu0 0.0
        %3070 = vmatprep.subr.mxu0 0.0
        %3071 = vmatpush2.msra.mxu0 0.0
        %3072 = vmatprep.subr.mxu0 0.0
        %3073 = vmatpush2.msra.mxu0 0.0
        %3074 = vmatprep.subr.mxu0 0.0
        %3075 = vmatpush2.msra.mxu0 0.0
        %3076 = vmatprep.subr.mxu0 0.0
        %3077 = vmatpush2.msra.mxu0 0.0
        %3078 = vmatprep.mubr.f32.mxu0 0.0
        %v3079 = vand.u32 %v2758, 4294901760
        %v3080 = vsub.f32 %v2758, %v3079
        %v3081 = vand.u32 %v3080, 4294901760
        %3082 = vmatmul.mubr.f32.gmra.mxu0 %v3081
        %v3083 = vpop.f32.mrf.mxu0
        %v3084 = vadd.f32 %v3007, %v3083
        %v3085 = vpop.f32.mrf.mxu0
        %3086 = vdwg.mxu0
        %3087 = vmatprep.subr.mxu0 0.0
        %3088 = vmatpush1.msra.mxu0 0.0
        %3089 = vmatprep.subr.mxu0 0.0
        %3090 = vmatpush1.msra.mxu0 0.0
        %3091 = vmatprep.subr.mxu0 0.0
        %3092 = vmatpush1.msra.mxu0 0.0
        %3093 = vmatprep.subr.mxu0 0.0
        %3094 = vmatpush1.msra.mxu0 0.0
        %3095 = vmatprep.subr.mxu0 0.0
        %3096 = vmatpush1.msra.mxu0 0.0
        %3097 = vmatprep.subr.mxu0 0.0
        %3098 = vmatpush1.msra.mxu0 0.0
        %3099 = vmatprep.subr.mxu0 0.0
        %3100 = vmatpush1.msra.mxu0 0.0
        %3101 = vmatprep.subr.mxu0 0.0
        %3102 = vmatpush1.msra.mxu0 0.0
        %3103 = vmatprep.subr.mxu0 0.0
        %3104 = vmatpush1.msra.mxu0 0.0
        %3105 = vmatprep.subr.mxu0 0.0
        %3106 = vmatpush1.msra.mxu0 0.0
        %3107 = vmatprep.subr.mxu0 0.0
        %3108 = vmatpush1.msra.mxu0 0.0
        %3109 = vmatprep.subr.mxu0 0.0
        %3110 = vmatpush1.msra.mxu0 0.0
        %3111 = vmatprep.subr.mxu0 0.0
        %v3112 = vand.u32 %v271, 4294901760
        %v3113 = vsub.f32 %v271, %v3112
        %v3114 = vand.u32 %v3113, 4294901760
        %3115 = vmatpush1.msra.mxu0 %v3114
        %3116 = vmatprep.subr.mxu0 0.0
        %v3117 = vand.u32 %v270, 4294901760
        %v3118 = vsub.f32 %v270, %v3117
        %v3119 = vand.u32 %v3118, 4294901760
        %3120 = vmatpush1.msra.mxu0 %v3119
        %3121 = vmatprep.subr.mxu0 0.0
        %v3122 = vand.u32 %v269, 4294901760
        %v3123 = vsub.f32 %v269, %v3122
        %v3124 = vand.u32 %v3123, 4294901760
        %3125 = vmatpush1.msra.mxu0 %v3124
        %3126 = vmatprep.subr.mxu0 0.0
        %v3127 = vand.u32 %v268, 4294901760
        %v3128 = vsub.f32 %v268, %v3127
        %v3129 = vand.u32 %v3128, 4294901760
        %3130 = vmatpush1.msra.mxu0 %v3129
        %3131 = vmatprep.subr.mxu0 0.0
        %3132 = vmatpush2.msra.mxu0 0.0
        %3133 = vmatprep.subr.mxu0 0.0
        %3134 = vmatpush2.msra.mxu0 0.0
        %3135 = vmatprep.subr.mxu0 0.0
        %3136 = vmatpush2.msra.mxu0 0.0
        %3137 = vmatprep.subr.mxu0 0.0
        %3138 = vmatpush2.msra.mxu0 0.0
        %3139 = vmatprep.subr.mxu0 0.0
        %3140 = vmatpush2.msra.mxu0 0.0
        %3141 = vmatprep.subr.mxu0 0.0
        %3142 = vmatpush2.msra.mxu0 0.0
        %3143 = vmatprep.subr.mxu0 0.0
        %3144 = vmatpush2.msra.mxu0 0.0
        %3145 = vmatprep.subr.mxu0 0.0
        %3146 = vmatpush2.msra.mxu0 0.0
        %3147 = vmatprep.subr.mxu0 0.0
        %3148 = vmatpush2.msra.mxu0 0.0
        %3149 = vmatprep.subr.mxu0 0.0
        %3150 = vmatpush2.msra.mxu0 0.0
        %3151 = vmatprep.subr.mxu0 0.0
        %3152 = vmatpush2.msra.mxu0 0.0
        %3153 = vmatprep.subr.mxu0 0.0
        %3154 = vmatpush2.msra.mxu0 0.0
        %3155 = vmatprep.subr.mxu0 0.0
        %3156 = vmatpush2.msra.mxu0 0.0
        %3157 = vmatprep.subr.mxu0 0.0
        %3158 = vmatpush2.msra.mxu0 0.0
        %3159 = vmatprep.subr.mxu0 0.0
        %3160 = vmatpush2.msra.mxu0 0.0
        %3161 = vmatprep.subr.mxu0 0.0
        %3162 = vmatpush2.msra.mxu0 0.0
        %3163 = vmatprep.mubr.f32.mxu0 0.0
        %v3164 = vand.u32 %v2758, 4294901760
        %3165 = vmatmul.mubr.f32.gmra.mxu0 %v3164
        %v3166 = vpop.f32.mrf.mxu0
        %v3167 = vadd.f32 %v3084, %v3166
        %v3168 = vpop.f32.mrf.mxu0
        %3169 = vdwg.mxu0
        %3170 = vmatprep.subr.mxu0 0.0
        %3171 = vmatpush1.msra.mxu0 0.0
        %3172 = vmatprep.subr.mxu0 0.0
        %3173 = vmatpush1.msra.mxu0 0.0
        %3174 = vmatprep.subr.mxu0 0.0
        %3175 = vmatpush1.msra.mxu0 0.0
        %3176 = vmatprep.subr.mxu0 0.0
        %3177 = vmatpush1.msra.mxu0 0.0
        %3178 = vmatprep.subr.mxu0 0.0
        %3179 = vmatpush1.msra.mxu0 0.0
        %3180 = vmatprep.subr.mxu0 0.0
        %3181 = vmatpush1.msra.mxu0 0.0
        %3182 = vmatprep.subr.mxu0 0.0
        %3183 = vmatpush1.msra.mxu0 0.0
        %3184 = vmatprep.subr.mxu0 0.0
        %3185 = vmatpush1.msra.mxu0 0.0
        %3186 = vmatprep.subr.mxu0 0.0
        %3187 = vmatpush1.msra.mxu0 0.0
        %3188 = vmatprep.subr.mxu0 0.0
        %3189 = vmatpush1.msra.mxu0 0.0
        %3190 = vmatprep.subr.mxu0 0.0
        %3191 = vmatpush1.msra.mxu0 0.0
        %3192 = vmatprep.subr.mxu0 0.0
        %3193 = vmatpush1.msra.mxu0 0.0
        %3194 = vmatprep.subr.mxu0 0.0
        %v3195 = vand.u32 %v271, 4294901760
        %3196 = vmatpush1.msra.mxu0 %v3195
        %3197 = vmatprep.subr.mxu0 0.0
        %v3198 = vand.u32 %v270, 4294901760
        %3199 = vmatpush1.msra.mxu0 %v3198
        %3200 = vmatprep.subr.mxu0 0.0
        %v3201 = vand.u32 %v269, 4294901760
        %3202 = vmatpush1.msra.mxu0 %v3201
        %3203 = vmatprep.subr.mxu0 0.0
        %v3204 = vand.u32 %v268, 4294901760
        %3205 = vmatpush1.msra.mxu0 %v3204
        %3206 = vmatprep.subr.mxu0 0.0
        %3207 = vmatpush2.msra.mxu0 0.0
        %3208 = vmatprep.subr.mxu0 0.0
        %3209 = vmatpush2.msra.mxu0 0.0
        %3210 = vmatprep.subr.mxu0 0.0
        %3211 = vmatpush2.msra.mxu0 0.0
        %3212 = vmatprep.subr.mxu0 0.0
        %3213 = vmatpush2.msra.mxu0 0.0
        %3214 = vmatprep.subr.mxu0 0.0
        %3215 = vmatpush2.msra.mxu0 0.0
        %3216 = vmatprep.subr.mxu0 0.0
        %3217 = vmatpush2.msra.mxu0 0.0
        %3218 = vmatprep.subr.mxu0 0.0
        %3219 = vmatpush2.msra.mxu0 0.0
        %3220 = vmatprep.subr.mxu0 0.0
        %3221 = vmatpush2.msra.mxu0 0.0
        %3222 = vmatprep.subr.mxu0 0.0
        %3223 = vmatpush2.msra.mxu0 0.0
        %3224 = vmatprep.subr.mxu0 0.0
        %3225 = vmatpush2.msra.mxu0 0.0
        %3226 = vmatprep.subr.mxu0 0.0
        %3227 = vmatpush2.msra.mxu0 0.0
        %3228 = vmatprep.subr.mxu0 0.0
        %3229 = vmatpush2.msra.mxu0 0.0
        %3230 = vmatprep.subr.mxu0 0.0
        %3231 = vmatpush2.msra.mxu0 0.0
        %3232 = vmatprep.subr.mxu0 0.0
        %3233 = vmatpush2.msra.mxu0 0.0
        %3234 = vmatprep.subr.mxu0 0.0
        %3235 = vmatpush2.msra.mxu0 0.0
        %3236 = vmatprep.subr.mxu0 0.0
        %3237 = vmatpush2.msra.mxu0 0.0
        %3238 = vmatprep.mubr.f32.mxu0 0.0
        %v3239 = vand.u32 %v2758, 4294901760
        %3240 = vmatmul.mubr.f32.gmra.mxu0 %v3239
        %v3241 = vpop.f32.mrf.mxu0
        %v3242 = vadd.f32 %v3167, %v3241
        %v3243 = vpop.f32.mrf.mxu0
        %3244 = vdwg.mxu0
        %v3245 = vmax.f32 %v2748, %v3242
        %s3246 = scalar_lea.vmem %s236, 48 [#allocation2]
        %v3247 = vld [vmem:[%s3246] sm:$0xff]
        %3248 = vset.pattern.permute.xlu0 0
        %3249 = vperm.xlu0 %3248, %v3247
        %v3250 = vpop.permute.xlu0 %3249
        %vm3251 = vcmp.eq.s32.totalorder %v3250, %v260
        %v3252 = vsel %vm3251, 1, 0
        %v3253 = vcvt.s32.f32 %v3252
        %v3255 = vsel %vm272, %v3253, 0
        %3257 = vmatprep.subr.mxu0 0.0
        %3258 = vmatpush1.msra.mxu0 0.0
        %3259 = vmatprep.subr.mxu0 0.0
        %3260 = vmatpush1.msra.mxu0 0.0
        %3261 = vmatprep.subr.mxu0 0.0
        %3262 = vmatpush1.msra.mxu0 0.0
        %3263 = vmatprep.subr.mxu0 0.0
        %3264 = vmatpush1.msra.mxu0 0.0
        %3265 = vmatprep.subr.mxu0 0.0
        %3266 = vmatpush1.msra.mxu0 0.0
        %3267 = vmatprep.subr.mxu0 0.0
        %3268 = vmatpush1.msra.mxu0 0.0
        %3269 = vmatprep.subr.mxu0 0.0
        %3270 = vmatpush1.msra.mxu0 0.0
        %3271 = vmatprep.subr.mxu0 0.0
        %3272 = vmatpush1.msra.mxu0 0.0
        %3273 = vmatprep.subr.mxu0 0.0
        %3274 = vmatpush1.msra.mxu0 0.0
        %3275 = vmatprep.subr.mxu0 0.0
        %3276 = vmatpush1.msra.mxu0 0.0
        %3277 = vmatprep.subr.mxu0 0.0
        %3278 = vmatpush1.msra.mxu0 0.0
        %3279 = vmatprep.subr.mxu0 0.0
        %3280 = vmatpush1.msra.mxu0 0.0
        %3281 = vmatprep.subr.mxu0 0.0
        %v3282 = vand.u32 %v271, 4294901760
        %3283 = vmatpush1.msra.mxu0 %v3282
        %3284 = vmatprep.subr.mxu0 0.0
        %v3285 = vand.u32 %v270, 4294901760
        %3286 = vmatpush1.msra.mxu0 %v3285
        %3287 = vmatprep.subr.mxu0 0.0
        %v3288 = vand.u32 %v269, 4294901760
        %3289 = vmatpush1.msra.mxu0 %v3288
        %3290 = vmatprep.subr.mxu0 0.0
        %v3291 = vand.u32 %v268, 4294901760
        %3292 = vmatpush1.msra.mxu0 %v3291
        %3293 = vmatprep.subr.mxu0 0.0
        %3294 = vmatpush2.msra.mxu0 0.0
        %3295 = vmatprep.subr.mxu0 0.0
        %3296 = vmatpush2.msra.mxu0 0.0
        %3297 = vmatprep.subr.mxu0 0.0
        %3298 = vmatpush2.msra.mxu0 0.0
        %3299 = vmatprep.subr.mxu0 0.0
        %3300 = vmatpush2.msra.mxu0 0.0
        %3301 = vmatprep.subr.mxu0 0.0
        %3302 = vmatpush2.msra.mxu0 0.0
        %3303 = vmatprep.subr.mxu0 0.0
        %3304 = vmatpush2.msra.mxu0 0.0
        %3305 = vmatprep.subr.mxu0 0.0
        %3306 = vmatpush2.msra.mxu0 0.0
        %3307 = vmatprep.subr.mxu0 0.0
        %3308 = vmatpush2.msra.mxu0 0.0
        %3309 = vmatprep.subr.mxu0 0.0
        %3310 = vmatpush2.msra.mxu0 0.0
        %3311 = vmatprep.subr.mxu0 0.0
        %3312 = vmatpush2.msra.mxu0 0.0
        %3313 = vmatprep.subr.mxu0 0.0
        %3314 = vmatpush2.msra.mxu0 0.0
        %3315 = vmatprep.subr.mxu0 0.0
        %3316 = vmatpush2.msra.mxu0 0.0
        %3317 = vmatprep.subr.mxu0 0.0
        %3318 = vmatpush2.msra.mxu0 0.0
        %3319 = vmatprep.subr.mxu0 0.0
        %3320 = vmatpush2.msra.mxu0 0.0
        %3321 = vmatprep.subr.mxu0 0.0
        %3322 = vmatpush2.msra.mxu0 0.0
        %3323 = vmatprep.subr.mxu0 0.0
        %3324 = vmatpush2.msra.mxu0 0.0
        %3325 = vmatprep.mubr.f32.mxu0 0.0
        %v3326 = vand.u32 %v3255, 4294901760
        %v3327 = vsub.f32 %v3255, %v3326
        %v3328 = vand.u32 %v3327, 4294901760
        %v3329 = vsub.f32 %v3327, %v3328
        %v3330 = vand.u32 %v3329, 4294901760
        %3331 = vmatmul.mubr.f32.gmra.mxu0 %v3330
        %v3332 = vpop.f32.mrf.mxu0
        %v3333 = vadd.f32 0.0, %v3332
        %v3334 = vpop.f32.mrf.mxu0
        %3335 = vdwg.mxu0
        %3336 = vmatprep.subr.mxu0 0.0
        %3337 = vmatpush1.msra.mxu0 0.0
        %3338 = vmatprep.subr.mxu0 0.0
        %3339 = vmatpush1.msra.mxu0 0.0
        %3340 = vmatprep.subr.mxu0 0.0
        %3341 = vmatpush1.msra.mxu0 0.0
        %3342 = vmatprep.subr.mxu0 0.0
        %3343 = vmatpush1.msra.mxu0 0.0
        %3344 = vmatprep.subr.mxu0 0.0
        %3345 = vmatpush1.msra.mxu0 0.0
        %3346 = vmatprep.subr.mxu0 0.0
        %3347 = vmatpush1.msra.mxu0 0.0
        %3348 = vmatprep.subr.mxu0 0.0
        %3349 = vmatpush1.msra.mxu0 0.0
        %3350 = vmatprep.subr.mxu0 0.0
        %3351 = vmatpush1.msra.mxu0 0.0
        %3352 = vmatprep.subr.mxu0 0.0
        %3353 = vmatpush1.msra.mxu0 0.0
        %3354 = vmatprep.subr.mxu0 0.0
        %3355 = vmatpush1.msra.mxu0 0.0
        %3356 = vmatprep.subr.mxu0 0.0
        %3357 = vmatpush1.msra.mxu0 0.0
        %3358 = vmatprep.subr.mxu0 0.0
        %3359 = vmatpush1.msra.mxu0 0.0
        %3360 = vmatprep.subr.mxu0 0.0
        %v3361 = vand.u32 %v271, 4294901760
        %v3362 = vsub.f32 %v271, %v3361
        %v3363 = vand.u32 %v3362, 4294901760
        %v3364 = vsub.f32 %v3362, %v3363
        %v3365 = vand.u32 %v3364, 4294901760
        %3366 = vmatpush1.msra.mxu0 %v3365
        %3367 = vmatprep.subr.mxu0 0.0
        %v3368 = vand.u32 %v270, 4294901760
        %v3369 = vsub.f32 %v270, %v3368
        %v3370 = vand.u32 %v3369, 4294901760
        %v3371 = vsub.f32 %v3369, %v3370
        %v3372 = vand.u32 %v3371, 4294901760
        %3373 = vmatpush1.msra.mxu0 %v3372
        %3374 = vmatprep.subr.mxu0 0.0
        %v3375 = vand.u32 %v269, 4294901760
        %v3376 = vsub.f32 %v269, %v3375
        %v3377 = vand.u32 %v3376, 4294901760
        %v3378 = vsub.f32 %v3376, %v3377
        %v3379 = vand.u32 %v3378, 4294901760
        %3380 = vmatpush1.msra.mxu0 %v3379
        %3381 = vmatprep.subr.mxu0 0.0
        %v3382 = vand.u32 %v268, 4294901760
        %v3383 = vsub.f32 %v268, %v3382
        %v3384 = vand.u32 %v3383, 4294901760
        %v3385 = vsub.f32 %v3383, %v3384
        %v3386 = vand.u32 %v3385, 4294901760
        %3387 = vmatpush1.msra.mxu0 %v3386
        %3388 = vmatprep.subr.mxu0 0.0
        %3389 = vmatpush2.msra.mxu0 0.0
        %3390 = vmatprep.subr.mxu0 0.0
        %3391 = vmatpush2.msra.mxu0 0.0
        %3392 = vmatprep.subr.mxu0 0.0
        %3393 = vmatpush2.msra.mxu0 0.0
        %3394 = vmatprep.subr.mxu0 0.0
        %3395 = vmatpush2.msra.mxu0 0.0
        %3396 = vmatprep.subr.mxu0 0.0
        %3397 = vmatpush2.msra.mxu0 0.0
        %3398 = vmatprep.subr.mxu0 0.0
        %3399 = vmatpush2.msra.mxu0 0.0
        %3400 = vmatprep.subr.mxu0 0.0
        %3401 = vmatpush2.msra.mxu0 0.0
        %3402 = vmatprep.subr.mxu0 0.0
        %3403 = vmatpush2.msra.mxu0 0.0
        %3404 = vmatprep.subr.mxu0 0.0
        %3405 = vmatpush2.msra.mxu0 0.0
        %3406 = vmatprep.subr.mxu0 0.0
        %3407 = vmatpush2.msra.mxu0 0.0
        %3408 = vmatprep.subr.mxu0 0.0
        %3409 = vmatpush2.msra.mxu0 0.0
        %3410 = vmatprep.subr.mxu0 0.0
        %3411 = vmatpush2.msra.mxu0 0.0
        %3412 = vmatprep.subr.mxu0 0.0
        %3413 = vmatpush2.msra.mxu0 0.0
        %3414 = vmatprep.subr.mxu0 0.0
        %3415 = vmatpush2.msra.mxu0 0.0
        %3416 = vmatprep.subr.mxu0 0.0
        %3417 = vmatpush2.msra.mxu0 0.0
        %3418 = vmatprep.subr.mxu0 0.0
        %3419 = vmatpush2.msra.mxu0 0.0
        %3420 = vmatprep.mubr.f32.mxu0 0.0
        %v3421 = vand.u32 %v3255, 4294901760
        %3422 = vmatmul.mubr.f32.gmra.mxu0 %v3421
        %v3423 = vpop.f32.mrf.mxu0
        %v3424 = vadd.f32 %v3333, %v3423
        %v3425 = vpop.f32.mrf.mxu0
        %3426 = vdwg.mxu0
        %3427 = vmatprep.subr.mxu0 0.0
        %3428 = vmatpush1.msra.mxu0 0.0
        %3429 = vmatprep.subr.mxu0 0.0
        %3430 = vmatpush1.msra.mxu0 0.0
        %3431 = vmatprep.subr.mxu0 0.0
        %3432 = vmatpush1.msra.mxu0 0.0
        %3433 = vmatprep.subr.mxu0 0.0
        %3434 = vmatpush1.msra.mxu0 0.0
        %3435 = vmatprep.subr.mxu0 0.0
        %3436 = vmatpush1.msra.mxu0 0.0
        %3437 = vmatprep.subr.mxu0 0.0
        %3438 = vmatpush1.msra.mxu0 0.0
        %3439 = vmatprep.subr.mxu0 0.0
        %3440 = vmatpush1.msra.mxu0 0.0
        %3441 = vmatprep.subr.mxu0 0.0
        %3442 = vmatpush1.msra.mxu0 0.0
        %3443 = vmatprep.subr.mxu0 0.0
        %3444 = vmatpush1.msra.mxu0 0.0
        %3445 = vmatprep.subr.mxu0 0.0
        %3446 = vmatpush1.msra.mxu0 0.0
        %3447 = vmatprep.subr.mxu0 0.0
        %3448 = vmatpush1.msra.mxu0 0.0
        %3449 = vmatprep.subr.mxu0 0.0
        %3450 = vmatpush1.msra.mxu0 0.0
        %3451 = vmatprep.subr.mxu0 0.0
        %v3452 = vand.u32 %v271, 4294901760
        %v3453 = vsub.f32 %v271, %v3452
        %3454 = vmatpush1.msra.mxu0 %v3453
        %3455 = vmatprep.subr.mxu0 0.0
        %v3456 = vand.u32 %v270, 4294901760
        %v3457 = vsub.f32 %v270, %v3456
        %3458 = vmatpush1.msra.mxu0 %v3457
        %3459 = vmatprep.subr.mxu0 0.0
        %v3460 = vand.u32 %v269, 4294901760
        %v3461 = vsub.f32 %v269, %v3460
        %3462 = vmatpush1.msra.mxu0 %v3461
        %3463 = vmatprep.subr.mxu0 0.0
        %v3464 = vand.u32 %v268, 4294901760
        %v3465 = vsub.f32 %v268, %v3464
        %3466 = vmatpush1.msra.mxu0 %v3465
        %3467 = vmatprep.subr.mxu0 0.0
        %3468 = vmatpush2.msra.mxu0 0.0
        %3469 = vmatprep.subr.mxu0 0.0
        %3470 = vmatpush2.msra.mxu0 0.0
        %3471 = vmatprep.subr.mxu0 0.0
        %3472 = vmatpush2.msra.mxu0 0.0
        %3473 = vmatprep.subr.mxu0 0.0
        %3474 = vmatpush2.msra.mxu0 0.0
        %3475 = vmatprep.subr.mxu0 0.0
        %3476 = vmatpush2.msra.mxu0 0.0
        %3477 = vmatprep.subr.mxu0 0.0
        %3478 = vmatpush2.msra.mxu0 0.0
        %3479 = vmatprep.subr.mxu0 0.0
        %3480 = vmatpush2.msra.mxu0 0.0
        %3481 = vmatprep.subr.mxu0 0.0
        %3482 = vmatpush2.msra.mxu0 0.0
        %3483 = vmatprep.subr.mxu0 0.0
        %3484 = vmatpush2.msra.mxu0 0.0
        %3485 = vmatprep.subr.mxu0 0.0
        %3486 = vmatpush2.msra.mxu0 0.0
        %3487 = vmatprep.subr.mxu0 0.0
        %3488 = vmatpush2.msra.mxu0 0.0
        %3489 = vmatprep.subr.mxu0 0.0
        %3490 = vmatpush2.msra.mxu0 0.0
        %3491 = vmatprep.subr.mxu0 0.0
        %3492 = vmatpush2.msra.mxu0 0.0
        %3493 = vmatprep.subr.mxu0 0.0
        %3494 = vmatpush2.msra.mxu0 0.0
        %3495 = vmatprep.subr.mxu0 0.0
        %3496 = vmatpush2.msra.mxu0 0.0
        %3497 = vmatprep.subr.mxu0 0.0
        %3498 = vmatpush2.msra.mxu0 0.0
        %3499 = vmatprep.mubr.f32.mxu0 0.0
        %v3500 = vand.u32 %v3255, 4294901760
        %v3501 = vsub.f32 %v3255, %v3500
        %3502 = vmatmul.mubr.f32.gmra.mxu0 %v3501
        %v3503 = vpop.f32.mrf.mxu0
        %v3504 = vadd.f32 %v3424, %v3503
        %v3505 = vpop.f32.mrf.mxu0
        %3506 = vdwg.mxu0
        %3507 = vmatprep.subr.mxu0 0.0
        %3508 = vmatpush1.msra.mxu0 0.0
        %3509 = vmatprep.subr.mxu0 0.0
        %3510 = vmatpush1.msra.mxu0 0.0
        %3511 = vmatprep.subr.mxu0 0.0
        %3512 = vmatpush1.msra.mxu0 0.0
        %3513 = vmatprep.subr.mxu0 0.0
        %3514 = vmatpush1.msra.mxu0 0.0
        %3515 = vmatprep.subr.mxu0 0.0
        %3516 = vmatpush1.msra.mxu0 0.0
        %3517 = vmatprep.subr.mxu0 0.0
        %3518 = vmatpush1.msra.mxu0 0.0
        %3519 = vmatprep.subr.mxu0 0.0
        %3520 = vmatpush1.msra.mxu0 0.0
        %3521 = vmatprep.subr.mxu0 0.0
        %3522 = vmatpush1.msra.mxu0 0.0
        %3523 = vmatprep.subr.mxu0 0.0
        %3524 = vmatpush1.msra.mxu0 0.0
        %3525 = vmatprep.subr.mxu0 0.0
        %3526 = vmatpush1.msra.mxu0 0.0
        %3527 = vmatprep.subr.mxu0 0.0
        %3528 = vmatpush1.msra.mxu0 0.0
        %3529 = vmatprep.subr.mxu0 0.0
        %3530 = vmatpush1.msra.mxu0 0.0
        %3531 = vmatprep.subr.mxu0 0.0
        %v3532 = vand.u32 %v271, 4294901760
        %3533 = vmatpush1.msra.mxu0 %v3532
        %3534 = vmatprep.subr.mxu0 0.0
        %v3535 = vand.u32 %v270, 4294901760
        %3536 = vmatpush1.msra.mxu0 %v3535
        %3537 = vmatprep.subr.mxu0 0.0
        %v3538 = vand.u32 %v269, 4294901760
        %3539 = vmatpush1.msra.mxu0 %v3538
        %3540 = vmatprep.subr.mxu0 0.0
        %v3541 = vand.u32 %v268, 4294901760
        %3542 = vmatpush1.msra.mxu0 %v3541
        %3543 = vmatprep.subr.mxu0 0.0
        %3544 = vmatpush2.msra.mxu0 0.0
        %3545 = vmatprep.subr.mxu0 0.0
        %3546 = vmatpush2.msra.mxu0 0.0
        %3547 = vmatprep.subr.mxu0 0.0
        %3548 = vmatpush2.msra.mxu0 0.0
        %3549 = vmatprep.subr.mxu0 0.0
        %3550 = vmatpush2.msra.mxu0 0.0
        %3551 = vmatprep.subr.mxu0 0.0
        %3552 = vmatpush2.msra.mxu0 0.0
        %3553 = vmatprep.subr.mxu0 0.0
        %3554 = vmatpush2.msra.mxu0 0.0
        %3555 = vmatprep.subr.mxu0 0.0
        %3556 = vmatpush2.msra.mxu0 0.0
        %3557 = vmatprep.subr.mxu0 0.0
        %3558 = vmatpush2.msra.mxu0 0.0
        %3559 = vmatprep.subr.mxu0 0.0
        %3560 = vmatpush2.msra.mxu0 0.0
        %3561 = vmatprep.subr.mxu0 0.0
        %3562 = vmatpush2.msra.mxu0 0.0
        %3563 = vmatprep.subr.mxu0 0.0
        %3564 = vmatpush2.msra.mxu0 0.0
        %3565 = vmatprep.subr.mxu0 0.0
        %3566 = vmatpush2.msra.mxu0 0.0
        %3567 = vmatprep.subr.mxu0 0.0
        %3568 = vmatpush2.msra.mxu0 0.0
        %3569 = vmatprep.subr.mxu0 0.0
        %3570 = vmatpush2.msra.mxu0 0.0
        %3571 = vmatprep.subr.mxu0 0.0
        %3572 = vmatpush2.msra.mxu0 0.0
        %3573 = vmatprep.subr.mxu0 0.0
        %3574 = vmatpush2.msra.mxu0 0.0
        %3575 = vmatprep.mubr.f32.mxu0 0.0
        %v3576 = vand.u32 %v3255, 4294901760
        %v3577 = vsub.f32 %v3255, %v3576
        %v3578 = vand.u32 %v3577, 4294901760
        %3579 = vmatmul.mubr.f32.gmra.mxu0 %v3578
        %v3580 = vpop.f32.mrf.mxu0
        %v3581 = vadd.f32 %v3504, %v3580
        %v3582 = vpop.f32.mrf.mxu0
        %3583 = vdwg.mxu0
        %3584 = vmatprep.subr.mxu0 0.0
        %3585 = vmatpush1.msra.mxu0 0.0
        %3586 = vmatprep.subr.mxu0 0.0
        %3587 = vmatpush1.msra.mxu0 0.0
        %3588 = vmatprep.subr.mxu0 0.0
        %3589 = vmatpush1.msra.mxu0 0.0
        %3590 = vmatprep.subr.mxu0 0.0
        %3591 = vmatpush1.msra.mxu0 0.0
        %3592 = vmatprep.subr.mxu0 0.0
        %3593 = vmatpush1.msra.mxu0 0.0
        %3594 = vmatprep.subr.mxu0 0.0
        %3595 = vmatpush1.msra.mxu0 0.0
        %3596 = vmatprep.subr.mxu0 0.0
        %3597 = vmatpush1.msra.mxu0 0.0
        %3598 = vmatprep.subr.mxu0 0.0
        %3599 = vmatpush1.msra.mxu0 0.0
        %3600 = vmatprep.subr.mxu0 0.0
        %3601 = vmatpush1.msra.mxu0 0.0
        %3602 = vmatprep.subr.mxu0 0.0
        %3603 = vmatpush1.msra.mxu0 0.0
        %3604 = vmatprep.subr.mxu0 0.0
        %3605 = vmatpush1.msra.mxu0 0.0
        %3606 = vmatprep.subr.mxu0 0.0
        %3607 = vmatpush1.msra.mxu0 0.0
        %3608 = vmatprep.subr.mxu0 0.0
        %v3609 = vand.u32 %v271, 4294901760
        %v3610 = vsub.f32 %v271, %v3609
        %v3611 = vand.u32 %v3610, 4294901760
        %3612 = vmatpush1.msra.mxu0 %v3611
        %3613 = vmatprep.subr.mxu0 0.0
        %v3614 = vand.u32 %v270, 4294901760
        %v3615 = vsub.f32 %v270, %v3614
        %v3616 = vand.u32 %v3615, 4294901760
        %3617 = vmatpush1.msra.mxu0 %v3616
        %3618 = vmatprep.subr.mxu0 0.0
        %v3619 = vand.u32 %v269, 4294901760
        %v3620 = vsub.f32 %v269, %v3619
        %v3621 = vand.u32 %v3620, 4294901760
        %3622 = vmatpush1.msra.mxu0 %v3621
        %3623 = vmatprep.subr.mxu0 0.0
        %v3624 = vand.u32 %v268, 4294901760
        %v3625 = vsub.f32 %v268, %v3624
        %v3626 = vand.u32 %v3625, 4294901760
        %3627 = vmatpush1.msra.mxu0 %v3626
        %3628 = vmatprep.subr.mxu0 0.0
        %3629 = vmatpush2.msra.mxu0 0.0
        %3630 = vmatprep.subr.mxu0 0.0
        %3631 = vmatpush2.msra.mxu0 0.0
        %3632 = vmatprep.subr.mxu0 0.0
        %3633 = vmatpush2.msra.mxu0 0.0
        %3634 = vmatprep.subr.mxu0 0.0
        %3635 = vmatpush2.msra.mxu0 0.0
        %3636 = vmatprep.subr.mxu0 0.0
        %3637 = vmatpush2.msra.mxu0 0.0
        %3638 = vmatprep.subr.mxu0 0.0
        %3639 = vmatpush2.msra.mxu0 0.0
        %3640 = vmatprep.subr.mxu0 0.0
        %3641 = vmatpush2.msra.mxu0 0.0
        %3642 = vmatprep.subr.mxu0 0.0
        %3643 = vmatpush2.msra.mxu0 0.0
        %3644 = vmatprep.subr.mxu0 0.0
        %3645 = vmatpush2.msra.mxu0 0.0
        %3646 = vmatprep.subr.mxu0 0.0
        %3647 = vmatpush2.msra.mxu0 0.0
        %3648 = vmatprep.subr.mxu0 0.0
        %3649 = vmatpush2.msra.mxu0 0.0
        %3650 = vmatprep.subr.mxu0 0.0
        %3651 = vmatpush2.msra.mxu0 0.0
        %3652 = vmatprep.subr.mxu0 0.0
        %3653 = vmatpush2.msra.mxu0 0.0
        %3654 = vmatprep.subr.mxu0 0.0
        %3655 = vmatpush2.msra.mxu0 0.0
        %3656 = vmatprep.subr.mxu0 0.0
        %3657 = vmatpush2.msra.mxu0 0.0
        %3658 = vmatprep.subr.mxu0 0.0
        %3659 = vmatpush2.msra.mxu0 0.0
        %3660 = vmatprep.mubr.f32.mxu0 0.0
        %v3661 = vand.u32 %v3255, 4294901760
        %3662 = vmatmul.mubr.f32.gmra.mxu0 %v3661
        %v3663 = vpop.f32.mrf.mxu0
        %v3664 = vadd.f32 %v3581, %v3663
        %v3665 = vpop.f32.mrf.mxu0
        %3666 = vdwg.mxu0
        %3667 = vmatprep.subr.mxu0 0.0
        %3668 = vmatpush1.msra.mxu0 0.0
        %3669 = vmatprep.subr.mxu0 0.0
        %3670 = vmatpush1.msra.mxu0 0.0
        %3671 = vmatprep.subr.mxu0 0.0
        %3672 = vmatpush1.msra.mxu0 0.0
        %3673 = vmatprep.subr.mxu0 0.0
        %3674 = vmatpush1.msra.mxu0 0.0
        %3675 = vmatprep.subr.mxu0 0.0
        %3676 = vmatpush1.msra.mxu0 0.0
        %3677 = vmatprep.subr.mxu0 0.0
        %3678 = vmatpush1.msra.mxu0 0.0
        %3679 = vmatprep.subr.mxu0 0.0
        %3680 = vmatpush1.msra.mxu0 0.0
        %3681 = vmatprep.subr.mxu0 0.0
        %3682 = vmatpush1.msra.mxu0 0.0
        %3683 = vmatprep.subr.mxu0 0.0
        %3684 = vmatpush1.msra.mxu0 0.0
        %3685 = vmatprep.subr.mxu0 0.0
        %3686 = vmatpush1.msra.mxu0 0.0
        %3687 = vmatprep.subr.mxu0 0.0
        %3688 = vmatpush1.msra.mxu0 0.0
        %3689 = vmatprep.subr.mxu0 0.0
        %3690 = vmatpush1.msra.mxu0 0.0
        %3691 = vmatprep.subr.mxu0 0.0
        %v3692 = vand.u32 %v271, 4294901760
        %3693 = vmatpush1.msra.mxu0 %v3692
        %3694 = vmatprep.subr.mxu0 0.0
        %v3695 = vand.u32 %v270, 4294901760
        %3696 = vmatpush1.msra.mxu0 %v3695
        %3697 = vmatprep.subr.mxu0 0.0
        %v3698 = vand.u32 %v269, 4294901760
        %3699 = vmatpush1.msra.mxu0 %v3698
        %3700 = vmatprep.subr.mxu0 0.0
        %v3701 = vand.u32 %v268, 4294901760
        %3702 = vmatpush1.msra.mxu0 %v3701
        %3703 = vmatprep.subr.mxu0 0.0
        %3704 = vmatpush2.msra.mxu0 0.0
        %3705 = vmatprep.subr.mxu0 0.0
        %3706 = vmatpush2.msra.mxu0 0.0
        %3707 = vmatprep.subr.mxu0 0.0
        %3708 = vmatpush2.msra.mxu0 0.0
        %3709 = vmatprep.subr.mxu0 0.0
        %3710 = vmatpush2.msra.mxu0 0.0
        %3711 = vmatprep.subr.mxu0 0.0
        %3712 = vmatpush2.msra.mxu0 0.0
        %3713 = vmatprep.subr.mxu0 0.0
        %3714 = vmatpush2.msra.mxu0 0.0
        %3715 = vmatprep.subr.mxu0 0.0
        %3716 = vmatpush2.msra.mxu0 0.0
        %3717 = vmatprep.subr.mxu0 0.0
        %3718 = vmatpush2.msra.mxu0 0.0
        %3719 = vmatprep.subr.mxu0 0.0
        %3720 = vmatpush2.msra.mxu0 0.0
        %3721 = vmatprep.subr.mxu0 0.0
        %3722 = vmatpush2.msra.mxu0 0.0
        %3723 = vmatprep.subr.mxu0 0.0
        %3724 = vmatpush2.msra.mxu0 0.0
        %3725 = vmatprep.subr.mxu0 0.0
        %3726 = vmatpush2.msra.mxu0 0.0
        %3727 = vmatprep.subr.mxu0 0.0
        %3728 = vmatpush2.msra.mxu0 0.0
        %3729 = vmatprep.subr.mxu0 0.0
        %3730 = vmatpush2.msra.mxu0 0.0
        %3731 = vmatprep.subr.mxu0 0.0
        %3732 = vmatpush2.msra.mxu0 0.0
        %3733 = vmatprep.subr.mxu0 0.0
        %3734 = vmatpush2.msra.mxu0 0.0
        %3735 = vmatprep.mubr.f32.mxu0 0.0
        %v3736 = vand.u32 %v3255, 4294901760
        %3737 = vmatmul.mubr.f32.gmra.mxu0 %v3736
        %v3738 = vpop.f32.mrf.mxu0
        %v3739 = vadd.f32 %v3664, %v3738
        %v3740 = vpop.f32.mrf.mxu0
        %3741 = vdwg.mxu0
        %v3742 = vmax.f32 %v3245, %v3739
        %s3743 = scalar_lea.vmem %s236, 56 [#allocation2]
        %v3744 = vld [vmem:[%s3743] sm:$0xff]
        %3745 = vset.pattern.permute.xlu0 0
        %3746 = vperm.xlu0 %3745, %v3744
        %v3747 = vpop.permute.xlu0 %3746
        %vm3748 = vcmp.eq.s32.totalorder %v3747, %v260
        %v3749 = vsel %vm3748, 1, 0
        %v3750 = vcvt.s32.f32 %v3749
        %v3752 = vsel %vm272, %v3750, 0
        %3754 = vmatprep.subr.mxu0 0.0
        %3755 = vmatpush1.msra.mxu0 0.0
        %3756 = vmatprep.subr.mxu0 0.0
        %3757 = vmatpush1.msra.mxu0 0.0
        %3758 = vmatprep.subr.mxu0 0.0
        %3759 = vmatpush1.msra.mxu0 0.0
        %3760 = vmatprep.subr.mxu0 0.0
        %3761 = vmatpush1.msra.mxu0 0.0
        %3762 = vmatprep.subr.mxu0 0.0
        %3763 = vmatpush1.msra.mxu0 0.0
        %3764 = vmatprep.subr.mxu0 0.0
        %3765 = vmatpush1.msra.mxu0 0.0
        %3766 = vmatprep.subr.mxu0 0.0
        %3767 = vmatpush1.msra.mxu0 0.0
        %3768 = vmatprep.subr.mxu0 0.0
        %3769 = vmatpush1.msra.mxu0 0.0
        %3770 = vmatprep.subr.mxu0 0.0
        %3771 = vmatpush1.msra.mxu0 0.0
        %3772 = vmatprep.subr.mxu0 0.0
        %3773 = vmatpush1.msra.mxu0 0.0
        %3774 = vmatprep.subr.mxu0 0.0
        %3775 = vmatpush1.msra.mxu0 0.0
        %3776 = vmatprep.subr.mxu0 0.0
        %3777 = vmatpush1.msra.mxu0 0.0
        %3778 = vmatprep.subr.mxu0 0.0
        %v3779 = vand.u32 %v271, 4294901760
        %3780 = vmatpush1.msra.mxu0 %v3779
        %3781 = vmatprep.subr.mxu0 0.0
        %v3782 = vand.u32 %v270, 4294901760
        %3783 = vmatpush1.msra.mxu0 %v3782
        %3784 = vmatprep.subr.mxu0 0.0
        %v3785 = vand.u32 %v269, 4294901760
        %3786 = vmatpush1.msra.mxu0 %v3785
        %3787 = vmatprep.subr.mxu0 0.0
        %v3788 = vand.u32 %v268, 4294901760
        %3789 = vmatpush1.msra.mxu0 %v3788
        %3790 = vmatprep.subr.mxu0 0.0
        %3791 = vmatpush2.msra.mxu0 0.0
        %3792 = vmatprep.subr.mxu0 0.0
        %3793 = vmatpush2.msra.mxu0 0.0
        %3794 = vmatprep.subr.mxu0 0.0
        %3795 = vmatpush2.msra.mxu0 0.0
        %3796 = vmatprep.subr.mxu0 0.0
        %3797 = vmatpush2.msra.mxu0 0.0
        %3798 = vmatprep.subr.mxu0 0.0
        %3799 = vmatpush2.msra.mxu0 0.0
        %3800 = vmatprep.subr.mxu0 0.0
        %3801 = vmatpush2.msra.mxu0 0.0
        %3802 = vmatprep.subr.mxu0 0.0
        %3803 = vmatpush2.msra.mxu0 0.0
        %3804 = vmatprep.subr.mxu0 0.0
        %3805 = vmatpush2.msra.mxu0 0.0
        %3806 = vmatprep.subr.mxu0 0.0
        %3807 = vmatpush2.msra.mxu0 0.0
        %3808 = vmatprep.subr.mxu0 0.0
        %3809 = vmatpush2.msra.mxu0 0.0
        %3810 = vmatprep.subr.mxu0 0.0
        %3811 = vmatpush2.msra.mxu0 0.0
        %3812 = vmatprep.subr.mxu0 0.0
        %3813 = vmatpush2.msra.mxu0 0.0
        %3814 = vmatprep.subr.mxu0 0.0
        %3815 = vmatpush2.msra.mxu0 0.0
        %3816 = vmatprep.subr.mxu0 0.0
        %3817 = vmatpush2.msra.mxu0 0.0
        %3818 = vmatprep.subr.mxu0 0.0
        %3819 = vmatpush2.msra.mxu0 0.0
        %3820 = vmatprep.subr.mxu0 0.0
        %3821 = vmatpush2.msra.mxu0 0.0
        %3822 = vmatprep.mubr.f32.mxu0 0.0
        %v3823 = vand.u32 %v3752, 4294901760
        %v3824 = vsub.f32 %v3752, %v3823
        %v3825 = vand.u32 %v3824, 4294901760
        %v3826 = vsub.f32 %v3824, %v3825
        %v3827 = vand.u32 %v3826, 4294901760
        %3828 = vmatmul.mubr.f32.gmra.mxu0 %v3827
        %v3829 = vpop.f32.mrf.mxu0
        %v3830 = vadd.f32 0.0, %v3829
        %v3831 = vpop.f32.mrf.mxu0
        %3832 = vdwg.mxu0
        %3833 = vmatprep.subr.mxu0 0.0
        %3834 = vmatpush1.msra.mxu0 0.0
        %3835 = vmatprep.subr.mxu0 0.0
        %3836 = vmatpush1.msra.mxu0 0.0
        %3837 = vmatprep.subr.mxu0 0.0
        %3838 = vmatpush1.msra.mxu0 0.0
        %3839 = vmatprep.subr.mxu0 0.0
        %3840 = vmatpush1.msra.mxu0 0.0
        %3841 = vmatprep.subr.mxu0 0.0
        %3842 = vmatpush1.msra.mxu0 0.0
        %3843 = vmatprep.subr.mxu0 0.0
        %3844 = vmatpush1.msra.mxu0 0.0
        %3845 = vmatprep.subr.mxu0 0.0
        %3846 = vmatpush1.msra.mxu0 0.0
        %3847 = vmatprep.subr.mxu0 0.0
        %3848 = vmatpush1.msra.mxu0 0.0
        %3849 = vmatprep.subr.mxu0 0.0
        %3850 = vmatpush1.msra.mxu0 0.0
        %3851 = vmatprep.subr.mxu0 0.0
        %3852 = vmatpush1.msra.mxu0 0.0
        %3853 = vmatprep.subr.mxu0 0.0
        %3854 = vmatpush1.msra.mxu0 0.0
        %3855 = vmatprep.subr.mxu0 0.0
        %3856 = vmatpush1.msra.mxu0 0.0
        %3857 = vmatprep.subr.mxu0 0.0
        %v3858 = vand.u32 %v271, 4294901760
        %v3859 = vsub.f32 %v271, %v3858
        %v3860 = vand.u32 %v3859, 4294901760
        %v3861 = vsub.f32 %v3859, %v3860
        %v3862 = vand.u32 %v3861, 4294901760
        %3863 = vmatpush1.msra.mxu0 %v3862
        %3864 = vmatprep.subr.mxu0 0.0
        %v3865 = vand.u32 %v270, 4294901760
        %v3866 = vsub.f32 %v270, %v3865
        %v3867 = vand.u32 %v3866, 4294901760
        %v3868 = vsub.f32 %v3866, %v3867
        %v3869 = vand.u32 %v3868, 4294901760
        %3870 = vmatpush1.msra.mxu0 %v3869
        %3871 = vmatprep.subr.mxu0 0.0
        %v3872 = vand.u32 %v269, 4294901760
        %v3873 = vsub.f32 %v269, %v3872
        %v3874 = vand.u32 %v3873, 4294901760
        %v3875 = vsub.f32 %v3873, %v3874
        %v3876 = vand.u32 %v3875, 4294901760
        %3877 = vmatpush1.msra.mxu0 %v3876
        %3878 = vmatprep.subr.mxu0 0.0
        %v3879 = vand.u32 %v268, 4294901760
        %v3880 = vsub.f32 %v268, %v3879
        %v3881 = vand.u32 %v3880, 4294901760
        %v3882 = vsub.f32 %v3880, %v3881
        %v3883 = vand.u32 %v3882, 4294901760
        %3884 = vmatpush1.msra.mxu0 %v3883
        %3885 = vmatprep.subr.mxu0 0.0
        %3886 = vmatpush2.msra.mxu0 0.0
        %3887 = vmatprep.subr.mxu0 0.0
        %3888 = vmatpush2.msra.mxu0 0.0
        %3889 = vmatprep.subr.mxu0 0.0
        %3890 = vmatpush2.msra.mxu0 0.0
        %3891 = vmatprep.subr.mxu0 0.0
        %3892 = vmatpush2.msra.mxu0 0.0
        %3893 = vmatprep.subr.mxu0 0.0
        %3894 = vmatpush2.msra.mxu0 0.0
        %3895 = vmatprep.subr.mxu0 0.0
        %3896 = vmatpush2.msra.mxu0 0.0
        %3897 = vmatprep.subr.mxu0 0.0
        %3898 = vmatpush2.msra.mxu0 0.0
        %3899 = vmatprep.subr.mxu0 0.0
        %3900 = vmatpush2.msra.mxu0 0.0
        %3901 = vmatprep.subr.mxu0 0.0
        %3902 = vmatpush2.msra.mxu0 0.0
        %3903 = vmatprep.subr.mxu0 0.0
        %3904 = vmatpush2.msra.mxu0 0.0
        %3905 = vmatprep.subr.mxu0 0.0
        %3906 = vmatpush2.msra.mxu0 0.0
        %3907 = vmatprep.subr.mxu0 0.0
        %3908 = vmatpush2.msra.mxu0 0.0
        %3909 = vmatprep.subr.mxu0 0.0
        %3910 = vmatpush2.msra.mxu0 0.0
        %3911 = vmatprep.subr.mxu0 0.0
        %3912 = vmatpush2.msra.mxu0 0.0
        %3913 = vmatprep.subr.mxu0 0.0
        %3914 = vmatpush2.msra.mxu0 0.0
        %3915 = vmatprep.subr.mxu0 0.0
        %3916 = vmatpush2.msra.mxu0 0.0
        %3917 = vmatprep.mubr.f32.mxu0 0.0
        %v3918 = vand.u32 %v3752, 4294901760
        %3919 = vmatmul.mubr.f32.gmra.mxu0 %v3918
        %v3920 = vpop.f32.mrf.mxu0
        %v3921 = vadd.f32 %v3830, %v3920
        %v3922 = vpop.f32.mrf.mxu0
        %3923 = vdwg.mxu0
        %3924 = vmatprep.subr.mxu0 0.0
        %3925 = vmatpush1.msra.mxu0 0.0
        %3926 = vmatprep.subr.mxu0 0.0
        %3927 = vmatpush1.msra.mxu0 0.0
        %3928 = vmatprep.subr.mxu0 0.0
        %3929 = vmatpush1.msra.mxu0 0.0
        %3930 = vmatprep.subr.mxu0 0.0
        %3931 = vmatpush1.msra.mxu0 0.0
        %3932 = vmatprep.subr.mxu0 0.0
        %3933 = vmatpush1.msra.mxu0 0.0
        %3934 = vmatprep.subr.mxu0 0.0
        %3935 = vmatpush1.msra.mxu0 0.0
        %3936 = vmatprep.subr.mxu0 0.0
        %3937 = vmatpush1.msra.mxu0 0.0
        %3938 = vmatprep.subr.mxu0 0.0
        %3939 = vmatpush1.msra.mxu0 0.0
        %3940 = vmatprep.subr.mxu0 0.0
        %3941 = vmatpush1.msra.mxu0 0.0
        %3942 = vmatprep.subr.mxu0 0.0
        %3943 = vmatpush1.msra.mxu0 0.0
        %3944 = vmatprep.subr.mxu0 0.0
        %3945 = vmatpush1.msra.mxu0 0.0
        %3946 = vmatprep.subr.mxu0 0.0
        %3947 = vmatpush1.msra.mxu0 0.0
        %3948 = vmatprep.subr.mxu0 0.0
        %v3949 = vand.u32 %v271, 4294901760
        %v3950 = vsub.f32 %v271, %v3949
        %3951 = vmatpush1.msra.mxu0 %v3950
        %3952 = vmatprep.subr.mxu0 0.0
        %v3953 = vand.u32 %v270, 4294901760
        %v3954 = vsub.f32 %v270, %v3953
        %3955 = vmatpush1.msra.mxu0 %v3954
        %3956 = vmatprep.subr.mxu0 0.0
        %v3957 = vand.u32 %v269, 4294901760
        %v3958 = vsub.f32 %v269, %v3957
        %3959 = vmatpush1.msra.mxu0 %v3958
        %3960 = vmatprep.subr.mxu0 0.0
        %v3961 = vand.u32 %v268, 4294901760
        %v3962 = vsub.f32 %v268, %v3961
        %3963 = vmatpush1.msra.mxu0 %v3962
        %3964 = vmatprep.subr.mxu0 0.0
        %3965 = vmatpush2.msra.mxu0 0.0
        %3966 = vmatprep.subr.mxu0 0.0
        %3967 = vmatpush2.msra.mxu0 0.0
        %3968 = vmatprep.subr.mxu0 0.0
        %3969 = vmatpush2.msra.mxu0 0.0
        %3970 = vmatprep.subr.mxu0 0.0
        %3971 = vmatpush2.msra.mxu0 0.0
        %3972 = vmatprep.subr.mxu0 0.0
        %3973 = vmatpush2.msra.mxu0 0.0
        %3974 = vmatprep.subr.mxu0 0.0
        %3975 = vmatpush2.msra.mxu0 0.0
        %3976 = vmatprep.subr.mxu0 0.0
        %3977 = vmatpush2.msra.mxu0 0.0
        %3978 = vmatprep.subr.mxu0 0.0
        %3979 = vmatpush2.msra.mxu0 0.0
        %3980 = vmatprep.subr.mxu0 0.0
        %3981 = vmatpush2.msra.mxu0 0.0
        %3982 = vmatprep.subr.mxu0 0.0
        %3983 = vmatpush2.msra.mxu0 0.0
        %3984 = vmatprep.subr.mxu0 0.0
        %3985 = vmatpush2.msra.mxu0 0.0
        %3986 = vmatprep.subr.mxu0 0.0
        %3987 = vmatpush2.msra.mxu0 0.0
        %3988 = vmatprep.subr.mxu0 0.0
        %3989 = vmatpush2.msra.mxu0 0.0
        %3990 = vmatprep.subr.mxu0 0.0
        %3991 = vmatpush2.msra.mxu0 0.0
        %3992 = vmatprep.subr.mxu0 0.0
        %3993 = vmatpush2.msra.mxu0 0.0
        %3994 = vmatprep.subr.mxu0 0.0
        %3995 = vmatpush2.msra.mxu0 0.0
        %3996 = vmatprep.mubr.f32.mxu0 0.0
        %v3997 = vand.u32 %v3752, 4294901760
        %v3998 = vsub.f32 %v3752, %v3997
        %3999 = vmatmul.mubr.f32.gmra.mxu0 %v3998
        %v4000 = vpop.f32.mrf.mxu0
        %v4001 = vadd.f32 %v3921, %v4000
        %v4002 = vpop.f32.mrf.mxu0
        %4003 = vdwg.mxu0
        %4004 = vmatprep.subr.mxu0 0.0
        %4005 = vmatpush1.msra.mxu0 0.0
        %4006 = vmatprep.subr.mxu0 0.0
        %4007 = vmatpush1.msra.mxu0 0.0
        %4008 = vmatprep.subr.mxu0 0.0
        %4009 = vmatpush1.msra.mxu0 0.0
        %4010 = vmatprep.subr.mxu0 0.0
        %4011 = vmatpush1.msra.mxu0 0.0
        %4012 = vmatprep.subr.mxu0 0.0
        %4013 = vmatpush1.msra.mxu0 0.0
        %4014 = vmatprep.subr.mxu0 0.0
        %4015 = vmatpush1.msra.mxu0 0.0
        %4016 = vmatprep.subr.mxu0 0.0
        %4017 = vmatpush1.msra.mxu0 0.0
        %4018 = vmatprep.subr.mxu0 0.0
        %4019 = vmatpush1.msra.mxu0 0.0
        %4020 = vmatprep.subr.mxu0 0.0
        %4021 = vmatpush1.msra.mxu0 0.0
        %4022 = vmatprep.subr.mxu0 0.0
        %4023 = vmatpush1.msra.mxu0 0.0
        %4024 = vmatprep.subr.mxu0 0.0
        %4025 = vmatpush1.msra.mxu0 0.0
        %4026 = vmatprep.subr.mxu0 0.0
        %4027 = vmatpush1.msra.mxu0 0.0
        %4028 = vmatprep.subr.mxu0 0.0
        %v4029 = vand.u32 %v271, 4294901760
        %4030 = vmatpush1.msra.mxu0 %v4029
        %4031 = vmatprep.subr.mxu0 0.0
        %v4032 = vand.u32 %v270, 4294901760
        %4033 = vmatpush1.msra.mxu0 %v4032
        %4034 = vmatprep.subr.mxu0 0.0
        %v4035 = vand.u32 %v269, 4294901760
        %4036 = vmatpush1.msra.mxu0 %v4035
        %4037 = vmatprep.subr.mxu0 0.0
        %v4038 = vand.u32 %v268, 4294901760
        %4039 = vmatpush1.msra.mxu0 %v4038
        %4040 = vmatprep.subr.mxu0 0.0
        %4041 = vmatpush2.msra.mxu0 0.0
        %4042 = vmatprep.subr.mxu0 0.0
        %4043 = vmatpush2.msra.mxu0 0.0
        %4044 = vmatprep.subr.mxu0 0.0
        %4045 = vmatpush2.msra.mxu0 0.0
        %4046 = vmatprep.subr.mxu0 0.0
        %4047 = vmatpush2.msra.mxu0 0.0
        %4048 = vmatprep.subr.mxu0 0.0
        %4049 = vmatpush2.msra.mxu0 0.0
        %4050 = vmatprep.subr.mxu0 0.0
        %4051 = vmatpush2.msra.mxu0 0.0
        %4052 = vmatprep.subr.mxu0 0.0
        %4053 = vmatpush2.msra.mxu0 0.0
        %4054 = vmatprep.subr.mxu0 0.0
        %4055 = vmatpush2.msra.mxu0 0.0
        %4056 = vmatprep.subr.mxu0 0.0
        %4057 = vmatpush2.msra.mxu0 0.0
        %4058 = vmatprep.subr.mxu0 0.0
        %4059 = vmatpush2.msra.mxu0 0.0
        %4060 = vmatprep.subr.mxu0 0.0
        %4061 = vmatpush2.msra.mxu0 0.0
        %4062 = vmatprep.subr.mxu0 0.0
        %4063 = vmatpush2.msra.mxu0 0.0
        %4064 = vmatprep.subr.mxu0 0.0
        %4065 = vmatpush2.msra.mxu0 0.0
        %4066 = vmatprep.subr.mxu0 0.0
        %4067 = vmatpush2.msra.mxu0 0.0
        %4068 = vmatprep.subr.mxu0 0.0
        %4069 = vmatpush2.msra.mxu0 0.0
        %4070 = vmatprep.subr.mxu0 0.0
        %4071 = vmatpush2.msra.mxu0 0.0
        %4072 = vmatprep.mubr.f32.mxu0 0.0
        %v4073 = vand.u32 %v3752, 4294901760
        %v4074 = vsub.f32 %v3752, %v4073
        %v4075 = vand.u32 %v4074, 4294901760
        %4076 = vmatmul.mubr.f32.gmra.mxu0 %v4075
        %v4077 = vpop.f32.mrf.mxu0
        %v4078 = vadd.f32 %v4001, %v4077
        %v4079 = vpop.f32.mrf.mxu0
        %4080 = vdwg.mxu0
        %4081 = vmatprep.subr.mxu0 0.0
        %4082 = vmatpush1.msra.mxu0 0.0
        %4083 = vmatprep.subr.mxu0 0.0
        %4084 = vmatpush1.msra.mxu0 0.0
        %4085 = vmatprep.subr.mxu0 0.0
        %4086 = vmatpush1.msra.mxu0 0.0
        %4087 = vmatprep.subr.mxu0 0.0
        %4088 = vmatpush1.msra.mxu0 0.0
        %4089 = vmatprep.subr.mxu0 0.0
        %4090 = vmatpush1.msra.mxu0 0.0
        %4091 = vmatprep.subr.mxu0 0.0
        %4092 = vmatpush1.msra.mxu0 0.0
        %4093 = vmatprep.subr.mxu0 0.0
        %4094 = vmatpush1.msra.mxu0 0.0
        %4095 = vmatprep.subr.mxu0 0.0
        %4096 = vmatpush1.msra.mxu0 0.0
        %4097 = vmatprep.subr.mxu0 0.0
        %4098 = vmatpush1.msra.mxu0 0.0
        %4099 = vmatprep.subr.mxu0 0.0
        %4100 = vmatpush1.msra.mxu0 0.0
        %4101 = vmatprep.subr.mxu0 0.0
        %4102 = vmatpush1.msra.mxu0 0.0
        %4103 = vmatprep.subr.mxu0 0.0
        %4104 = vmatpush1.msra.mxu0 0.0
        %4105 = vmatprep.subr.mxu0 0.0
        %v4106 = vand.u32 %v271, 4294901760
        %v4107 = vsub.f32 %v271, %v4106
        %v4108 = vand.u32 %v4107, 4294901760
        %4109 = vmatpush1.msra.mxu0 %v4108
        %4110 = vmatprep.subr.mxu0 0.0
        %v4111 = vand.u32 %v270, 4294901760
        %v4112 = vsub.f32 %v270, %v4111
        %v4113 = vand.u32 %v4112, 4294901760
        %4114 = vmatpush1.msra.mxu0 %v4113
        %4115 = vmatprep.subr.mxu0 0.0
        %v4116 = vand.u32 %v269, 4294901760
        %v4117 = vsub.f32 %v269, %v4116
        %v4118 = vand.u32 %v4117, 4294901760
        %4119 = vmatpush1.msra.mxu0 %v4118
        %4120 = vmatprep.subr.mxu0 0.0
        %v4121 = vand.u32 %v268, 4294901760
        %v4122 = vsub.f32 %v268, %v4121
        %v4123 = vand.u32 %v4122, 4294901760
        %4124 = vmatpush1.msra.mxu0 %v4123
        %4125 = vmatprep.subr.mxu0 0.0
        %4126 = vmatpush2.msra.mxu0 0.0
        %4127 = vmatprep.subr.mxu0 0.0
        %4128 = vmatpush2.msra.mxu0 0.0
        %4129 = vmatprep.subr.mxu0 0.0
        %4130 = vmatpush2.msra.mxu0 0.0
        %4131 = vmatprep.subr.mxu0 0.0
        %4132 = vmatpush2.msra.mxu0 0.0
        %4133 = vmatprep.subr.mxu0 0.0
        %4134 = vmatpush2.msra.mxu0 0.0
        %4135 = vmatprep.subr.mxu0 0.0
        %4136 = vmatpush2.msra.mxu0 0.0
        %4137 = vmatprep.subr.mxu0 0.0
        %4138 = vmatpush2.msra.mxu0 0.0
        %4139 = vmatprep.subr.mxu0 0.0
        %4140 = vmatpush2.msra.mxu0 0.0
        %4141 = vmatprep.subr.mxu0 0.0
        %4142 = vmatpush2.msra.mxu0 0.0
        %4143 = vmatprep.subr.mxu0 0.0
        %4144 = vmatpush2.msra.mxu0 0.0
        %4145 = vmatprep.subr.mxu0 0.0
        %4146 = vmatpush2.msra.mxu0 0.0
        %4147 = vmatprep.subr.mxu0 0.0
        %4148 = vmatpush2.msra.mxu0 0.0
        %4149 = vmatprep.subr.mxu0 0.0
        %4150 = vmatpush2.msra.mxu0 0.0
        %4151 = vmatprep.subr.mxu0 0.0
        %4152 = vmatpush2.msra.mxu0 0.0
        %4153 = vmatprep.subr.mxu0 0.0
        %4154 = vmatpush2.msra.mxu0 0.0
        %4155 = vmatprep.subr.mxu0 0.0
        %4156 = vmatpush2.msra.mxu0 0.0
        %4157 = vmatprep.mubr.f32.mxu0 0.0
        %v4158 = vand.u32 %v3752, 4294901760
        %4159 = vmatmul.mubr.f32.gmra.mxu0 %v4158
        %v4160 = vpop.f32.mrf.mxu0
        %v4161 = vadd.f32 %v4078, %v4160
        %v4162 = vpop.f32.mrf.mxu0
        %4163 = vdwg.mxu0
        %4164 = vmatprep.subr.mxu0 0.0
        %4165 = vmatpush1.msra.mxu0 0.0
        %4166 = vmatprep.subr.mxu0 0.0
        %4167 = vmatpush1.msra.mxu0 0.0
        %4168 = vmatprep.subr.mxu0 0.0
        %4169 = vmatpush1.msra.mxu0 0.0
        %4170 = vmatprep.subr.mxu0 0.0
        %4171 = vmatpush1.msra.mxu0 0.0
        %4172 = vmatprep.subr.mxu0 0.0
        %4173 = vmatpush1.msra.mxu0 0.0
        %4174 = vmatprep.subr.mxu0 0.0
        %4175 = vmatpush1.msra.mxu0 0.0
        %4176 = vmatprep.subr.mxu0 0.0
        %4177 = vmatpush1.msra.mxu0 0.0
        %4178 = vmatprep.subr.mxu0 0.0
        %4179 = vmatpush1.msra.mxu0 0.0
        %4180 = vmatprep.subr.mxu0 0.0
        %4181 = vmatpush1.msra.mxu0 0.0
        %4182 = vmatprep.subr.mxu0 0.0
        %4183 = vmatpush1.msra.mxu0 0.0
        %4184 = vmatprep.subr.mxu0 0.0
        %4185 = vmatpush1.msra.mxu0 0.0
        %4186 = vmatprep.subr.mxu0 0.0
        %4187 = vmatpush1.msra.mxu0 0.0
        %4188 = vmatprep.subr.mxu0 0.0
        %v4189 = vand.u32 %v271, 4294901760
        %4190 = vmatpush1.msra.mxu0 %v4189
        %4191 = vmatprep.subr.mxu0 0.0
        %v4192 = vand.u32 %v270, 4294901760
        %4193 = vmatpush1.msra.mxu0 %v4192
        %4194 = vmatprep.subr.mxu0 0.0
        %v4195 = vand.u32 %v269, 4294901760
        %4196 = vmatpush1.msra.mxu0 %v4195
        %4197 = vmatprep.subr.mxu0 0.0
        %v4198 = vand.u32 %v268, 4294901760
        %4199 = vmatpush1.msra.mxu0 %v4198
        %4200 = vmatprep.subr.mxu0 0.0
        %4201 = vmatpush2.msra.mxu0 0.0
        %4202 = vmatprep.subr.mxu0 0.0
        %4203 = vmatpush2.msra.mxu0 0.0
        %4204 = vmatprep.subr.mxu0 0.0
        %4205 = vmatpush2.msra.mxu0 0.0
        %4206 = vmatprep.subr.mxu0 0.0
        %4207 = vmatpush2.msra.mxu0 0.0
        %4208 = vmatprep.subr.mxu0 0.0
        %4209 = vmatpush2.msra.mxu0 0.0
        %4210 = vmatprep.subr.mxu0 0.0
        %4211 = vmatpush2.msra.mxu0 0.0
        %4212 = vmatprep.subr.mxu0 0.0
        %4213 = vmatpush2.msra.mxu0 0.0
        %4214 = vmatprep.subr.mxu0 0.0
        %4215 = vmatpush2.msra.mxu0 0.0
        %4216 = vmatprep.subr.mxu0 0.0
        %4217 = vmatpush2.msra.mxu0 0.0
        %4218 = vmatprep.subr.mxu0 0.0
        %4219 = vmatpush2.msra.mxu0 0.0
        %4220 = vmatprep.subr.mxu0 0.0
        %4221 = vmatpush2.msra.mxu0 0.0
        %4222 = vmatprep.subr.mxu0 0.0
        %4223 = vmatpush2.msra.mxu0 0.0
        %4224 = vmatprep.subr.mxu0 0.0
        %4225 = vmatpush2.msra.mxu0 0.0
        %4226 = vmatprep.subr.mxu0 0.0
        %4227 = vmatpush2.msra.mxu0 0.0
        %4228 = vmatprep.subr.mxu0 0.0
        %4229 = vmatpush2.msra.mxu0 0.0
        %4230 = vmatprep.subr.mxu0 0.0
        %4231 = vmatpush2.msra.mxu0 0.0
        %4232 = vmatprep.mubr.f32.mxu0 0.0
        %v4233 = vand.u32 %v3752, 4294901760
        %4234 = vmatmul.mubr.f32.gmra.mxu0 %v4233
        %v4235 = vpop.f32.mrf.mxu0
        %v4236 = vadd.f32 %v4161, %v4235
        %v4237 = vpop.f32.mrf.mxu0
        %4238 = vdwg.mxu0
        %v4239 = vmax.f32 %v3742, %v4236
        %v4240 = vld [vmem:[%s2] sm:$0xff]
        %v4241 = vld [vmem:[%s2 + $0x8] sm:$0xff]
        %v4242 = vld [vmem:[%s2 + $0x10] sm:$0xff]
        %v4243 = vld [vmem:[%s2 + $0x18] sm:$0xff]
        %v4244 = vld [vmem:[%s3] sm:$0x1]
        %v4246 = vlaneseq
        %v4247 = vshrl.u32 %v4246, 7
        %v4248 = vsub.s32 0, %v4247
        %v4249 = vrot.slane %v4244, %v4248
        %v4252 = vsel %vm272, %v4239, 0
        %4254 = vmatprep.subr.mxu0 0.0
        %4255 = vmatpush1.msra.mxu0 0.0
        %4256 = vmatprep.subr.mxu0 0.0
        %4257 = vmatpush1.msra.mxu0 0.0
        %4258 = vmatprep.subr.mxu0 0.0
        %4259 = vmatpush1.msra.mxu0 0.0
        %4260 = vmatprep.subr.mxu0 0.0
        %4261 = vmatpush1.msra.mxu0 0.0
        %4262 = vmatprep.subr.mxu0 0.0
        %4263 = vmatpush1.msra.mxu0 0.0
        %4264 = vmatprep.subr.mxu0 0.0
        %4265 = vmatpush1.msra.mxu0 0.0
        %4266 = vmatprep.subr.mxu0 0.0
        %4267 = vmatpush1.msra.mxu0 0.0
        %4268 = vmatprep.subr.mxu0 0.0
        %4269 = vmatpush1.msra.mxu0 0.0
        %4270 = vmatprep.subr.mxu0 0.0
        %4271 = vmatpush1.msra.mxu0 0.0
        %4272 = vmatprep.subr.mxu0 0.0
        %4273 = vmatpush1.msra.mxu0 0.0
        %4274 = vmatprep.subr.mxu0 0.0
        %4275 = vmatpush1.msra.mxu0 0.0
        %4276 = vmatprep.subr.mxu0 0.0
        %4277 = vmatpush1.msra.mxu0 0.0
        %4278 = vmatprep.subr.mxu0 0.0
        %4279 = vmatpush1.msra.mxu0 %v4243
        %4280 = vmatprep.subr.mxu0 0.0
        %4281 = vmatpush1.msra.mxu0 %v4242
        %4282 = vmatprep.subr.mxu0 0.0
        %4283 = vmatpush1.msra.mxu0 %v4241
        %4284 = vmatprep.subr.mxu0 0.0
        %4285 = vmatpush1.msra.mxu0 %v4240
        %4286 = vmatprep.subr.mxu0 0.0
        %4287 = vmatpush2.msra.mxu0 0.0
        %4288 = vmatprep.subr.mxu0 0.0
        %4289 = vmatpush2.msra.mxu0 0.0
        %4290 = vmatprep.subr.mxu0 0.0
        %4291 = vmatpush2.msra.mxu0 0.0
        %4292 = vmatprep.subr.mxu0 0.0
        %4293 = vmatpush2.msra.mxu0 0.0
        %4294 = vmatprep.subr.mxu0 0.0
        %4295 = vmatpush2.msra.mxu0 0.0
        %4296 = vmatprep.subr.mxu0 0.0
        %4297 = vmatpush2.msra.mxu0 0.0
        %4298 = vmatprep.subr.mxu0 0.0
        %4299 = vmatpush2.msra.mxu0 0.0
        %4300 = vmatprep.subr.mxu0 0.0
        %4301 = vmatpush2.msra.mxu0 0.0
        %4302 = vmatprep.subr.mxu0 0.0
        %4303 = vmatpush2.msra.mxu0 0.0
        %4304 = vmatprep.subr.mxu0 0.0
        %4305 = vmatpush2.msra.mxu0 0.0
        %4306 = vmatprep.subr.mxu0 0.0
        %4307 = vmatpush2.msra.mxu0 0.0
        %4308 = vmatprep.subr.mxu0 0.0
        %4309 = vmatpush2.msra.mxu0 0.0
        %4310 = vmatprep.subr.mxu0 0.0
        %4311 = vmatpush2.msra.mxu0 0.0
        %4312 = vmatprep.subr.mxu0 0.0
        %4313 = vmatpush2.msra.mxu0 0.0
        %4314 = vmatprep.subr.mxu0 0.0
        %4315 = vmatpush2.msra.mxu0 0.0
        %4316 = vmatprep.subr.mxu0 0.0
        %4317 = vmatpush2.msra.mxu0 0.0
        %4318 = vmatprep.mubr.f32.mxu0 0.0
        %4319 = vmatmul.mubr.f32.gmra.mxu0 %v4252
        %v4320 = vpop.f32.mrf.mxu0
        %v4321 = vadd.f32 %v4249, %v4320
        %v4322 = vpop.f32.mrf.mxu0
        %4323 = vdwg.mxu0
        %4324 = vst [vmem:[%s258] sm:$0xff] %v4321
        %s4325 = sand.u32 %s115, 1
        %s4326 = scalar_lea.sflag [#allocation4], %s4325
        %s4327 = sand.u32 %s115, 1
        %s4328 = smul.addr %s4327, 8
        %s4329 = scalar_lea.vmem [#allocation3], %s4328
        // Predicated region
        $region75: #{tpu_custom_call.1} parent=69 // pred_check
          %p4330 = pneg %p125
        $region76: #{tpu_custom_call.1} parent=69 // pred_check_branch
          %4332 = sbr.rel (%p4330) target = $region78
        $region77: #{tpu_custom_call.1} parent=69 // pred_region
          %s4334 = ssub.s32 128, 128
          %4335 = vsyncadd %s4326, %s4334
          %s4336 = smul.addr %s18, 128
          %s4337 = scalar_lea.hbm %s4, %s4336
          %s4339 = sshll.u32 %s4329, 4
          %s4340 = int_to_ptr.vmem [resolvable:$true] %s4339
          %4342 = dma.vmem_to_hbm [thread:$0]  %s4340, 128, %s4337, %s4326
        $region78: #{tpu_custom_call.1} parent=69 // pred_fallthru
          _
      $region70: #{tpu_custom_call.1} parent=5 // pred_fallthru
        _
      %p4343 = scmp.le.s32.totalorder 2, %s13
      // Predicated region
      $region79: #{tpu_custom_call.1} parent=5 // pred_check
        %p4344 = pneg %p4343
      $region80: #{tpu_custom_call.1} parent=5 // pred_check_branch
        %4346 = sbr.rel (%p4344) target = $region82
      $region81: #{tpu_custom_call.1} parent=5 // pred_region
        %s4347 = ssub.s32 %s13, 2
        // Predicated region
        $region83: #{tpu_custom_call.1} parent=81 // pred_check
          %p4348 = pneg %p131
        $region84: #{tpu_custom_call.1} parent=81 // pred_check_branch
          %4350 = sbr.rel (%p4348) target = $region86
        $region85: #{tpu_custom_call.1} parent=81 // pred_region
          %s4351 = sand.u32 %s116, 1
          %s4352 = scalar_lea.sflag [#allocation4], %s4351
          %s4353 = sand.u32 %s116, 1
          %s4354 = smul.addr %s4353, 8
          %s4355 = scalar_lea.vmem [#allocation3], %s4354
          %4356 = dma.done %s4352, 128
        $region86: #{tpu_custom_call.1} parent=81 // pred_fallthru
          _
      $region82: #{tpu_custom_call.1} parent=5 // pred_fallthru
        _
    $region6: #{tpu_custom_call.1} parent=1 // loop_footer
      %s17 = sadd.s32 1, %s13
    $region7: #{tpu_custom_call.1} parent=1 // loop_footer_branch
      %12 = sbr.rel target = $region3
    $region8: #{tpu_custom_call.1} parent=1 // loop_exit
      _
    %4357 = vsyncpa [#allocation4], 1
    %s4358 = scalar_lea.sflag [#allocation4], 1
    %4359 = vsyncpa %s4358, 1

</llo_original>
